<compile_context>
chip_gen: v7x
topology: tpu7x:2x2x1
jax: 0.10.0
libtpu: 0.0.40
codegen_flags: <defaults>
</compile_context>

<pallas_src>
import math

import jax
import jax.numpy as jnp
from jax.experimental import pallas as pl
from jax.experimental.pallas import tpu as pltpu


# ----------------------------------------------------------------------------
# Fused ConvLSTM cell kernel: im2col matmul + gate nonlinearities + state update
# ----------------------------------------------------------------------------
def _convlstm_kernel(x_ref, w_ref, b_ref, cprev_ref, h_ref, cnew_ref, acc_ref):
    """Grid = (j: hidden-channel blocks, m: row blocks, k: reduction blocks).

    x_ref:     (tm, tk)        im2col LHS block, bf16
    w_ref:     (1, tk, 4*tc)   gate-concatenated weights (in|rem|out|cell), bf16
    b_ref:     (1, 1, 4*tc)    gate bias, f32
    cprev_ref: (tm, tc)        previous cell state, f32
    h_ref:     (tm, tc)        new hidden state (output), f32
    cnew_ref:  (tm, tc)        new cell state (output), f32
    acc_ref:   (tm, 4*tc)      f32 gate pre-activation accumulator (scratch)
    """
    k = pl.program_id(2)

    partial = jnp.dot(x_ref[...], w_ref[0],
                      preferred_element_type=jnp.float32)        # (tm, 4*tc)

    @pl.when(k == 0)
    def _():
        acc_ref[...] = partial + b_ref[0]       # bias-initialized accumulator

    @pl.when(k > 0)
    def _():
        acc_ref[...] += partial

    @pl.when(k == pl.num_programs(2) - 1)
    def _():
        tc = h_ref.shape[-1]
        g = acc_ref[...]
        in_g = jax.nn.sigmoid(g[:, 0 * tc:1 * tc])
        rem_g = jax.nn.sigmoid(g[:, 1 * tc:2 * tc])
        out_g = jax.nn.sigmoid(g[:, 2 * tc:3 * tc])
        cell_g = jnp.tanh(g[:, 3 * tc:4 * tc])
        c_new = rem_g * cprev_ref[...] + in_g * cell_g
        h_ref[...] = (out_g * jnp.tanh(c_new)).astype(h_ref.dtype)
        cnew_ref[...] = c_new.astype(cnew_ref.dtype)


# ----------------------------------------------------------------------------
# Tiling heuristics
# ----------------------------------------------------------------------------
def _pick_tm(m):
    # Prefer >=2 parallel M blocks (keeps the 2nd TensorCore busy when the
    # hidden-channel axis yields a single block), rows a multiple of 8.
    for tm in (256, 128, 64, 32, 16, 8):
        if m % tm == 0 and m // tm >= 2:
            return tm
    return m


def _pick_tk(k_dim, n_cols, budget_bytes=4 * 1024 * 1024):
    # Largest divisor of K that is a multiple of 128 and keeps the bf16 weight
    # block under `budget_bytes` (so double-buffering fits v5e's scoped VMEM).
    for i in range(1, k_dim // 128 + 1):
        if k_dim % i:
            continue
        tk = k_dim // i
        if tk % 128:
            continue
        if tk * n_cols * 2 <= budget_bytes:
            return tk
    return 128 if k_dim % 128 == 0 else k_dim


# ----------------------------------------------------------------------------
# Wrapper (matches ConvLSTMCell.forward semantics)
# ----------------------------------------------------------------------------
def conv_lstm_cell(weight, bias, input_nchw, prev_state=None):
    """Forward of ConvLSTMCell.

    weight:     (4*Ch, Cin+Ch, 3, 3)   PyTorch Gates conv weight (OIHW)
    bias:       (4*Ch,)
    input_nchw: (N, Cin, H, W)
    prev_state: None or (prev_hidden, prev_cell), each (N, Ch, H, W)
    returns     (hidden, cell), each (N, Ch, H, W) float32
    """
    n, cin, h, w = input_nchw.shape
    c4, ctot, kh, kw = weight.shape
    ch = c4 // 4
    assert kh == 3 and kw == 3 and ctot == cin + ch

    if prev_state is None:
        zeros = jnp.zeros((n, ch, h, w), jnp.float32)
        prev_state = (zeros, zeros)
    prev_h, prev_c = prev_state

    m = n * h * w
    k_raw = 9 * ctot
    k_pad = ((k_raw + 127) // 128) * 128     # pad K to a lane-aligned multiple

    # Hidden-channel tile: lane-dense 128 (matmul N = 4*tc = 512 fills the MXU);
    # fall back to the full dim for small / odd hidden sizes.
    tc = 128 if ch % 128 == 0 else ch
    n_j = ch // tc
    tm = _pick_tm(m)
    n_m = m // tm
    tk = _pick_tk(k_pad, 4 * tc)
    n_k = k_pad // tk

    # --- im2col LHS: NCHW -> NHWC, stack [input | prev_hidden], pad spatial by 1,
    #     gather the 9 shifted windows along channels -> (M, K), bf16 MXU operand.
    x_nhwc = jnp.transpose(input_nchw.astype(jnp.float32), (0, 2, 3, 1))
    h_nhwc = jnp.transpose(prev_h.astype(jnp.float32), (0, 2, 3, 1))
    stacked = jnp.concatenate([x_nhwc, h_nhwc], axis=-1)          # (N, H, W, Ctot)
    x_sp = jnp.pad(stacked, ((0, 0), (1, 1), (1, 1), (0, 0)))     # (N, H+2, W+2, Ctot)
    cols = [x_sp[:, a:a + h, b:b + w, :] for a in range(3) for b in range(3)]
    x_col = jnp.concatenate(cols, axis=-1).reshape(m, k_raw)
    if k_pad > k_raw:
        x_col = jnp.pad(x_col, ((0, 0), (0, k_pad - k_raw)))
    x_col = x_col.astype(jnp.bfloat16)

    # --- weights: (4*Ch, Ctot, 3, 3) OIHW, gate order = chunk(4, dim=1)
    #     -> (n_j, K, 4*tc) with K row = (a*3+b)*Ctot + cin, col = g*tc + c_local.
    w5 = weight.astype(jnp.float32).reshape(4, ch, ctot, 3, 3)    # (g, oc, ic, a, b)
    w5 = jnp.transpose(w5, (3, 4, 2, 0, 1))                       # (a, b, ic, g, oc)
    wk = w5.reshape(k_raw, 4, ch)
    if k_pad > k_raw:
        wk = jnp.pad(wk, ((0, k_pad - k_raw), (0, 0), (0, 0)))
    wk = wk.reshape(k_pad, 4, n_j, tc)
    w_packed = jnp.transpose(wk, (2, 0, 1, 3)).reshape(n_j, k_pad, 4 * tc)
    w_packed = w_packed.astype(jnp.bfloat16)

    # --- bias: (4*Ch,) -> (n_j, 1, 4*tc), f32 (stays f32 end-to-end).
    b_packed = bias.astype(jnp.float32).reshape(4, n_j, tc)
    b_packed = jnp.transpose(b_packed, (1, 0, 2)).reshape(n_j, 1, 4 * tc)

    # --- previous cell state in the kernel's (M, Ch) layout, f32.
    c_prev2d = jnp.transpose(prev_c.astype(jnp.float32), (0, 2, 3, 1)).reshape(m, ch)

    hid2d, cell2d = pl.pallas_call(
        _convlstm_kernel,
        out_shape=(jax.ShapeDtypeStruct((m, ch), jnp.float32),
                   jax.ShapeDtypeStruct((m, ch), jnp.float32)),
        grid_spec=pltpu.PrefetchScalarGridSpec(
            num_scalar_prefetch=0,
            grid=(n_j, n_m, n_k),
            in_specs=[
                pl.BlockSpec((tm, tk), lambda j, mi, k: (mi, k)),          # im2col LHS
                pl.BlockSpec((1, tk, 4 * tc), lambda j, mi, k: (j, k, 0)),  # weights
                pl.BlockSpec((1, 1, 4 * tc), lambda j, mi, k: (j, 0, 0)),   # bias
                pl.BlockSpec((tm, tc), lambda j, mi, k: (mi, j)),           # prev cell
            ],
            out_specs=(pl.BlockSpec((tm, tc), lambda j, mi, k: (mi, j)),
                       pl.BlockSpec((tm, tc), lambda j, mi, k: (mi, j))),
            scratch_shapes=[pltpu.VMEM((tm, 4 * tc), jnp.float32)],
        ),
        compiler_params=pltpu.CompilerParams(
            dimension_semantics=("parallel", "parallel", "arbitrary"),
            vmem_limit_bytes=32 * 1024 * 1024),
    )(x_col, w_packed, b_packed, c_prev2d)

    hidden = jnp.transpose(hid2d.reshape(n, h, w, ch), (0, 3, 1, 2))
    cell = jnp.transpose(cell2d.reshape(n, h, w, ch), (0, 3, 1, 2))
    return hidden, cell


# ----------------------------------------------------------------------------
# Pure-JAX reference (correctness check)
# ----------------------------------------------------------------------------
def conv_lstm_cell_ref(weight, bias, input_nchw, prev_state):
    prev_h, prev_c = prev_state
    stacked = jnp.concatenate([input_nchw, prev_h], axis=1)
    gates = jax.lax.conv_general_dilated(
        stacked, weight, window_strides=(1, 1), padding=((1, 1), (1, 1)),
        dimension_numbers=("NCHW", "OIHW", "NCHW"))
    gates = gates + bias[None, :, None, None]
    in_g, rem_g, out_g, cell_g = jnp.split(gates, 4, axis=1)
    in_g = jax.nn.sigmoid(in_g)
    rem_g = jax.nn.sigmoid(rem_g)
    out_g = jax.nn.sigmoid(out_g)
    cell_g = jnp.tanh(cell_g)
    cell = rem_g * prev_c + in_g * cell_g
    hidden = out_g * jnp.tanh(cell)
    return hidden, cell


# ----------------------------------------------------------------------------
if __name__ == "__main__":
    key = jax.random.PRNGKey(0)
    k_w, k_b, k_x, k_h, k_c = jax.random.split(key, 5)

    # Small shapes consistent with the module (MRNet uses ConvLSTMCell(512, 512)
    # on 8x8); hidden=128 keeps the output tiles lane-dense, M=512 gives 2
    # parallel row blocks.
    N, CIN, CH, H, W = 2, 64, 128, 16, 16
    fan_in = (CIN + CH) * 9
    bound = 1.0 / math.sqrt(fan_in)
    weight = jax.random.normal(k_w, (4 * CH, CIN + CH, 3, 3), jnp.float32) * bound
    bias = jax.random.uniform(k_b, (4 * CH,), jnp.float32, -bound, bound)

    x = jax.random.normal(k_x, (N, CIN, H, W), jnp.float32)
    prev_h = jax.random.normal(k_h, (N, CH, H, W), jnp.float32)
    prev_c = jax.random.normal(k_c, (N, CH, H, W), jnp.float32)

    fwd = jax.jit(conv_lstm_cell)
    hidden, cell = fwd(weight, bias, x, (prev_h, prev_c))
    hidden = jax.block_until_ready(hidden)
    cell = jax.block_until_ready(cell)

    assert hidden.shape == (N, CH, H, W), hidden.shape
    assert cell.shape == (N, CH, H, W), cell.shape
    assert bool(jnp.all(jnp.isfinite(hidden))) and bool(jnp.all(jnp.isfinite(cell)))

    h_ref, c_ref = conv_lstm_cell_ref(weight, bias, x, (prev_h, prev_c))
    err_h = float(jnp.max(jnp.abs(hidden - h_ref)))
    err_c = float(jnp.max(jnp.abs(cell - c_ref)))
    # bf16 MXU operands with f32 accumulation -> small, bounded error
    assert err_h < 0.1 and err_c < 0.1, (err_h, err_c)

    print("KERNEL_OK")
</pallas_src>

<mosaic_0001>
module attributes {stable_mosaic.version = 11 : i64} {
  func.func @_convlstm_kernel(%arg0: i32, %arg1: i32, %arg2: i32, %arg3: memref<256x1792xbf16, #tpu.memory_space<vmem>>, %arg4: memref<1x1792x512xbf16, #tpu.memory_space<vmem>>, %arg5: memref<1x1x512xf32, #tpu.memory_space<vmem>>, %arg6: memref<256x128xf32, #tpu.memory_space<vmem>>, %arg7: memref<256x128xf32, #tpu.memory_space<vmem>>, %arg8: memref<256x128xf32, #tpu.memory_space<vmem>>, %arg9: memref<256x512xf32, #tpu.memory_space<vmem>>) attributes {dimension_semantics = [#tpu.dimension_semantics<parallel>, #tpu.dimension_semantics<parallel>, #tpu.dimension_semantics<arbitrary>], iteration_bounds = array<i64: 1, 2, 1>, scalar_prefetch = 0 : i64, scratch_operands = 1 : i64, tpu.core_type = #tpu.core_type<tc>, window_params = [{transform_indices = @transform_0, window_bounds = array<i64: 256, 1792>}, {transform_indices = @transform_1, window_bounds = array<i64: 1, 1792, 512>}, {transform_indices = @transform_2, window_bounds = array<i64: 1, 1, 512>}, {transform_indices = @transform_3, window_bounds = array<i64: 256, 128>}, {transform_indices = @transform_4, window_bounds = array<i64: 256, 128>}, {transform_indices = @transform_5, window_bounds = array<i64: 256, 128>}]} {
    %c0 = arith.constant 0 : index
    %c0_0 = arith.constant 0 : index
    %0 = vector.load %arg3[%c0, %c0_0] : memref<256x1792xbf16, #tpu.memory_space<vmem>>, vector<256x1792xbf16>
    %c0_1 = arith.constant 0 : index
    %c0_2 = arith.constant 0 : index
    %c0_3 = arith.constant 0 : index
    %1 = vector.load %arg4[%c0_1, %c0_2, %c0_3] : memref<1x1792x512xbf16, #tpu.memory_space<vmem>>, vector<1x1792x512xbf16>
    %2 = vector.shape_cast %1 : vector<1x1792x512xbf16> to vector<1792x512xbf16>
    %cst = arith.constant dense<0.000000e+00> : vector<256x512xf32>
    %3 = tpu.matmul %0, %2, %cst {dimension_numbers = #tpu.dot_dimension_numbers<[1], [0], [0], [1], [0, 0, 1, 1], [], []>} : vector<256x1792xbf16>, vector<1792x512xbf16>, vector<256x512xf32> -> vector<256x512xf32>
    %c0_i32 = arith.constant 0 : i32
    %4 = arith.cmpi eq, %arg2, %c0_i32 : i32
    %5 = arith.extui %4 : i1 to i32
    %c0_i32_4 = arith.constant 0 : i32
    %6 = arith.cmpi ne, %5, %c0_i32_4 : i32
    scf.if %6 {
      %c0_9 = arith.constant 0 : index
      %c0_10 = arith.constant 0 : index
      %c0_11 = arith.constant 0 : index
      %13 = vector.load %arg5[%c0_9, %c0_10, %c0_11] : memref<1x1x512xf32, #tpu.memory_space<vmem>>, vector<1x1x512xf32>
      %14 = vector.shape_cast %13 : vector<1x1x512xf32> to vector<1x512xf32>
      %15 = vector.broadcast %14 : vector<1x512xf32> to vector<256x512xf32>
      %16 = arith.addf %3, %15 : vector<256x512xf32>
      %c0_12 = arith.constant 0 : index
      %c0_13 = arith.constant 0 : index
      %17 = vector.load %arg9[%c0_12, %c0_13] : memref<256x512xf32, #tpu.memory_space<vmem>>, vector<256x512xf32>
      tpu.vector_store %arg9[%c0_12, %c0_13], %16 {strides = array<i32>} : memref<256x512xf32, #tpu.memory_space<vmem>>, vector<256x512xf32>,
    } else {
    }
    %c0_i32_5 = arith.constant 0 : i32
    %7 = arith.cmpi sgt, %arg2, %c0_i32_5 : i32
    %8 = arith.extui %7 : i1 to i32
    %c0_i32_6 = arith.constant 0 : i32
    %9 = arith.cmpi ne, %8, %c0_i32_6 : i32
    scf.if %9 {
      %c0_9 = arith.constant 0 : index
      %c0_10 = arith.constant 0 : index
      %13 = vector.load %arg9[%c0_9, %c0_10] : memref<256x512xf32, #tpu.memory_space<vmem>>, vector<256x512xf32>
      %14 = arith.addf %13, %3 : vector<256x512xf32>
      %c0_11 = arith.constant 0 : index
      %c0_12 = arith.constant 0 : index
      %15 = vector.load %arg9[%c0_11, %c0_12] : memref<256x512xf32, #tpu.memory_space<vmem>>, vector<256x512xf32>
      tpu.vector_store %arg9[%c0_11, %c0_12], %14 {strides = array<i32>} : memref<256x512xf32, #tpu.memory_space<vmem>>, vector<256x512xf32>,
    } else {
    }
    %c0_i32_7 = arith.constant 0 : i32
    %10 = arith.cmpi eq, %arg2, %c0_i32_7 : i32
    %11 = arith.extui %10 : i1 to i32
    %c0_i32_8 = arith.constant 0 : i32
    %12 = arith.cmpi ne, %11, %c0_i32_8 : i32
    scf.if %12 {
      %c0_9 = arith.constant 0 : index
      %c0_10 = arith.constant 0 : index
      %13 = vector.load %arg9[%c0_9, %c0_10] : memref<256x512xf32, #tpu.memory_space<vmem>>, vector<256x512xf32>
      %14 = vector.extract_strided_slice %13 {offsets = [0, 0], sizes = [256, 128], strides = [1, 1]} : vector<256x512xf32> to vector<256x128xf32>
      %15 = arith.negf %14 : vector<256x128xf32>
      %16 = math.exp %15 : vector<256x128xf32>
      %cst_11 = arith.constant 1.000000e+00 : f32
      %17 = vector.broadcast %cst_11 : f32 to vector<256x128xf32>
      %18 = arith.addf %17, %16 : vector<256x128xf32>
      %19 = arith.divf %17, %18 : vector<256x128xf32>
      %20 = vector.extract_strided_slice %13 {offsets = [0, 128], sizes = [256, 128], strides = [1, 1]} : vector<256x512xf32> to vector<256x128xf32>
      %21 = arith.negf %20 : vector<256x128xf32>
      %22 = math.exp %21 : vector<256x128xf32>
      %cst_12 = arith.constant 1.000000e+00 : f32
      %23 = vector.broadcast %cst_12 : f32 to vector<256x128xf32>
      %24 = arith.addf %23, %22 : vector<256x128xf32>
      %25 = arith.divf %23, %24 : vector<256x128xf32>
      %26 = vector.extract_strided_slice %13 {offsets = [0, 256], sizes = [256, 128], strides = [1, 1]} : vector<256x512xf32> to vector<256x128xf32>
      %27 = arith.negf %26 : vector<256x128xf32>
      %28 = math.exp %27 : vector<256x128xf32>
      %cst_13 = arith.constant 1.000000e+00 : f32
      %29 = vector.broadcast %cst_13 : f32 to vector<256x128xf32>
      %30 = arith.addf %29, %28 : vector<256x128xf32>
      %31 = arith.divf %29, %30 : vector<256x128xf32>
      %32 = vector.extract_strided_slice %13 {offsets = [0, 384], sizes = [256, 128], strides = [1, 1]} : vector<256x512xf32> to vector<256x128xf32>
      %33 = math.tanh %32 : vector<256x128xf32>
      %c0_14 = arith.constant 0 : index
      %c0_15 = arith.constant 0 : index
      %34 = vector.load %arg6[%c0_14, %c0_15] : memref<256x128xf32, #tpu.memory_space<vmem>>, vector<256x128xf32>
      %35 = arith.mulf %25, %34 : vector<256x128xf32>
      %36 = arith.mulf %19, %33 : vector<256x128xf32>
      %37 = arith.addf %35, %36 : vector<256x128xf32>
      %38 = math.tanh %37 : vector<256x128xf32>
      %39 = arith.mulf %31, %38 : vector<256x128xf32>
      %c0_16 = arith.constant 0 : index
      %c0_17 = arith.constant 0 : index
      %40 = vector.load %arg7[%c0_16, %c0_17] : memref<256x128xf32, #tpu.memory_space<vmem>>, vector<256x128xf32>
      tpu.vector_store %arg7[%c0_16, %c0_17], %39 {strides = array<i32>} : memref<256x128xf32, #tpu.memory_space<vmem>>, vector<256x128xf32>,
      %c0_18 = arith.constant 0 : index
      %c0_19 = arith.constant 0 : index
      %41 = vector.load %arg8[%c0_18, %c0_19] : memref<256x128xf32, #tpu.memory_space<vmem>>, vector<256x128xf32>
      tpu.vector_store %arg8[%c0_18, %c0_19], %37 {strides = array<i32>} : memref<256x128xf32, #tpu.memory_space<vmem>>, vector<256x128xf32>,
    } else {
    }
    return
  }
  func.func @transform_0(%arg0: i32, %arg1: i32, %arg2: i32) -> (i32, i32) {
    %c0_i32 = arith.constant 0 : i32
    return %arg1, %arg2 : i32, i32
  }
  func.func @transform_1(%arg0: i32, %arg1: i32, %arg2: i32) -> (i32, i32, i32) {
    %c0_i32 = arith.constant 0 : i32
    %c0_i32_0 = arith.constant 0 : i32
    return %arg0, %arg2, %c0_i32 : i32, i32, i32
  }
  func.func @transform_2(%arg0: i32, %arg1: i32, %arg2: i32) -> (i32, i32, i32) {
    %c0_i32 = arith.constant 0 : i32
    %c0_i32_0 = arith.constant 0 : i32
    %c0_i32_1 = arith.constant 0 : i32
    return %arg0, %c0_i32, %c0_i32_0 : i32, i32, i32
  }
  func.func @transform_3(%arg0: i32, %arg1: i32, %arg2: i32) -> (i32, i32) {
    %c0_i32 = arith.constant 0 : i32
    return %arg1, %arg0 : i32, i32
  }
  func.func @transform_4(%arg0: i32, %arg1: i32, %arg2: i32) -> (i32, i32) {
    %c0_i32 = arith.constant 0 : i32
    return %arg1, %arg0 : i32, i32
  }
  func.func @transform_5(%arg0: i32, %arg1: i32, %arg2: i32) -> (i32, i32) {
    %c0_i32 = arith.constant 0 : i32
    return %arg1, %arg0 : i32, i32
  }
}

</mosaic_0001>

<llo_original>
// kernel: conv_lstm_cell.1
$region0: #{conv_lstm_cell.1}
  #allocation0 [shape = 'u32[]', space=smem, size = 0x4, offset = 0x4, fixed_abs, tag = 'smem constant byte address 0x4 - core index']
  #allocation1 [shape = 'u32[144,128]{1,0:T(1,128)}', space=vmem, size = 0x12000, scoped, tag = 'internal scratch']
  #allocation2 [shape = 'f32[256,512]{1,0:T(8,128)}', space=vmem, size = 0x80000, scoped, tag = 'scratch operand']
  %s0 = inlined_call_operand.vmem [shape: bf16[512,1792], index: 0, kind: input, shape index: {}]
  %s1 = inlined_call_operand.vmem [shape: bf16[1,1792,512], index: 1, kind: input, shape index: {}]
  %s2 = inlined_call_operand.vmem [shape: f32[1,1,512], index: 2, kind: input, shape index: {}]
  %s3 = inlined_call_operand.vmem [shape: f32[512,128], index: 3, kind: input, shape index: {}]
  %s4 = inlined_call_operand.hbm [shape: f32[512,128], index: 4, kind: output, shape index: {0}]
  %s5 = inlined_call_operand.hbm [shape: f32[512,128], index: 5, kind: output, shape index: {1}]
  %6 = xla_tuple %s4, %s5
  %s7 = sld [smem:[#allocation0]]
  $region69: #{conv_lstm_cell.1} parent=0
    _
  %s9 = ssub.s32 1, %s7
  %s10 = scalar_select 0, %s9, %s7
  $region1: #{conv_lstm_cell.1} parent=0
    #allocation3 [shape = 'u8[262144]{0}', space=vmem, size = 0x40000, scoped, tag = 'output window, operand 0']
    #allocation4 [shape = 's32[2]{0}', space=sflag, size = 0x8, scoped, tag = 'scoped memory for conv_lstm_cell.1']
    #allocation5 [shape = 'u8[262144]{0}', space=vmem, size = 0x40000, scoped, tag = 'output window, operand 1']
    #allocation6 [shape = 's32[2]{0}', space=sflag, size = 0x8, scoped, tag = 'scoped memory for conv_lstm_cell.1']
    %11 = vsyncpa [#allocation4], 0
    %s12 = scalar_lea.sflag [#allocation4], 1
    %13 = vsyncpa %s12, 0
    %14 = vsyncpa [#allocation6], 0
    %s15 = scalar_lea.sflag [#allocation6], 1
    %16 = vsyncpa %s15, 0
    loop: start=0, step=1, limit=4
    $region2: #{conv_lstm_cell.1} parent=1 // loop_pre_header
      _
    $region3: #{conv_lstm_cell.1} parent=1 // loop_header
      %s18 = sphi 0, %s22
      %p19 = scmp.ge.s32.totalorder %s18, 4
      %s25 = sphi 0, %s44
      %s26 = sphi 0, %s40
      %s27 = sphi 0, %s36
      %s28 = sphi 0, %s25
      %s29 = sphi 0, %s26
      %s30 = sphi 0, %s27
      %s31 = sphi 0, %s28
      %s32 = sphi 0, %s29
      %s33 = sphi 0, %s30
      %s49 = sphi 0, %s51
      %s52 = sphi 0, %s49
      %s53 = sphi 0, %s52
      %s69 = sphi 0, %s53
      %s77 = sphi 0, %s79
      %s80 = sphi 0, %s77
      %s81 = sphi 0, %s80
      %s97 = sphi 0, %s81
      %s103 = sphi 0, %s105
      %s106 = sphi 0, %s103
      %s107 = sphi 0, %s106
      %s123 = sphi 0, %s107
      %s131 = sphi 0, %s133
      %s134 = sphi 0, %s131
      %s135 = sphi 0, %s134
      %s151 = sphi 0, %s135
      %s159 = sphi 0, %s161
      %s162 = sphi 0, %s159
      %s163 = sphi 0, %s162
      %s179 = sphi 0, %s163
      %s187 = sphi 0, %s189
      %s190 = sphi 0, %s187
      %s191 = sphi 0, %s190
      %s207 = sphi 0, %s191
    $region4: #{conv_lstm_cell.1} parent=1 // loop_header_branch
      %21 = sbr.rel (%p19) target = $region8
    $region5: #{conv_lstm_cell.1} parent=1 // loop_body
      %s23 = ssub.s32 %s18, 1
      %s24 = ssub.s32 %s18, 2
      %s34 = sadd.s32 1, %s27
      %p35 = scmp.ge.s32.totalorder %s34, 1
      %s36 = scalar_select %p35, 0, %s34
      %s37 = sadd.s32 1, %s26
      %s38 = scalar_select %p35, %s37, %s26
      %p39 = scmp.ge.s32.totalorder %s38, 2
      %s40 = scalar_select %p39, 0, %s38
      %s41 = sadd.s32 1, %s25
      %s42 = scalar_select %p39, %s41, %s25
      %p43 = scmp.ge.s32.totalorder %s42, 1
      %s44 = scalar_select %p43, 0, %s42
      %s45 = ssub.s32 %s26, %s40
      %s46 = ssub.s32 %s27, %s36
      %s47 = sor.u32 %s45, %s46
      %p48 = scmp.eq.s32.totalorder %s47, 0
      %s50 = sadd.s32 %s49, 1
      %s51 = scalar_select %p48, %s49, %s50
      %p54 = pneg %p48
      %p55 = scmp.eq.s32.totalorder %s18, 1
      %p56 = por %p54, %p55
      %p57 = scmp.ne.s32.totalorder %s49, %s52
      %p58 = scmp.eq.s32.totalorder %s18, 0
      %p59 = por %p57, %p58
      %p60 = scmp.ne.s32.totalorder %s49, %s52
      %p61 = scmp.eq.s32.totalorder %s23, 1
      %p62 = por %p60, %p61
      %p63 = scmp.ne.s32.totalorder %s52, %s53
      %p64 = scmp.eq.s32.totalorder %s23, 0
      %p65 = por %p63, %p64
      %p66 = scmp.ne.s32.totalorder %s52, %s53
      %p67 = scmp.eq.s32.totalorder %s24, 1
      %p68 = por %p66, %p67
      %p70 = scmp.ne.s32.totalorder %s53, %s69
      %p71 = scmp.eq.s32.totalorder %s24, 0
      %p72 = por %p70, %p71
      %s73 = ssub.s32 %s25, %s44
      %s74 = ssub.s32 %s27, %s36
      %s75 = sor.u32 %s73, %s74
      %p76 = scmp.eq.s32.totalorder %s75, 0
      %s78 = sadd.s32 %s77, 1
      %s79 = scalar_select %p76, %s77, %s78
      %p82 = pneg %p76
      %p83 = scmp.eq.s32.totalorder %s18, 1
      %p84 = por %p82, %p83
      %p85 = scmp.ne.s32.totalorder %s77, %s80
      %p86 = scmp.eq.s32.totalorder %s18, 0
      %p87 = por %p85, %p86
      %p88 = scmp.ne.s32.totalorder %s77, %s80
      %p89 = scmp.eq.s32.totalorder %s23, 1
      %p90 = por %p88, %p89
      %p91 = scmp.ne.s32.totalorder %s80, %s81
      %p92 = scmp.eq.s32.totalorder %s23, 0
      %p93 = por %p91, %p92
      %p94 = scmp.ne.s32.totalorder %s80, %s81
      %p95 = scmp.eq.s32.totalorder %s24, 1
      %p96 = por %p94, %p95
      %p98 = scmp.ne.s32.totalorder %s81, %s97
      %p99 = scmp.eq.s32.totalorder %s24, 0
      %p100 = por %p98, %p99
      %s101 = ssub.s32 %s25, %s44
      %p102 = scmp.eq.s32.totalorder %s101, 0
      %s104 = sadd.s32 %s103, 1
      %s105 = scalar_select %p102, %s103, %s104
      %p108 = pneg %p102
      %p109 = scmp.eq.s32.totalorder %s18, 1
      %p110 = por %p108, %p109
      %p111 = scmp.ne.s32.totalorder %s103, %s106
      %p112 = scmp.eq.s32.totalorder %s18, 0
      %p113 = por %p111, %p112
      %p114 = scmp.ne.s32.totalorder %s103, %s106
      %p115 = scmp.eq.s32.totalorder %s23, 1
      %p116 = por %p114, %p115
      %p117 = scmp.ne.s32.totalorder %s106, %s107
      %p118 = scmp.eq.s32.totalorder %s23, 0
      %p119 = por %p117, %p118
      %p120 = scmp.ne.s32.totalorder %s106, %s107
      %p121 = scmp.eq.s32.totalorder %s24, 1
      %p122 = por %p120, %p121
      %p124 = scmp.ne.s32.totalorder %s107, %s123
      %p125 = scmp.eq.s32.totalorder %s24, 0
      %p126 = por %p124, %p125
      %s127 = ssub.s32 %s26, %s40
      %s128 = ssub.s32 %s25, %s44
      %s129 = sor.u32 %s127, %s128
      %p130 = scmp.eq.s32.totalorder %s129, 0
      %s132 = sadd.s32 %s131, 1
      %s133 = scalar_select %p130, %s131, %s132
      %p136 = pneg %p130
      %p137 = scmp.eq.s32.totalorder %s18, 1
      %p138 = por %p136, %p137
      %p139 = scmp.ne.s32.totalorder %s131, %s134
      %p140 = scmp.eq.s32.totalorder %s18, 0
      %p141 = por %p139, %p140
      %p142 = scmp.ne.s32.totalorder %s131, %s134
      %p143 = scmp.eq.s32.totalorder %s23, 1
      %p144 = por %p142, %p143
      %p145 = scmp.ne.s32.totalorder %s134, %s135
      %p146 = scmp.eq.s32.totalorder %s23, 0
      %p147 = por %p145, %p146
      %p148 = scmp.ne.s32.totalorder %s134, %s135
      %p149 = scmp.eq.s32.totalorder %s24, 1
      %p150 = por %p148, %p149
      %p152 = scmp.ne.s32.totalorder %s135, %s151
      %p153 = scmp.eq.s32.totalorder %s24, 0
      %p154 = por %p152, %p153
      %s155 = ssub.s32 %s26, %s40
      %s156 = ssub.s32 %s25, %s44
      %s157 = sor.u32 %s155, %s156
      %p158 = scmp.eq.s32.totalorder %s157, 0
      %s160 = sadd.s32 %s159, 1
      %s161 = scalar_select %p158, %s159, %s160
      %p164 = pneg %p158
      %p165 = scmp.eq.s32.totalorder %s18, 1
      %p166 = por %p164, %p165
      %p167 = scmp.ne.s32.totalorder %s159, %s162
      %p168 = scmp.eq.s32.totalorder %s18, 0
      %p169 = por %p167, %p168
      %p170 = scmp.ne.s32.totalorder %s159, %s162
      %p171 = scmp.eq.s32.totalorder %s23, 1
      %p172 = por %p170, %p171
      %p173 = scmp.ne.s32.totalorder %s162, %s163
      %p174 = scmp.eq.s32.totalorder %s23, 0
      %p175 = por %p173, %p174
      %p176 = scmp.ne.s32.totalorder %s162, %s163
      %p177 = scmp.eq.s32.totalorder %s24, 1
      %p178 = por %p176, %p177
      %p180 = scmp.ne.s32.totalorder %s163, %s179
      %p181 = scmp.eq.s32.totalorder %s24, 0
      %p182 = por %p180, %p181
      %s183 = ssub.s32 %s26, %s40
      %s184 = ssub.s32 %s25, %s44
      %s185 = sor.u32 %s183, %s184
      %p186 = scmp.eq.s32.totalorder %s185, 0
      %s188 = sadd.s32 %s187, 1
      %s189 = scalar_select %p186, %s187, %s188
      %p192 = pneg %p186
      %p193 = scmp.eq.s32.totalorder %s18, 1
      %p194 = por %p192, %p193
      %p195 = scmp.ne.s32.totalorder %s187, %s190
      %p196 = scmp.eq.s32.totalorder %s18, 0
      %p197 = por %p195, %p196
      %p198 = scmp.ne.s32.totalorder %s187, %s190
      %p199 = scmp.eq.s32.totalorder %s23, 1
      %p200 = por %p198, %p199
      %p201 = scmp.ne.s32.totalorder %s190, %s191
      %p202 = scmp.eq.s32.totalorder %s23, 0
      %p203 = por %p201, %p202
      %p204 = scmp.ne.s32.totalorder %s190, %s191
      %p205 = scmp.eq.s32.totalorder %s24, 1
      %p206 = por %p204, %p205
      %p208 = scmp.ne.s32.totalorder %s191, %s207
      %p209 = scmp.eq.s32.totalorder %s24, 0
      %p210 = por %p208, %p209
      %p211 = scmp.le.s32.totalorder 1, %s18
      %p212 = scmp.lt.s32.totalorder %s18, 3
      %p213 = pnand %p211, %p212
      %p214 = pneg %p213
      // Predicated region
      $region9: #{conv_lstm_cell.1} parent=5 // pred_check
        _
      $region10: #{conv_lstm_cell.1} parent=5 // pred_check_branch
        %216 = sbr.rel (%p213) target = $region12
      $region11: #{conv_lstm_cell.1} parent=5 // pred_region
        %s217 = ssub.s32 %s18, 1
        // Predicated region
        $region13: #{conv_lstm_cell.1} parent=11 // pred_check
          %p218 = pneg %p93
        $region14: #{conv_lstm_cell.1} parent=11 // pred_check_branch
          %220 = sbr.rel (%p218) target = $region16
        $region15: #{conv_lstm_cell.1} parent=11 // pred_region
          %s221 = smul.u32 224, %s30
          %p222 = scmp.lt.s32.totalorder %s28, 0
          %s223 = scalar_select %p222, %s28, 0
          %p224 = scmp.lt.s32.totalorder %s221, 223
          %s225 = scalar_select %p224, %s221, 223
          %s226 = smul.addr %s225, 4
          %s227 = smul.addr %s223, 896
          %s228 = sadd.s32 %s226, %s227
          %s229 = smul.addr %s228, 4
          %s230 = scalar_lea.vmem %s1, %s229
          %s231 = smul.u32 224, %s30
        $region16: #{conv_lstm_cell.1} parent=11 // pred_fallthru
          _
        // Predicated region
        $region17: #{conv_lstm_cell.1} parent=11 // pred_check
          %p232 = pneg %p119
        $region18: #{conv_lstm_cell.1} parent=11 // pred_check_branch
          %234 = sbr.rel (%p232) target = $region20
        $region19: #{conv_lstm_cell.1} parent=11 // pred_region
          %p235 = scmp.lt.s32.totalorder %s28, 0
          %s236 = scalar_select %p235, %s28, 0
          %s237 = smul.addr %s236, 4
          %s238 = scalar_lea.vmem %s2, %s237
        $region20: #{conv_lstm_cell.1} parent=11 // pred_fallthru
          _
      $region12: #{conv_lstm_cell.1} parent=5 // pred_fallthru
        _
      %p239 = scmp.lt.s32.totalorder %s18, 2
      // Predicated region
      $region21: #{conv_lstm_cell.1} parent=5 // pred_check
        %p240 = pneg %p239
      $region22: #{conv_lstm_cell.1} parent=5 // pred_check_branch
        %242 = sbr.rel (%p240) target = $region24
      $region23: #{conv_lstm_cell.1} parent=5 // pred_region
        // Predicated region
        $region25: #{conv_lstm_cell.1} parent=23 // pred_check
          %p243 = pneg %p59
        $region26: #{conv_lstm_cell.1} parent=23 // pred_check_branch
          %245 = sbr.rel (%p243) target = $region28
        $region27: #{conv_lstm_cell.1} parent=23 // pred_region
          %s246 = smul.u32 32, %s26
          %s247 = smul.u32 14, %s27
          %p248 = scmp.lt.s32.totalorder %s246, 63
          %s249 = scalar_select %p248, %s246, 63
          %p250 = scmp.lt.s32.totalorder %s247, 13
          %s251 = scalar_select %p250, %s247, 13
          %s252 = smul.addr %s249, 14
          %s253 = sadd.s32 %s251, %s252
          %s254 = smul.addr %s253, 4
          %s255 = scalar_lea.vmem %s0, %s254
          %s256 = smul.u32 32, %s26
          %s257 = smul.u32 14, %s27
        $region28: #{conv_lstm_cell.1} parent=23 // pred_fallthru
          _
        // Predicated region
        $region29: #{conv_lstm_cell.1} parent=23 // pred_check
          %p258 = pneg %p141
        $region30: #{conv_lstm_cell.1} parent=23 // pred_check_branch
          %260 = sbr.rel (%p258) target = $region32
        $region31: #{conv_lstm_cell.1} parent=23 // pred_region
          %s261 = smul.u32 32, %s26
          %p262 = scmp.lt.s32.totalorder %s261, 63
          %s263 = scalar_select %p262, %s261, 63
          %p264 = scmp.lt.s32.totalorder %s25, 0
          %s265 = scalar_select %p264, %s25, 0
          %s266 = sadd.s32 %s265, %s263
          %s267 = smul.addr %s266, 8
          %s268 = scalar_lea.vmem %s3, %s267
          %s269 = smul.u32 32, %s26
        $region32: #{conv_lstm_cell.1} parent=23 // pred_fallthru
          _
      $region24: #{conv_lstm_cell.1} parent=5 // pred_fallthru
        _
      %p270 = scmp.le.s32.totalorder 1, %s18
      %p271 = scmp.lt.s32.totalorder %s18, 3
      %p272 = pnand %p270, %p271
      %p273 = pneg %p272
      // Predicated region
      $region33: #{conv_lstm_cell.1} parent=5 // pred_check
        _
      $region34: #{conv_lstm_cell.1} parent=5 // pred_check_branch
        %275 = sbr.rel (%p272) target = $region36
      $region35: #{conv_lstm_cell.1} parent=5 // pred_region
        %s276 = ssub.s32 %s18, 1
        %s277 = smul.u32 32, %s29
        %s278 = smul.u32 14, %s30
        %p279 = scmp.lt.s32.totalorder %s277, 63
        %s280 = scalar_select %p279, %s277, 63
        %p281 = scmp.lt.s32.totalorder %s278, 13
        %s282 = scalar_select %p281, %s278, 13
        %s283 = smul.addr %s280, 14
        %s284 = sadd.s32 %s282, %s283
        %s285 = smul.addr %s284, 4
        %s286 = scalar_lea.vmem %s0, %s285
        %p287 = pneg %p65
        %p288 = pneg %p62
        %s289 = smul.u32 224, %s30
        %p290 = scmp.lt.s32.totalorder %s28, 0
        %s291 = scalar_select %p290, %s28, 0
        %p292 = scmp.lt.s32.totalorder %s289, 223
        %s293 = scalar_select %p292, %s289, 223
        %s294 = smul.addr %s293, 4
        %s295 = smul.addr %s291, 896
        %s296 = sadd.s32 %s294, %s295
        %s297 = smul.addr %s296, 4
        %s298 = scalar_lea.vmem %s1, %s297
        %p299 = pneg %p93
        %p300 = pneg %p90
        %p301 = scmp.lt.s32.totalorder %s28, 0
        %s302 = scalar_select %p301, %s28, 0
        %s303 = smul.addr %s302, 4
        %s304 = scalar_lea.vmem %s2, %s303
        %p305 = pneg %p119
        %p306 = pneg %p116
        %s307 = smul.u32 32, %s29
        %p308 = scmp.lt.s32.totalorder %s307, 63
        %s309 = scalar_select %p308, %s307, 63
        %p310 = scmp.lt.s32.totalorder %s28, 0
        %s311 = scalar_select %p310, %s28, 0
        %s312 = sadd.s32 %s311, %s309
        %s313 = smul.addr %s312, 8
        %s314 = scalar_lea.vmem %s3, %s313
        %p315 = pneg %p147
        %p316 = pneg %p144
        %p317 = pneg %p175
        %p318 = pneg %p172
        %s319 = sand.u32 %s162, 1
        %s320 = scalar_lea.sflag [#allocation4], %s319
        %s321 = sand.u32 %s162, 1
        %s322 = smul.addr %s321, 256
        %s323 = scalar_lea.vmem [#allocation3], %s322
        %p324 = pneg %p203
        %p325 = pneg %p200
        %s326 = sand.u32 %s190, 1
        %s327 = scalar_lea.sflag [#allocation6], %s326
        %s328 = sand.u32 %s190, 1
        %s329 = smul.addr %s328, 256
        %s330 = scalar_lea.vmem [#allocation5], %s329
        %s331 = smul.u32 32, %s29
        %s332 = smul.u32 14, %s30
        %p333 = scmp.lt.s32.totalorder %s331, 63
        %s334 = scalar_select %p333, %s331, 63
        %p335 = scmp.lt.s32.totalorder %s332, 13
        %s336 = scalar_select %p335, %s332, 13
        %s337 = smul.addr %s334, 14
        %s338 = sadd.s32 %s336, %s337
        %s339 = smul.addr %s338, 4
        %s340 = scalar_lea.vmem %s0, %s339
        %s341 = smul.u32 32, %s29
        %s342 = smul.u32 14, %s30
        %s343 = smul.u32 224, %s30
        %p344 = scmp.lt.s32.totalorder %s28, 0
        %s345 = scalar_select %p344, %s28, 0
        %p346 = scmp.lt.s32.totalorder %s343, 223
        %s347 = scalar_select %p346, %s343, 223
        %s348 = smul.addr %s347, 4
        %s349 = smul.addr %s345, 896
        %s350 = sadd.s32 %s348, %s349
        %s351 = smul.addr %s350, 4
        %s352 = scalar_lea.vmem %s1, %s351
        %s353 = smul.u32 224, %s30
        %p354 = scmp.lt.s32.totalorder %s28, 0
        %s355 = scalar_select %p354, %s28, 0
        %s356 = smul.addr %s355, 4
        %s357 = scalar_lea.vmem %s2, %s356
        %s358 = smul.u32 32, %s29
        %p359 = scmp.lt.s32.totalorder %s358, 63
        %s360 = scalar_select %p359, %s358, 63
        %p361 = scmp.lt.s32.totalorder %s28, 0
        %s362 = scalar_select %p361, %s28, 0
        %s363 = sadd.s32 %s362, %s360
        %s364 = smul.addr %s363, 8
        %s365 = scalar_lea.vmem %s3, %s364
        %s366 = smul.u32 32, %s29
        %s367 = smul.u32 32, %s29
        %s368 = smul.u32 32, %s29
        %v369 = vld [vmem:[%s340] sm:$0xff]
        %v370 = vld [vmem:[%s340 + $0x8] sm:$0xff]
        %v371 = vld [vmem:[%s340 + $0x10] sm:$0xff]
        %v372 = vld [vmem:[%s340 + $0x18] sm:$0xff]
        %v373 = vld [vmem:[%s340 + $0x20] sm:$0xff]
        %v374 = vld [vmem:[%s340 + $0x28] sm:$0xff]
        %v375 = vld [vmem:[%s340 + $0x30] sm:$0xff]
        %v376 = vld [vmem:[%s340 + $0x38] sm:$0xff]
        %v377 = vld [vmem:[%s340 + $0x40] sm:$0xff]
        %v378 = vld [vmem:[%s340 + $0x48] sm:$0xff]
        %v379 = vld [vmem:[%s340 + $0x50] sm:$0xff]
        %v380 = vld [vmem:[%s340 + $0x58] sm:$0xff]
        %v381 = vld [vmem:[%s340 + $0x60] sm:$0xff]
        %v382 = vld [vmem:[%s340 + $0x68] sm:$0xff]
        %v383 = vld [vmem:[%s340 + $0x70] sm:$0xff]
        %v384 = vld [vmem:[%s340 + $0x78] sm:$0xff]
        %v385 = vld [vmem:[%s340 + $0x80] sm:$0xff]
        %v386 = vld [vmem:[%s340 + $0x88] sm:$0xff]
        %v387 = vld [vmem:[%s340 + $0x90] sm:$0xff]
        %v388 = vld [vmem:[%s340 + $0x98] sm:$0xff]
        %v389 = vld [vmem:[%s340 + $0xa0] sm:$0xff]
        %v390 = vld [vmem:[%s340 + $0xa8] sm:$0xff]
        %v391 = vld [vmem:[%s340 + $0xb0] sm:$0xff]
        %v392 = vld [vmem:[%s340 + $0xb8] sm:$0xff]
        %v393 = vld [vmem:[%s340 + $0xc0] sm:$0xff]
        %v394 = vld [vmem:[%s340 + $0xc8] sm:$0xff]
        %v395 = vld [vmem:[%s340 + $0xd0] sm:$0xff]
        %v396 = vld [vmem:[%s340 + $0xd8] sm:$0xff]
        %v397 = vld [vmem:[%s340 + $0xe0] sm:$0xff]
        %v398 = vld [vmem:[%s340 + $0xe8] sm:$0xff]
        %v399 = vld [vmem:[%s340 + $0xf0] sm:$0xff]
        %v400 = vld [vmem:[%s340 + $0xf8] sm:$0xff]
        %v401 = vld [vmem:[%s340 + $0x100] sm:$0xff]
        %v402 = vld [vmem:[%s340 + $0x108] sm:$0xff]
        %v403 = vld [vmem:[%s340 + $0x110] sm:$0xff]
        %v404 = vld [vmem:[%s340 + $0x118] sm:$0xff]
        %v405 = vld [vmem:[%s340 + $0x120] sm:$0xff]
        %v406 = vld [vmem:[%s340 + $0x128] sm:$0xff]
        %v407 = vld [vmem:[%s340 + $0x130] sm:$0xff]
        %v408 = vld [vmem:[%s340 + $0x138] sm:$0xff]
        %v409 = vld [vmem:[%s340 + $0x140] sm:$0xff]
        %v410 = vld [vmem:[%s340 + $0x148] sm:$0xff]
        %v411 = vld [vmem:[%s340 + $0x150] sm:$0xff]
        %v412 = vld [vmem:[%s340 + $0x158] sm:$0xff]
        %v413 = vld [vmem:[%s340 + $0x160] sm:$0xff]
        %v414 = vld [vmem:[%s340 + $0x168] sm:$0xff]
        %v415 = vld [vmem:[%s340 + $0x170] sm:$0xff]
        %v416 = vld [vmem:[%s340 + $0x178] sm:$0xff]
        %v417 = vld [vmem:[%s340 + $0x180] sm:$0xff]
        %v418 = vld [vmem:[%s340 + $0x188] sm:$0xff]
        %v419 = vld [vmem:[%s340 + $0x190] sm:$0xff]
        %v420 = vld [vmem:[%s340 + $0x198] sm:$0xff]
        %v421 = vld [vmem:[%s340 + $0x1a0] sm:$0xff]
        %v422 = vld [vmem:[%s340 + $0x1a8] sm:$0xff]
        %v423 = vld [vmem:[%s340 + $0x1b0] sm:$0xff]
        %v424 = vld [vmem:[%s340 + $0x1b8] sm:$0xff]
        %v425 = vld [vmem:[%s340 + $0x1c0] sm:$0xff]
        %v426 = vld [vmem:[%s340 + $0x1c8] sm:$0xff]
        %v427 = vld [vmem:[%s340 + $0x1d0] sm:$0xff]
        %v428 = vld [vmem:[%s340 + $0x1d8] sm:$0xff]
        %v429 = vld [vmem:[%s340 + $0x1e0] sm:$0xff]
        %v430 = vld [vmem:[%s340 + $0x1e8] sm:$0xff]
        %v431 = vld [vmem:[%s340 + $0x1f0] sm:$0xff]
        %v432 = vld [vmem:[%s340 + $0x1f8] sm:$0xff]
        %v433 = vld [vmem:[%s340 + $0x200] sm:$0xff]
        %v434 = vld [vmem:[%s340 + $0x208] sm:$0xff]
        %v435 = vld [vmem:[%s340 + $0x210] sm:$0xff]
        %v436 = vld [vmem:[%s340 + $0x218] sm:$0xff]
        %v437 = vld [vmem:[%s340 + $0x220] sm:$0xff]
        %v438 = vld [vmem:[%s340 + $0x228] sm:$0xff]
        %v439 = vld [vmem:[%s340 + $0x230] sm:$0xff]
        %v440 = vld [vmem:[%s340 + $0x238] sm:$0xff]
        %v441 = vld [vmem:[%s340 + $0x240] sm:$0xff]
        %v442 = vld [vmem:[%s340 + $0x248] sm:$0xff]
        %v443 = vld [vmem:[%s340 + $0x250] sm:$0xff]
        %v444 = vld [vmem:[%s340 + $0x258] sm:$0xff]
        %v445 = vld [vmem:[%s340 + $0x260] sm:$0xff]
        %v446 = vld [vmem:[%s340 + $0x268] sm:$0xff]
        %v447 = vld [vmem:[%s340 + $0x270] sm:$0xff]
        %v448 = vld [vmem:[%s340 + $0x278] sm:$0xff]
        %v449 = vld [vmem:[%s340 + $0x280] sm:$0xff]
        %v450 = vld [vmem:[%s340 + $0x288] sm:$0xff]
        %v451 = vld [vmem:[%s340 + $0x290] sm:$0xff]
        %v452 = vld [vmem:[%s340 + $0x298] sm:$0xff]
        %v453 = vld [vmem:[%s340 + $0x2a0] sm:$0xff]
        %v454 = vld [vmem:[%s340 + $0x2a8] sm:$0xff]
        %v455 = vld [vmem:[%s340 + $0x2b0] sm:$0xff]
        %v456 = vld [vmem:[%s340 + $0x2b8] sm:$0xff]
        %v457 = vld [vmem:[%s340 + $0x2c0] sm:$0xff]
        %v458 = vld [vmem:[%s340 + $0x2c8] sm:$0xff]
        %v459 = vld [vmem:[%s340 + $0x2d0] sm:$0xff]
        %v460 = vld [vmem:[%s340 + $0x2d8] sm:$0xff]
        %v461 = vld [vmem:[%s340 + $0x2e0] sm:$0xff]
        %v462 = vld [vmem:[%s340 + $0x2e8] sm:$0xff]
        %v463 = vld [vmem:[%s340 + $0x2f0] sm:$0xff]
        %v464 = vld [vmem:[%s340 + $0x2f8] sm:$0xff]
        %v465 = vld [vmem:[%s340 + $0x300] sm:$0xff]
        %v466 = vld [vmem:[%s340 + $0x308] sm:$0xff]
        %v467 = vld [vmem:[%s340 + $0x310] sm:$0xff]
        %v468 = vld [vmem:[%s340 + $0x318] sm:$0xff]
        %v469 = vld [vmem:[%s340 + $0x320] sm:$0xff]
        %v470 = vld [vmem:[%s340 + $0x328] sm:$0xff]
        %v471 = vld [vmem:[%s340 + $0x330] sm:$0xff]
        %v472 = vld [vmem:[%s340 + $0x338] sm:$0xff]
        %v473 = vld [vmem:[%s340 + $0x340] sm:$0xff]
        %v474 = vld [vmem:[%s340 + $0x348] sm:$0xff]
        %v475 = vld [vmem:[%s340 + $0x350] sm:$0xff]
        %v476 = vld [vmem:[%s340 + $0x358] sm:$0xff]
        %v477 = vld [vmem:[%s340 + $0x360] sm:$0xff]
        %v478 = vld [vmem:[%s340 + $0x368] sm:$0xff]
        %v479 = vld [vmem:[%s340 + $0x370] sm:$0xff]
        %v480 = vld [vmem:[%s340 + $0x378] sm:$0xff]
        %v481 = vld [vmem:[%s340 + $0x380] sm:$0xff]
        %v482 = vld [vmem:[%s340 + $0x388] sm:$0xff]
        %v483 = vld [vmem:[%s340 + $0x390] sm:$0xff]
        %v484 = vld [vmem:[%s340 + $0x398] sm:$0xff]
        %v485 = vld [vmem:[%s340 + $0x3a0] sm:$0xff]
        %v486 = vld [vmem:[%s340 + $0x3a8] sm:$0xff]
        %v487 = vld [vmem:[%s340 + $0x3b0] sm:$0xff]
        %v488 = vld [vmem:[%s340 + $0x3b8] sm:$0xff]
        %v489 = vld [vmem:[%s340 + $0x3c0] sm:$0xff]
        %v490 = vld [vmem:[%s340 + $0x3c8] sm:$0xff]
        %v491 = vld [vmem:[%s340 + $0x3d0] sm:$0xff]
        %v492 = vld [vmem:[%s340 + $0x3d8] sm:$0xff]
        %v493 = vld [vmem:[%s340 + $0x3e0] sm:$0xff]
        %v494 = vld [vmem:[%s340 + $0x3e8] sm:$0xff]
        %v495 = vld [vmem:[%s340 + $0x3f0] sm:$0xff]
        %v496 = vld [vmem:[%s340 + $0x3f8] sm:$0xff]
        %v497 = vld [vmem:[%s340 + $0x400] sm:$0xff]
        %v498 = vld [vmem:[%s340 + $0x408] sm:$0xff]
        %v499 = vld [vmem:[%s340 + $0x410] sm:$0xff]
        %v500 = vld [vmem:[%s340 + $0x418] sm:$0xff]
        %v501 = vld [vmem:[%s340 + $0x420] sm:$0xff]
        %v502 = vld [vmem:[%s340 + $0x428] sm:$0xff]
        %v503 = vld [vmem:[%s340 + $0x430] sm:$0xff]
        %v504 = vld [vmem:[%s340 + $0x438] sm:$0xff]
        %v505 = vld [vmem:[%s340 + $0x440] sm:$0xff]
        %v506 = vld [vmem:[%s340 + $0x448] sm:$0xff]
        %v507 = vld [vmem:[%s340 + $0x450] sm:$0xff]
        %v508 = vld [vmem:[%s340 + $0x458] sm:$0xff]
        %v509 = vld [vmem:[%s340 + $0x460] sm:$0xff]
        %v510 = vld [vmem:[%s340 + $0x468] sm:$0xff]
        %v511 = vld [vmem:[%s340 + $0x470] sm:$0xff]
        %v512 = vld [vmem:[%s340 + $0x478] sm:$0xff]
        %v513 = vld [vmem:[%s340 + $0x480] sm:$0xff]
        %v514 = vld [vmem:[%s340 + $0x488] sm:$0xff]
        %v515 = vld [vmem:[%s340 + $0x490] sm:$0xff]
        %v516 = vld [vmem:[%s340 + $0x498] sm:$0xff]
        %v517 = vld [vmem:[%s340 + $0x4a0] sm:$0xff]
        %v518 = vld [vmem:[%s340 + $0x4a8] sm:$0xff]
        %v519 = vld [vmem:[%s340 + $0x4b0] sm:$0xff]
        %v520 = vld [vmem:[%s340 + $0x4b8] sm:$0xff]
        %v521 = vld [vmem:[%s340 + $0x4c0] sm:$0xff]
        %v522 = vld [vmem:[%s340 + $0x4c8] sm:$0xff]
        %v523 = vld [vmem:[%s340 + $0x4d0] sm:$0xff]
        %v524 = vld [vmem:[%s340 + $0x4d8] sm:$0xff]
        %v525 = vld [vmem:[%s340 + $0x4e0] sm:$0xff]
        %v526 = vld [vmem:[%s340 + $0x4e8] sm:$0xff]
        %v527 = vld [vmem:[%s340 + $0x4f0] sm:$0xff]
        %v528 = vld [vmem:[%s340 + $0x4f8] sm:$0xff]
        %v529 = vld [vmem:[%s340 + $0x500] sm:$0xff]
        %v530 = vld [vmem:[%s340 + $0x508] sm:$0xff]
        %v531 = vld [vmem:[%s340 + $0x510] sm:$0xff]
        %v532 = vld [vmem:[%s340 + $0x518] sm:$0xff]
        %v533 = vld [vmem:[%s340 + $0x520] sm:$0xff]
        %v534 = vld [vmem:[%s340 + $0x528] sm:$0xff]
        %v535 = vld [vmem:[%s340 + $0x530] sm:$0xff]
        %v536 = vld [vmem:[%s340 + $0x538] sm:$0xff]
        %v537 = vld [vmem:[%s340 + $0x540] sm:$0xff]
        %v538 = vld [vmem:[%s340 + $0x548] sm:$0xff]
        %v539 = vld [vmem:[%s340 + $0x550] sm:$0xff]
        %v540 = vld [vmem:[%s340 + $0x558] sm:$0xff]
        %v541 = vld [vmem:[%s340 + $0x560] sm:$0xff]
        %v542 = vld [vmem:[%s340 + $0x568] sm:$0xff]
        %v543 = vld [vmem:[%s340 + $0x570] sm:$0xff]
        %v544 = vld [vmem:[%s340 + $0x578] sm:$0xff]
        %v545 = vld [vmem:[%s340 + $0x580] sm:$0xff]
        %v546 = vld [vmem:[%s340 + $0x588] sm:$0xff]
        %v547 = vld [vmem:[%s340 + $0x590] sm:$0xff]
        %v548 = vld [vmem:[%s340 + $0x598] sm:$0xff]
        %v549 = vld [vmem:[%s340 + $0x5a0] sm:$0xff]
        %v550 = vld [vmem:[%s340 + $0x5a8] sm:$0xff]
        %v551 = vld [vmem:[%s340 + $0x5b0] sm:$0xff]
        %v552 = vld [vmem:[%s340 + $0x5b8] sm:$0xff]
        %v553 = vld [vmem:[%s340 + $0x5c0] sm:$0xff]
        %v554 = vld [vmem:[%s340 + $0x5c8] sm:$0xff]
        %v555 = vld [vmem:[%s340 + $0x5d0] sm:$0xff]
        %v556 = vld [vmem:[%s340 + $0x5d8] sm:$0xff]
        %v557 = vld [vmem:[%s340 + $0x5e0] sm:$0xff]
        %v558 = vld [vmem:[%s340 + $0x5e8] sm:$0xff]
        %v559 = vld [vmem:[%s340 + $0x5f0] sm:$0xff]
        %v560 = vld [vmem:[%s340 + $0x5f8] sm:$0xff]
        %v561 = vld [vmem:[%s340 + $0x600] sm:$0xff]
        %v562 = vld [vmem:[%s340 + $0x608] sm:$0xff]
        %v563 = vld [vmem:[%s340 + $0x610] sm:$0xff]
        %v564 = vld [vmem:[%s340 + $0x618] sm:$0xff]
        %v565 = vld [vmem:[%s340 + $0x620] sm:$0xff]
        %v566 = vld [vmem:[%s340 + $0x628] sm:$0xff]
        %v567 = vld [vmem:[%s340 + $0x630] sm:$0xff]
        %v568 = vld [vmem:[%s340 + $0x638] sm:$0xff]
        %v569 = vld [vmem:[%s340 + $0x640] sm:$0xff]
        %v570 = vld [vmem:[%s340 + $0x648] sm:$0xff]
        %v571 = vld [vmem:[%s340 + $0x650] sm:$0xff]
        %v572 = vld [vmem:[%s340 + $0x658] sm:$0xff]
        %v573 = vld [vmem:[%s340 + $0x660] sm:$0xff]
        %v574 = vld [vmem:[%s340 + $0x668] sm:$0xff]
        %v575 = vld [vmem:[%s340 + $0x670] sm:$0xff]
        %v576 = vld [vmem:[%s340 + $0x678] sm:$0xff]
        %v577 = vld [vmem:[%s340 + $0x680] sm:$0xff]
        %v578 = vld [vmem:[%s340 + $0x688] sm:$0xff]
        %v579 = vld [vmem:[%s340 + $0x690] sm:$0xff]
        %v580 = vld [vmem:[%s340 + $0x698] sm:$0xff]
        %v581 = vld [vmem:[%s340 + $0x6a0] sm:$0xff]
        %v582 = vld [vmem:[%s340 + $0x6a8] sm:$0xff]
        %v583 = vld [vmem:[%s340 + $0x6b0] sm:$0xff]
        %v584 = vld [vmem:[%s340 + $0x6b8] sm:$0xff]
        %v585 = vld [vmem:[%s340 + $0x6c0] sm:$0xff]
        %v586 = vld [vmem:[%s340 + $0x6c8] sm:$0xff]
        %v587 = vld [vmem:[%s340 + $0x6d0] sm:$0xff]
        %v588 = vld [vmem:[%s340 + $0x6d8] sm:$0xff]
        %v589 = vld [vmem:[%s340 + $0x6e0] sm:$0xff]
        %v590 = vld [vmem:[%s340 + $0x6e8] sm:$0xff]
        %v591 = vld [vmem:[%s340 + $0x6f0] sm:$0xff]
        %v592 = vld [vmem:[%s340 + $0x6f8] sm:$0xff]
        %v593 = vld [vmem:[%s352] sm:$0xff]
        %v594 = vld [vmem:[%s352 + $0x8] sm:$0xff]
        %v595 = vld [vmem:[%s352 + $0x10] sm:$0xff]
        %v596 = vld [vmem:[%s352 + $0x18] sm:$0xff]
        %v597 = vld [vmem:[%s352 + $0x20] sm:$0xff]
        %v598 = vld [vmem:[%s352 + $0x28] sm:$0xff]
        %v599 = vld [vmem:[%s352 + $0x30] sm:$0xff]
        %v600 = vld [vmem:[%s352 + $0x38] sm:$0xff]
        %v601 = vld [vmem:[%s352 + $0x40] sm:$0xff]
        %v602 = vld [vmem:[%s352 + $0x48] sm:$0xff]
        %v603 = vld [vmem:[%s352 + $0x50] sm:$0xff]
        %v604 = vld [vmem:[%s352 + $0x58] sm:$0xff]
        %v605 = vld [vmem:[%s352 + $0x60] sm:$0xff]
        %v606 = vld [vmem:[%s352 + $0x68] sm:$0xff]
        %v607 = vld [vmem:[%s352 + $0x70] sm:$0xff]
        %v608 = vld [vmem:[%s352 + $0x78] sm:$0xff]
        %v609 = vld [vmem:[%s352 + $0x80] sm:$0xff]
        %v610 = vld [vmem:[%s352 + $0x88] sm:$0xff]
        %v611 = vld [vmem:[%s352 + $0x90] sm:$0xff]
        %v612 = vld [vmem:[%s352 + $0x98] sm:$0xff]
        %v613 = vld [vmem:[%s352 + $0xa0] sm:$0xff]
        %v614 = vld [vmem:[%s352 + $0xa8] sm:$0xff]
        %v615 = vld [vmem:[%s352 + $0xb0] sm:$0xff]
        %v616 = vld [vmem:[%s352 + $0xb8] sm:$0xff]
        %v617 = vld [vmem:[%s352 + $0xc0] sm:$0xff]
        %v618 = vld [vmem:[%s352 + $0xc8] sm:$0xff]
        %v619 = vld [vmem:[%s352 + $0xd0] sm:$0xff]
        %v620 = vld [vmem:[%s352 + $0xd8] sm:$0xff]
        %v621 = vld [vmem:[%s352 + $0xe0] sm:$0xff]
        %v622 = vld [vmem:[%s352 + $0xe8] sm:$0xff]
        %v623 = vld [vmem:[%s352 + $0xf0] sm:$0xff]
        %v624 = vld [vmem:[%s352 + $0xf8] sm:$0xff]
        %v625 = vld [vmem:[%s352 + $0x100] sm:$0xff]
        %v626 = vld [vmem:[%s352 + $0x108] sm:$0xff]
        %v627 = vld [vmem:[%s352 + $0x110] sm:$0xff]
        %v628 = vld [vmem:[%s352 + $0x118] sm:$0xff]
        %v629 = vld [vmem:[%s352 + $0x120] sm:$0xff]
        %v630 = vld [vmem:[%s352 + $0x128] sm:$0xff]
        %v631 = vld [vmem:[%s352 + $0x130] sm:$0xff]
        %v632 = vld [vmem:[%s352 + $0x138] sm:$0xff]
        %v633 = vld [vmem:[%s352 + $0x140] sm:$0xff]
        %v634 = vld [vmem:[%s352 + $0x148] sm:$0xff]
        %v635 = vld [vmem:[%s352 + $0x150] sm:$0xff]
        %v636 = vld [vmem:[%s352 + $0x158] sm:$0xff]
        %v637 = vld [vmem:[%s352 + $0x160] sm:$0xff]
        %v638 = vld [vmem:[%s352 + $0x168] sm:$0xff]
        %v639 = vld [vmem:[%s352 + $0x170] sm:$0xff]
        %v640 = vld [vmem:[%s352 + $0x178] sm:$0xff]
        %v641 = vld [vmem:[%s352 + $0x180] sm:$0xff]
        %v642 = vld [vmem:[%s352 + $0x188] sm:$0xff]
        %v643 = vld [vmem:[%s352 + $0x190] sm:$0xff]
        %v644 = vld [vmem:[%s352 + $0x198] sm:$0xff]
        %v645 = vld [vmem:[%s352 + $0x1a0] sm:$0xff]
        %v646 = vld [vmem:[%s352 + $0x1a8] sm:$0xff]
        %v647 = vld [vmem:[%s352 + $0x1b0] sm:$0xff]
        %v648 = vld [vmem:[%s352 + $0x1b8] sm:$0xff]
        %v649 = vld [vmem:[%s352 + $0x1c0] sm:$0xff]
        %v650 = vld [vmem:[%s352 + $0x1c8] sm:$0xff]
        %v651 = vld [vmem:[%s352 + $0x1d0] sm:$0xff]
        %v652 = vld [vmem:[%s352 + $0x1d8] sm:$0xff]
        %v653 = vld [vmem:[%s352 + $0x1e0] sm:$0xff]
        %v654 = vld [vmem:[%s352 + $0x1e8] sm:$0xff]
        %v655 = vld [vmem:[%s352 + $0x1f0] sm:$0xff]
        %v656 = vld [vmem:[%s352 + $0x1f8] sm:$0xff]
        %v657 = vld [vmem:[%s352 + $0x200] sm:$0xff]
        %v658 = vld [vmem:[%s352 + $0x208] sm:$0xff]
        %v659 = vld [vmem:[%s352 + $0x210] sm:$0xff]
        %v660 = vld [vmem:[%s352 + $0x218] sm:$0xff]
        %v661 = vld [vmem:[%s352 + $0x220] sm:$0xff]
        %v662 = vld [vmem:[%s352 + $0x228] sm:$0xff]
        %v663 = vld [vmem:[%s352 + $0x230] sm:$0xff]
        %v664 = vld [vmem:[%s352 + $0x238] sm:$0xff]
        %v665 = vld [vmem:[%s352 + $0x240] sm:$0xff]
        %v666 = vld [vmem:[%s352 + $0x248] sm:$0xff]
        %v667 = vld [vmem:[%s352 + $0x250] sm:$0xff]
        %v668 = vld [vmem:[%s352 + $0x258] sm:$0xff]
        %v669 = vld [vmem:[%s352 + $0x260] sm:$0xff]
        %v670 = vld [vmem:[%s352 + $0x268] sm:$0xff]
        %v671 = vld [vmem:[%s352 + $0x270] sm:$0xff]
        %v672 = vld [vmem:[%s352 + $0x278] sm:$0xff]
        %v673 = vld [vmem:[%s352 + $0x280] sm:$0xff]
        %v674 = vld [vmem:[%s352 + $0x288] sm:$0xff]
        %v675 = vld [vmem:[%s352 + $0x290] sm:$0xff]
        %v676 = vld [vmem:[%s352 + $0x298] sm:$0xff]
        %v677 = vld [vmem:[%s352 + $0x2a0] sm:$0xff]
        %v678 = vld [vmem:[%s352 + $0x2a8] sm:$0xff]
        %v679 = vld [vmem:[%s352 + $0x2b0] sm:$0xff]
        %v680 = vld [vmem:[%s352 + $0x2b8] sm:$0xff]
        %v681 = vld [vmem:[%s352 + $0x2c0] sm:$0xff]
        %v682 = vld [vmem:[%s352 + $0x2c8] sm:$0xff]
        %v683 = vld [vmem:[%s352 + $0x2d0] sm:$0xff]
        %v684 = vld [vmem:[%s352 + $0x2d8] sm:$0xff]
        %v685 = vld [vmem:[%s352 + $0x2e0] sm:$0xff]
        %v686 = vld [vmem:[%s352 + $0x2e8] sm:$0xff]
        %v687 = vld [vmem:[%s352 + $0x2f0] sm:$0xff]
        %v688 = vld [vmem:[%s352 + $0x2f8] sm:$0xff]
        %v689 = vld [vmem:[%s352 + $0x300] sm:$0xff]
        %v690 = vld [vmem:[%s352 + $0x308] sm:$0xff]
        %v691 = vld [vmem:[%s352 + $0x310] sm:$0xff]
        %v692 = vld [vmem:[%s352 + $0x318] sm:$0xff]
        %v693 = vld [vmem:[%s352 + $0x320] sm:$0xff]
        %v694 = vld [vmem:[%s352 + $0x328] sm:$0xff]
        %v695 = vld [vmem:[%s352 + $0x330] sm:$0xff]
        %v696 = vld [vmem:[%s352 + $0x338] sm:$0xff]
        %v697 = vld [vmem:[%s352 + $0x340] sm:$0xff]
        %v698 = vld [vmem:[%s352 + $0x348] sm:$0xff]
        %v699 = vld [vmem:[%s352 + $0x350] sm:$0xff]
        %v700 = vld [vmem:[%s352 + $0x358] sm:$0xff]
        %v701 = vld [vmem:[%s352 + $0x360] sm:$0xff]
        %v702 = vld [vmem:[%s352 + $0x368] sm:$0xff]
        %v703 = vld [vmem:[%s352 + $0x370] sm:$0xff]
        %v704 = vld [vmem:[%s352 + $0x378] sm:$0xff]
        %v705 = vld [vmem:[%s352 + $0x380] sm:$0xff]
        %v706 = vld [vmem:[%s352 + $0x388] sm:$0xff]
        %v707 = vld [vmem:[%s352 + $0x390] sm:$0xff]
        %v708 = vld [vmem:[%s352 + $0x398] sm:$0xff]
        %v709 = vld [vmem:[%s352 + $0x3a0] sm:$0xff]
        %v710 = vld [vmem:[%s352 + $0x3a8] sm:$0xff]
        %v711 = vld [vmem:[%s352 + $0x3b0] sm:$0xff]
        %v712 = vld [vmem:[%s352 + $0x3b8] sm:$0xff]
        %v713 = vld [vmem:[%s352 + $0x3c0] sm:$0xff]
        %v714 = vld [vmem:[%s352 + $0x3c8] sm:$0xff]
        %v715 = vld [vmem:[%s352 + $0x3d0] sm:$0xff]
        %v716 = vld [vmem:[%s352 + $0x3d8] sm:$0xff]
        %v717 = vld [vmem:[%s352 + $0x3e0] sm:$0xff]
        %v718 = vld [vmem:[%s352 + $0x3e8] sm:$0xff]
        %v719 = vld [vmem:[%s352 + $0x3f0] sm:$0xff]
        %v720 = vld [vmem:[%s352 + $0x3f8] sm:$0xff]
        %v721 = vld [vmem:[%s352 + $0x400] sm:$0xff]
        %v722 = vld [vmem:[%s352 + $0x408] sm:$0xff]
        %v723 = vld [vmem:[%s352 + $0x410] sm:$0xff]
        %v724 = vld [vmem:[%s352 + $0x418] sm:$0xff]
        %v725 = vld [vmem:[%s352 + $0x420] sm:$0xff]
        %v726 = vld [vmem:[%s352 + $0x428] sm:$0xff]
        %v727 = vld [vmem:[%s352 + $0x430] sm:$0xff]
        %v728 = vld [vmem:[%s352 + $0x438] sm:$0xff]
        %v729 = vld [vmem:[%s352 + $0x440] sm:$0xff]
        %v730 = vld [vmem:[%s352 + $0x448] sm:$0xff]
        %v731 = vld [vmem:[%s352 + $0x450] sm:$0xff]
        %v732 = vld [vmem:[%s352 + $0x458] sm:$0xff]
        %v733 = vld [vmem:[%s352 + $0x460] sm:$0xff]
        %v734 = vld [vmem:[%s352 + $0x468] sm:$0xff]
        %v735 = vld [vmem:[%s352 + $0x470] sm:$0xff]
        %v736 = vld [vmem:[%s352 + $0x478] sm:$0xff]
        %v737 = vld [vmem:[%s352 + $0x480] sm:$0xff]
        %v738 = vld [vmem:[%s352 + $0x488] sm:$0xff]
        %v739 = vld [vmem:[%s352 + $0x490] sm:$0xff]
        %v740 = vld [vmem:[%s352 + $0x498] sm:$0xff]
        %v741 = vld [vmem:[%s352 + $0x4a0] sm:$0xff]
        %v742 = vld [vmem:[%s352 + $0x4a8] sm:$0xff]
        %v743 = vld [vmem:[%s352 + $0x4b0] sm:$0xff]
        %v744 = vld [vmem:[%s352 + $0x4b8] sm:$0xff]
        %v745 = vld [vmem:[%s352 + $0x4c0] sm:$0xff]
        %v746 = vld [vmem:[%s352 + $0x4c8] sm:$0xff]
        %v747 = vld [vmem:[%s352 + $0x4d0] sm:$0xff]
        %v748 = vld [vmem:[%s352 + $0x4d8] sm:$0xff]
        %v749 = vld [vmem:[%s352 + $0x4e0] sm:$0xff]
        %v750 = vld [vmem:[%s352 + $0x4e8] sm:$0xff]
        %v751 = vld [vmem:[%s352 + $0x4f0] sm:$0xff]
        %v752 = vld [vmem:[%s352 + $0x4f8] sm:$0xff]
        %v753 = vld [vmem:[%s352 + $0x500] sm:$0xff]
        %v754 = vld [vmem:[%s352 + $0x508] sm:$0xff]
        %v755 = vld [vmem:[%s352 + $0x510] sm:$0xff]
        %v756 = vld [vmem:[%s352 + $0x518] sm:$0xff]
        %v757 = vld [vmem:[%s352 + $0x520] sm:$0xff]
        %v758 = vld [vmem:[%s352 + $0x528] sm:$0xff]
        %v759 = vld [vmem:[%s352 + $0x530] sm:$0xff]
        %v760 = vld [vmem:[%s352 + $0x538] sm:$0xff]
        %v761 = vld [vmem:[%s352 + $0x540] sm:$0xff]
        %v762 = vld [vmem:[%s352 + $0x548] sm:$0xff]
        %v763 = vld [vmem:[%s352 + $0x550] sm:$0xff]
        %v764 = vld [vmem:[%s352 + $0x558] sm:$0xff]
        %v765 = vld [vmem:[%s352 + $0x560] sm:$0xff]
        %v766 = vld [vmem:[%s352 + $0x568] sm:$0xff]
        %v767 = vld [vmem:[%s352 + $0x570] sm:$0xff]
        %v768 = vld [vmem:[%s352 + $0x578] sm:$0xff]
        %v769 = vld [vmem:[%s352 + $0x580] sm:$0xff]
        %v770 = vld [vmem:[%s352 + $0x588] sm:$0xff]
        %v771 = vld [vmem:[%s352 + $0x590] sm:$0xff]
        %v772 = vld [vmem:[%s352 + $0x598] sm:$0xff]
        %v773 = vld [vmem:[%s352 + $0x5a0] sm:$0xff]
        %v774 = vld [vmem:[%s352 + $0x5a8] sm:$0xff]
        %v775 = vld [vmem:[%s352 + $0x5b0] sm:$0xff]
        %v776 = vld [vmem:[%s352 + $0x5b8] sm:$0xff]
        %v777 = vld [vmem:[%s352 + $0x5c0] sm:$0xff]
        %v778 = vld [vmem:[%s352 + $0x5c8] sm:$0xff]
        %v779 = vld [vmem:[%s352 + $0x5d0] sm:$0xff]
        %v780 = vld [vmem:[%s352 + $0x5d8] sm:$0xff]
        %v781 = vld [vmem:[%s352 + $0x5e0] sm:$0xff]
        %v782 = vld [vmem:[%s352 + $0x5e8] sm:$0xff]
        %v783 = vld [vmem:[%s352 + $0x5f0] sm:$0xff]
        %v784 = vld [vmem:[%s352 + $0x5f8] sm:$0xff]
        %v785 = vld [vmem:[%s352 + $0x600] sm:$0xff]
        %v786 = vld [vmem:[%s352 + $0x608] sm:$0xff]
        %v787 = vld [vmem:[%s352 + $0x610] sm:$0xff]
        %v788 = vld [vmem:[%s352 + $0x618] sm:$0xff]
        %v789 = vld [vmem:[%s352 + $0x620] sm:$0xff]
        %v790 = vld [vmem:[%s352 + $0x628] sm:$0xff]
        %v791 = vld [vmem:[%s352 + $0x630] sm:$0xff]
        %v792 = vld [vmem:[%s352 + $0x638] sm:$0xff]
        %v793 = vld [vmem:[%s352 + $0x640] sm:$0xff]
        %v794 = vld [vmem:[%s352 + $0x648] sm:$0xff]
        %v795 = vld [vmem:[%s352 + $0x650] sm:$0xff]
        %v796 = vld [vmem:[%s352 + $0x658] sm:$0xff]
        %v797 = vld [vmem:[%s352 + $0x660] sm:$0xff]
        %v798 = vld [vmem:[%s352 + $0x668] sm:$0xff]
        %v799 = vld [vmem:[%s352 + $0x670] sm:$0xff]
        %v800 = vld [vmem:[%s352 + $0x678] sm:$0xff]
        %v801 = vld [vmem:[%s352 + $0x680] sm:$0xff]
        %v802 = vld [vmem:[%s352 + $0x688] sm:$0xff]
        %v803 = vld [vmem:[%s352 + $0x690] sm:$0xff]
        %v804 = vld [vmem:[%s352 + $0x698] sm:$0xff]
        %v805 = vld [vmem:[%s352 + $0x6a0] sm:$0xff]
        %v806 = vld [vmem:[%s352 + $0x6a8] sm:$0xff]
        %v807 = vld [vmem:[%s352 + $0x6b0] sm:$0xff]
        %v808 = vld [vmem:[%s352 + $0x6b8] sm:$0xff]
        %v809 = vld [vmem:[%s352 + $0x6c0] sm:$0xff]
        %v810 = vld [vmem:[%s352 + $0x6c8] sm:$0xff]
        %v811 = vld [vmem:[%s352 + $0x6d0] sm:$0xff]
        %v812 = vld [vmem:[%s352 + $0x6d8] sm:$0xff]
        %v813 = vld [vmem:[%s352 + $0x6e0] sm:$0xff]
        %v814 = vld [vmem:[%s352 + $0x6e8] sm:$0xff]
        %v815 = vld [vmem:[%s352 + $0x6f0] sm:$0xff]
        %v816 = vld [vmem:[%s352 + $0x6f8] sm:$0xff]
        %v817 = vld [vmem:[%s352 + $0x700] sm:$0xff]
        %v818 = vld [vmem:[%s352 + $0x708] sm:$0xff]
        %v819 = vld [vmem:[%s352 + $0x710] sm:$0xff]
        %v820 = vld [vmem:[%s352 + $0x718] sm:$0xff]
        %v821 = vld [vmem:[%s352 + $0x720] sm:$0xff]
        %v822 = vld [vmem:[%s352 + $0x728] sm:$0xff]
        %v823 = vld [vmem:[%s352 + $0x730] sm:$0xff]
        %v824 = vld [vmem:[%s352 + $0x738] sm:$0xff]
        %v825 = vld [vmem:[%s352 + $0x740] sm:$0xff]
        %v826 = vld [vmem:[%s352 + $0x748] sm:$0xff]
        %v827 = vld [vmem:[%s352 + $0x750] sm:$0xff]
        %v828 = vld [vmem:[%s352 + $0x758] sm:$0xff]
        %v829 = vld [vmem:[%s352 + $0x760] sm:$0xff]
        %v830 = vld [vmem:[%s352 + $0x768] sm:$0xff]
        %v831 = vld [vmem:[%s352 + $0x770] sm:$0xff]
        %v832 = vld [vmem:[%s352 + $0x778] sm:$0xff]
        %v833 = vld [vmem:[%s352 + $0x780] sm:$0xff]
        %v834 = vld [vmem:[%s352 + $0x788] sm:$0xff]
        %v835 = vld [vmem:[%s352 + $0x790] sm:$0xff]
        %v836 = vld [vmem:[%s352 + $0x798] sm:$0xff]
        %v837 = vld [vmem:[%s352 + $0x7a0] sm:$0xff]
        %v838 = vld [vmem:[%s352 + $0x7a8] sm:$0xff]
        %v839 = vld [vmem:[%s352 + $0x7b0] sm:$0xff]
        %v840 = vld [vmem:[%s352 + $0x7b8] sm:$0xff]
        %v841 = vld [vmem:[%s352 + $0x7c0] sm:$0xff]
        %v842 = vld [vmem:[%s352 + $0x7c8] sm:$0xff]
        %v843 = vld [vmem:[%s352 + $0x7d0] sm:$0xff]
        %v844 = vld [vmem:[%s352 + $0x7d8] sm:$0xff]
        %v845 = vld [vmem:[%s352 + $0x7e0] sm:$0xff]
        %v846 = vld [vmem:[%s352 + $0x7e8] sm:$0xff]
        %v847 = vld [vmem:[%s352 + $0x7f0] sm:$0xff]
        %v848 = vld [vmem:[%s352 + $0x7f8] sm:$0xff]
        %v849 = vld [vmem:[%s352 + $0x800] sm:$0xff]
        %v850 = vld [vmem:[%s352 + $0x808] sm:$0xff]
        %v851 = vld [vmem:[%s352 + $0x810] sm:$0xff]
        %v852 = vld [vmem:[%s352 + $0x818] sm:$0xff]
        %v853 = vld [vmem:[%s352 + $0x820] sm:$0xff]
        %v854 = vld [vmem:[%s352 + $0x828] sm:$0xff]
        %v855 = vld [vmem:[%s352 + $0x830] sm:$0xff]
        %v856 = vld [vmem:[%s352 + $0x838] sm:$0xff]
        %v857 = vld [vmem:[%s352 + $0x840] sm:$0xff]
        %v858 = vld [vmem:[%s352 + $0x848] sm:$0xff]
        %v859 = vld [vmem:[%s352 + $0x850] sm:$0xff]
        %v860 = vld [vmem:[%s352 + $0x858] sm:$0xff]
        %v861 = vld [vmem:[%s352 + $0x860] sm:$0xff]
        %v862 = vld [vmem:[%s352 + $0x868] sm:$0xff]
        %v863 = vld [vmem:[%s352 + $0x870] sm:$0xff]
        %v864 = vld [vmem:[%s352 + $0x878] sm:$0xff]
        %v865 = vld [vmem:[%s352 + $0x880] sm:$0xff]
        %v866 = vld [vmem:[%s352 + $0x888] sm:$0xff]
        %v867 = vld [vmem:[%s352 + $0x890] sm:$0xff]
        %v868 = vld [vmem:[%s352 + $0x898] sm:$0xff]
        %v869 = vld [vmem:[%s352 + $0x8a0] sm:$0xff]
        %v870 = vld [vmem:[%s352 + $0x8a8] sm:$0xff]
        %v871 = vld [vmem:[%s352 + $0x8b0] sm:$0xff]
        %v872 = vld [vmem:[%s352 + $0x8b8] sm:$0xff]
        %v873 = vld [vmem:[%s352 + $0x8c0] sm:$0xff]
        %v874 = vld [vmem:[%s352 + $0x8c8] sm:$0xff]
        %v875 = vld [vmem:[%s352 + $0x8d0] sm:$0xff]
        %v876 = vld [vmem:[%s352 + $0x8d8] sm:$0xff]
        %v877 = vld [vmem:[%s352 + $0x8e0] sm:$0xff]
        %v878 = vld [vmem:[%s352 + $0x8e8] sm:$0xff]
        %v879 = vld [vmem:[%s352 + $0x8f0] sm:$0xff]
        %v880 = vld [vmem:[%s352 + $0x8f8] sm:$0xff]
        %v881 = vld [vmem:[%s352 + $0x900] sm:$0xff]
        %v882 = vld [vmem:[%s352 + $0x908] sm:$0xff]
        %v883 = vld [vmem:[%s352 + $0x910] sm:$0xff]
        %v884 = vld [vmem:[%s352 + $0x918] sm:$0xff]
        %v885 = vld [vmem:[%s352 + $0x920] sm:$0xff]
        %v886 = vld [vmem:[%s352 + $0x928] sm:$0xff]
        %v887 = vld [vmem:[%s352 + $0x930] sm:$0xff]
        %v888 = vld [vmem:[%s352 + $0x938] sm:$0xff]
        %v889 = vld [vmem:[%s352 + $0x940] sm:$0xff]
        %v890 = vld [vmem:[%s352 + $0x948] sm:$0xff]
        %v891 = vld [vmem:[%s352 + $0x950] sm:$0xff]
        %v892 = vld [vmem:[%s352 + $0x958] sm:$0xff]
        %v893 = vld [vmem:[%s352 + $0x960] sm:$0xff]
        %v894 = vld [vmem:[%s352 + $0x968] sm:$0xff]
        %v895 = vld [vmem:[%s352 + $0x970] sm:$0xff]
        %v896 = vld [vmem:[%s352 + $0x978] sm:$0xff]
        %v897 = vld [vmem:[%s352 + $0x980] sm:$0xff]
        %v898 = vld [vmem:[%s352 + $0x988] sm:$0xff]
        %v899 = vld [vmem:[%s352 + $0x990] sm:$0xff]
        %v900 = vld [vmem:[%s352 + $0x998] sm:$0xff]
        %v901 = vld [vmem:[%s352 + $0x9a0] sm:$0xff]
        %v902 = vld [vmem:[%s352 + $0x9a8] sm:$0xff]
        %v903 = vld [vmem:[%s352 + $0x9b0] sm:$0xff]
        %v904 = vld [vmem:[%s352 + $0x9b8] sm:$0xff]
        %v905 = vld [vmem:[%s352 + $0x9c0] sm:$0xff]
        %v906 = vld [vmem:[%s352 + $0x9c8] sm:$0xff]
        %v907 = vld [vmem:[%s352 + $0x9d0] sm:$0xff]
        %v908 = vld [vmem:[%s352 + $0x9d8] sm:$0xff]
        %v909 = vld [vmem:[%s352 + $0x9e0] sm:$0xff]
        %v910 = vld [vmem:[%s352 + $0x9e8] sm:$0xff]
        %v911 = vld [vmem:[%s352 + $0x9f0] sm:$0xff]
        %v912 = vld [vmem:[%s352 + $0x9f8] sm:$0xff]
        %v913 = vld [vmem:[%s352 + $0xa00] sm:$0xff]
        %v914 = vld [vmem:[%s352 + $0xa08] sm:$0xff]
        %v915 = vld [vmem:[%s352 + $0xa10] sm:$0xff]
        %v916 = vld [vmem:[%s352 + $0xa18] sm:$0xff]
        %v917 = vld [vmem:[%s352 + $0xa20] sm:$0xff]
        %v918 = vld [vmem:[%s352 + $0xa28] sm:$0xff]
        %v919 = vld [vmem:[%s352 + $0xa30] sm:$0xff]
        %v920 = vld [vmem:[%s352 + $0xa38] sm:$0xff]
        %v921 = vld [vmem:[%s352 + $0xa40] sm:$0xff]
        %v922 = vld [vmem:[%s352 + $0xa48] sm:$0xff]
        %v923 = vld [vmem:[%s352 + $0xa50] sm:$0xff]
        %v924 = vld [vmem:[%s352 + $0xa58] sm:$0xff]
        %v925 = vld [vmem:[%s352 + $0xa60] sm:$0xff]
        %v926 = vld [vmem:[%s352 + $0xa68] sm:$0xff]
        %v927 = vld [vmem:[%s352 + $0xa70] sm:$0xff]
        %v928 = vld [vmem:[%s352 + $0xa78] sm:$0xff]
        %v929 = vld [vmem:[%s352 + $0xa80] sm:$0xff]
        %v930 = vld [vmem:[%s352 + $0xa88] sm:$0xff]
        %v931 = vld [vmem:[%s352 + $0xa90] sm:$0xff]
        %v932 = vld [vmem:[%s352 + $0xa98] sm:$0xff]
        %v933 = vld [vmem:[%s352 + $0xaa0] sm:$0xff]
        %v934 = vld [vmem:[%s352 + $0xaa8] sm:$0xff]
        %v935 = vld [vmem:[%s352 + $0xab0] sm:$0xff]
        %v936 = vld [vmem:[%s352 + $0xab8] sm:$0xff]
        %v937 = vld [vmem:[%s352 + $0xac0] sm:$0xff]
        %v938 = vld [vmem:[%s352 + $0xac8] sm:$0xff]
        %v939 = vld [vmem:[%s352 + $0xad0] sm:$0xff]
        %v940 = vld [vmem:[%s352 + $0xad8] sm:$0xff]
        %v941 = vld [vmem:[%s352 + $0xae0] sm:$0xff]
        %v942 = vld [vmem:[%s352 + $0xae8] sm:$0xff]
        %v943 = vld [vmem:[%s352 + $0xaf0] sm:$0xff]
        %v944 = vld [vmem:[%s352 + $0xaf8] sm:$0xff]
        %v945 = vld [vmem:[%s352 + $0xb00] sm:$0xff]
        %v946 = vld [vmem:[%s352 + $0xb08] sm:$0xff]
        %v947 = vld [vmem:[%s352 + $0xb10] sm:$0xff]
        %v948 = vld [vmem:[%s352 + $0xb18] sm:$0xff]
        %v949 = vld [vmem:[%s352 + $0xb20] sm:$0xff]
        %v950 = vld [vmem:[%s352 + $0xb28] sm:$0xff]
        %v951 = vld [vmem:[%s352 + $0xb30] sm:$0xff]
        %v952 = vld [vmem:[%s352 + $0xb38] sm:$0xff]
        %v953 = vld [vmem:[%s352 + $0xb40] sm:$0xff]
        %v954 = vld [vmem:[%s352 + $0xb48] sm:$0xff]
        %v955 = vld [vmem:[%s352 + $0xb50] sm:$0xff]
        %v956 = vld [vmem:[%s352 + $0xb58] sm:$0xff]
        %v957 = vld [vmem:[%s352 + $0xb60] sm:$0xff]
        %v958 = vld [vmem:[%s352 + $0xb68] sm:$0xff]
        %v959 = vld [vmem:[%s352 + $0xb70] sm:$0xff]
        %v960 = vld [vmem:[%s352 + $0xb78] sm:$0xff]
        %v961 = vld [vmem:[%s352 + $0xb80] sm:$0xff]
        %v962 = vld [vmem:[%s352 + $0xb88] sm:$0xff]
        %v963 = vld [vmem:[%s352 + $0xb90] sm:$0xff]
        %v964 = vld [vmem:[%s352 + $0xb98] sm:$0xff]
        %v965 = vld [vmem:[%s352 + $0xba0] sm:$0xff]
        %v966 = vld [vmem:[%s352 + $0xba8] sm:$0xff]
        %v967 = vld [vmem:[%s352 + $0xbb0] sm:$0xff]
        %v968 = vld [vmem:[%s352 + $0xbb8] sm:$0xff]
        %v969 = vld [vmem:[%s352 + $0xbc0] sm:$0xff]
        %v970 = vld [vmem:[%s352 + $0xbc8] sm:$0xff]
        %v971 = vld [vmem:[%s352 + $0xbd0] sm:$0xff]
        %v972 = vld [vmem:[%s352 + $0xbd8] sm:$0xff]
        %v973 = vld [vmem:[%s352 + $0xbe0] sm:$0xff]
        %v974 = vld [vmem:[%s352 + $0xbe8] sm:$0xff]
        %v975 = vld [vmem:[%s352 + $0xbf0] sm:$0xff]
        %v976 = vld [vmem:[%s352 + $0xbf8] sm:$0xff]
        %v977 = vld [vmem:[%s352 + $0xc00] sm:$0xff]
        %v978 = vld [vmem:[%s352 + $0xc08] sm:$0xff]
        %v979 = vld [vmem:[%s352 + $0xc10] sm:$0xff]
        %v980 = vld [vmem:[%s352 + $0xc18] sm:$0xff]
        %v981 = vld [vmem:[%s352 + $0xc20] sm:$0xff]
        %v982 = vld [vmem:[%s352 + $0xc28] sm:$0xff]
        %v983 = vld [vmem:[%s352 + $0xc30] sm:$0xff]
        %v984 = vld [vmem:[%s352 + $0xc38] sm:$0xff]
        %v985 = vld [vmem:[%s352 + $0xc40] sm:$0xff]
        %v986 = vld [vmem:[%s352 + $0xc48] sm:$0xff]
        %v987 = vld [vmem:[%s352 + $0xc50] sm:$0xff]
        %v988 = vld [vmem:[%s352 + $0xc58] sm:$0xff]
        %v989 = vld [vmem:[%s352 + $0xc60] sm:$0xff]
        %v990 = vld [vmem:[%s352 + $0xc68] sm:$0xff]
        %v991 = vld [vmem:[%s352 + $0xc70] sm:$0xff]
        %v992 = vld [vmem:[%s352 + $0xc78] sm:$0xff]
        %v993 = vld [vmem:[%s352 + $0xc80] sm:$0xff]
        %v994 = vld [vmem:[%s352 + $0xc88] sm:$0xff]
        %v995 = vld [vmem:[%s352 + $0xc90] sm:$0xff]
        %v996 = vld [vmem:[%s352 + $0xc98] sm:$0xff]
        %v997 = vld [vmem:[%s352 + $0xca0] sm:$0xff]
        %v998 = vld [vmem:[%s352 + $0xca8] sm:$0xff]
        %v999 = vld [vmem:[%s352 + $0xcb0] sm:$0xff]
        %v1000 = vld [vmem:[%s352 + $0xcb8] sm:$0xff]
        %v1001 = vld [vmem:[%s352 + $0xcc0] sm:$0xff]
        %v1002 = vld [vmem:[%s352 + $0xcc8] sm:$0xff]
        %v1003 = vld [vmem:[%s352 + $0xcd0] sm:$0xff]
        %v1004 = vld [vmem:[%s352 + $0xcd8] sm:$0xff]
        %v1005 = vld [vmem:[%s352 + $0xce0] sm:$0xff]
        %v1006 = vld [vmem:[%s352 + $0xce8] sm:$0xff]
        %v1007 = vld [vmem:[%s352 + $0xcf0] sm:$0xff]
        %v1008 = vld [vmem:[%s352 + $0xcf8] sm:$0xff]
        %v1009 = vld [vmem:[%s352 + $0xd00] sm:$0xff]
        %v1010 = vld [vmem:[%s352 + $0xd08] sm:$0xff]
        %v1011 = vld [vmem:[%s352 + $0xd10] sm:$0xff]
        %v1012 = vld [vmem:[%s352 + $0xd18] sm:$0xff]
        %v1013 = vld [vmem:[%s352 + $0xd20] sm:$0xff]
        %v1014 = vld [vmem:[%s352 + $0xd28] sm:$0xff]
        %v1015 = vld [vmem:[%s352 + $0xd30] sm:$0xff]
        %v1016 = vld [vmem:[%s352 + $0xd38] sm:$0xff]
        %v1017 = vld [vmem:[%s352 + $0xd40] sm:$0xff]
        %v1018 = vld [vmem:[%s352 + $0xd48] sm:$0xff]
        %v1019 = vld [vmem:[%s352 + $0xd50] sm:$0xff]
        %v1020 = vld [vmem:[%s352 + $0xd58] sm:$0xff]
        %v1021 = vld [vmem:[%s352 + $0xd60] sm:$0xff]
        %v1022 = vld [vmem:[%s352 + $0xd68] sm:$0xff]
        %v1023 = vld [vmem:[%s352 + $0xd70] sm:$0xff]
        %v1024 = vld [vmem:[%s352 + $0xd78] sm:$0xff]
        %v1025 = vld [vmem:[%s352 + $0xd80] sm:$0xff]
        %v1026 = vld [vmem:[%s352 + $0xd88] sm:$0xff]
        %v1027 = vld [vmem:[%s352 + $0xd90] sm:$0xff]
        %v1028 = vld [vmem:[%s352 + $0xd98] sm:$0xff]
        %v1029 = vld [vmem:[%s352 + $0xda0] sm:$0xff]
        %v1030 = vld [vmem:[%s352 + $0xda8] sm:$0xff]
        %v1031 = vld [vmem:[%s352 + $0xdb0] sm:$0xff]
        %v1032 = vld [vmem:[%s352 + $0xdb8] sm:$0xff]
        %v1033 = vld [vmem:[%s352 + $0xdc0] sm:$0xff]
        %v1034 = vld [vmem:[%s352 + $0xdc8] sm:$0xff]
        %v1035 = vld [vmem:[%s352 + $0xdd0] sm:$0xff]
        %v1036 = vld [vmem:[%s352 + $0xdd8] sm:$0xff]
        %v1037 = vld [vmem:[%s352 + $0xde0] sm:$0xff]
        %v1038 = vld [vmem:[%s352 + $0xde8] sm:$0xff]
        %v1039 = vld [vmem:[%s352 + $0xdf0] sm:$0xff]
        %v1040 = vld [vmem:[%s352 + $0xdf8] sm:$0xff]
        %v1265 = vunpack.c.l.b16 %v369
        %v1266 = vunpack.c.h.b16 %v369
        %v1267 = vunpack.c.l.b16 %v370
        %v1268 = vunpack.c.h.b16 %v370
        %v1269 = vunpack.c.l.b16 %v371
        %v1270 = vunpack.c.h.b16 %v371
        %v1271 = vunpack.c.l.b16 %v372
        %v1272 = vunpack.c.h.b16 %v372
        %v1273 = vunpack.c.l.b16 %v373
        %v1274 = vunpack.c.h.b16 %v373
        %v1275 = vunpack.c.l.b16 %v374
        %v1276 = vunpack.c.h.b16 %v374
        %v1277 = vunpack.c.l.b16 %v375
        %v1278 = vunpack.c.h.b16 %v375
        %v1279 = vunpack.c.l.b16 %v376
        %v1280 = vunpack.c.h.b16 %v376
        %v1281 = vunpack.c.l.b16 %v377
        %v1282 = vunpack.c.h.b16 %v377
        %v1283 = vunpack.c.l.b16 %v378
        %v1284 = vunpack.c.h.b16 %v378
        %v1285 = vunpack.c.l.b16 %v379
        %v1286 = vunpack.c.h.b16 %v379
        %v1287 = vunpack.c.l.b16 %v380
        %v1288 = vunpack.c.h.b16 %v380
        %v1289 = vunpack.c.l.b16 %v381
        %v1290 = vunpack.c.h.b16 %v381
        %v1291 = vunpack.c.l.b16 %v382
        %v1292 = vunpack.c.h.b16 %v382
        %v1293 = vunpack.c.l.b16 %v383
        %v1294 = vunpack.c.h.b16 %v383
        %v1295 = vunpack.c.l.b16 %v384
        %v1296 = vunpack.c.h.b16 %v384
        %v1297 = vunpack.c.l.b16 %v385
        %v1298 = vunpack.c.h.b16 %v385
        %v1299 = vunpack.c.l.b16 %v386
        %v1300 = vunpack.c.h.b16 %v386
        %v1301 = vunpack.c.l.b16 %v387
        %v1302 = vunpack.c.h.b16 %v387
        %v1303 = vunpack.c.l.b16 %v388
        %v1304 = vunpack.c.h.b16 %v388
        %v1305 = vunpack.c.l.b16 %v389
        %v1306 = vunpack.c.h.b16 %v389
        %v1307 = vunpack.c.l.b16 %v390
        %v1308 = vunpack.c.h.b16 %v390
        %v1309 = vunpack.c.l.b16 %v391
        %v1310 = vunpack.c.h.b16 %v391
        %v1311 = vunpack.c.l.b16 %v392
        %v1312 = vunpack.c.h.b16 %v392
        %v1313 = vunpack.c.l.b16 %v393
        %v1314 = vunpack.c.h.b16 %v393
        %v1315 = vunpack.c.l.b16 %v394
        %v1316 = vunpack.c.h.b16 %v394
        %v1317 = vunpack.c.l.b16 %v395
        %v1318 = vunpack.c.h.b16 %v395
        %v1319 = vunpack.c.l.b16 %v396
        %v1320 = vunpack.c.h.b16 %v396
        %v1321 = vunpack.c.l.b16 %v397
        %v1322 = vunpack.c.h.b16 %v397
        %v1323 = vunpack.c.l.b16 %v398
        %v1324 = vunpack.c.h.b16 %v398
        %v1325 = vunpack.c.l.b16 %v399
        %v1326 = vunpack.c.h.b16 %v399
        %v1327 = vunpack.c.l.b16 %v400
        %v1328 = vunpack.c.h.b16 %v400
        %v1329 = vunpack.c.l.b16 %v401
        %v1330 = vunpack.c.h.b16 %v401
        %v1331 = vunpack.c.l.b16 %v402
        %v1332 = vunpack.c.h.b16 %v402
        %v1333 = vunpack.c.l.b16 %v403
        %v1334 = vunpack.c.h.b16 %v403
        %v1335 = vunpack.c.l.b16 %v404
        %v1336 = vunpack.c.h.b16 %v404
        %v1337 = vunpack.c.l.b16 %v405
        %v1338 = vunpack.c.h.b16 %v405
        %v1339 = vunpack.c.l.b16 %v406
        %v1340 = vunpack.c.h.b16 %v406
        %v1341 = vunpack.c.l.b16 %v407
        %v1342 = vunpack.c.h.b16 %v407
        %v1343 = vunpack.c.l.b16 %v408
        %v1344 = vunpack.c.h.b16 %v408
        %v1345 = vunpack.c.l.b16 %v409
        %v1346 = vunpack.c.h.b16 %v409
        %v1347 = vunpack.c.l.b16 %v410
        %v1348 = vunpack.c.h.b16 %v410
        %v1349 = vunpack.c.l.b16 %v411
        %v1350 = vunpack.c.h.b16 %v411
        %v1351 = vunpack.c.l.b16 %v412
        %v1352 = vunpack.c.h.b16 %v412
        %v1353 = vunpack.c.l.b16 %v413
        %v1354 = vunpack.c.h.b16 %v413
        %v1355 = vunpack.c.l.b16 %v414
        %v1356 = vunpack.c.h.b16 %v414
        %v1357 = vunpack.c.l.b16 %v415
        %v1358 = vunpack.c.h.b16 %v415
        %v1359 = vunpack.c.l.b16 %v416
        %v1360 = vunpack.c.h.b16 %v416
        %v1361 = vunpack.c.l.b16 %v417
        %v1362 = vunpack.c.h.b16 %v417
        %v1363 = vunpack.c.l.b16 %v418
        %v1364 = vunpack.c.h.b16 %v418
        %v1365 = vunpack.c.l.b16 %v419
        %v1366 = vunpack.c.h.b16 %v419
        %v1367 = vunpack.c.l.b16 %v420
        %v1368 = vunpack.c.h.b16 %v420
        %v1369 = vunpack.c.l.b16 %v421
        %v1370 = vunpack.c.h.b16 %v421
        %v1371 = vunpack.c.l.b16 %v422
        %v1372 = vunpack.c.h.b16 %v422
        %v1373 = vunpack.c.l.b16 %v423
        %v1374 = vunpack.c.h.b16 %v423
        %v1375 = vunpack.c.l.b16 %v424
        %v1376 = vunpack.c.h.b16 %v424
        %v1377 = vunpack.c.l.b16 %v425
        %v1378 = vunpack.c.h.b16 %v425
        %v1379 = vunpack.c.l.b16 %v426
        %v1380 = vunpack.c.h.b16 %v426
        %v1381 = vunpack.c.l.b16 %v427
        %v1382 = vunpack.c.h.b16 %v427
        %v1383 = vunpack.c.l.b16 %v428
        %v1384 = vunpack.c.h.b16 %v428
        %v1385 = vunpack.c.l.b16 %v429
        %v1386 = vunpack.c.h.b16 %v429
        %v1387 = vunpack.c.l.b16 %v430
        %v1388 = vunpack.c.h.b16 %v430
        %v1389 = vunpack.c.l.b16 %v431
        %v1390 = vunpack.c.h.b16 %v431
        %v1391 = vunpack.c.l.b16 %v432
        %v1392 = vunpack.c.h.b16 %v432
        %v1393 = vunpack.c.l.b16 %v433
        %v1394 = vunpack.c.h.b16 %v433
        %v1395 = vunpack.c.l.b16 %v434
        %v1396 = vunpack.c.h.b16 %v434
        %v1397 = vunpack.c.l.b16 %v435
        %v1398 = vunpack.c.h.b16 %v435
        %v1399 = vunpack.c.l.b16 %v436
        %v1400 = vunpack.c.h.b16 %v436
        %v1401 = vunpack.c.l.b16 %v437
        %v1402 = vunpack.c.h.b16 %v437
        %v1403 = vunpack.c.l.b16 %v438
        %v1404 = vunpack.c.h.b16 %v438
        %v1405 = vunpack.c.l.b16 %v439
        %v1406 = vunpack.c.h.b16 %v439
        %v1407 = vunpack.c.l.b16 %v440
        %v1408 = vunpack.c.h.b16 %v440
        %v1409 = vunpack.c.l.b16 %v441
        %v1410 = vunpack.c.h.b16 %v441
        %v1411 = vunpack.c.l.b16 %v442
        %v1412 = vunpack.c.h.b16 %v442
        %v1413 = vunpack.c.l.b16 %v443
        %v1414 = vunpack.c.h.b16 %v443
        %v1415 = vunpack.c.l.b16 %v444
        %v1416 = vunpack.c.h.b16 %v444
        %v1417 = vunpack.c.l.b16 %v445
        %v1418 = vunpack.c.h.b16 %v445
        %v1419 = vunpack.c.l.b16 %v446
        %v1420 = vunpack.c.h.b16 %v446
        %v1421 = vunpack.c.l.b16 %v447
        %v1422 = vunpack.c.h.b16 %v447
        %v1423 = vunpack.c.l.b16 %v448
        %v1424 = vunpack.c.h.b16 %v448
        %v1425 = vunpack.c.l.b16 %v449
        %v1426 = vunpack.c.h.b16 %v449
        %v1427 = vunpack.c.l.b16 %v450
        %v1428 = vunpack.c.h.b16 %v450
        %v1429 = vunpack.c.l.b16 %v451
        %v1430 = vunpack.c.h.b16 %v451
        %v1431 = vunpack.c.l.b16 %v452
        %v1432 = vunpack.c.h.b16 %v452
        %v1433 = vunpack.c.l.b16 %v453
        %v1434 = vunpack.c.h.b16 %v453
        %v1435 = vunpack.c.l.b16 %v454
        %v1436 = vunpack.c.h.b16 %v454
        %v1437 = vunpack.c.l.b16 %v455
        %v1438 = vunpack.c.h.b16 %v455
        %v1439 = vunpack.c.l.b16 %v456
        %v1440 = vunpack.c.h.b16 %v456
        %v1441 = vunpack.c.l.b16 %v457
        %v1442 = vunpack.c.h.b16 %v457
        %v1443 = vunpack.c.l.b16 %v458
        %v1444 = vunpack.c.h.b16 %v458
        %v1445 = vunpack.c.l.b16 %v459
        %v1446 = vunpack.c.h.b16 %v459
        %v1447 = vunpack.c.l.b16 %v460
        %v1448 = vunpack.c.h.b16 %v460
        %v1449 = vunpack.c.l.b16 %v461
        %v1450 = vunpack.c.h.b16 %v461
        %v1451 = vunpack.c.l.b16 %v462
        %v1452 = vunpack.c.h.b16 %v462
        %v1453 = vunpack.c.l.b16 %v463
        %v1454 = vunpack.c.h.b16 %v463
        %v1455 = vunpack.c.l.b16 %v464
        %v1456 = vunpack.c.h.b16 %v464
        %v1457 = vunpack.c.l.b16 %v465
        %v1458 = vunpack.c.h.b16 %v465
        %v1459 = vunpack.c.l.b16 %v466
        %v1460 = vunpack.c.h.b16 %v466
        %v1461 = vunpack.c.l.b16 %v467
        %v1462 = vunpack.c.h.b16 %v467
        %v1463 = vunpack.c.l.b16 %v468
        %v1464 = vunpack.c.h.b16 %v468
        %v1465 = vunpack.c.l.b16 %v469
        %v1466 = vunpack.c.h.b16 %v469
        %v1467 = vunpack.c.l.b16 %v470
        %v1468 = vunpack.c.h.b16 %v470
        %v1469 = vunpack.c.l.b16 %v471
        %v1470 = vunpack.c.h.b16 %v471
        %v1471 = vunpack.c.l.b16 %v472
        %v1472 = vunpack.c.h.b16 %v472
        %v1473 = vunpack.c.l.b16 %v473
        %v1474 = vunpack.c.h.b16 %v473
        %v1475 = vunpack.c.l.b16 %v474
        %v1476 = vunpack.c.h.b16 %v474
        %v1477 = vunpack.c.l.b16 %v475
        %v1478 = vunpack.c.h.b16 %v475
        %v1479 = vunpack.c.l.b16 %v476
        %v1480 = vunpack.c.h.b16 %v476
        %v1481 = vunpack.c.l.b16 %v477
        %v1482 = vunpack.c.h.b16 %v477
        %v1483 = vunpack.c.l.b16 %v478
        %v1484 = vunpack.c.h.b16 %v478
        %v1485 = vunpack.c.l.b16 %v479
        %v1486 = vunpack.c.h.b16 %v479
        %v1487 = vunpack.c.l.b16 %v480
        %v1488 = vunpack.c.h.b16 %v480
        %v1489 = vunpack.c.l.b16 %v481
        %v1490 = vunpack.c.h.b16 %v481
        %v1491 = vunpack.c.l.b16 %v482
        %v1492 = vunpack.c.h.b16 %v482
        %v1493 = vunpack.c.l.b16 %v483
        %v1494 = vunpack.c.h.b16 %v483
        %v1495 = vunpack.c.l.b16 %v484
        %v1496 = vunpack.c.h.b16 %v484
        %v1497 = vunpack.c.l.b16 %v485
        %v1498 = vunpack.c.h.b16 %v485
        %v1499 = vunpack.c.l.b16 %v486
        %v1500 = vunpack.c.h.b16 %v486
        %v1501 = vunpack.c.l.b16 %v487
        %v1502 = vunpack.c.h.b16 %v487
        %v1503 = vunpack.c.l.b16 %v488
        %v1504 = vunpack.c.h.b16 %v488
        %v1505 = vunpack.c.l.b16 %v489
        %v1506 = vunpack.c.h.b16 %v489
        %v1507 = vunpack.c.l.b16 %v490
        %v1508 = vunpack.c.h.b16 %v490
        %v1509 = vunpack.c.l.b16 %v491
        %v1510 = vunpack.c.h.b16 %v491
        %v1511 = vunpack.c.l.b16 %v492
        %v1512 = vunpack.c.h.b16 %v492
        %v1513 = vunpack.c.l.b16 %v493
        %v1514 = vunpack.c.h.b16 %v493
        %v1515 = vunpack.c.l.b16 %v494
        %v1516 = vunpack.c.h.b16 %v494
        %v1517 = vunpack.c.l.b16 %v495
        %v1518 = vunpack.c.h.b16 %v495
        %v1519 = vunpack.c.l.b16 %v496
        %v1520 = vunpack.c.h.b16 %v496
        %v1521 = vunpack.c.l.b16 %v497
        %v1522 = vunpack.c.h.b16 %v497
        %v1523 = vunpack.c.l.b16 %v498
        %v1524 = vunpack.c.h.b16 %v498
        %v1525 = vunpack.c.l.b16 %v499
        %v1526 = vunpack.c.h.b16 %v499
        %v1527 = vunpack.c.l.b16 %v500
        %v1528 = vunpack.c.h.b16 %v500
        %v1529 = vunpack.c.l.b16 %v501
        %v1530 = vunpack.c.h.b16 %v501
        %v1531 = vunpack.c.l.b16 %v502
        %v1532 = vunpack.c.h.b16 %v502
        %v1533 = vunpack.c.l.b16 %v503
        %v1534 = vunpack.c.h.b16 %v503
        %v1535 = vunpack.c.l.b16 %v504
        %v1536 = vunpack.c.h.b16 %v504
        %v1537 = vunpack.c.l.b16 %v505
        %v1538 = vunpack.c.h.b16 %v505
        %v1539 = vunpack.c.l.b16 %v506
        %v1540 = vunpack.c.h.b16 %v506
        %v1541 = vunpack.c.l.b16 %v507
        %v1542 = vunpack.c.h.b16 %v507
        %v1543 = vunpack.c.l.b16 %v508
        %v1544 = vunpack.c.h.b16 %v508
        %v1545 = vunpack.c.l.b16 %v509
        %v1546 = vunpack.c.h.b16 %v509
        %v1547 = vunpack.c.l.b16 %v510
        %v1548 = vunpack.c.h.b16 %v510
        %v1549 = vunpack.c.l.b16 %v511
        %v1550 = vunpack.c.h.b16 %v511
        %v1551 = vunpack.c.l.b16 %v512
        %v1552 = vunpack.c.h.b16 %v512
        %v1553 = vunpack.c.l.b16 %v513
        %v1554 = vunpack.c.h.b16 %v513
        %v1555 = vunpack.c.l.b16 %v514
        %v1556 = vunpack.c.h.b16 %v514
        %v1557 = vunpack.c.l.b16 %v515
        %v1558 = vunpack.c.h.b16 %v515
        %v1559 = vunpack.c.l.b16 %v516
        %v1560 = vunpack.c.h.b16 %v516
        %v1561 = vunpack.c.l.b16 %v517
        %v1562 = vunpack.c.h.b16 %v517
        %v1563 = vunpack.c.l.b16 %v518
        %v1564 = vunpack.c.h.b16 %v518
        %v1565 = vunpack.c.l.b16 %v519
        %v1566 = vunpack.c.h.b16 %v519
        %v1567 = vunpack.c.l.b16 %v520
        %v1568 = vunpack.c.h.b16 %v520
        %v1569 = vunpack.c.l.b16 %v521
        %v1570 = vunpack.c.h.b16 %v521
        %v1571 = vunpack.c.l.b16 %v522
        %v1572 = vunpack.c.h.b16 %v522
        %v1573 = vunpack.c.l.b16 %v523
        %v1574 = vunpack.c.h.b16 %v523
        %v1575 = vunpack.c.l.b16 %v524
        %v1576 = vunpack.c.h.b16 %v524
        %v1577 = vunpack.c.l.b16 %v525
        %v1578 = vunpack.c.h.b16 %v525
        %v1579 = vunpack.c.l.b16 %v526
        %v1580 = vunpack.c.h.b16 %v526
        %v1581 = vunpack.c.l.b16 %v527
        %v1582 = vunpack.c.h.b16 %v527
        %v1583 = vunpack.c.l.b16 %v528
        %v1584 = vunpack.c.h.b16 %v528
        %v1585 = vunpack.c.l.b16 %v529
        %v1586 = vunpack.c.h.b16 %v529
        %v1587 = vunpack.c.l.b16 %v530
        %v1588 = vunpack.c.h.b16 %v530
        %v1589 = vunpack.c.l.b16 %v531
        %v1590 = vunpack.c.h.b16 %v531
        %v1591 = vunpack.c.l.b16 %v532
        %v1592 = vunpack.c.h.b16 %v532
        %v1593 = vunpack.c.l.b16 %v533
        %v1594 = vunpack.c.h.b16 %v533
        %v1595 = vunpack.c.l.b16 %v534
        %v1596 = vunpack.c.h.b16 %v534
        %v1597 = vunpack.c.l.b16 %v535
        %v1598 = vunpack.c.h.b16 %v535
        %v1599 = vunpack.c.l.b16 %v536
        %v1600 = vunpack.c.h.b16 %v536
        %v1601 = vunpack.c.l.b16 %v537
        %v1602 = vunpack.c.h.b16 %v537
        %v1603 = vunpack.c.l.b16 %v538
        %v1604 = vunpack.c.h.b16 %v538
        %v1605 = vunpack.c.l.b16 %v539
        %v1606 = vunpack.c.h.b16 %v539
        %v1607 = vunpack.c.l.b16 %v540
        %v1608 = vunpack.c.h.b16 %v540
        %v1609 = vunpack.c.l.b16 %v541
        %v1610 = vunpack.c.h.b16 %v541
        %v1611 = vunpack.c.l.b16 %v542
        %v1612 = vunpack.c.h.b16 %v542
        %v1613 = vunpack.c.l.b16 %v543
        %v1614 = vunpack.c.h.b16 %v543
        %v1615 = vunpack.c.l.b16 %v544
        %v1616 = vunpack.c.h.b16 %v544
        %v1617 = vunpack.c.l.b16 %v545
        %v1618 = vunpack.c.h.b16 %v545
        %v1619 = vunpack.c.l.b16 %v546
        %v1620 = vunpack.c.h.b16 %v546
        %v1621 = vunpack.c.l.b16 %v547
        %v1622 = vunpack.c.h.b16 %v547
        %v1623 = vunpack.c.l.b16 %v548
        %v1624 = vunpack.c.h.b16 %v548
        %v1625 = vunpack.c.l.b16 %v549
        %v1626 = vunpack.c.h.b16 %v549
        %v1627 = vunpack.c.l.b16 %v550
        %v1628 = vunpack.c.h.b16 %v550
        %v1629 = vunpack.c.l.b16 %v551
        %v1630 = vunpack.c.h.b16 %v551
        %v1631 = vunpack.c.l.b16 %v552
        %v1632 = vunpack.c.h.b16 %v552
        %v1633 = vunpack.c.l.b16 %v553
        %v1634 = vunpack.c.h.b16 %v553
        %v1635 = vunpack.c.l.b16 %v554
        %v1636 = vunpack.c.h.b16 %v554
        %v1637 = vunpack.c.l.b16 %v555
        %v1638 = vunpack.c.h.b16 %v555
        %v1639 = vunpack.c.l.b16 %v556
        %v1640 = vunpack.c.h.b16 %v556
        %v1641 = vunpack.c.l.b16 %v557
        %v1642 = vunpack.c.h.b16 %v557
        %v1643 = vunpack.c.l.b16 %v558
        %v1644 = vunpack.c.h.b16 %v558
        %v1645 = vunpack.c.l.b16 %v559
        %v1646 = vunpack.c.h.b16 %v559
        %v1647 = vunpack.c.l.b16 %v560
        %v1648 = vunpack.c.h.b16 %v560
        %v1649 = vunpack.c.l.b16 %v561
        %v1650 = vunpack.c.h.b16 %v561
        %v1651 = vunpack.c.l.b16 %v562
        %v1652 = vunpack.c.h.b16 %v562
        %v1653 = vunpack.c.l.b16 %v563
        %v1654 = vunpack.c.h.b16 %v563
        %v1655 = vunpack.c.l.b16 %v564
        %v1656 = vunpack.c.h.b16 %v564
        %v1657 = vunpack.c.l.b16 %v565
        %v1658 = vunpack.c.h.b16 %v565
        %v1659 = vunpack.c.l.b16 %v566
        %v1660 = vunpack.c.h.b16 %v566
        %v1661 = vunpack.c.l.b16 %v567
        %v1662 = vunpack.c.h.b16 %v567
        %v1663 = vunpack.c.l.b16 %v568
        %v1664 = vunpack.c.h.b16 %v568
        %v1665 = vunpack.c.l.b16 %v569
        %v1666 = vunpack.c.h.b16 %v569
        %v1667 = vunpack.c.l.b16 %v570
        %v1668 = vunpack.c.h.b16 %v570
        %v1669 = vunpack.c.l.b16 %v571
        %v1670 = vunpack.c.h.b16 %v571
        %v1671 = vunpack.c.l.b16 %v572
        %v1672 = vunpack.c.h.b16 %v572
        %v1673 = vunpack.c.l.b16 %v573
        %v1674 = vunpack.c.h.b16 %v573
        %v1675 = vunpack.c.l.b16 %v574
        %v1676 = vunpack.c.h.b16 %v574
        %v1677 = vunpack.c.l.b16 %v575
        %v1678 = vunpack.c.h.b16 %v575
        %v1679 = vunpack.c.l.b16 %v576
        %v1680 = vunpack.c.h.b16 %v576
        %v1681 = vunpack.c.l.b16 %v577
        %v1682 = vunpack.c.h.b16 %v577
        %v1683 = vunpack.c.l.b16 %v578
        %v1684 = vunpack.c.h.b16 %v578
        %v1685 = vunpack.c.l.b16 %v579
        %v1686 = vunpack.c.h.b16 %v579
        %v1687 = vunpack.c.l.b16 %v580
        %v1688 = vunpack.c.h.b16 %v580
        %v1689 = vunpack.c.l.b16 %v581
        %v1690 = vunpack.c.h.b16 %v581
        %v1691 = vunpack.c.l.b16 %v582
        %v1692 = vunpack.c.h.b16 %v582
        %v1693 = vunpack.c.l.b16 %v583
        %v1694 = vunpack.c.h.b16 %v583
        %v1695 = vunpack.c.l.b16 %v584
        %v1696 = vunpack.c.h.b16 %v584
        %v1697 = vunpack.c.l.b16 %v585
        %v1698 = vunpack.c.h.b16 %v585
        %v1699 = vunpack.c.l.b16 %v586
        %v1700 = vunpack.c.h.b16 %v586
        %v1701 = vunpack.c.l.b16 %v587
        %v1702 = vunpack.c.h.b16 %v587
        %v1703 = vunpack.c.l.b16 %v588
        %v1704 = vunpack.c.h.b16 %v588
        %v1705 = vunpack.c.l.b16 %v589
        %v1706 = vunpack.c.h.b16 %v589
        %v1707 = vunpack.c.l.b16 %v590
        %v1708 = vunpack.c.h.b16 %v590
        %v1709 = vunpack.c.l.b16 %v591
        %v1710 = vunpack.c.h.b16 %v591
        %v1711 = vunpack.c.l.b16 %v592
        %v1712 = vunpack.c.h.b16 %v592
        %v1713 = vpack.c.b16 %v1279, %v1265
        %v1714 = vpack.c.b16 %v1280, %v1266
        %v1715 = vpack.c.b16 %v1281, %v1267
        %v1716 = vpack.c.b16 %v1282, %v1268
        %v1717 = vpack.c.b16 %v1283, %v1269
        %v1718 = vpack.c.b16 %v1284, %v1270
        %v1719 = vpack.c.b16 %v1285, %v1271
        %v1720 = vpack.c.b16 %v1286, %v1272
        %v1721 = vpack.c.b16 %v1287, %v1273
        %v1722 = vpack.c.b16 %v1288, %v1274
        %v1723 = vpack.c.b16 %v1289, %v1275
        %v1724 = vpack.c.b16 %v1290, %v1276
        %v1725 = vpack.c.b16 %v1291, %v1277
        %v1726 = vpack.c.b16 %v1292, %v1278
        %v1727 = vpack.c.b16 %v1307, %v1293
        %v1728 = vpack.c.b16 %v1308, %v1294
        %v1729 = vpack.c.b16 %v1309, %v1295
        %v1730 = vpack.c.b16 %v1310, %v1296
        %v1731 = vpack.c.b16 %v1311, %v1297
        %v1732 = vpack.c.b16 %v1312, %v1298
        %v1733 = vpack.c.b16 %v1313, %v1299
        %v1734 = vpack.c.b16 %v1314, %v1300
        %v1735 = vpack.c.b16 %v1315, %v1301
        %v1736 = vpack.c.b16 %v1316, %v1302
        %v1737 = vpack.c.b16 %v1317, %v1303
        %v1738 = vpack.c.b16 %v1318, %v1304
        %v1739 = vpack.c.b16 %v1319, %v1305
        %v1740 = vpack.c.b16 %v1320, %v1306
        %v1741 = vpack.c.b16 %v1335, %v1321
        %v1742 = vpack.c.b16 %v1336, %v1322
        %v1743 = vpack.c.b16 %v1337, %v1323
        %v1744 = vpack.c.b16 %v1338, %v1324
        %v1745 = vpack.c.b16 %v1339, %v1325
        %v1746 = vpack.c.b16 %v1340, %v1326
        %v1747 = vpack.c.b16 %v1341, %v1327
        %v1748 = vpack.c.b16 %v1342, %v1328
        %v1749 = vpack.c.b16 %v1343, %v1329
        %v1750 = vpack.c.b16 %v1344, %v1330
        %v1751 = vpack.c.b16 %v1345, %v1331
        %v1752 = vpack.c.b16 %v1346, %v1332
        %v1753 = vpack.c.b16 %v1347, %v1333
        %v1754 = vpack.c.b16 %v1348, %v1334
        %v1755 = vpack.c.b16 %v1363, %v1349
        %v1756 = vpack.c.b16 %v1364, %v1350
        %v1757 = vpack.c.b16 %v1365, %v1351
        %v1758 = vpack.c.b16 %v1366, %v1352
        %v1759 = vpack.c.b16 %v1367, %v1353
        %v1760 = vpack.c.b16 %v1368, %v1354
        %v1761 = vpack.c.b16 %v1369, %v1355
        %v1762 = vpack.c.b16 %v1370, %v1356
        %v1763 = vpack.c.b16 %v1371, %v1357
        %v1764 = vpack.c.b16 %v1372, %v1358
        %v1765 = vpack.c.b16 %v1373, %v1359
        %v1766 = vpack.c.b16 %v1374, %v1360
        %v1767 = vpack.c.b16 %v1375, %v1361
        %v1768 = vpack.c.b16 %v1376, %v1362
        %v1769 = vpack.c.b16 %v1391, %v1377
        %v1770 = vpack.c.b16 %v1392, %v1378
        %v1771 = vpack.c.b16 %v1393, %v1379
        %v1772 = vpack.c.b16 %v1394, %v1380
        %v1773 = vpack.c.b16 %v1395, %v1381
        %v1774 = vpack.c.b16 %v1396, %v1382
        %v1775 = vpack.c.b16 %v1397, %v1383
        %v1776 = vpack.c.b16 %v1398, %v1384
        %v1777 = vpack.c.b16 %v1399, %v1385
        %v1778 = vpack.c.b16 %v1400, %v1386
        %v1779 = vpack.c.b16 %v1401, %v1387
        %v1780 = vpack.c.b16 %v1402, %v1388
        %v1781 = vpack.c.b16 %v1403, %v1389
        %v1782 = vpack.c.b16 %v1404, %v1390
        %v1783 = vpack.c.b16 %v1419, %v1405
        %v1784 = vpack.c.b16 %v1420, %v1406
        %v1785 = vpack.c.b16 %v1421, %v1407
        %v1786 = vpack.c.b16 %v1422, %v1408
        %v1787 = vpack.c.b16 %v1423, %v1409
        %v1788 = vpack.c.b16 %v1424, %v1410
        %v1789 = vpack.c.b16 %v1425, %v1411
        %v1790 = vpack.c.b16 %v1426, %v1412
        %v1791 = vpack.c.b16 %v1427, %v1413
        %v1792 = vpack.c.b16 %v1428, %v1414
        %v1793 = vpack.c.b16 %v1429, %v1415
        %v1794 = vpack.c.b16 %v1430, %v1416
        %v1795 = vpack.c.b16 %v1431, %v1417
        %v1796 = vpack.c.b16 %v1432, %v1418
        %v1797 = vpack.c.b16 %v1447, %v1433
        %v1798 = vpack.c.b16 %v1448, %v1434
        %v1799 = vpack.c.b16 %v1449, %v1435
        %v1800 = vpack.c.b16 %v1450, %v1436
        %v1801 = vpack.c.b16 %v1451, %v1437
        %v1802 = vpack.c.b16 %v1452, %v1438
        %v1803 = vpack.c.b16 %v1453, %v1439
        %v1804 = vpack.c.b16 %v1454, %v1440
        %v1805 = vpack.c.b16 %v1455, %v1441
        %v1806 = vpack.c.b16 %v1456, %v1442
        %v1807 = vpack.c.b16 %v1457, %v1443
        %v1808 = vpack.c.b16 %v1458, %v1444
        %v1809 = vpack.c.b16 %v1459, %v1445
        %v1810 = vpack.c.b16 %v1460, %v1446
        %v1811 = vpack.c.b16 %v1475, %v1461
        %v1812 = vpack.c.b16 %v1476, %v1462
        %v1813 = vpack.c.b16 %v1477, %v1463
        %v1814 = vpack.c.b16 %v1478, %v1464
        %v1815 = vpack.c.b16 %v1479, %v1465
        %v1816 = vpack.c.b16 %v1480, %v1466
        %v1817 = vpack.c.b16 %v1481, %v1467
        %v1818 = vpack.c.b16 %v1482, %v1468
        %v1819 = vpack.c.b16 %v1483, %v1469
        %v1820 = vpack.c.b16 %v1484, %v1470
        %v1821 = vpack.c.b16 %v1485, %v1471
        %v1822 = vpack.c.b16 %v1486, %v1472
        %v1823 = vpack.c.b16 %v1487, %v1473
        %v1824 = vpack.c.b16 %v1488, %v1474
        %v1825 = vpack.c.b16 %v1503, %v1489
        %v1826 = vpack.c.b16 %v1504, %v1490
        %v1827 = vpack.c.b16 %v1505, %v1491
        %v1828 = vpack.c.b16 %v1506, %v1492
        %v1829 = vpack.c.b16 %v1507, %v1493
        %v1830 = vpack.c.b16 %v1508, %v1494
        %v1831 = vpack.c.b16 %v1509, %v1495
        %v1832 = vpack.c.b16 %v1510, %v1496
        %v1833 = vpack.c.b16 %v1511, %v1497
        %v1834 = vpack.c.b16 %v1512, %v1498
        %v1835 = vpack.c.b16 %v1513, %v1499
        %v1836 = vpack.c.b16 %v1514, %v1500
        %v1837 = vpack.c.b16 %v1515, %v1501
        %v1838 = vpack.c.b16 %v1516, %v1502
        %v1839 = vpack.c.b16 %v1531, %v1517
        %v1840 = vpack.c.b16 %v1532, %v1518
        %v1841 = vpack.c.b16 %v1533, %v1519
        %v1842 = vpack.c.b16 %v1534, %v1520
        %v1843 = vpack.c.b16 %v1535, %v1521
        %v1844 = vpack.c.b16 %v1536, %v1522
        %v1845 = vpack.c.b16 %v1537, %v1523
        %v1846 = vpack.c.b16 %v1538, %v1524
        %v1847 = vpack.c.b16 %v1539, %v1525
        %v1848 = vpack.c.b16 %v1540, %v1526
        %v1849 = vpack.c.b16 %v1541, %v1527
        %v1850 = vpack.c.b16 %v1542, %v1528
        %v1851 = vpack.c.b16 %v1543, %v1529
        %v1852 = vpack.c.b16 %v1544, %v1530
        %v1853 = vpack.c.b16 %v1559, %v1545
        %v1854 = vpack.c.b16 %v1560, %v1546
        %v1855 = vpack.c.b16 %v1561, %v1547
        %v1856 = vpack.c.b16 %v1562, %v1548
        %v1857 = vpack.c.b16 %v1563, %v1549
        %v1858 = vpack.c.b16 %v1564, %v1550
        %v1859 = vpack.c.b16 %v1565, %v1551
        %v1860 = vpack.c.b16 %v1566, %v1552
        %v1861 = vpack.c.b16 %v1567, %v1553
        %v1862 = vpack.c.b16 %v1568, %v1554
        %v1863 = vpack.c.b16 %v1569, %v1555
        %v1864 = vpack.c.b16 %v1570, %v1556
        %v1865 = vpack.c.b16 %v1571, %v1557
        %v1866 = vpack.c.b16 %v1572, %v1558
        %v1867 = vpack.c.b16 %v1587, %v1573
        %v1868 = vpack.c.b16 %v1588, %v1574
        %v1869 = vpack.c.b16 %v1589, %v1575
        %v1870 = vpack.c.b16 %v1590, %v1576
        %v1871 = vpack.c.b16 %v1591, %v1577
        %v1872 = vpack.c.b16 %v1592, %v1578
        %v1873 = vpack.c.b16 %v1593, %v1579
        %v1874 = vpack.c.b16 %v1594, %v1580
        %v1875 = vpack.c.b16 %v1595, %v1581
        %v1876 = vpack.c.b16 %v1596, %v1582
        %v1877 = vpack.c.b16 %v1597, %v1583
        %v1878 = vpack.c.b16 %v1598, %v1584
        %v1879 = vpack.c.b16 %v1599, %v1585
        %v1880 = vpack.c.b16 %v1600, %v1586
        %v1881 = vpack.c.b16 %v1615, %v1601
        %v1882 = vpack.c.b16 %v1616, %v1602
        %v1883 = vpack.c.b16 %v1617, %v1603
        %v1884 = vpack.c.b16 %v1618, %v1604
        %v1885 = vpack.c.b16 %v1619, %v1605
        %v1886 = vpack.c.b16 %v1620, %v1606
        %v1887 = vpack.c.b16 %v1621, %v1607
        %v1888 = vpack.c.b16 %v1622, %v1608
        %v1889 = vpack.c.b16 %v1623, %v1609
        %v1890 = vpack.c.b16 %v1624, %v1610
        %v1891 = vpack.c.b16 %v1625, %v1611
        %v1892 = vpack.c.b16 %v1626, %v1612
        %v1893 = vpack.c.b16 %v1627, %v1613
        %v1894 = vpack.c.b16 %v1628, %v1614
        %v1895 = vpack.c.b16 %v1643, %v1629
        %v1896 = vpack.c.b16 %v1644, %v1630
        %v1897 = vpack.c.b16 %v1645, %v1631
        %v1898 = vpack.c.b16 %v1646, %v1632
        %v1899 = vpack.c.b16 %v1647, %v1633
        %v1900 = vpack.c.b16 %v1648, %v1634
        %v1901 = vpack.c.b16 %v1649, %v1635
        %v1902 = vpack.c.b16 %v1650, %v1636
        %v1903 = vpack.c.b16 %v1651, %v1637
        %v1904 = vpack.c.b16 %v1652, %v1638
        %v1905 = vpack.c.b16 %v1653, %v1639
        %v1906 = vpack.c.b16 %v1654, %v1640
        %v1907 = vpack.c.b16 %v1655, %v1641
        %v1908 = vpack.c.b16 %v1656, %v1642
        %v1909 = vpack.c.b16 %v1671, %v1657
        %v1910 = vpack.c.b16 %v1672, %v1658
        %v1911 = vpack.c.b16 %v1673, %v1659
        %v1912 = vpack.c.b16 %v1674, %v1660
        %v1913 = vpack.c.b16 %v1675, %v1661
        %v1914 = vpack.c.b16 %v1676, %v1662
        %v1915 = vpack.c.b16 %v1677, %v1663
        %v1916 = vpack.c.b16 %v1678, %v1664
        %v1917 = vpack.c.b16 %v1679, %v1665
        %v1918 = vpack.c.b16 %v1680, %v1666
        %v1919 = vpack.c.b16 %v1681, %v1667
        %v1920 = vpack.c.b16 %v1682, %v1668
        %v1921 = vpack.c.b16 %v1683, %v1669
        %v1922 = vpack.c.b16 %v1684, %v1670
        %v1923 = vpack.c.b16 %v1699, %v1685
        %v1924 = vpack.c.b16 %v1700, %v1686
        %v1925 = vpack.c.b16 %v1701, %v1687
        %v1926 = vpack.c.b16 %v1702, %v1688
        %v1927 = vpack.c.b16 %v1703, %v1689
        %v1928 = vpack.c.b16 %v1704, %v1690
        %v1929 = vpack.c.b16 %v1705, %v1691
        %v1930 = vpack.c.b16 %v1706, %v1692
        %v1931 = vpack.c.b16 %v1707, %v1693
        %v1932 = vpack.c.b16 %v1708, %v1694
        %v1933 = vpack.c.b16 %v1709, %v1695
        %v1934 = vpack.c.b16 %v1710, %v1696
        %v1935 = vpack.c.b16 %v1711, %v1697
        %v1936 = vpack.c.b16 %v1712, %v1698
        %v2609 = vunpack.c.l.b16 %v593
        %v2610 = vunpack.c.h.b16 %v593
        %v2611 = vunpack.c.l.b16 %v594
        %v2612 = vunpack.c.h.b16 %v594
        %v2613 = vunpack.c.l.b16 %v595
        %v2614 = vunpack.c.h.b16 %v595
        %v2615 = vunpack.c.l.b16 %v596
        %v2616 = vunpack.c.h.b16 %v596
        %v2617 = vunpack.c.l.b16 %v597
        %v2618 = vunpack.c.h.b16 %v597
        %v2619 = vunpack.c.l.b16 %v598
        %v2620 = vunpack.c.h.b16 %v598
        %v2621 = vunpack.c.l.b16 %v599
        %v2622 = vunpack.c.h.b16 %v599
        %v2623 = vunpack.c.l.b16 %v600
        %v2624 = vunpack.c.h.b16 %v600
        %v2625 = vunpack.c.l.b16 %v601
        %v2626 = vunpack.c.h.b16 %v601
        %v2627 = vunpack.c.l.b16 %v602
        %v2628 = vunpack.c.h.b16 %v602
        %v2629 = vunpack.c.l.b16 %v603
        %v2630 = vunpack.c.h.b16 %v603
        %v2631 = vunpack.c.l.b16 %v604
        %v2632 = vunpack.c.h.b16 %v604
        %v2633 = vunpack.c.l.b16 %v605
        %v2634 = vunpack.c.h.b16 %v605
        %v2635 = vunpack.c.l.b16 %v606
        %v2636 = vunpack.c.h.b16 %v606
        %v2637 = vunpack.c.l.b16 %v607
        %v2638 = vunpack.c.h.b16 %v607
        %v2639 = vunpack.c.l.b16 %v608
        %v2640 = vunpack.c.h.b16 %v608
        %v2641 = vunpack.c.l.b16 %v609
        %v2642 = vunpack.c.h.b16 %v609
        %v2643 = vunpack.c.l.b16 %v610
        %v2644 = vunpack.c.h.b16 %v610
        %v2645 = vunpack.c.l.b16 %v611
        %v2646 = vunpack.c.h.b16 %v611
        %v2647 = vunpack.c.l.b16 %v612
        %v2648 = vunpack.c.h.b16 %v612
        %v2649 = vunpack.c.l.b16 %v613
        %v2650 = vunpack.c.h.b16 %v613
        %v2651 = vunpack.c.l.b16 %v614
        %v2652 = vunpack.c.h.b16 %v614
        %v2653 = vunpack.c.l.b16 %v615
        %v2654 = vunpack.c.h.b16 %v615
        %v2655 = vunpack.c.l.b16 %v616
        %v2656 = vunpack.c.h.b16 %v616
        %v2657 = vunpack.c.l.b16 %v617
        %v2658 = vunpack.c.h.b16 %v617
        %v2659 = vunpack.c.l.b16 %v618
        %v2660 = vunpack.c.h.b16 %v618
        %v2661 = vunpack.c.l.b16 %v619
        %v2662 = vunpack.c.h.b16 %v619
        %v2663 = vunpack.c.l.b16 %v620
        %v2664 = vunpack.c.h.b16 %v620
        %v2665 = vunpack.c.l.b16 %v621
        %v2666 = vunpack.c.h.b16 %v621
        %v2667 = vunpack.c.l.b16 %v622
        %v2668 = vunpack.c.h.b16 %v622
        %v2669 = vunpack.c.l.b16 %v623
        %v2670 = vunpack.c.h.b16 %v623
        %v2671 = vunpack.c.l.b16 %v624
        %v2672 = vunpack.c.h.b16 %v624
        %v2673 = vunpack.c.l.b16 %v625
        %v2674 = vunpack.c.h.b16 %v625
        %v2675 = vunpack.c.l.b16 %v626
        %v2676 = vunpack.c.h.b16 %v626
        %v2677 = vunpack.c.l.b16 %v627
        %v2678 = vunpack.c.h.b16 %v627
        %v2679 = vunpack.c.l.b16 %v628
        %v2680 = vunpack.c.h.b16 %v628
        %v2681 = vunpack.c.l.b16 %v629
        %v2682 = vunpack.c.h.b16 %v629
        %v2683 = vunpack.c.l.b16 %v630
        %v2684 = vunpack.c.h.b16 %v630
        %v2685 = vunpack.c.l.b16 %v631
        %v2686 = vunpack.c.h.b16 %v631
        %v2687 = vunpack.c.l.b16 %v632
        %v2688 = vunpack.c.h.b16 %v632
        %v2689 = vunpack.c.l.b16 %v633
        %v2690 = vunpack.c.h.b16 %v633
        %v2691 = vunpack.c.l.b16 %v634
        %v2692 = vunpack.c.h.b16 %v634
        %v2693 = vunpack.c.l.b16 %v635
        %v2694 = vunpack.c.h.b16 %v635
        %v2695 = vunpack.c.l.b16 %v636
        %v2696 = vunpack.c.h.b16 %v636
        %v2697 = vunpack.c.l.b16 %v637
        %v2698 = vunpack.c.h.b16 %v637
        %v2699 = vunpack.c.l.b16 %v638
        %v2700 = vunpack.c.h.b16 %v638
        %v2701 = vunpack.c.l.b16 %v639
        %v2702 = vunpack.c.h.b16 %v639
        %v2703 = vunpack.c.l.b16 %v640
        %v2704 = vunpack.c.h.b16 %v640
        %v2705 = vunpack.c.l.b16 %v641
        %v2706 = vunpack.c.h.b16 %v641
        %v2707 = vunpack.c.l.b16 %v642
        %v2708 = vunpack.c.h.b16 %v642
        %v2709 = vunpack.c.l.b16 %v643
        %v2710 = vunpack.c.h.b16 %v643
        %v2711 = vunpack.c.l.b16 %v644
        %v2712 = vunpack.c.h.b16 %v644
        %v2713 = vunpack.c.l.b16 %v645
        %v2714 = vunpack.c.h.b16 %v645
        %v2715 = vunpack.c.l.b16 %v646
        %v2716 = vunpack.c.h.b16 %v646
        %v2717 = vunpack.c.l.b16 %v647
        %v2718 = vunpack.c.h.b16 %v647
        %v2719 = vunpack.c.l.b16 %v648
        %v2720 = vunpack.c.h.b16 %v648
        %v2721 = vunpack.c.l.b16 %v649
        %v2722 = vunpack.c.h.b16 %v649
        %v2723 = vunpack.c.l.b16 %v650
        %v2724 = vunpack.c.h.b16 %v650
        %v2725 = vunpack.c.l.b16 %v651
        %v2726 = vunpack.c.h.b16 %v651
        %v2727 = vunpack.c.l.b16 %v652
        %v2728 = vunpack.c.h.b16 %v652
        %v2729 = vunpack.c.l.b16 %v653
        %v2730 = vunpack.c.h.b16 %v653
        %v2731 = vunpack.c.l.b16 %v654
        %v2732 = vunpack.c.h.b16 %v654
        %v2733 = vunpack.c.l.b16 %v655
        %v2734 = vunpack.c.h.b16 %v655
        %v2735 = vunpack.c.l.b16 %v656
        %v2736 = vunpack.c.h.b16 %v656
        %v2737 = vunpack.c.l.b16 %v657
        %v2738 = vunpack.c.h.b16 %v657
        %v2739 = vunpack.c.l.b16 %v658
        %v2740 = vunpack.c.h.b16 %v658
        %v2741 = vunpack.c.l.b16 %v659
        %v2742 = vunpack.c.h.b16 %v659
        %v2743 = vunpack.c.l.b16 %v660
        %v2744 = vunpack.c.h.b16 %v660
        %v2745 = vunpack.c.l.b16 %v661
        %v2746 = vunpack.c.h.b16 %v661
        %v2747 = vunpack.c.l.b16 %v662
        %v2748 = vunpack.c.h.b16 %v662
        %v2749 = vunpack.c.l.b16 %v663
        %v2750 = vunpack.c.h.b16 %v663
        %v2751 = vunpack.c.l.b16 %v664
        %v2752 = vunpack.c.h.b16 %v664
        %v2753 = vunpack.c.l.b16 %v665
        %v2754 = vunpack.c.h.b16 %v665
        %v2755 = vunpack.c.l.b16 %v666
        %v2756 = vunpack.c.h.b16 %v666
        %v2757 = vunpack.c.l.b16 %v667
        %v2758 = vunpack.c.h.b16 %v667
        %v2759 = vunpack.c.l.b16 %v668
        %v2760 = vunpack.c.h.b16 %v668
        %v2761 = vunpack.c.l.b16 %v669
        %v2762 = vunpack.c.h.b16 %v669
        %v2763 = vunpack.c.l.b16 %v670
        %v2764 = vunpack.c.h.b16 %v670
        %v2765 = vunpack.c.l.b16 %v671
        %v2766 = vunpack.c.h.b16 %v671
        %v2767 = vunpack.c.l.b16 %v672
        %v2768 = vunpack.c.h.b16 %v672
        %v2769 = vunpack.c.l.b16 %v673
        %v2770 = vunpack.c.h.b16 %v673
        %v2771 = vunpack.c.l.b16 %v674
        %v2772 = vunpack.c.h.b16 %v674
        %v2773 = vunpack.c.l.b16 %v675
        %v2774 = vunpack.c.h.b16 %v675
        %v2775 = vunpack.c.l.b16 %v676
        %v2776 = vunpack.c.h.b16 %v676
        %v2777 = vunpack.c.l.b16 %v677
        %v2778 = vunpack.c.h.b16 %v677
        %v2779 = vunpack.c.l.b16 %v678
        %v2780 = vunpack.c.h.b16 %v678
        %v2781 = vunpack.c.l.b16 %v679
        %v2782 = vunpack.c.h.b16 %v679
        %v2783 = vunpack.c.l.b16 %v680
        %v2784 = vunpack.c.h.b16 %v680
        %v2785 = vunpack.c.l.b16 %v681
        %v2786 = vunpack.c.h.b16 %v681
        %v2787 = vunpack.c.l.b16 %v682
        %v2788 = vunpack.c.h.b16 %v682
        %v2789 = vunpack.c.l.b16 %v683
        %v2790 = vunpack.c.h.b16 %v683
        %v2791 = vunpack.c.l.b16 %v684
        %v2792 = vunpack.c.h.b16 %v684
        %v2793 = vunpack.c.l.b16 %v685
        %v2794 = vunpack.c.h.b16 %v685
        %v2795 = vunpack.c.l.b16 %v686
        %v2796 = vunpack.c.h.b16 %v686
        %v2797 = vunpack.c.l.b16 %v687
        %v2798 = vunpack.c.h.b16 %v687
        %v2799 = vunpack.c.l.b16 %v688
        %v2800 = vunpack.c.h.b16 %v688
        %v2801 = vunpack.c.l.b16 %v689
        %v2802 = vunpack.c.h.b16 %v689
        %v2803 = vunpack.c.l.b16 %v690
        %v2804 = vunpack.c.h.b16 %v690
        %v2805 = vunpack.c.l.b16 %v691
        %v2806 = vunpack.c.h.b16 %v691
        %v2807 = vunpack.c.l.b16 %v692
        %v2808 = vunpack.c.h.b16 %v692
        %v2809 = vunpack.c.l.b16 %v693
        %v2810 = vunpack.c.h.b16 %v693
        %v2811 = vunpack.c.l.b16 %v694
        %v2812 = vunpack.c.h.b16 %v694
        %v2813 = vunpack.c.l.b16 %v695
        %v2814 = vunpack.c.h.b16 %v695
        %v2815 = vunpack.c.l.b16 %v696
        %v2816 = vunpack.c.h.b16 %v696
        %v2817 = vunpack.c.l.b16 %v697
        %v2818 = vunpack.c.h.b16 %v697
        %v2819 = vunpack.c.l.b16 %v698
        %v2820 = vunpack.c.h.b16 %v698
        %v2821 = vunpack.c.l.b16 %v699
        %v2822 = vunpack.c.h.b16 %v699
        %v2823 = vunpack.c.l.b16 %v700
        %v2824 = vunpack.c.h.b16 %v700
        %v2825 = vunpack.c.l.b16 %v701
        %v2826 = vunpack.c.h.b16 %v701
        %v2827 = vunpack.c.l.b16 %v702
        %v2828 = vunpack.c.h.b16 %v702
        %v2829 = vunpack.c.l.b16 %v703
        %v2830 = vunpack.c.h.b16 %v703
        %v2831 = vunpack.c.l.b16 %v704
        %v2832 = vunpack.c.h.b16 %v704
        %v2833 = vunpack.c.l.b16 %v705
        %v2834 = vunpack.c.h.b16 %v705
        %v2835 = vunpack.c.l.b16 %v706
        %v2836 = vunpack.c.h.b16 %v706
        %v2837 = vunpack.c.l.b16 %v707
        %v2838 = vunpack.c.h.b16 %v707
        %v2839 = vunpack.c.l.b16 %v708
        %v2840 = vunpack.c.h.b16 %v708
        %v2841 = vunpack.c.l.b16 %v709
        %v2842 = vunpack.c.h.b16 %v709
        %v2843 = vunpack.c.l.b16 %v710
        %v2844 = vunpack.c.h.b16 %v710
        %v2845 = vunpack.c.l.b16 %v711
        %v2846 = vunpack.c.h.b16 %v711
        %v2847 = vunpack.c.l.b16 %v712
        %v2848 = vunpack.c.h.b16 %v712
        %v2849 = vunpack.c.l.b16 %v713
        %v2850 = vunpack.c.h.b16 %v713
        %v2851 = vunpack.c.l.b16 %v714
        %v2852 = vunpack.c.h.b16 %v714
        %v2853 = vunpack.c.l.b16 %v715
        %v2854 = vunpack.c.h.b16 %v715
        %v2855 = vunpack.c.l.b16 %v716
        %v2856 = vunpack.c.h.b16 %v716
        %v2857 = vunpack.c.l.b16 %v717
        %v2858 = vunpack.c.h.b16 %v717
        %v2859 = vunpack.c.l.b16 %v718
        %v2860 = vunpack.c.h.b16 %v718
        %v2861 = vunpack.c.l.b16 %v719
        %v2862 = vunpack.c.h.b16 %v719
        %v2863 = vunpack.c.l.b16 %v720
        %v2864 = vunpack.c.h.b16 %v720
        %v2865 = vunpack.c.l.b16 %v721
        %v2866 = vunpack.c.h.b16 %v721
        %v2867 = vunpack.c.l.b16 %v722
        %v2868 = vunpack.c.h.b16 %v722
        %v2869 = vunpack.c.l.b16 %v723
        %v2870 = vunpack.c.h.b16 %v723
        %v2871 = vunpack.c.l.b16 %v724
        %v2872 = vunpack.c.h.b16 %v724
        %v2873 = vunpack.c.l.b16 %v725
        %v2874 = vunpack.c.h.b16 %v725
        %v2875 = vunpack.c.l.b16 %v726
        %v2876 = vunpack.c.h.b16 %v726
        %v2877 = vunpack.c.l.b16 %v727
        %v2878 = vunpack.c.h.b16 %v727
        %v2879 = vunpack.c.l.b16 %v728
        %v2880 = vunpack.c.h.b16 %v728
        %v2881 = vunpack.c.l.b16 %v729
        %v2882 = vunpack.c.h.b16 %v729
        %v2883 = vunpack.c.l.b16 %v730
        %v2884 = vunpack.c.h.b16 %v730
        %v2885 = vunpack.c.l.b16 %v731
        %v2886 = vunpack.c.h.b16 %v731
        %v2887 = vunpack.c.l.b16 %v732
        %v2888 = vunpack.c.h.b16 %v732
        %v2889 = vunpack.c.l.b16 %v733
        %v2890 = vunpack.c.h.b16 %v733
        %v2891 = vunpack.c.l.b16 %v734
        %v2892 = vunpack.c.h.b16 %v734
        %v2893 = vunpack.c.l.b16 %v735
        %v2894 = vunpack.c.h.b16 %v735
        %v2895 = vunpack.c.l.b16 %v736
        %v2896 = vunpack.c.h.b16 %v736
        %v2897 = vunpack.c.l.b16 %v737
        %v2898 = vunpack.c.h.b16 %v737
        %v2899 = vunpack.c.l.b16 %v738
        %v2900 = vunpack.c.h.b16 %v738
        %v2901 = vunpack.c.l.b16 %v739
        %v2902 = vunpack.c.h.b16 %v739
        %v2903 = vunpack.c.l.b16 %v740
        %v2904 = vunpack.c.h.b16 %v740
        %v2905 = vunpack.c.l.b16 %v741
        %v2906 = vunpack.c.h.b16 %v741
        %v2907 = vunpack.c.l.b16 %v742
        %v2908 = vunpack.c.h.b16 %v742
        %v2909 = vunpack.c.l.b16 %v743
        %v2910 = vunpack.c.h.b16 %v743
        %v2911 = vunpack.c.l.b16 %v744
        %v2912 = vunpack.c.h.b16 %v744
        %v2913 = vunpack.c.l.b16 %v745
        %v2914 = vunpack.c.h.b16 %v745
        %v2915 = vunpack.c.l.b16 %v746
        %v2916 = vunpack.c.h.b16 %v746
        %v2917 = vunpack.c.l.b16 %v747
        %v2918 = vunpack.c.h.b16 %v747
        %v2919 = vunpack.c.l.b16 %v748
        %v2920 = vunpack.c.h.b16 %v748
        %v2921 = vunpack.c.l.b16 %v749
        %v2922 = vunpack.c.h.b16 %v749
        %v2923 = vunpack.c.l.b16 %v750
        %v2924 = vunpack.c.h.b16 %v750
        %v2925 = vunpack.c.l.b16 %v751
        %v2926 = vunpack.c.h.b16 %v751
        %v2927 = vunpack.c.l.b16 %v752
        %v2928 = vunpack.c.h.b16 %v752
        %v2929 = vunpack.c.l.b16 %v753
        %v2930 = vunpack.c.h.b16 %v753
        %v2931 = vunpack.c.l.b16 %v754
        %v2932 = vunpack.c.h.b16 %v754
        %v2933 = vunpack.c.l.b16 %v755
        %v2934 = vunpack.c.h.b16 %v755
        %v2935 = vunpack.c.l.b16 %v756
        %v2936 = vunpack.c.h.b16 %v756
        %v2937 = vunpack.c.l.b16 %v757
        %v2938 = vunpack.c.h.b16 %v757
        %v2939 = vunpack.c.l.b16 %v758
        %v2940 = vunpack.c.h.b16 %v758
        %v2941 = vunpack.c.l.b16 %v759
        %v2942 = vunpack.c.h.b16 %v759
        %v2943 = vunpack.c.l.b16 %v760
        %v2944 = vunpack.c.h.b16 %v760
        %v2945 = vunpack.c.l.b16 %v761
        %v2946 = vunpack.c.h.b16 %v761
        %v2947 = vunpack.c.l.b16 %v762
        %v2948 = vunpack.c.h.b16 %v762
        %v2949 = vunpack.c.l.b16 %v763
        %v2950 = vunpack.c.h.b16 %v763
        %v2951 = vunpack.c.l.b16 %v764
        %v2952 = vunpack.c.h.b16 %v764
        %v2953 = vunpack.c.l.b16 %v765
        %v2954 = vunpack.c.h.b16 %v765
        %v2955 = vunpack.c.l.b16 %v766
        %v2956 = vunpack.c.h.b16 %v766
        %v2957 = vunpack.c.l.b16 %v767
        %v2958 = vunpack.c.h.b16 %v767
        %v2959 = vunpack.c.l.b16 %v768
        %v2960 = vunpack.c.h.b16 %v768
        %v2961 = vunpack.c.l.b16 %v769
        %v2962 = vunpack.c.h.b16 %v769
        %v2963 = vunpack.c.l.b16 %v770
        %v2964 = vunpack.c.h.b16 %v770
        %v2965 = vunpack.c.l.b16 %v771
        %v2966 = vunpack.c.h.b16 %v771
        %v2967 = vunpack.c.l.b16 %v772
        %v2968 = vunpack.c.h.b16 %v772
        %v2969 = vunpack.c.l.b16 %v773
        %v2970 = vunpack.c.h.b16 %v773
        %v2971 = vunpack.c.l.b16 %v774
        %v2972 = vunpack.c.h.b16 %v774
        %v2973 = vunpack.c.l.b16 %v775
        %v2974 = vunpack.c.h.b16 %v775
        %v2975 = vunpack.c.l.b16 %v776
        %v2976 = vunpack.c.h.b16 %v776
        %v2977 = vunpack.c.l.b16 %v777
        %v2978 = vunpack.c.h.b16 %v777
        %v2979 = vunpack.c.l.b16 %v778
        %v2980 = vunpack.c.h.b16 %v778
        %v2981 = vunpack.c.l.b16 %v779
        %v2982 = vunpack.c.h.b16 %v779
        %v2983 = vunpack.c.l.b16 %v780
        %v2984 = vunpack.c.h.b16 %v780
        %v2985 = vunpack.c.l.b16 %v781
        %v2986 = vunpack.c.h.b16 %v781
        %v2987 = vunpack.c.l.b16 %v782
        %v2988 = vunpack.c.h.b16 %v782
        %v2989 = vunpack.c.l.b16 %v783
        %v2990 = vunpack.c.h.b16 %v783
        %v2991 = vunpack.c.l.b16 %v784
        %v2992 = vunpack.c.h.b16 %v784
        %v2993 = vunpack.c.l.b16 %v785
        %v2994 = vunpack.c.h.b16 %v785
        %v2995 = vunpack.c.l.b16 %v786
        %v2996 = vunpack.c.h.b16 %v786
        %v2997 = vunpack.c.l.b16 %v787
        %v2998 = vunpack.c.h.b16 %v787
        %v2999 = vunpack.c.l.b16 %v788
        %v3000 = vunpack.c.h.b16 %v788
        %v3001 = vunpack.c.l.b16 %v789
        %v3002 = vunpack.c.h.b16 %v789
        %v3003 = vunpack.c.l.b16 %v790
        %v3004 = vunpack.c.h.b16 %v790
        %v3005 = vunpack.c.l.b16 %v791
        %v3006 = vunpack.c.h.b16 %v791
        %v3007 = vunpack.c.l.b16 %v792
        %v3008 = vunpack.c.h.b16 %v792
        %v3009 = vunpack.c.l.b16 %v793
        %v3010 = vunpack.c.h.b16 %v793
        %v3011 = vunpack.c.l.b16 %v794
        %v3012 = vunpack.c.h.b16 %v794
        %v3013 = vunpack.c.l.b16 %v795
        %v3014 = vunpack.c.h.b16 %v795
        %v3015 = vunpack.c.l.b16 %v796
        %v3016 = vunpack.c.h.b16 %v796
        %v3017 = vunpack.c.l.b16 %v797
        %v3018 = vunpack.c.h.b16 %v797
        %v3019 = vunpack.c.l.b16 %v798
        %v3020 = vunpack.c.h.b16 %v798
        %v3021 = vunpack.c.l.b16 %v799
        %v3022 = vunpack.c.h.b16 %v799
        %v3023 = vunpack.c.l.b16 %v800
        %v3024 = vunpack.c.h.b16 %v800
        %v3025 = vunpack.c.l.b16 %v801
        %v3026 = vunpack.c.h.b16 %v801
        %v3027 = vunpack.c.l.b16 %v802
        %v3028 = vunpack.c.h.b16 %v802
        %v3029 = vunpack.c.l.b16 %v803
        %v3030 = vunpack.c.h.b16 %v803
        %v3031 = vunpack.c.l.b16 %v804
        %v3032 = vunpack.c.h.b16 %v804
        %v3033 = vunpack.c.l.b16 %v805
        %v3034 = vunpack.c.h.b16 %v805
        %v3035 = vunpack.c.l.b16 %v806
        %v3036 = vunpack.c.h.b16 %v806
        %v3037 = vunpack.c.l.b16 %v807
        %v3038 = vunpack.c.h.b16 %v807
        %v3039 = vunpack.c.l.b16 %v808
        %v3040 = vunpack.c.h.b16 %v808
        %v3041 = vunpack.c.l.b16 %v809
        %v3042 = vunpack.c.h.b16 %v809
        %v3043 = vunpack.c.l.b16 %v810
        %v3044 = vunpack.c.h.b16 %v810
        %v3045 = vunpack.c.l.b16 %v811
        %v3046 = vunpack.c.h.b16 %v811
        %v3047 = vunpack.c.l.b16 %v812
        %v3048 = vunpack.c.h.b16 %v812
        %v3049 = vunpack.c.l.b16 %v813
        %v3050 = vunpack.c.h.b16 %v813
        %v3051 = vunpack.c.l.b16 %v814
        %v3052 = vunpack.c.h.b16 %v814
        %v3053 = vunpack.c.l.b16 %v815
        %v3054 = vunpack.c.h.b16 %v815
        %v3055 = vunpack.c.l.b16 %v816
        %v3056 = vunpack.c.h.b16 %v816
        %v3057 = vunpack.c.l.b16 %v817
        %v3058 = vunpack.c.h.b16 %v817
        %v3059 = vunpack.c.l.b16 %v818
        %v3060 = vunpack.c.h.b16 %v818
        %v3061 = vunpack.c.l.b16 %v819
        %v3062 = vunpack.c.h.b16 %v819
        %v3063 = vunpack.c.l.b16 %v820
        %v3064 = vunpack.c.h.b16 %v820
        %v3065 = vunpack.c.l.b16 %v821
        %v3066 = vunpack.c.h.b16 %v821
        %v3067 = vunpack.c.l.b16 %v822
        %v3068 = vunpack.c.h.b16 %v822
        %v3069 = vunpack.c.l.b16 %v823
        %v3070 = vunpack.c.h.b16 %v823
        %v3071 = vunpack.c.l.b16 %v824
        %v3072 = vunpack.c.h.b16 %v824
        %v3073 = vunpack.c.l.b16 %v825
        %v3074 = vunpack.c.h.b16 %v825
        %v3075 = vunpack.c.l.b16 %v826
        %v3076 = vunpack.c.h.b16 %v826
        %v3077 = vunpack.c.l.b16 %v827
        %v3078 = vunpack.c.h.b16 %v827
        %v3079 = vunpack.c.l.b16 %v828
        %v3080 = vunpack.c.h.b16 %v828
        %v3081 = vunpack.c.l.b16 %v829
        %v3082 = vunpack.c.h.b16 %v829
        %v3083 = vunpack.c.l.b16 %v830
        %v3084 = vunpack.c.h.b16 %v830
        %v3085 = vunpack.c.l.b16 %v831
        %v3086 = vunpack.c.h.b16 %v831
        %v3087 = vunpack.c.l.b16 %v832
        %v3088 = vunpack.c.h.b16 %v832
        %v3089 = vunpack.c.l.b16 %v833
        %v3090 = vunpack.c.h.b16 %v833
        %v3091 = vunpack.c.l.b16 %v834
        %v3092 = vunpack.c.h.b16 %v834
        %v3093 = vunpack.c.l.b16 %v835
        %v3094 = vunpack.c.h.b16 %v835
        %v3095 = vunpack.c.l.b16 %v836
        %v3096 = vunpack.c.h.b16 %v836
        %v3097 = vunpack.c.l.b16 %v837
        %v3098 = vunpack.c.h.b16 %v837
        %v3099 = vunpack.c.l.b16 %v838
        %v3100 = vunpack.c.h.b16 %v838
        %v3101 = vunpack.c.l.b16 %v839
        %v3102 = vunpack.c.h.b16 %v839
        %v3103 = vunpack.c.l.b16 %v840
        %v3104 = vunpack.c.h.b16 %v840
        %v3105 = vunpack.c.l.b16 %v841
        %v3106 = vunpack.c.h.b16 %v841
        %v3107 = vunpack.c.l.b16 %v842
        %v3108 = vunpack.c.h.b16 %v842
        %v3109 = vunpack.c.l.b16 %v843
        %v3110 = vunpack.c.h.b16 %v843
        %v3111 = vunpack.c.l.b16 %v844
        %v3112 = vunpack.c.h.b16 %v844
        %v3113 = vunpack.c.l.b16 %v845
        %v3114 = vunpack.c.h.b16 %v845
        %v3115 = vunpack.c.l.b16 %v846
        %v3116 = vunpack.c.h.b16 %v846
        %v3117 = vunpack.c.l.b16 %v847
        %v3118 = vunpack.c.h.b16 %v847
        %v3119 = vunpack.c.l.b16 %v848
        %v3120 = vunpack.c.h.b16 %v848
        %v3121 = vunpack.c.l.b16 %v849
        %v3122 = vunpack.c.h.b16 %v849
        %v3123 = vunpack.c.l.b16 %v850
        %v3124 = vunpack.c.h.b16 %v850
        %v3125 = vunpack.c.l.b16 %v851
        %v3126 = vunpack.c.h.b16 %v851
        %v3127 = vunpack.c.l.b16 %v852
        %v3128 = vunpack.c.h.b16 %v852
        %v3129 = vunpack.c.l.b16 %v853
        %v3130 = vunpack.c.h.b16 %v853
        %v3131 = vunpack.c.l.b16 %v854
        %v3132 = vunpack.c.h.b16 %v854
        %v3133 = vunpack.c.l.b16 %v855
        %v3134 = vunpack.c.h.b16 %v855
        %v3135 = vunpack.c.l.b16 %v856
        %v3136 = vunpack.c.h.b16 %v856
        %v3137 = vunpack.c.l.b16 %v857
        %v3138 = vunpack.c.h.b16 %v857
        %v3139 = vunpack.c.l.b16 %v858
        %v3140 = vunpack.c.h.b16 %v858
        %v3141 = vunpack.c.l.b16 %v859
        %v3142 = vunpack.c.h.b16 %v859
        %v3143 = vunpack.c.l.b16 %v860
        %v3144 = vunpack.c.h.b16 %v860
        %v3145 = vunpack.c.l.b16 %v861
        %v3146 = vunpack.c.h.b16 %v861
        %v3147 = vunpack.c.l.b16 %v862
        %v3148 = vunpack.c.h.b16 %v862
        %v3149 = vunpack.c.l.b16 %v863
        %v3150 = vunpack.c.h.b16 %v863
        %v3151 = vunpack.c.l.b16 %v864
        %v3152 = vunpack.c.h.b16 %v864
        %v3153 = vunpack.c.l.b16 %v865
        %v3154 = vunpack.c.h.b16 %v865
        %v3155 = vunpack.c.l.b16 %v866
        %v3156 = vunpack.c.h.b16 %v866
        %v3157 = vunpack.c.l.b16 %v867
        %v3158 = vunpack.c.h.b16 %v867
        %v3159 = vunpack.c.l.b16 %v868
        %v3160 = vunpack.c.h.b16 %v868
        %v3161 = vunpack.c.l.b16 %v869
        %v3162 = vunpack.c.h.b16 %v869
        %v3163 = vunpack.c.l.b16 %v870
        %v3164 = vunpack.c.h.b16 %v870
        %v3165 = vunpack.c.l.b16 %v871
        %v3166 = vunpack.c.h.b16 %v871
        %v3167 = vunpack.c.l.b16 %v872
        %v3168 = vunpack.c.h.b16 %v872
        %v3169 = vunpack.c.l.b16 %v873
        %v3170 = vunpack.c.h.b16 %v873
        %v3171 = vunpack.c.l.b16 %v874
        %v3172 = vunpack.c.h.b16 %v874
        %v3173 = vunpack.c.l.b16 %v875
        %v3174 = vunpack.c.h.b16 %v875
        %v3175 = vunpack.c.l.b16 %v876
        %v3176 = vunpack.c.h.b16 %v876
        %v3177 = vunpack.c.l.b16 %v877
        %v3178 = vunpack.c.h.b16 %v877
        %v3179 = vunpack.c.l.b16 %v878
        %v3180 = vunpack.c.h.b16 %v878
        %v3181 = vunpack.c.l.b16 %v879
        %v3182 = vunpack.c.h.b16 %v879
        %v3183 = vunpack.c.l.b16 %v880
        %v3184 = vunpack.c.h.b16 %v880
        %v3185 = vunpack.c.l.b16 %v881
        %v3186 = vunpack.c.h.b16 %v881
        %v3187 = vunpack.c.l.b16 %v882
        %v3188 = vunpack.c.h.b16 %v882
        %v3189 = vunpack.c.l.b16 %v883
        %v3190 = vunpack.c.h.b16 %v883
        %v3191 = vunpack.c.l.b16 %v884
        %v3192 = vunpack.c.h.b16 %v884
        %v3193 = vunpack.c.l.b16 %v885
        %v3194 = vunpack.c.h.b16 %v885
        %v3195 = vunpack.c.l.b16 %v886
        %v3196 = vunpack.c.h.b16 %v886
        %v3197 = vunpack.c.l.b16 %v887
        %v3198 = vunpack.c.h.b16 %v887
        %v3199 = vunpack.c.l.b16 %v888
        %v3200 = vunpack.c.h.b16 %v888
        %v3201 = vunpack.c.l.b16 %v889
        %v3202 = vunpack.c.h.b16 %v889
        %v3203 = vunpack.c.l.b16 %v890
        %v3204 = vunpack.c.h.b16 %v890
        %v3205 = vunpack.c.l.b16 %v891
        %v3206 = vunpack.c.h.b16 %v891
        %v3207 = vunpack.c.l.b16 %v892
        %v3208 = vunpack.c.h.b16 %v892
        %v3209 = vunpack.c.l.b16 %v893
        %v3210 = vunpack.c.h.b16 %v893
        %v3211 = vunpack.c.l.b16 %v894
        %v3212 = vunpack.c.h.b16 %v894
        %v3213 = vunpack.c.l.b16 %v895
        %v3214 = vunpack.c.h.b16 %v895
        %v3215 = vunpack.c.l.b16 %v896
        %v3216 = vunpack.c.h.b16 %v896
        %v3217 = vunpack.c.l.b16 %v897
        %v3218 = vunpack.c.h.b16 %v897
        %v3219 = vunpack.c.l.b16 %v898
        %v3220 = vunpack.c.h.b16 %v898
        %v3221 = vunpack.c.l.b16 %v899
        %v3222 = vunpack.c.h.b16 %v899
        %v3223 = vunpack.c.l.b16 %v900
        %v3224 = vunpack.c.h.b16 %v900
        %v3225 = vunpack.c.l.b16 %v901
        %v3226 = vunpack.c.h.b16 %v901
        %v3227 = vunpack.c.l.b16 %v902
        %v3228 = vunpack.c.h.b16 %v902
        %v3229 = vunpack.c.l.b16 %v903
        %v3230 = vunpack.c.h.b16 %v903
        %v3231 = vunpack.c.l.b16 %v904
        %v3232 = vunpack.c.h.b16 %v904
        %v3233 = vunpack.c.l.b16 %v905
        %v3234 = vunpack.c.h.b16 %v905
        %v3235 = vunpack.c.l.b16 %v906
        %v3236 = vunpack.c.h.b16 %v906
        %v3237 = vunpack.c.l.b16 %v907
        %v3238 = vunpack.c.h.b16 %v907
        %v3239 = vunpack.c.l.b16 %v908
        %v3240 = vunpack.c.h.b16 %v908
        %v3241 = vunpack.c.l.b16 %v909
        %v3242 = vunpack.c.h.b16 %v909
        %v3243 = vunpack.c.l.b16 %v910
        %v3244 = vunpack.c.h.b16 %v910
        %v3245 = vunpack.c.l.b16 %v911
        %v3246 = vunpack.c.h.b16 %v911
        %v3247 = vunpack.c.l.b16 %v912
        %v3248 = vunpack.c.h.b16 %v912
        %v3249 = vunpack.c.l.b16 %v913
        %v3250 = vunpack.c.h.b16 %v913
        %v3251 = vunpack.c.l.b16 %v914
        %v3252 = vunpack.c.h.b16 %v914
        %v3253 = vunpack.c.l.b16 %v915
        %v3254 = vunpack.c.h.b16 %v915
        %v3255 = vunpack.c.l.b16 %v916
        %v3256 = vunpack.c.h.b16 %v916
        %v3257 = vunpack.c.l.b16 %v917
        %v3258 = vunpack.c.h.b16 %v917
        %v3259 = vunpack.c.l.b16 %v918
        %v3260 = vunpack.c.h.b16 %v918
        %v3261 = vunpack.c.l.b16 %v919
        %v3262 = vunpack.c.h.b16 %v919
        %v3263 = vunpack.c.l.b16 %v920
        %v3264 = vunpack.c.h.b16 %v920
        %v3265 = vunpack.c.l.b16 %v921
        %v3266 = vunpack.c.h.b16 %v921
        %v3267 = vunpack.c.l.b16 %v922
        %v3268 = vunpack.c.h.b16 %v922
        %v3269 = vunpack.c.l.b16 %v923
        %v3270 = vunpack.c.h.b16 %v923
        %v3271 = vunpack.c.l.b16 %v924
        %v3272 = vunpack.c.h.b16 %v924
        %v3273 = vunpack.c.l.b16 %v925
        %v3274 = vunpack.c.h.b16 %v925
        %v3275 = vunpack.c.l.b16 %v926
        %v3276 = vunpack.c.h.b16 %v926
        %v3277 = vunpack.c.l.b16 %v927
        %v3278 = vunpack.c.h.b16 %v927
        %v3279 = vunpack.c.l.b16 %v928
        %v3280 = vunpack.c.h.b16 %v928
        %v3281 = vunpack.c.l.b16 %v929
        %v3282 = vunpack.c.h.b16 %v929
        %v3283 = vunpack.c.l.b16 %v930
        %v3284 = vunpack.c.h.b16 %v930
        %v3285 = vunpack.c.l.b16 %v931
        %v3286 = vunpack.c.h.b16 %v931
        %v3287 = vunpack.c.l.b16 %v932
        %v3288 = vunpack.c.h.b16 %v932
        %v3289 = vunpack.c.l.b16 %v933
        %v3290 = vunpack.c.h.b16 %v933
        %v3291 = vunpack.c.l.b16 %v934
        %v3292 = vunpack.c.h.b16 %v934
        %v3293 = vunpack.c.l.b16 %v935
        %v3294 = vunpack.c.h.b16 %v935
        %v3295 = vunpack.c.l.b16 %v936
        %v3296 = vunpack.c.h.b16 %v936
        %v3297 = vunpack.c.l.b16 %v937
        %v3298 = vunpack.c.h.b16 %v937
        %v3299 = vunpack.c.l.b16 %v938
        %v3300 = vunpack.c.h.b16 %v938
        %v3301 = vunpack.c.l.b16 %v939
        %v3302 = vunpack.c.h.b16 %v939
        %v3303 = vunpack.c.l.b16 %v940
        %v3304 = vunpack.c.h.b16 %v940
        %v3305 = vunpack.c.l.b16 %v941
        %v3306 = vunpack.c.h.b16 %v941
        %v3307 = vunpack.c.l.b16 %v942
        %v3308 = vunpack.c.h.b16 %v942
        %v3309 = vunpack.c.l.b16 %v943
        %v3310 = vunpack.c.h.b16 %v943
        %v3311 = vunpack.c.l.b16 %v944
        %v3312 = vunpack.c.h.b16 %v944
        %v3313 = vunpack.c.l.b16 %v945
        %v3314 = vunpack.c.h.b16 %v945
        %v3315 = vunpack.c.l.b16 %v946
        %v3316 = vunpack.c.h.b16 %v946
        %v3317 = vunpack.c.l.b16 %v947
        %v3318 = vunpack.c.h.b16 %v947
        %v3319 = vunpack.c.l.b16 %v948
        %v3320 = vunpack.c.h.b16 %v948
        %v3321 = vunpack.c.l.b16 %v949
        %v3322 = vunpack.c.h.b16 %v949
        %v3323 = vunpack.c.l.b16 %v950
        %v3324 = vunpack.c.h.b16 %v950
        %v3325 = vunpack.c.l.b16 %v951
        %v3326 = vunpack.c.h.b16 %v951
        %v3327 = vunpack.c.l.b16 %v952
        %v3328 = vunpack.c.h.b16 %v952
        %v3329 = vunpack.c.l.b16 %v953
        %v3330 = vunpack.c.h.b16 %v953
        %v3331 = vunpack.c.l.b16 %v954
        %v3332 = vunpack.c.h.b16 %v954
        %v3333 = vunpack.c.l.b16 %v955
        %v3334 = vunpack.c.h.b16 %v955
        %v3335 = vunpack.c.l.b16 %v956
        %v3336 = vunpack.c.h.b16 %v956
        %v3337 = vunpack.c.l.b16 %v957
        %v3338 = vunpack.c.h.b16 %v957
        %v3339 = vunpack.c.l.b16 %v958
        %v3340 = vunpack.c.h.b16 %v958
        %v3341 = vunpack.c.l.b16 %v959
        %v3342 = vunpack.c.h.b16 %v959
        %v3343 = vunpack.c.l.b16 %v960
        %v3344 = vunpack.c.h.b16 %v960
        %v3345 = vunpack.c.l.b16 %v961
        %v3346 = vunpack.c.h.b16 %v961
        %v3347 = vunpack.c.l.b16 %v962
        %v3348 = vunpack.c.h.b16 %v962
        %v3349 = vunpack.c.l.b16 %v963
        %v3350 = vunpack.c.h.b16 %v963
        %v3351 = vunpack.c.l.b16 %v964
        %v3352 = vunpack.c.h.b16 %v964
        %v3353 = vunpack.c.l.b16 %v965
        %v3354 = vunpack.c.h.b16 %v965
        %v3355 = vunpack.c.l.b16 %v966
        %v3356 = vunpack.c.h.b16 %v966
        %v3357 = vunpack.c.l.b16 %v967
        %v3358 = vunpack.c.h.b16 %v967
        %v3359 = vunpack.c.l.b16 %v968
        %v3360 = vunpack.c.h.b16 %v968
        %v3361 = vunpack.c.l.b16 %v969
        %v3362 = vunpack.c.h.b16 %v969
        %v3363 = vunpack.c.l.b16 %v970
        %v3364 = vunpack.c.h.b16 %v970
        %v3365 = vunpack.c.l.b16 %v971
        %v3366 = vunpack.c.h.b16 %v971
        %v3367 = vunpack.c.l.b16 %v972
        %v3368 = vunpack.c.h.b16 %v972
        %v3369 = vunpack.c.l.b16 %v973
        %v3370 = vunpack.c.h.b16 %v973
        %v3371 = vunpack.c.l.b16 %v974
        %v3372 = vunpack.c.h.b16 %v974
        %v3373 = vunpack.c.l.b16 %v975
        %v3374 = vunpack.c.h.b16 %v975
        %v3375 = vunpack.c.l.b16 %v976
        %v3376 = vunpack.c.h.b16 %v976
        %v3377 = vunpack.c.l.b16 %v977
        %v3378 = vunpack.c.h.b16 %v977
        %v3379 = vunpack.c.l.b16 %v978
        %v3380 = vunpack.c.h.b16 %v978
        %v3381 = vunpack.c.l.b16 %v979
        %v3382 = vunpack.c.h.b16 %v979
        %v3383 = vunpack.c.l.b16 %v980
        %v3384 = vunpack.c.h.b16 %v980
        %v3385 = vunpack.c.l.b16 %v981
        %v3386 = vunpack.c.h.b16 %v981
        %v3387 = vunpack.c.l.b16 %v982
        %v3388 = vunpack.c.h.b16 %v982
        %v3389 = vunpack.c.l.b16 %v983
        %v3390 = vunpack.c.h.b16 %v983
        %v3391 = vunpack.c.l.b16 %v984
        %v3392 = vunpack.c.h.b16 %v984
        %v3393 = vunpack.c.l.b16 %v985
        %v3394 = vunpack.c.h.b16 %v985
        %v3395 = vunpack.c.l.b16 %v986
        %v3396 = vunpack.c.h.b16 %v986
        %v3397 = vunpack.c.l.b16 %v987
        %v3398 = vunpack.c.h.b16 %v987
        %v3399 = vunpack.c.l.b16 %v988
        %v3400 = vunpack.c.h.b16 %v988
        %v3401 = vunpack.c.l.b16 %v989
        %v3402 = vunpack.c.h.b16 %v989
        %v3403 = vunpack.c.l.b16 %v990
        %v3404 = vunpack.c.h.b16 %v990
        %v3405 = vunpack.c.l.b16 %v991
        %v3406 = vunpack.c.h.b16 %v991
        %v3407 = vunpack.c.l.b16 %v992
        %v3408 = vunpack.c.h.b16 %v992
        %v3409 = vunpack.c.l.b16 %v993
        %v3410 = vunpack.c.h.b16 %v993
        %v3411 = vunpack.c.l.b16 %v994
        %v3412 = vunpack.c.h.b16 %v994
        %v3413 = vunpack.c.l.b16 %v995
        %v3414 = vunpack.c.h.b16 %v995
        %v3415 = vunpack.c.l.b16 %v996
        %v3416 = vunpack.c.h.b16 %v996
        %v3417 = vunpack.c.l.b16 %v997
        %v3418 = vunpack.c.h.b16 %v997
        %v3419 = vunpack.c.l.b16 %v998
        %v3420 = vunpack.c.h.b16 %v998
        %v3421 = vunpack.c.l.b16 %v999
        %v3422 = vunpack.c.h.b16 %v999
        %v3423 = vunpack.c.l.b16 %v1000
        %v3424 = vunpack.c.h.b16 %v1000
        %v3425 = vunpack.c.l.b16 %v1001
        %v3426 = vunpack.c.h.b16 %v1001
        %v3427 = vunpack.c.l.b16 %v1002
        %v3428 = vunpack.c.h.b16 %v1002
        %v3429 = vunpack.c.l.b16 %v1003
        %v3430 = vunpack.c.h.b16 %v1003
        %v3431 = vunpack.c.l.b16 %v1004
        %v3432 = vunpack.c.h.b16 %v1004
        %v3433 = vunpack.c.l.b16 %v1005
        %v3434 = vunpack.c.h.b16 %v1005
        %v3435 = vunpack.c.l.b16 %v1006
        %v3436 = vunpack.c.h.b16 %v1006
        %v3437 = vunpack.c.l.b16 %v1007
        %v3438 = vunpack.c.h.b16 %v1007
        %v3439 = vunpack.c.l.b16 %v1008
        %v3440 = vunpack.c.h.b16 %v1008
        %v3441 = vunpack.c.l.b16 %v1009
        %v3442 = vunpack.c.h.b16 %v1009
        %v3443 = vunpack.c.l.b16 %v1010
        %v3444 = vunpack.c.h.b16 %v1010
        %v3445 = vunpack.c.l.b16 %v1011
        %v3446 = vunpack.c.h.b16 %v1011
        %v3447 = vunpack.c.l.b16 %v1012
        %v3448 = vunpack.c.h.b16 %v1012
        %v3449 = vunpack.c.l.b16 %v1013
        %v3450 = vunpack.c.h.b16 %v1013
        %v3451 = vunpack.c.l.b16 %v1014
        %v3452 = vunpack.c.h.b16 %v1014
        %v3453 = vunpack.c.l.b16 %v1015
        %v3454 = vunpack.c.h.b16 %v1015
        %v3455 = vunpack.c.l.b16 %v1016
        %v3456 = vunpack.c.h.b16 %v1016
        %v3457 = vunpack.c.l.b16 %v1017
        %v3458 = vunpack.c.h.b16 %v1017
        %v3459 = vunpack.c.l.b16 %v1018
        %v3460 = vunpack.c.h.b16 %v1018
        %v3461 = vunpack.c.l.b16 %v1019
        %v3462 = vunpack.c.h.b16 %v1019
        %v3463 = vunpack.c.l.b16 %v1020
        %v3464 = vunpack.c.h.b16 %v1020
        %v3465 = vunpack.c.l.b16 %v1021
        %v3466 = vunpack.c.h.b16 %v1021
        %v3467 = vunpack.c.l.b16 %v1022
        %v3468 = vunpack.c.h.b16 %v1022
        %v3469 = vunpack.c.l.b16 %v1023
        %v3470 = vunpack.c.h.b16 %v1023
        %v3471 = vunpack.c.l.b16 %v1024
        %v3472 = vunpack.c.h.b16 %v1024
        %v3473 = vunpack.c.l.b16 %v1025
        %v3474 = vunpack.c.h.b16 %v1025
        %v3475 = vunpack.c.l.b16 %v1026
        %v3476 = vunpack.c.h.b16 %v1026
        %v3477 = vunpack.c.l.b16 %v1027
        %v3478 = vunpack.c.h.b16 %v1027
        %v3479 = vunpack.c.l.b16 %v1028
        %v3480 = vunpack.c.h.b16 %v1028
        %v3481 = vunpack.c.l.b16 %v1029
        %v3482 = vunpack.c.h.b16 %v1029
        %v3483 = vunpack.c.l.b16 %v1030
        %v3484 = vunpack.c.h.b16 %v1030
        %v3485 = vunpack.c.l.b16 %v1031
        %v3486 = vunpack.c.h.b16 %v1031
        %v3487 = vunpack.c.l.b16 %v1032
        %v3488 = vunpack.c.h.b16 %v1032
        %v3489 = vunpack.c.l.b16 %v1033
        %v3490 = vunpack.c.h.b16 %v1033
        %v3491 = vunpack.c.l.b16 %v1034
        %v3492 = vunpack.c.h.b16 %v1034
        %v3493 = vunpack.c.l.b16 %v1035
        %v3494 = vunpack.c.h.b16 %v1035
        %v3495 = vunpack.c.l.b16 %v1036
        %v3496 = vunpack.c.h.b16 %v1036
        %v3497 = vunpack.c.l.b16 %v1037
        %v3498 = vunpack.c.h.b16 %v1037
        %v3499 = vunpack.c.l.b16 %v1038
        %v3500 = vunpack.c.h.b16 %v1038
        %v3501 = vunpack.c.l.b16 %v1039
        %v3502 = vunpack.c.h.b16 %v1039
        %v3503 = vunpack.c.l.b16 %v1040
        %v3504 = vunpack.c.h.b16 %v1040
        %v3505 = vpack.c.b16 %v2613, %v2609
        %v3506 = vpack.c.b16 %v2614, %v2610
        %v3507 = vpack.c.b16 %v2615, %v2611
        %v3508 = vpack.c.b16 %v2616, %v2612
        %v3509 = vpack.c.b16 %v2621, %v2617
        %v3510 = vpack.c.b16 %v2622, %v2618
        %v3511 = vpack.c.b16 %v2623, %v2619
        %v3512 = vpack.c.b16 %v2624, %v2620
        %v3513 = vpack.c.b16 %v2629, %v2625
        %v3514 = vpack.c.b16 %v2630, %v2626
        %v3515 = vpack.c.b16 %v2631, %v2627
        %v3516 = vpack.c.b16 %v2632, %v2628
        %v3517 = vpack.c.b16 %v2637, %v2633
        %v3518 = vpack.c.b16 %v2638, %v2634
        %v3519 = vpack.c.b16 %v2639, %v2635
        %v3520 = vpack.c.b16 %v2640, %v2636
        %v3521 = vpack.c.b16 %v2645, %v2641
        %v3522 = vpack.c.b16 %v2646, %v2642
        %v3523 = vpack.c.b16 %v2647, %v2643
        %v3524 = vpack.c.b16 %v2648, %v2644
        %v3525 = vpack.c.b16 %v2653, %v2649
        %v3526 = vpack.c.b16 %v2654, %v2650
        %v3527 = vpack.c.b16 %v2655, %v2651
        %v3528 = vpack.c.b16 %v2656, %v2652
        %v3529 = vpack.c.b16 %v2661, %v2657
        %v3530 = vpack.c.b16 %v2662, %v2658
        %v3531 = vpack.c.b16 %v2663, %v2659
        %v3532 = vpack.c.b16 %v2664, %v2660
        %v3533 = vpack.c.b16 %v2669, %v2665
        %v3534 = vpack.c.b16 %v2670, %v2666
        %v3535 = vpack.c.b16 %v2671, %v2667
        %v3536 = vpack.c.b16 %v2672, %v2668
        %v3537 = vpack.c.b16 %v2677, %v2673
        %v3538 = vpack.c.b16 %v2678, %v2674
        %v3539 = vpack.c.b16 %v2679, %v2675
        %v3540 = vpack.c.b16 %v2680, %v2676
        %v3541 = vpack.c.b16 %v2685, %v2681
        %v3542 = vpack.c.b16 %v2686, %v2682
        %v3543 = vpack.c.b16 %v2687, %v2683
        %v3544 = vpack.c.b16 %v2688, %v2684
        %v3545 = vpack.c.b16 %v2693, %v2689
        %v3546 = vpack.c.b16 %v2694, %v2690
        %v3547 = vpack.c.b16 %v2695, %v2691
        %v3548 = vpack.c.b16 %v2696, %v2692
        %v3549 = vpack.c.b16 %v2701, %v2697
        %v3550 = vpack.c.b16 %v2702, %v2698
        %v3551 = vpack.c.b16 %v2703, %v2699
        %v3552 = vpack.c.b16 %v2704, %v2700
        %v3553 = vpack.c.b16 %v2709, %v2705
        %v3554 = vpack.c.b16 %v2710, %v2706
        %v3555 = vpack.c.b16 %v2711, %v2707
        %v3556 = vpack.c.b16 %v2712, %v2708
        %v3557 = vpack.c.b16 %v2717, %v2713
        %v3558 = vpack.c.b16 %v2718, %v2714
        %v3559 = vpack.c.b16 %v2719, %v2715
        %v3560 = vpack.c.b16 %v2720, %v2716
        %v3561 = vpack.c.b16 %v2725, %v2721
        %v3562 = vpack.c.b16 %v2726, %v2722
        %v3563 = vpack.c.b16 %v2727, %v2723
        %v3564 = vpack.c.b16 %v2728, %v2724
        %v3565 = vpack.c.b16 %v2733, %v2729
        %v3566 = vpack.c.b16 %v2734, %v2730
        %v3567 = vpack.c.b16 %v2735, %v2731
        %v3568 = vpack.c.b16 %v2736, %v2732
        %v3569 = vpack.c.b16 %v2741, %v2737
        %v3570 = vpack.c.b16 %v2742, %v2738
        %v3571 = vpack.c.b16 %v2743, %v2739
        %v3572 = vpack.c.b16 %v2744, %v2740
        %v3573 = vpack.c.b16 %v2749, %v2745
        %v3574 = vpack.c.b16 %v2750, %v2746
        %v3575 = vpack.c.b16 %v2751, %v2747
        %v3576 = vpack.c.b16 %v2752, %v2748
        %v3577 = vpack.c.b16 %v2757, %v2753
        %v3578 = vpack.c.b16 %v2758, %v2754
        %v3579 = vpack.c.b16 %v2759, %v2755
        %v3580 = vpack.c.b16 %v2760, %v2756
        %v3581 = vpack.c.b16 %v2765, %v2761
        %v3582 = vpack.c.b16 %v2766, %v2762
        %v3583 = vpack.c.b16 %v2767, %v2763
        %v3584 = vpack.c.b16 %v2768, %v2764
        %v3585 = vpack.c.b16 %v2773, %v2769
        %v3586 = vpack.c.b16 %v2774, %v2770
        %v3587 = vpack.c.b16 %v2775, %v2771
        %v3588 = vpack.c.b16 %v2776, %v2772
        %v3589 = vpack.c.b16 %v2781, %v2777
        %v3590 = vpack.c.b16 %v2782, %v2778
        %v3591 = vpack.c.b16 %v2783, %v2779
        %v3592 = vpack.c.b16 %v2784, %v2780
        %v3593 = vpack.c.b16 %v2789, %v2785
        %v3594 = vpack.c.b16 %v2790, %v2786
        %v3595 = vpack.c.b16 %v2791, %v2787
        %v3596 = vpack.c.b16 %v2792, %v2788
        %v3597 = vpack.c.b16 %v2797, %v2793
        %v3598 = vpack.c.b16 %v2798, %v2794
        %v3599 = vpack.c.b16 %v2799, %v2795
        %v3600 = vpack.c.b16 %v2800, %v2796
        %v3601 = vpack.c.b16 %v2805, %v2801
        %v3602 = vpack.c.b16 %v2806, %v2802
        %v3603 = vpack.c.b16 %v2807, %v2803
        %v3604 = vpack.c.b16 %v2808, %v2804
        %v3605 = vpack.c.b16 %v2813, %v2809
        %v3606 = vpack.c.b16 %v2814, %v2810
        %v3607 = vpack.c.b16 %v2815, %v2811
        %v3608 = vpack.c.b16 %v2816, %v2812
        %v3609 = vpack.c.b16 %v2821, %v2817
        %v3610 = vpack.c.b16 %v2822, %v2818
        %v3611 = vpack.c.b16 %v2823, %v2819
        %v3612 = vpack.c.b16 %v2824, %v2820
        %v3613 = vpack.c.b16 %v2829, %v2825
        %v3614 = vpack.c.b16 %v2830, %v2826
        %v3615 = vpack.c.b16 %v2831, %v2827
        %v3616 = vpack.c.b16 %v2832, %v2828
        %v3617 = vpack.c.b16 %v2837, %v2833
        %v3618 = vpack.c.b16 %v2838, %v2834
        %v3619 = vpack.c.b16 %v2839, %v2835
        %v3620 = vpack.c.b16 %v2840, %v2836
        %v3621 = vpack.c.b16 %v2845, %v2841
        %v3622 = vpack.c.b16 %v2846, %v2842
        %v3623 = vpack.c.b16 %v2847, %v2843
        %v3624 = vpack.c.b16 %v2848, %v2844
        %v3625 = vpack.c.b16 %v2853, %v2849
        %v3626 = vpack.c.b16 %v2854, %v2850
        %v3627 = vpack.c.b16 %v2855, %v2851
        %v3628 = vpack.c.b16 %v2856, %v2852
        %v3629 = vpack.c.b16 %v2861, %v2857
        %v3630 = vpack.c.b16 %v2862, %v2858
        %v3631 = vpack.c.b16 %v2863, %v2859
        %v3632 = vpack.c.b16 %v2864, %v2860
        %v3633 = vpack.c.b16 %v2869, %v2865
        %v3634 = vpack.c.b16 %v2870, %v2866
        %v3635 = vpack.c.b16 %v2871, %v2867
        %v3636 = vpack.c.b16 %v2872, %v2868
        %v3637 = vpack.c.b16 %v2877, %v2873
        %v3638 = vpack.c.b16 %v2878, %v2874
        %v3639 = vpack.c.b16 %v2879, %v2875
        %v3640 = vpack.c.b16 %v2880, %v2876
        %v3641 = vpack.c.b16 %v2885, %v2881
        %v3642 = vpack.c.b16 %v2886, %v2882
        %v3643 = vpack.c.b16 %v2887, %v2883
        %v3644 = vpack.c.b16 %v2888, %v2884
        %v3645 = vpack.c.b16 %v2893, %v2889
        %v3646 = vpack.c.b16 %v2894, %v2890
        %v3647 = vpack.c.b16 %v2895, %v2891
        %v3648 = vpack.c.b16 %v2896, %v2892
        %v3649 = vpack.c.b16 %v2901, %v2897
        %v3650 = vpack.c.b16 %v2902, %v2898
        %v3651 = vpack.c.b16 %v2903, %v2899
        %v3652 = vpack.c.b16 %v2904, %v2900
        %v3653 = vpack.c.b16 %v2909, %v2905
        %v3654 = vpack.c.b16 %v2910, %v2906
        %v3655 = vpack.c.b16 %v2911, %v2907
        %v3656 = vpack.c.b16 %v2912, %v2908
        %v3657 = vpack.c.b16 %v2917, %v2913
        %v3658 = vpack.c.b16 %v2918, %v2914
        %v3659 = vpack.c.b16 %v2919, %v2915
        %v3660 = vpack.c.b16 %v2920, %v2916
        %v3661 = vpack.c.b16 %v2925, %v2921
        %v3662 = vpack.c.b16 %v2926, %v2922
        %v3663 = vpack.c.b16 %v2927, %v2923
        %v3664 = vpack.c.b16 %v2928, %v2924
        %v3665 = vpack.c.b16 %v2933, %v2929
        %v3666 = vpack.c.b16 %v2934, %v2930
        %v3667 = vpack.c.b16 %v2935, %v2931
        %v3668 = vpack.c.b16 %v2936, %v2932
        %v3669 = vpack.c.b16 %v2941, %v2937
        %v3670 = vpack.c.b16 %v2942, %v2938
        %v3671 = vpack.c.b16 %v2943, %v2939
        %v3672 = vpack.c.b16 %v2944, %v2940
        %v3673 = vpack.c.b16 %v2949, %v2945
        %v3674 = vpack.c.b16 %v2950, %v2946
        %v3675 = vpack.c.b16 %v2951, %v2947
        %v3676 = vpack.c.b16 %v2952, %v2948
        %v3677 = vpack.c.b16 %v2957, %v2953
        %v3678 = vpack.c.b16 %v2958, %v2954
        %v3679 = vpack.c.b16 %v2959, %v2955
        %v3680 = vpack.c.b16 %v2960, %v2956
        %v3681 = vpack.c.b16 %v2965, %v2961
        %v3682 = vpack.c.b16 %v2966, %v2962
        %v3683 = vpack.c.b16 %v2967, %v2963
        %v3684 = vpack.c.b16 %v2968, %v2964
        %v3685 = vpack.c.b16 %v2973, %v2969
        %v3686 = vpack.c.b16 %v2974, %v2970
        %v3687 = vpack.c.b16 %v2975, %v2971
        %v3688 = vpack.c.b16 %v2976, %v2972
        %v3689 = vpack.c.b16 %v2981, %v2977
        %v3690 = vpack.c.b16 %v2982, %v2978
        %v3691 = vpack.c.b16 %v2983, %v2979
        %v3692 = vpack.c.b16 %v2984, %v2980
        %v3693 = vpack.c.b16 %v2989, %v2985
        %v3694 = vpack.c.b16 %v2990, %v2986
        %v3695 = vpack.c.b16 %v2991, %v2987
        %v3696 = vpack.c.b16 %v2992, %v2988
        %v3697 = vpack.c.b16 %v2997, %v2993
        %v3698 = vpack.c.b16 %v2998, %v2994
        %v3699 = vpack.c.b16 %v2999, %v2995
        %v3700 = vpack.c.b16 %v3000, %v2996
        %v3701 = vpack.c.b16 %v3005, %v3001
        %v3702 = vpack.c.b16 %v3006, %v3002
        %v3703 = vpack.c.b16 %v3007, %v3003
        %v3704 = vpack.c.b16 %v3008, %v3004
        %v3705 = vpack.c.b16 %v3013, %v3009
        %v3706 = vpack.c.b16 %v3014, %v3010
        %v3707 = vpack.c.b16 %v3015, %v3011
        %v3708 = vpack.c.b16 %v3016, %v3012
        %v3709 = vpack.c.b16 %v3021, %v3017
        %v3710 = vpack.c.b16 %v3022, %v3018
        %v3711 = vpack.c.b16 %v3023, %v3019
        %v3712 = vpack.c.b16 %v3024, %v3020
        %v3713 = vpack.c.b16 %v3029, %v3025
        %v3714 = vpack.c.b16 %v3030, %v3026
        %v3715 = vpack.c.b16 %v3031, %v3027
        %v3716 = vpack.c.b16 %v3032, %v3028
        %v3717 = vpack.c.b16 %v3037, %v3033
        %v3718 = vpack.c.b16 %v3038, %v3034
        %v3719 = vpack.c.b16 %v3039, %v3035
        %v3720 = vpack.c.b16 %v3040, %v3036
        %v3721 = vpack.c.b16 %v3045, %v3041
        %v3722 = vpack.c.b16 %v3046, %v3042
        %v3723 = vpack.c.b16 %v3047, %v3043
        %v3724 = vpack.c.b16 %v3048, %v3044
        %v3725 = vpack.c.b16 %v3053, %v3049
        %v3726 = vpack.c.b16 %v3054, %v3050
        %v3727 = vpack.c.b16 %v3055, %v3051
        %v3728 = vpack.c.b16 %v3056, %v3052
        %v3729 = vpack.c.b16 %v3061, %v3057
        %v3730 = vpack.c.b16 %v3062, %v3058
        %v3731 = vpack.c.b16 %v3063, %v3059
        %v3732 = vpack.c.b16 %v3064, %v3060
        %v3733 = vpack.c.b16 %v3069, %v3065
        %v3734 = vpack.c.b16 %v3070, %v3066
        %v3735 = vpack.c.b16 %v3071, %v3067
        %v3736 = vpack.c.b16 %v3072, %v3068
        %v3737 = vpack.c.b16 %v3077, %v3073
        %v3738 = vpack.c.b16 %v3078, %v3074
        %v3739 = vpack.c.b16 %v3079, %v3075
        %v3740 = vpack.c.b16 %v3080, %v3076
        %v3741 = vpack.c.b16 %v3085, %v3081
        %v3742 = vpack.c.b16 %v3086, %v3082
        %v3743 = vpack.c.b16 %v3087, %v3083
        %v3744 = vpack.c.b16 %v3088, %v3084
        %v3745 = vpack.c.b16 %v3093, %v3089
        %v3746 = vpack.c.b16 %v3094, %v3090
        %v3747 = vpack.c.b16 %v3095, %v3091
        %v3748 = vpack.c.b16 %v3096, %v3092
        %v3749 = vpack.c.b16 %v3101, %v3097
        %v3750 = vpack.c.b16 %v3102, %v3098
        %v3751 = vpack.c.b16 %v3103, %v3099
        %v3752 = vpack.c.b16 %v3104, %v3100
        %v3753 = vpack.c.b16 %v3109, %v3105
        %v3754 = vpack.c.b16 %v3110, %v3106
        %v3755 = vpack.c.b16 %v3111, %v3107
        %v3756 = vpack.c.b16 %v3112, %v3108
        %v3757 = vpack.c.b16 %v3117, %v3113
        %v3758 = vpack.c.b16 %v3118, %v3114
        %v3759 = vpack.c.b16 %v3119, %v3115
        %v3760 = vpack.c.b16 %v3120, %v3116
        %v3761 = vpack.c.b16 %v3125, %v3121
        %v3762 = vpack.c.b16 %v3126, %v3122
        %v3763 = vpack.c.b16 %v3127, %v3123
        %v3764 = vpack.c.b16 %v3128, %v3124
        %v3765 = vpack.c.b16 %v3133, %v3129
        %v3766 = vpack.c.b16 %v3134, %v3130
        %v3767 = vpack.c.b16 %v3135, %v3131
        %v3768 = vpack.c.b16 %v3136, %v3132
        %v3769 = vpack.c.b16 %v3141, %v3137
        %v3770 = vpack.c.b16 %v3142, %v3138
        %v3771 = vpack.c.b16 %v3143, %v3139
        %v3772 = vpack.c.b16 %v3144, %v3140
        %v3773 = vpack.c.b16 %v3149, %v3145
        %v3774 = vpack.c.b16 %v3150, %v3146
        %v3775 = vpack.c.b16 %v3151, %v3147
        %v3776 = vpack.c.b16 %v3152, %v3148
        %v3777 = vpack.c.b16 %v3157, %v3153
        %v3778 = vpack.c.b16 %v3158, %v3154
        %v3779 = vpack.c.b16 %v3159, %v3155
        %v3780 = vpack.c.b16 %v3160, %v3156
        %v3781 = vpack.c.b16 %v3165, %v3161
        %v3782 = vpack.c.b16 %v3166, %v3162
        %v3783 = vpack.c.b16 %v3167, %v3163
        %v3784 = vpack.c.b16 %v3168, %v3164
        %v3785 = vpack.c.b16 %v3173, %v3169
        %v3786 = vpack.c.b16 %v3174, %v3170
        %v3787 = vpack.c.b16 %v3175, %v3171
        %v3788 = vpack.c.b16 %v3176, %v3172
        %v3789 = vpack.c.b16 %v3181, %v3177
        %v3790 = vpack.c.b16 %v3182, %v3178
        %v3791 = vpack.c.b16 %v3183, %v3179
        %v3792 = vpack.c.b16 %v3184, %v3180
        %v3793 = vpack.c.b16 %v3189, %v3185
        %v3794 = vpack.c.b16 %v3190, %v3186
        %v3795 = vpack.c.b16 %v3191, %v3187
        %v3796 = vpack.c.b16 %v3192, %v3188
        %v3797 = vpack.c.b16 %v3197, %v3193
        %v3798 = vpack.c.b16 %v3198, %v3194
        %v3799 = vpack.c.b16 %v3199, %v3195
        %v3800 = vpack.c.b16 %v3200, %v3196
        %v3801 = vpack.c.b16 %v3205, %v3201
        %v3802 = vpack.c.b16 %v3206, %v3202
        %v3803 = vpack.c.b16 %v3207, %v3203
        %v3804 = vpack.c.b16 %v3208, %v3204
        %v3805 = vpack.c.b16 %v3213, %v3209
        %v3806 = vpack.c.b16 %v3214, %v3210
        %v3807 = vpack.c.b16 %v3215, %v3211
        %v3808 = vpack.c.b16 %v3216, %v3212
        %v3809 = vpack.c.b16 %v3221, %v3217
        %v3810 = vpack.c.b16 %v3222, %v3218
        %v3811 = vpack.c.b16 %v3223, %v3219
        %v3812 = vpack.c.b16 %v3224, %v3220
        %v3813 = vpack.c.b16 %v3229, %v3225
        %v3814 = vpack.c.b16 %v3230, %v3226
        %v3815 = vpack.c.b16 %v3231, %v3227
        %v3816 = vpack.c.b16 %v3232, %v3228
        %v3817 = vpack.c.b16 %v3237, %v3233
        %v3818 = vpack.c.b16 %v3238, %v3234
        %v3819 = vpack.c.b16 %v3239, %v3235
        %v3820 = vpack.c.b16 %v3240, %v3236
        %v3821 = vpack.c.b16 %v3245, %v3241
        %v3822 = vpack.c.b16 %v3246, %v3242
        %v3823 = vpack.c.b16 %v3247, %v3243
        %v3824 = vpack.c.b16 %v3248, %v3244
        %v3825 = vpack.c.b16 %v3253, %v3249
        %v3826 = vpack.c.b16 %v3254, %v3250
        %v3827 = vpack.c.b16 %v3255, %v3251
        %v3828 = vpack.c.b16 %v3256, %v3252
        %v3829 = vpack.c.b16 %v3261, %v3257
        %v3830 = vpack.c.b16 %v3262, %v3258
        %v3831 = vpack.c.b16 %v3263, %v3259
        %v3832 = vpack.c.b16 %v3264, %v3260
        %v3833 = vpack.c.b16 %v3269, %v3265
        %v3834 = vpack.c.b16 %v3270, %v3266
        %v3835 = vpack.c.b16 %v3271, %v3267
        %v3836 = vpack.c.b16 %v3272, %v3268
        %v3837 = vpack.c.b16 %v3277, %v3273
        %v3838 = vpack.c.b16 %v3278, %v3274
        %v3839 = vpack.c.b16 %v3279, %v3275
        %v3840 = vpack.c.b16 %v3280, %v3276
        %v3841 = vpack.c.b16 %v3285, %v3281
        %v3842 = vpack.c.b16 %v3286, %v3282
        %v3843 = vpack.c.b16 %v3287, %v3283
        %v3844 = vpack.c.b16 %v3288, %v3284
        %v3845 = vpack.c.b16 %v3293, %v3289
        %v3846 = vpack.c.b16 %v3294, %v3290
        %v3847 = vpack.c.b16 %v3295, %v3291
        %v3848 = vpack.c.b16 %v3296, %v3292
        %v3849 = vpack.c.b16 %v3301, %v3297
        %v3850 = vpack.c.b16 %v3302, %v3298
        %v3851 = vpack.c.b16 %v3303, %v3299
        %v3852 = vpack.c.b16 %v3304, %v3300
        %v3853 = vpack.c.b16 %v3309, %v3305
        %v3854 = vpack.c.b16 %v3310, %v3306
        %v3855 = vpack.c.b16 %v3311, %v3307
        %v3856 = vpack.c.b16 %v3312, %v3308
        %v3857 = vpack.c.b16 %v3317, %v3313
        %v3858 = vpack.c.b16 %v3318, %v3314
        %v3859 = vpack.c.b16 %v3319, %v3315
        %v3860 = vpack.c.b16 %v3320, %v3316
        %v3861 = vpack.c.b16 %v3325, %v3321
        %v3862 = vpack.c.b16 %v3326, %v3322
        %v3863 = vpack.c.b16 %v3327, %v3323
        %v3864 = vpack.c.b16 %v3328, %v3324
        %v3865 = vpack.c.b16 %v3333, %v3329
        %v3866 = vpack.c.b16 %v3334, %v3330
        %v3867 = vpack.c.b16 %v3335, %v3331
        %v3868 = vpack.c.b16 %v3336, %v3332
        %v3869 = vpack.c.b16 %v3341, %v3337
        %v3870 = vpack.c.b16 %v3342, %v3338
        %v3871 = vpack.c.b16 %v3343, %v3339
        %v3872 = vpack.c.b16 %v3344, %v3340
        %v3873 = vpack.c.b16 %v3349, %v3345
        %v3874 = vpack.c.b16 %v3350, %v3346
        %v3875 = vpack.c.b16 %v3351, %v3347
        %v3876 = vpack.c.b16 %v3352, %v3348
        %v3877 = vpack.c.b16 %v3357, %v3353
        %v3878 = vpack.c.b16 %v3358, %v3354
        %v3879 = vpack.c.b16 %v3359, %v3355
        %v3880 = vpack.c.b16 %v3360, %v3356
        %v3881 = vpack.c.b16 %v3365, %v3361
        %v3882 = vpack.c.b16 %v3366, %v3362
        %v3883 = vpack.c.b16 %v3367, %v3363
        %v3884 = vpack.c.b16 %v3368, %v3364
        %v3885 = vpack.c.b16 %v3373, %v3369
        %v3886 = vpack.c.b16 %v3374, %v3370
        %v3887 = vpack.c.b16 %v3375, %v3371
        %v3888 = vpack.c.b16 %v3376, %v3372
        %v3889 = vpack.c.b16 %v3381, %v3377
        %v3890 = vpack.c.b16 %v3382, %v3378
        %v3891 = vpack.c.b16 %v3383, %v3379
        %v3892 = vpack.c.b16 %v3384, %v3380
        %v3893 = vpack.c.b16 %v3389, %v3385
        %v3894 = vpack.c.b16 %v3390, %v3386
        %v3895 = vpack.c.b16 %v3391, %v3387
        %v3896 = vpack.c.b16 %v3392, %v3388
        %v3897 = vpack.c.b16 %v3397, %v3393
        %v3898 = vpack.c.b16 %v3398, %v3394
        %v3899 = vpack.c.b16 %v3399, %v3395
        %v3900 = vpack.c.b16 %v3400, %v3396
        %v3901 = vpack.c.b16 %v3405, %v3401
        %v3902 = vpack.c.b16 %v3406, %v3402
        %v3903 = vpack.c.b16 %v3407, %v3403
        %v3904 = vpack.c.b16 %v3408, %v3404
        %v3905 = vpack.c.b16 %v3413, %v3409
        %v3906 = vpack.c.b16 %v3414, %v3410
        %v3907 = vpack.c.b16 %v3415, %v3411
        %v3908 = vpack.c.b16 %v3416, %v3412
        %v3909 = vpack.c.b16 %v3421, %v3417
        %v3910 = vpack.c.b16 %v3422, %v3418
        %v3911 = vpack.c.b16 %v3423, %v3419
        %v3912 = vpack.c.b16 %v3424, %v3420
        %v3913 = vpack.c.b16 %v3429, %v3425
        %v3914 = vpack.c.b16 %v3430, %v3426
        %v3915 = vpack.c.b16 %v3431, %v3427
        %v3916 = vpack.c.b16 %v3432, %v3428
        %v3917 = vpack.c.b16 %v3437, %v3433
        %v3918 = vpack.c.b16 %v3438, %v3434
        %v3919 = vpack.c.b16 %v3439, %v3435
        %v3920 = vpack.c.b16 %v3440, %v3436
        %v3921 = vpack.c.b16 %v3445, %v3441
        %v3922 = vpack.c.b16 %v3446, %v3442
        %v3923 = vpack.c.b16 %v3447, %v3443
        %v3924 = vpack.c.b16 %v3448, %v3444
        %v3925 = vpack.c.b16 %v3453, %v3449
        %v3926 = vpack.c.b16 %v3454, %v3450
        %v3927 = vpack.c.b16 %v3455, %v3451
        %v3928 = vpack.c.b16 %v3456, %v3452
        %v3929 = vpack.c.b16 %v3461, %v3457
        %v3930 = vpack.c.b16 %v3462, %v3458
        %v3931 = vpack.c.b16 %v3463, %v3459
        %v3932 = vpack.c.b16 %v3464, %v3460
        %v3933 = vpack.c.b16 %v3469, %v3465
        %v3934 = vpack.c.b16 %v3470, %v3466
        %v3935 = vpack.c.b16 %v3471, %v3467
        %v3936 = vpack.c.b16 %v3472, %v3468
        %v3937 = vpack.c.b16 %v3477, %v3473
        %v3938 = vpack.c.b16 %v3478, %v3474
        %v3939 = vpack.c.b16 %v3479, %v3475
        %v3940 = vpack.c.b16 %v3480, %v3476
        %v3941 = vpack.c.b16 %v3485, %v3481
        %v3942 = vpack.c.b16 %v3486, %v3482
        %v3943 = vpack.c.b16 %v3487, %v3483
        %v3944 = vpack.c.b16 %v3488, %v3484
        %v3945 = vpack.c.b16 %v3493, %v3489
        %v3946 = vpack.c.b16 %v3494, %v3490
        %v3947 = vpack.c.b16 %v3495, %v3491
        %v3948 = vpack.c.b16 %v3496, %v3492
        %v3949 = vpack.c.b16 %v3501, %v3497
        %v3950 = vpack.c.b16 %v3502, %v3498
        %v3951 = vpack.c.b16 %v3503, %v3499
        %v3952 = vpack.c.b16 %v3504, %v3500
        %4401 = vmatprep.subr.bf16.mxu0 %v3506
        %4402 = vmatpush1.bf16.msra.mxu0 %v3505
        %4403 = vmatprep.subr.bf16.mxu0 %v3510
        %4404 = vmatpush1.bf16.msra.mxu0 %v3509
        %4405 = vmatprep.subr.bf16.mxu0 %v3514
        %4406 = vmatpush1.bf16.msra.mxu0 %v3513
        %4407 = vmatprep.subr.bf16.mxu0 %v3518
        %4408 = vmatpush1.bf16.msra.mxu0 %v3517
        %4409 = vmatprep.subr.bf16.mxu0 %v3522
        %4410 = vmatpush1.bf16.msra.mxu0 %v3521
        %4411 = vmatprep.subr.bf16.mxu0 %v3526
        %4412 = vmatpush1.bf16.msra.mxu0 %v3525
        %4413 = vmatprep.subr.bf16.mxu0 %v3530
        %4414 = vmatpush1.bf16.msra.mxu0 %v3529
        %4415 = vmatprep.subr.bf16.mxu0 %v3534
        %4416 = vmatpush1.bf16.msra.mxu0 %v3533
        %4417 = vmatprep.subr.bf16.mxu0 %v3538
        %4418 = vmatpush1.bf16.msra.mxu0 %v3537
        %4419 = vmatprep.subr.bf16.mxu0 %v3542
        %4420 = vmatpush1.bf16.msra.mxu0 %v3541
        %4421 = vmatprep.subr.bf16.mxu0 %v3546
        %4422 = vmatpush1.bf16.msra.mxu0 %v3545
        %4423 = vmatprep.subr.bf16.mxu0 %v3550
        %4424 = vmatpush1.bf16.msra.mxu0 %v3549
        %4425 = vmatprep.subr.bf16.mxu0 %v3554
        %4426 = vmatpush1.bf16.msra.mxu0 %v3553
        %4427 = vmatprep.subr.bf16.mxu0 %v3558
        %4428 = vmatpush1.bf16.msra.mxu0 %v3557
        %4429 = vmatprep.subr.bf16.mxu0 %v3562
        %4430 = vmatpush1.bf16.msra.mxu0 %v3561
        %4431 = vmatprep.subr.bf16.mxu0 %v3566
        %4432 = vmatpush1.bf16.msra.mxu0 %v3565
        %4433 = vmatprep.mubr.bf16.mxu0 %v1714
        %4434 = vmatmul.mubr.bf16.gmra.mrb[0].mxu0 %v1713
        %v4435 = vpop.f32.mrb[0].mxu0
        %v4436 = vadd.f32 0.0, %v4435
        %v4437 = vpop.f32.mrb[0].mxu0
        %v4438 = vadd.f32 0.0, %v4437
        %v4439 = vpop.f32.mrb[0].mxu0
        %v4440 = vadd.f32 0.0, %v4439
        %v4441 = vpop.f32.mrb[0].mxu0
        %v4442 = vadd.f32 0.0, %v4441
        %4443 = vmatprep.mubr.bf16.mxu0 %v1728
        %4444 = vmatmul.mubr.bf16.gmra.mrb[0].mxu0 %v1727
        %v4445 = vpop.f32.mrb[0].mxu0
        %v4446 = vadd.f32 0.0, %v4445
        %v4447 = vpop.f32.mrb[0].mxu0
        %v4448 = vadd.f32 0.0, %v4447
        %v4449 = vpop.f32.mrb[0].mxu0
        %v4450 = vadd.f32 0.0, %v4449
        %v4451 = vpop.f32.mrb[0].mxu0
        %v4452 = vadd.f32 0.0, %v4451
        %4453 = vmatprep.mubr.bf16.mxu0 %v1742
        %4454 = vmatmul.mubr.bf16.gmra.mrb[0].mxu0 %v1741
        %v4455 = vpop.f32.mrb[0].mxu0
        %v4456 = vadd.f32 0.0, %v4455
        %v4457 = vpop.f32.mrb[0].mxu0
        %v4458 = vadd.f32 0.0, %v4457
        %v4459 = vpop.f32.mrb[0].mxu0
        %v4460 = vadd.f32 0.0, %v4459
        %v4461 = vpop.f32.mrb[0].mxu0
        %v4462 = vadd.f32 0.0, %v4461
        %4463 = vmatprep.mubr.bf16.mxu0 %v1756
        %4464 = vmatmul.mubr.bf16.gmra.mrb[0].mxu0 %v1755
        %v4465 = vpop.f32.mrb[0].mxu0
        %v4466 = vadd.f32 0.0, %v4465
        %v4467 = vpop.f32.mrb[0].mxu0
        %v4468 = vadd.f32 0.0, %v4467
        %v4469 = vpop.f32.mrb[0].mxu0
        %v4470 = vadd.f32 0.0, %v4469
        %v4471 = vpop.f32.mrb[0].mxu0
        %v4472 = vadd.f32 0.0, %v4471
        %4473 = vmatprep.mubr.bf16.mxu0 %v1770
        %4474 = vmatmul.mubr.bf16.gmra.mrb[0].mxu0 %v1769
        %v4475 = vpop.f32.mrb[0].mxu0
        %v4476 = vadd.f32 0.0, %v4475
        %v4477 = vpop.f32.mrb[0].mxu0
        %v4478 = vadd.f32 0.0, %v4477
        %v4479 = vpop.f32.mrb[0].mxu0
        %v4480 = vadd.f32 0.0, %v4479
        %v4481 = vpop.f32.mrb[0].mxu0
        %v4482 = vadd.f32 0.0, %v4481
        %4483 = vmatprep.mubr.bf16.mxu0 %v1784
        %4484 = vmatmul.mubr.bf16.gmra.mrb[0].mxu0 %v1783
        %v4485 = vpop.f32.mrb[0].mxu0
        %v4486 = vadd.f32 0.0, %v4485
        %v4487 = vpop.f32.mrb[0].mxu0
        %v4488 = vadd.f32 0.0, %v4487
        %v4489 = vpop.f32.mrb[0].mxu0
        %v4490 = vadd.f32 0.0, %v4489
        %v4491 = vpop.f32.mrb[0].mxu0
        %v4492 = vadd.f32 0.0, %v4491
        %4493 = vmatprep.mubr.bf16.mxu0 %v1798
        %4494 = vmatmul.mubr.bf16.gmra.mrb[0].mxu0 %v1797
        %v4495 = vpop.f32.mrb[0].mxu0
        %v4496 = vadd.f32 0.0, %v4495
        %v4497 = vpop.f32.mrb[0].mxu0
        %v4498 = vadd.f32 0.0, %v4497
        %v4499 = vpop.f32.mrb[0].mxu0
        %v4500 = vadd.f32 0.0, %v4499
        %v4501 = vpop.f32.mrb[0].mxu0
        %v4502 = vadd.f32 0.0, %v4501
        %4503 = vmatprep.mubr.bf16.mxu0 %v1812
        %4504 = vmatmul.mubr.bf16.gmra.mrb[0].mxu0 %v1811
        %v4505 = vpop.f32.mrb[0].mxu0
        %v4506 = vadd.f32 0.0, %v4505
        %v4507 = vpop.f32.mrb[0].mxu0
        %v4508 = vadd.f32 0.0, %v4507
        %v4509 = vpop.f32.mrb[0].mxu0
        %v4510 = vadd.f32 0.0, %v4509
        %v4511 = vpop.f32.mrb[0].mxu0
        %v4512 = vadd.f32 0.0, %v4511
        %4513 = vmatprep.mubr.bf16.mxu0 %v1826
        %4514 = vmatmul.mubr.bf16.gmra.mrb[0].mxu0 %v1825
        %v4515 = vpop.f32.mrb[0].mxu0
        %v4516 = vadd.f32 0.0, %v4515
        %v4517 = vpop.f32.mrb[0].mxu0
        %v4518 = vadd.f32 0.0, %v4517
        %v4519 = vpop.f32.mrb[0].mxu0
        %v4520 = vadd.f32 0.0, %v4519
        %v4521 = vpop.f32.mrb[0].mxu0
        %v4522 = vadd.f32 0.0, %v4521
        %4523 = vmatprep.mubr.bf16.mxu0 %v1840
        %4524 = vmatmul.mubr.bf16.gmra.mrb[0].mxu0 %v1839
        %v4525 = vpop.f32.mrb[0].mxu0
        %v4526 = vadd.f32 0.0, %v4525
        %v4527 = vpop.f32.mrb[0].mxu0
        %v4528 = vadd.f32 0.0, %v4527
        %v4529 = vpop.f32.mrb[0].mxu0
        %v4530 = vadd.f32 0.0, %v4529
        %v4531 = vpop.f32.mrb[0].mxu0
        %v4532 = vadd.f32 0.0, %v4531
        %4533 = vmatprep.mubr.bf16.mxu0 %v1854
        %4534 = vmatmul.mubr.bf16.gmra.mrb[0].mxu0 %v1853
        %v4535 = vpop.f32.mrb[0].mxu0
        %v4536 = vadd.f32 0.0, %v4535
        %v4537 = vpop.f32.mrb[0].mxu0
        %v4538 = vadd.f32 0.0, %v4537
        %v4539 = vpop.f32.mrb[0].mxu0
        %v4540 = vadd.f32 0.0, %v4539
        %v4541 = vpop.f32.mrb[0].mxu0
        %v4542 = vadd.f32 0.0, %v4541
        %4543 = vmatprep.mubr.bf16.mxu0 %v1868
        %4544 = vmatmul.mubr.bf16.gmra.mrb[0].mxu0 %v1867
        %v4545 = vpop.f32.mrb[0].mxu0
        %v4546 = vadd.f32 0.0, %v4545
        %v4547 = vpop.f32.mrb[0].mxu0
        %v4548 = vadd.f32 0.0, %v4547
        %v4549 = vpop.f32.mrb[0].mxu0
        %v4550 = vadd.f32 0.0, %v4549
        %v4551 = vpop.f32.mrb[0].mxu0
        %v4552 = vadd.f32 0.0, %v4551
        %4553 = vmatprep.mubr.bf16.mxu0 %v1882
        %4554 = vmatmul.mubr.bf16.gmra.mrb[0].mxu0 %v1881
        %v4555 = vpop.f32.mrb[0].mxu0
        %v4556 = vadd.f32 0.0, %v4555
        %v4557 = vpop.f32.mrb[0].mxu0
        %v4558 = vadd.f32 0.0, %v4557
        %v4559 = vpop.f32.mrb[0].mxu0
        %v4560 = vadd.f32 0.0, %v4559
        %v4561 = vpop.f32.mrb[0].mxu0
        %v4562 = vadd.f32 0.0, %v4561
        %4563 = vmatprep.mubr.bf16.mxu0 %v1896
        %4564 = vmatmul.mubr.bf16.gmra.mrb[0].mxu0 %v1895
        %v4565 = vpop.f32.mrb[0].mxu0
        %v4566 = vadd.f32 0.0, %v4565
        %v4567 = vpop.f32.mrb[0].mxu0
        %v4568 = vadd.f32 0.0, %v4567
        %v4569 = vpop.f32.mrb[0].mxu0
        %v4570 = vadd.f32 0.0, %v4569
        %v4571 = vpop.f32.mrb[0].mxu0
        %v4572 = vadd.f32 0.0, %v4571
        %4573 = vmatprep.mubr.bf16.mxu0 %v1910
        %4574 = vmatmul.mubr.bf16.gmra.mrb[0].mxu0 %v1909
        %v4575 = vpop.f32.mrb[0].mxu0
        %v4576 = vadd.f32 0.0, %v4575
        %v4577 = vpop.f32.mrb[0].mxu0
        %v4578 = vadd.f32 0.0, %v4577
        %v4579 = vpop.f32.mrb[0].mxu0
        %v4580 = vadd.f32 0.0, %v4579
        %v4581 = vpop.f32.mrb[0].mxu0
        %v4582 = vadd.f32 0.0, %v4581
        %4583 = vmatprep.mubr.bf16.mxu0 %v1924
        %4584 = vmatmul.mubr.bf16.gmra.mrb[0].mxu0 %v1923
        %v4585 = vpop.f32.mrb[0].mxu0
        %v4586 = vadd.f32 0.0, %v4585
        %v4587 = vpop.f32.mrb[0].mxu0
        %v4588 = vadd.f32 0.0, %v4587
        %v4589 = vpop.f32.mrb[0].mxu0
        %v4590 = vadd.f32 0.0, %v4589
        %v4591 = vpop.f32.mrb[0].mxu0
        %v4592 = vadd.f32 0.0, %v4591
        %4593 = vdwg.mxu0
        %4594 = vmatprep.subr.bf16.mxu0 %v3570
        %4595 = vmatpush1.bf16.msra.mxu0 %v3569
        %4596 = vmatprep.subr.bf16.mxu0 %v3574
        %4597 = vmatpush1.bf16.msra.mxu0 %v3573
        %4598 = vmatprep.subr.bf16.mxu0 %v3578
        %4599 = vmatpush1.bf16.msra.mxu0 %v3577
        %4600 = vmatprep.subr.bf16.mxu0 %v3582
        %4601 = vmatpush1.bf16.msra.mxu0 %v3581
        %4602 = vmatprep.subr.bf16.mxu0 %v3586
        %4603 = vmatpush1.bf16.msra.mxu0 %v3585
        %4604 = vmatprep.subr.bf16.mxu0 %v3590
        %4605 = vmatpush1.bf16.msra.mxu0 %v3589
        %4606 = vmatprep.subr.bf16.mxu0 %v3594
        %4607 = vmatpush1.bf16.msra.mxu0 %v3593
        %4608 = vmatprep.subr.bf16.mxu0 %v3598
        %4609 = vmatpush1.bf16.msra.mxu0 %v3597
        %4610 = vmatprep.subr.bf16.mxu0 %v3602
        %4611 = vmatpush1.bf16.msra.mxu0 %v3601
        %4612 = vmatprep.subr.bf16.mxu0 %v3606
        %4613 = vmatpush1.bf16.msra.mxu0 %v3605
        %4614 = vmatprep.subr.bf16.mxu0 %v3610
        %4615 = vmatpush1.bf16.msra.mxu0 %v3609
        %4616 = vmatprep.subr.bf16.mxu0 %v3614
        %4617 = vmatpush1.bf16.msra.mxu0 %v3613
        %4618 = vmatprep.subr.bf16.mxu0 %v3618
        %4619 = vmatpush1.bf16.msra.mxu0 %v3617
        %4620 = vmatprep.subr.bf16.mxu0 %v3622
        %4621 = vmatpush1.bf16.msra.mxu0 %v3621
        %4622 = vmatprep.subr.bf16.mxu0 %v3626
        %4623 = vmatpush1.bf16.msra.mxu0 %v3625
        %4624 = vmatprep.subr.bf16.mxu0 %v3630
        %4625 = vmatpush1.bf16.msra.mxu0 %v3629
        %4626 = vmatprep.mubr.bf16.mxu0 %v1716
        %4627 = vmatmul.mubr.bf16.gmra.mrb[0].mxu0 %v1715
        %v4628 = vpop.f32.mrb[0].mxu0
        %v4629 = vadd.f32 %v4436, %v4628
        %v4630 = vpop.f32.mrb[0].mxu0
        %v4631 = vadd.f32 %v4438, %v4630
        %v4632 = vpop.f32.mrb[0].mxu0
        %v4633 = vadd.f32 %v4440, %v4632
        %v4634 = vpop.f32.mrb[0].mxu0
        %v4635 = vadd.f32 %v4442, %v4634
        %4636 = vmatprep.mubr.bf16.mxu0 %v1730
        %4637 = vmatmul.mubr.bf16.gmra.mrb[0].mxu0 %v1729
        %v4638 = vpop.f32.mrb[0].mxu0
        %v4639 = vadd.f32 %v4446, %v4638
        %v4640 = vpop.f32.mrb[0].mxu0
        %v4641 = vadd.f32 %v4448, %v4640
        %v4642 = vpop.f32.mrb[0].mxu0
        %v4643 = vadd.f32 %v4450, %v4642
        %v4644 = vpop.f32.mrb[0].mxu0
        %v4645 = vadd.f32 %v4452, %v4644
        %4646 = vmatprep.mubr.bf16.mxu0 %v1744
        %4647 = vmatmul.mubr.bf16.gmra.mrb[0].mxu0 %v1743
        %v4648 = vpop.f32.mrb[0].mxu0
        %v4649 = vadd.f32 %v4456, %v4648
        %v4650 = vpop.f32.mrb[0].mxu0
        %v4651 = vadd.f32 %v4458, %v4650
        %v4652 = vpop.f32.mrb[0].mxu0
        %v4653 = vadd.f32 %v4460, %v4652
        %v4654 = vpop.f32.mrb[0].mxu0
        %v4655 = vadd.f32 %v4462, %v4654
        %4656 = vmatprep.mubr.bf16.mxu0 %v1758
        %4657 = vmatmul.mubr.bf16.gmra.mrb[0].mxu0 %v1757
        %v4658 = vpop.f32.mrb[0].mxu0
        %v4659 = vadd.f32 %v4466, %v4658
        %v4660 = vpop.f32.mrb[0].mxu0
        %v4661 = vadd.f32 %v4468, %v4660
        %v4662 = vpop.f32.mrb[0].mxu0
        %v4663 = vadd.f32 %v4470, %v4662
        %v4664 = vpop.f32.mrb[0].mxu0
        %v4665 = vadd.f32 %v4472, %v4664
        %4666 = vmatprep.mubr.bf16.mxu0 %v1772
        %4667 = vmatmul.mubr.bf16.gmra.mrb[0].mxu0 %v1771
        %v4668 = vpop.f32.mrb[0].mxu0
        %v4669 = vadd.f32 %v4476, %v4668
        %v4670 = vpop.f32.mrb[0].mxu0
        %v4671 = vadd.f32 %v4478, %v4670
        %v4672 = vpop.f32.mrb[0].mxu0
        %v4673 = vadd.f32 %v4480, %v4672
        %v4674 = vpop.f32.mrb[0].mxu0
        %v4675 = vadd.f32 %v4482, %v4674
        %4676 = vmatprep.mubr.bf16.mxu0 %v1786
        %4677 = vmatmul.mubr.bf16.gmra.mrb[0].mxu0 %v1785
        %v4678 = vpop.f32.mrb[0].mxu0
        %v4679 = vadd.f32 %v4486, %v4678
        %v4680 = vpop.f32.mrb[0].mxu0
        %v4681 = vadd.f32 %v4488, %v4680
        %v4682 = vpop.f32.mrb[0].mxu0
        %v4683 = vadd.f32 %v4490, %v4682
        %v4684 = vpop.f32.mrb[0].mxu0
        %v4685 = vadd.f32 %v4492, %v4684
        %4686 = vmatprep.mubr.bf16.mxu0 %v1800
        %4687 = vmatmul.mubr.bf16.gmra.mrb[0].mxu0 %v1799
        %v4688 = vpop.f32.mrb[0].mxu0
        %v4689 = vadd.f32 %v4496, %v4688
        %v4690 = vpop.f32.mrb[0].mxu0
        %v4691 = vadd.f32 %v4498, %v4690
        %v4692 = vpop.f32.mrb[0].mxu0
        %v4693 = vadd.f32 %v4500, %v4692
        %v4694 = vpop.f32.mrb[0].mxu0
        %v4695 = vadd.f32 %v4502, %v4694
        %4696 = vmatprep.mubr.bf16.mxu0 %v1814
        %4697 = vmatmul.mubr.bf16.gmra.mrb[0].mxu0 %v1813
        %v4698 = vpop.f32.mrb[0].mxu0
        %v4699 = vadd.f32 %v4506, %v4698
        %v4700 = vpop.f32.mrb[0].mxu0
        %v4701 = vadd.f32 %v4508, %v4700
        %v4702 = vpop.f32.mrb[0].mxu0
        %v4703 = vadd.f32 %v4510, %v4702
        %v4704 = vpop.f32.mrb[0].mxu0
        %v4705 = vadd.f32 %v4512, %v4704
        %4706 = vmatprep.mubr.bf16.mxu0 %v1828
        %4707 = vmatmul.mubr.bf16.gmra.mrb[0].mxu0 %v1827
        %v4708 = vpop.f32.mrb[0].mxu0
        %v4709 = vadd.f32 %v4516, %v4708
        %v4710 = vpop.f32.mrb[0].mxu0
        %v4711 = vadd.f32 %v4518, %v4710
        %v4712 = vpop.f32.mrb[0].mxu0
        %v4713 = vadd.f32 %v4520, %v4712
        %v4714 = vpop.f32.mrb[0].mxu0
        %v4715 = vadd.f32 %v4522, %v4714
        %4716 = vmatprep.mubr.bf16.mxu0 %v1842
        %4717 = vmatmul.mubr.bf16.gmra.mrb[0].mxu0 %v1841
        %v4718 = vpop.f32.mrb[0].mxu0
        %v4719 = vadd.f32 %v4526, %v4718
        %v4720 = vpop.f32.mrb[0].mxu0
        %v4721 = vadd.f32 %v4528, %v4720
        %v4722 = vpop.f32.mrb[0].mxu0
        %v4723 = vadd.f32 %v4530, %v4722
        %v4724 = vpop.f32.mrb[0].mxu0
        %v4725 = vadd.f32 %v4532, %v4724
        %4726 = vmatprep.mubr.bf16.mxu0 %v1856
        %4727 = vmatmul.mubr.bf16.gmra.mrb[0].mxu0 %v1855
        %v4728 = vpop.f32.mrb[0].mxu0
        %v4729 = vadd.f32 %v4536, %v4728
        %v4730 = vpop.f32.mrb[0].mxu0
        %v4731 = vadd.f32 %v4538, %v4730
        %v4732 = vpop.f32.mrb[0].mxu0
        %v4733 = vadd.f32 %v4540, %v4732
        %v4734 = vpop.f32.mrb[0].mxu0
        %v4735 = vadd.f32 %v4542, %v4734
        %4736 = vmatprep.mubr.bf16.mxu0 %v1870
        %4737 = vmatmul.mubr.bf16.gmra.mrb[0].mxu0 %v1869
        %v4738 = vpop.f32.mrb[0].mxu0
        %v4739 = vadd.f32 %v4546, %v4738
        %v4740 = vpop.f32.mrb[0].mxu0
        %v4741 = vadd.f32 %v4548, %v4740
        %v4742 = vpop.f32.mrb[0].mxu0
        %v4743 = vadd.f32 %v4550, %v4742
        %v4744 = vpop.f32.mrb[0].mxu0
        %v4745 = vadd.f32 %v4552, %v4744
        %4746 = vmatprep.mubr.bf16.mxu0 %v1884
        %4747 = vmatmul.mubr.bf16.gmra.mrb[0].mxu0 %v1883
        %v4748 = vpop.f32.mrb[0].mxu0
        %v4749 = vadd.f32 %v4556, %v4748
        %v4750 = vpop.f32.mrb[0].mxu0
        %v4751 = vadd.f32 %v4558, %v4750
        %v4752 = vpop.f32.mrb[0].mxu0
        %v4753 = vadd.f32 %v4560, %v4752
        %v4754 = vpop.f32.mrb[0].mxu0
        %v4755 = vadd.f32 %v4562, %v4754
        %4756 = vmatprep.mubr.bf16.mxu0 %v1898
        %4757 = vmatmul.mubr.bf16.gmra.mrb[0].mxu0 %v1897
        %v4758 = vpop.f32.mrb[0].mxu0
        %v4759 = vadd.f32 %v4566, %v4758
        %v4760 = vpop.f32.mrb[0].mxu0
        %v4761 = vadd.f32 %v4568, %v4760
        %v4762 = vpop.f32.mrb[0].mxu0
        %v4763 = vadd.f32 %v4570, %v4762
        %v4764 = vpop.f32.mrb[0].mxu0
        %v4765 = vadd.f32 %v4572, %v4764
        %4766 = vmatprep.mubr.bf16.mxu0 %v1912
        %4767 = vmatmul.mubr.bf16.gmra.mrb[0].mxu0 %v1911
        %v4768 = vpop.f32.mrb[0].mxu0
        %v4769 = vadd.f32 %v4576, %v4768
        %v4770 = vpop.f32.mrb[0].mxu0
        %v4771 = vadd.f32 %v4578, %v4770
        %v4772 = vpop.f32.mrb[0].mxu0
        %v4773 = vadd.f32 %v4580, %v4772
        %v4774 = vpop.f32.mrb[0].mxu0
        %v4775 = vadd.f32 %v4582, %v4774
        %4776 = vmatprep.mubr.bf16.mxu0 %v1926
        %4777 = vmatmul.mubr.bf16.gmra.mrb[0].mxu0 %v1925
        %v4778 = vpop.f32.mrb[0].mxu0
        %v4779 = vadd.f32 %v4586, %v4778
        %v4780 = vpop.f32.mrb[0].mxu0
        %v4781 = vadd.f32 %v4588, %v4780
        %v4782 = vpop.f32.mrb[0].mxu0
        %v4783 = vadd.f32 %v4590, %v4782
        %v4784 = vpop.f32.mrb[0].mxu0
        %v4785 = vadd.f32 %v4592, %v4784
        %4786 = vdwg.mxu0
        %4787 = vmatprep.subr.bf16.mxu0 %v3634
        %4788 = vmatpush1.bf16.msra.mxu0 %v3633
        %4789 = vmatprep.subr.bf16.mxu0 %v3638
        %4790 = vmatpush1.bf16.msra.mxu0 %v3637
        %4791 = vmatprep.subr.bf16.mxu0 %v3642
        %4792 = vmatpush1.bf16.msra.mxu0 %v3641
        %4793 = vmatprep.subr.bf16.mxu0 %v3646
        %4794 = vmatpush1.bf16.msra.mxu0 %v3645
        %4795 = vmatprep.subr.bf16.mxu0 %v3650
        %4796 = vmatpush1.bf16.msra.mxu0 %v3649
        %4797 = vmatprep.subr.bf16.mxu0 %v3654
        %4798 = vmatpush1.bf16.msra.mxu0 %v3653
        %4799 = vmatprep.subr.bf16.mxu0 %v3658
        %4800 = vmatpush1.bf16.msra.mxu0 %v3657
        %4801 = vmatprep.subr.bf16.mxu0 %v3662
        %4802 = vmatpush1.bf16.msra.mxu0 %v3661
        %4803 = vmatprep.subr.bf16.mxu0 %v3666
        %4804 = vmatpush1.bf16.msra.mxu0 %v3665
        %4805 = vmatprep.subr.bf16.mxu0 %v3670
        %4806 = vmatpush1.bf16.msra.mxu0 %v3669
        %4807 = vmatprep.subr.bf16.mxu0 %v3674
        %4808 = vmatpush1.bf16.msra.mxu0 %v3673
        %4809 = vmatprep.subr.bf16.mxu0 %v3678
        %4810 = vmatpush1.bf16.msra.mxu0 %v3677
        %4811 = vmatprep.subr.bf16.mxu0 %v3682
        %4812 = vmatpush1.bf16.msra.mxu0 %v3681
        %4813 = vmatprep.subr.bf16.mxu0 %v3686
        %4814 = vmatpush1.bf16.msra.mxu0 %v3685
        %4815 = vmatprep.subr.bf16.mxu0 %v3690
        %4816 = vmatpush1.bf16.msra.mxu0 %v3689
        %4817 = vmatprep.subr.bf16.mxu0 %v3694
        %4818 = vmatpush1.bf16.msra.mxu0 %v3693
        %4819 = vmatprep.mubr.bf16.mxu0 %v1718
        %4820 = vmatmul.mubr.bf16.gmra.mrb[0].mxu0 %v1717
        %v4821 = vpop.f32.mrb[0].mxu0
        %v4822 = vadd.f32 %v4629, %v4821
        %v4823 = vpop.f32.mrb[0].mxu0
        %v4824 = vadd.f32 %v4631, %v4823
        %v4825 = vpop.f32.mrb[0].mxu0
        %v4826 = vadd.f32 %v4633, %v4825
        %v4827 = vpop.f32.mrb[0].mxu0
        %v4828 = vadd.f32 %v4635, %v4827
        %4829 = vmatprep.mubr.bf16.mxu0 %v1732
        %4830 = vmatmul.mubr.bf16.gmra.mrb[0].mxu0 %v1731
        %v4831 = vpop.f32.mrb[0].mxu0
        %v4832 = vadd.f32 %v4639, %v4831
        %v4833 = vpop.f32.mrb[0].mxu0
        %v4834 = vadd.f32 %v4641, %v4833
        %v4835 = vpop.f32.mrb[0].mxu0
        %v4836 = vadd.f32 %v4643, %v4835
        %v4837 = vpop.f32.mrb[0].mxu0
        %v4838 = vadd.f32 %v4645, %v4837
        %4839 = vmatprep.mubr.bf16.mxu0 %v1746
        %4840 = vmatmul.mubr.bf16.gmra.mrb[0].mxu0 %v1745
        %v4841 = vpop.f32.mrb[0].mxu0
        %v4842 = vadd.f32 %v4649, %v4841
        %v4843 = vpop.f32.mrb[0].mxu0
        %v4844 = vadd.f32 %v4651, %v4843
        %v4845 = vpop.f32.mrb[0].mxu0
        %v4846 = vadd.f32 %v4653, %v4845
        %v4847 = vpop.f32.mrb[0].mxu0
        %v4848 = vadd.f32 %v4655, %v4847
        %4849 = vmatprep.mubr.bf16.mxu0 %v1760
        %4850 = vmatmul.mubr.bf16.gmra.mrb[0].mxu0 %v1759
        %v4851 = vpop.f32.mrb[0].mxu0
        %v4852 = vadd.f32 %v4659, %v4851
        %v4853 = vpop.f32.mrb[0].mxu0
        %v4854 = vadd.f32 %v4661, %v4853
        %v4855 = vpop.f32.mrb[0].mxu0
        %v4856 = vadd.f32 %v4663, %v4855
        %v4857 = vpop.f32.mrb[0].mxu0
        %v4858 = vadd.f32 %v4665, %v4857
        %4859 = vmatprep.mubr.bf16.mxu0 %v1774
        %4860 = vmatmul.mubr.bf16.gmra.mrb[0].mxu0 %v1773
        %v4861 = vpop.f32.mrb[0].mxu0
        %v4862 = vadd.f32 %v4669, %v4861
        %v4863 = vpop.f32.mrb[0].mxu0
        %v4864 = vadd.f32 %v4671, %v4863
        %v4865 = vpop.f32.mrb[0].mxu0
        %v4866 = vadd.f32 %v4673, %v4865
        %v4867 = vpop.f32.mrb[0].mxu0
        %v4868 = vadd.f32 %v4675, %v4867
        %4869 = vmatprep.mubr.bf16.mxu0 %v1788
        %4870 = vmatmul.mubr.bf16.gmra.mrb[0].mxu0 %v1787
        %v4871 = vpop.f32.mrb[0].mxu0
        %v4872 = vadd.f32 %v4679, %v4871
        %v4873 = vpop.f32.mrb[0].mxu0
        %v4874 = vadd.f32 %v4681, %v4873
        %v4875 = vpop.f32.mrb[0].mxu0
        %v4876 = vadd.f32 %v4683, %v4875
        %v4877 = vpop.f32.mrb[0].mxu0
        %v4878 = vadd.f32 %v4685, %v4877
        %4879 = vmatprep.mubr.bf16.mxu0 %v1802
        %4880 = vmatmul.mubr.bf16.gmra.mrb[0].mxu0 %v1801
        %v4881 = vpop.f32.mrb[0].mxu0
        %v4882 = vadd.f32 %v4689, %v4881
        %v4883 = vpop.f32.mrb[0].mxu0
        %v4884 = vadd.f32 %v4691, %v4883
        %v4885 = vpop.f32.mrb[0].mxu0
        %v4886 = vadd.f32 %v4693, %v4885
        %v4887 = vpop.f32.mrb[0].mxu0
        %v4888 = vadd.f32 %v4695, %v4887
        %4889 = vmatprep.mubr.bf16.mxu0 %v1816
        %4890 = vmatmul.mubr.bf16.gmra.mrb[0].mxu0 %v1815
        %v4891 = vpop.f32.mrb[0].mxu0
        %v4892 = vadd.f32 %v4699, %v4891
        %v4893 = vpop.f32.mrb[0].mxu0
        %v4894 = vadd.f32 %v4701, %v4893
        %v4895 = vpop.f32.mrb[0].mxu0
        %v4896 = vadd.f32 %v4703, %v4895
        %v4897 = vpop.f32.mrb[0].mxu0
        %v4898 = vadd.f32 %v4705, %v4897
        %4899 = vmatprep.mubr.bf16.mxu0 %v1830
        %4900 = vmatmul.mubr.bf16.gmra.mrb[0].mxu0 %v1829
        %v4901 = vpop.f32.mrb[0].mxu0
        %v4902 = vadd.f32 %v4709, %v4901
        %v4903 = vpop.f32.mrb[0].mxu0
        %v4904 = vadd.f32 %v4711, %v4903
        %v4905 = vpop.f32.mrb[0].mxu0
        %v4906 = vadd.f32 %v4713, %v4905
        %v4907 = vpop.f32.mrb[0].mxu0
        %v4908 = vadd.f32 %v4715, %v4907
        %4909 = vmatprep.mubr.bf16.mxu0 %v1844
        %4910 = vmatmul.mubr.bf16.gmra.mrb[0].mxu0 %v1843
        %v4911 = vpop.f32.mrb[0].mxu0
        %v4912 = vadd.f32 %v4719, %v4911
        %v4913 = vpop.f32.mrb[0].mxu0
        %v4914 = vadd.f32 %v4721, %v4913
        %v4915 = vpop.f32.mrb[0].mxu0
        %v4916 = vadd.f32 %v4723, %v4915
        %v4917 = vpop.f32.mrb[0].mxu0
        %v4918 = vadd.f32 %v4725, %v4917
        %4919 = vmatprep.mubr.bf16.mxu0 %v1858
        %4920 = vmatmul.mubr.bf16.gmra.mrb[0].mxu0 %v1857
        %v4921 = vpop.f32.mrb[0].mxu0
        %v4922 = vadd.f32 %v4729, %v4921
        %v4923 = vpop.f32.mrb[0].mxu0
        %v4924 = vadd.f32 %v4731, %v4923
        %v4925 = vpop.f32.mrb[0].mxu0
        %v4926 = vadd.f32 %v4733, %v4925
        %v4927 = vpop.f32.mrb[0].mxu0
        %v4928 = vadd.f32 %v4735, %v4927
        %4929 = vmatprep.mubr.bf16.mxu0 %v1872
        %4930 = vmatmul.mubr.bf16.gmra.mrb[0].mxu0 %v1871
        %v4931 = vpop.f32.mrb[0].mxu0
        %v4932 = vadd.f32 %v4739, %v4931
        %v4933 = vpop.f32.mrb[0].mxu0
        %v4934 = vadd.f32 %v4741, %v4933
        %v4935 = vpop.f32.mrb[0].mxu0
        %v4936 = vadd.f32 %v4743, %v4935
        %v4937 = vpop.f32.mrb[0].mxu0
        %v4938 = vadd.f32 %v4745, %v4937
        %4939 = vmatprep.mubr.bf16.mxu0 %v1886
        %4940 = vmatmul.mubr.bf16.gmra.mrb[0].mxu0 %v1885
        %v4941 = vpop.f32.mrb[0].mxu0
        %v4942 = vadd.f32 %v4749, %v4941
        %v4943 = vpop.f32.mrb[0].mxu0
        %v4944 = vadd.f32 %v4751, %v4943
        %v4945 = vpop.f32.mrb[0].mxu0
        %v4946 = vadd.f32 %v4753, %v4945
        %v4947 = vpop.f32.mrb[0].mxu0
        %v4948 = vadd.f32 %v4755, %v4947
        %4949 = vmatprep.mubr.bf16.mxu0 %v1900
        %4950 = vmatmul.mubr.bf16.gmra.mrb[0].mxu0 %v1899
        %v4951 = vpop.f32.mrb[0].mxu0
        %v4952 = vadd.f32 %v4759, %v4951
        %v4953 = vpop.f32.mrb[0].mxu0
        %v4954 = vadd.f32 %v4761, %v4953
        %v4955 = vpop.f32.mrb[0].mxu0
        %v4956 = vadd.f32 %v4763, %v4955
        %v4957 = vpop.f32.mrb[0].mxu0
        %v4958 = vadd.f32 %v4765, %v4957
        %4959 = vmatprep.mubr.bf16.mxu0 %v1914
        %4960 = vmatmul.mubr.bf16.gmra.mrb[0].mxu0 %v1913
        %v4961 = vpop.f32.mrb[0].mxu0
        %v4962 = vadd.f32 %v4769, %v4961
        %v4963 = vpop.f32.mrb[0].mxu0
        %v4964 = vadd.f32 %v4771, %v4963
        %v4965 = vpop.f32.mrb[0].mxu0
        %v4966 = vadd.f32 %v4773, %v4965
        %v4967 = vpop.f32.mrb[0].mxu0
        %v4968 = vadd.f32 %v4775, %v4967
        %4969 = vmatprep.mubr.bf16.mxu0 %v1928
        %4970 = vmatmul.mubr.bf16.gmra.mrb[0].mxu0 %v1927
        %v4971 = vpop.f32.mrb[0].mxu0
        %v4972 = vadd.f32 %v4779, %v4971
        %v4973 = vpop.f32.mrb[0].mxu0
        %v4974 = vadd.f32 %v4781, %v4973
        %v4975 = vpop.f32.mrb[0].mxu0
        %v4976 = vadd.f32 %v4783, %v4975
        %v4977 = vpop.f32.mrb[0].mxu0
        %v4978 = vadd.f32 %v4785, %v4977
        %4979 = vdwg.mxu0
        %4980 = vmatprep.subr.bf16.mxu0 %v3698
        %4981 = vmatpush1.bf16.msra.mxu0 %v3697
        %4982 = vmatprep.subr.bf16.mxu0 %v3702
        %4983 = vmatpush1.bf16.msra.mxu0 %v3701
        %4984 = vmatprep.subr.bf16.mxu0 %v3706
        %4985 = vmatpush1.bf16.msra.mxu0 %v3705
        %4986 = vmatprep.subr.bf16.mxu0 %v3710
        %4987 = vmatpush1.bf16.msra.mxu0 %v3709
        %4988 = vmatprep.subr.bf16.mxu0 %v3714
        %4989 = vmatpush1.bf16.msra.mxu0 %v3713
        %4990 = vmatprep.subr.bf16.mxu0 %v3718
        %4991 = vmatpush1.bf16.msra.mxu0 %v3717
        %4992 = vmatprep.subr.bf16.mxu0 %v3722
        %4993 = vmatpush1.bf16.msra.mxu0 %v3721
        %4994 = vmatprep.subr.bf16.mxu0 %v3726
        %4995 = vmatpush1.bf16.msra.mxu0 %v3725
        %4996 = vmatprep.subr.bf16.mxu0 %v3730
        %4997 = vmatpush1.bf16.msra.mxu0 %v3729
        %4998 = vmatprep.subr.bf16.mxu0 %v3734
        %4999 = vmatpush1.bf16.msra.mxu0 %v3733
        %5000 = vmatprep.subr.bf16.mxu0 %v3738
        %5001 = vmatpush1.bf16.msra.mxu0 %v3737
        %5002 = vmatprep.subr.bf16.mxu0 %v3742
        %5003 = vmatpush1.bf16.msra.mxu0 %v3741
        %5004 = vmatprep.subr.bf16.mxu0 %v3746
        %5005 = vmatpush1.bf16.msra.mxu0 %v3745
        %5006 = vmatprep.subr.bf16.mxu0 %v3750
        %5007 = vmatpush1.bf16.msra.mxu0 %v3749
        %5008 = vmatprep.subr.bf16.mxu0 %v3754
        %5009 = vmatpush1.bf16.msra.mxu0 %v3753
        %5010 = vmatprep.subr.bf16.mxu0 %v3758
        %5011 = vmatpush1.bf16.msra.mxu0 %v3757
        %5012 = vmatprep.mubr.bf16.mxu0 %v1720
        %5013 = vmatmul.mubr.bf16.gmra.mrb[0].mxu0 %v1719
        %v5014 = vpop.f32.mrb[0].mxu0
        %v5015 = vadd.f32 %v4822, %v5014
        %v5016 = vpop.f32.mrb[0].mxu0
        %v5017 = vadd.f32 %v4824, %v5016
        %v5018 = vpop.f32.mrb[0].mxu0
        %v5019 = vadd.f32 %v4826, %v5018
        %v5020 = vpop.f32.mrb[0].mxu0
        %v5021 = vadd.f32 %v4828, %v5020
        %5022 = vmatprep.mubr.bf16.mxu0 %v1734
        %5023 = vmatmul.mubr.bf16.gmra.mrb[0].mxu0 %v1733
        %v5024 = vpop.f32.mrb[0].mxu0
        %v5025 = vadd.f32 %v4832, %v5024
        %v5026 = vpop.f32.mrb[0].mxu0
        %v5027 = vadd.f32 %v4834, %v5026
        %v5028 = vpop.f32.mrb[0].mxu0
        %v5029 = vadd.f32 %v4836, %v5028
        %v5030 = vpop.f32.mrb[0].mxu0
        %v5031 = vadd.f32 %v4838, %v5030
        %5032 = vmatprep.mubr.bf16.mxu0 %v1748
        %5033 = vmatmul.mubr.bf16.gmra.mrb[0].mxu0 %v1747
        %v5034 = vpop.f32.mrb[0].mxu0
        %v5035 = vadd.f32 %v4842, %v5034
        %v5036 = vpop.f32.mrb[0].mxu0
        %v5037 = vadd.f32 %v4844, %v5036
        %v5038 = vpop.f32.mrb[0].mxu0
        %v5039 = vadd.f32 %v4846, %v5038
        %v5040 = vpop.f32.mrb[0].mxu0
        %v5041 = vadd.f32 %v4848, %v5040
        %5042 = vmatprep.mubr.bf16.mxu0 %v1762
        %5043 = vmatmul.mubr.bf16.gmra.mrb[0].mxu0 %v1761
        %v5044 = vpop.f32.mrb[0].mxu0
        %v5045 = vadd.f32 %v4852, %v5044
        %v5046 = vpop.f32.mrb[0].mxu0
        %v5047 = vadd.f32 %v4854, %v5046
        %v5048 = vpop.f32.mrb[0].mxu0
        %v5049 = vadd.f32 %v4856, %v5048
        %v5050 = vpop.f32.mrb[0].mxu0
        %v5051 = vadd.f32 %v4858, %v5050
        %5052 = vmatprep.mubr.bf16.mxu0 %v1776
        %5053 = vmatmul.mubr.bf16.gmra.mrb[0].mxu0 %v1775
        %v5054 = vpop.f32.mrb[0].mxu0
        %v5055 = vadd.f32 %v4862, %v5054
        %v5056 = vpop.f32.mrb[0].mxu0
        %v5057 = vadd.f32 %v4864, %v5056
        %v5058 = vpop.f32.mrb[0].mxu0
        %v5059 = vadd.f32 %v4866, %v5058
        %v5060 = vpop.f32.mrb[0].mxu0
        %v5061 = vadd.f32 %v4868, %v5060
        %5062 = vmatprep.mubr.bf16.mxu0 %v1790
        %5063 = vmatmul.mubr.bf16.gmra.mrb[0].mxu0 %v1789
        %v5064 = vpop.f32.mrb[0].mxu0
        %v5065 = vadd.f32 %v4872, %v5064
        %v5066 = vpop.f32.mrb[0].mxu0
        %v5067 = vadd.f32 %v4874, %v5066
        %v5068 = vpop.f32.mrb[0].mxu0
        %v5069 = vadd.f32 %v4876, %v5068
        %v5070 = vpop.f32.mrb[0].mxu0
        %v5071 = vadd.f32 %v4878, %v5070
        %5072 = vmatprep.mubr.bf16.mxu0 %v1804
        %5073 = vmatmul.mubr.bf16.gmra.mrb[0].mxu0 %v1803
        %v5074 = vpop.f32.mrb[0].mxu0
        %v5075 = vadd.f32 %v4882, %v5074
        %v5076 = vpop.f32.mrb[0].mxu0
        %v5077 = vadd.f32 %v4884, %v5076
        %v5078 = vpop.f32.mrb[0].mxu0
        %v5079 = vadd.f32 %v4886, %v5078
        %v5080 = vpop.f32.mrb[0].mxu0
        %v5081 = vadd.f32 %v4888, %v5080
        %5082 = vmatprep.mubr.bf16.mxu0 %v1818
        %5083 = vmatmul.mubr.bf16.gmra.mrb[0].mxu0 %v1817
        %v5084 = vpop.f32.mrb[0].mxu0
        %v5085 = vadd.f32 %v4892, %v5084
        %v5086 = vpop.f32.mrb[0].mxu0
        %v5087 = vadd.f32 %v4894, %v5086
        %v5088 = vpop.f32.mrb[0].mxu0
        %v5089 = vadd.f32 %v4896, %v5088
        %v5090 = vpop.f32.mrb[0].mxu0
        %v5091 = vadd.f32 %v4898, %v5090
        %5092 = vmatprep.mubr.bf16.mxu0 %v1832
        %5093 = vmatmul.mubr.bf16.gmra.mrb[0].mxu0 %v1831
        %v5094 = vpop.f32.mrb[0].mxu0
        %v5095 = vadd.f32 %v4902, %v5094
        %v5096 = vpop.f32.mrb[0].mxu0
        %v5097 = vadd.f32 %v4904, %v5096
        %v5098 = vpop.f32.mrb[0].mxu0
        %v5099 = vadd.f32 %v4906, %v5098
        %v5100 = vpop.f32.mrb[0].mxu0
        %v5101 = vadd.f32 %v4908, %v5100
        %5102 = vmatprep.mubr.bf16.mxu0 %v1846
        %5103 = vmatmul.mubr.bf16.gmra.mrb[0].mxu0 %v1845
        %v5104 = vpop.f32.mrb[0].mxu0
        %v5105 = vadd.f32 %v4912, %v5104
        %v5106 = vpop.f32.mrb[0].mxu0
        %v5107 = vadd.f32 %v4914, %v5106
        %v5108 = vpop.f32.mrb[0].mxu0
        %v5109 = vadd.f32 %v4916, %v5108
        %v5110 = vpop.f32.mrb[0].mxu0
        %v5111 = vadd.f32 %v4918, %v5110
        %5112 = vmatprep.mubr.bf16.mxu0 %v1860
        %5113 = vmatmul.mubr.bf16.gmra.mrb[0].mxu0 %v1859
        %v5114 = vpop.f32.mrb[0].mxu0
        %v5115 = vadd.f32 %v4922, %v5114
        %v5116 = vpop.f32.mrb[0].mxu0
        %v5117 = vadd.f32 %v4924, %v5116
        %v5118 = vpop.f32.mrb[0].mxu0
        %v5119 = vadd.f32 %v4926, %v5118
        %v5120 = vpop.f32.mrb[0].mxu0
        %v5121 = vadd.f32 %v4928, %v5120
        %5122 = vmatprep.mubr.bf16.mxu0 %v1874
        %5123 = vmatmul.mubr.bf16.gmra.mrb[0].mxu0 %v1873
        %v5124 = vpop.f32.mrb[0].mxu0
        %v5125 = vadd.f32 %v4932, %v5124
        %v5126 = vpop.f32.mrb[0].mxu0
        %v5127 = vadd.f32 %v4934, %v5126
        %v5128 = vpop.f32.mrb[0].mxu0
        %v5129 = vadd.f32 %v4936, %v5128
        %v5130 = vpop.f32.mrb[0].mxu0
        %v5131 = vadd.f32 %v4938, %v5130
        %5132 = vmatprep.mubr.bf16.mxu0 %v1888
        %5133 = vmatmul.mubr.bf16.gmra.mrb[0].mxu0 %v1887
        %v5134 = vpop.f32.mrb[0].mxu0
        %v5135 = vadd.f32 %v4942, %v5134
        %v5136 = vpop.f32.mrb[0].mxu0
        %v5137 = vadd.f32 %v4944, %v5136
        %v5138 = vpop.f32.mrb[0].mxu0
        %v5139 = vadd.f32 %v4946, %v5138
        %v5140 = vpop.f32.mrb[0].mxu0
        %v5141 = vadd.f32 %v4948, %v5140
        %5142 = vmatprep.mubr.bf16.mxu0 %v1902
        %5143 = vmatmul.mubr.bf16.gmra.mrb[0].mxu0 %v1901
        %v5144 = vpop.f32.mrb[0].mxu0
        %v5145 = vadd.f32 %v4952, %v5144
        %v5146 = vpop.f32.mrb[0].mxu0
        %v5147 = vadd.f32 %v4954, %v5146
        %v5148 = vpop.f32.mrb[0].mxu0
        %v5149 = vadd.f32 %v4956, %v5148
        %v5150 = vpop.f32.mrb[0].mxu0
        %v5151 = vadd.f32 %v4958, %v5150
        %5152 = vmatprep.mubr.bf16.mxu0 %v1916
        %5153 = vmatmul.mubr.bf16.gmra.mrb[0].mxu0 %v1915
        %v5154 = vpop.f32.mrb[0].mxu0
        %v5155 = vadd.f32 %v4962, %v5154
        %v5156 = vpop.f32.mrb[0].mxu0
        %v5157 = vadd.f32 %v4964, %v5156
        %v5158 = vpop.f32.mrb[0].mxu0
        %v5159 = vadd.f32 %v4966, %v5158
        %v5160 = vpop.f32.mrb[0].mxu0
        %v5161 = vadd.f32 %v4968, %v5160
        %5162 = vmatprep.mubr.bf16.mxu0 %v1930
        %5163 = vmatmul.mubr.bf16.gmra.mrb[0].mxu0 %v1929
        %v5164 = vpop.f32.mrb[0].mxu0
        %v5165 = vadd.f32 %v4972, %v5164
        %v5166 = vpop.f32.mrb[0].mxu0
        %v5167 = vadd.f32 %v4974, %v5166
        %v5168 = vpop.f32.mrb[0].mxu0
        %v5169 = vadd.f32 %v4976, %v5168
        %v5170 = vpop.f32.mrb[0].mxu0
        %v5171 = vadd.f32 %v4978, %v5170
        %5172 = vdwg.mxu0
        %5173 = vmatprep.subr.bf16.mxu0 %v3762
        %5174 = vmatpush1.bf16.msra.mxu0 %v3761
        %5175 = vmatprep.subr.bf16.mxu0 %v3766
        %5176 = vmatpush1.bf16.msra.mxu0 %v3765
        %5177 = vmatprep.subr.bf16.mxu0 %v3770
        %5178 = vmatpush1.bf16.msra.mxu0 %v3769
        %5179 = vmatprep.subr.bf16.mxu0 %v3774
        %5180 = vmatpush1.bf16.msra.mxu0 %v3773
        %5181 = vmatprep.subr.bf16.mxu0 %v3778
        %5182 = vmatpush1.bf16.msra.mxu0 %v3777
        %5183 = vmatprep.subr.bf16.mxu0 %v3782
        %5184 = vmatpush1.bf16.msra.mxu0 %v3781
        %5185 = vmatprep.subr.bf16.mxu0 %v3786
        %5186 = vmatpush1.bf16.msra.mxu0 %v3785
        %5187 = vmatprep.subr.bf16.mxu0 %v3790
        %5188 = vmatpush1.bf16.msra.mxu0 %v3789
        %5189 = vmatprep.subr.bf16.mxu0 %v3794
        %5190 = vmatpush1.bf16.msra.mxu0 %v3793
        %5191 = vmatprep.subr.bf16.mxu0 %v3798
        %5192 = vmatpush1.bf16.msra.mxu0 %v3797
        %5193 = vmatprep.subr.bf16.mxu0 %v3802
        %5194 = vmatpush1.bf16.msra.mxu0 %v3801
        %5195 = vmatprep.subr.bf16.mxu0 %v3806
        %5196 = vmatpush1.bf16.msra.mxu0 %v3805
        %5197 = vmatprep.subr.bf16.mxu0 %v3810
        %5198 = vmatpush1.bf16.msra.mxu0 %v3809
        %5199 = vmatprep.subr.bf16.mxu0 %v3814
        %5200 = vmatpush1.bf16.msra.mxu0 %v3813
        %5201 = vmatprep.subr.bf16.mxu0 %v3818
        %5202 = vmatpush1.bf16.msra.mxu0 %v3817
        %5203 = vmatprep.subr.bf16.mxu0 %v3822
        %5204 = vmatpush1.bf16.msra.mxu0 %v3821
        %5205 = vmatprep.mubr.bf16.mxu0 %v1722
        %5206 = vmatmul.mubr.bf16.gmra.mrb[0].mxu0 %v1721
        %v5207 = vpop.f32.mrb[0].mxu0
        %v5208 = vadd.f32 %v5015, %v5207
        %v5209 = vpop.f32.mrb[0].mxu0
        %v5210 = vadd.f32 %v5017, %v5209
        %v5211 = vpop.f32.mrb[0].mxu0
        %v5212 = vadd.f32 %v5019, %v5211
        %v5213 = vpop.f32.mrb[0].mxu0
        %v5214 = vadd.f32 %v5021, %v5213
        %5215 = vmatprep.mubr.bf16.mxu0 %v1736
        %5216 = vmatmul.mubr.bf16.gmra.mrb[0].mxu0 %v1735
        %v5217 = vpop.f32.mrb[0].mxu0
        %v5218 = vadd.f32 %v5025, %v5217
        %v5219 = vpop.f32.mrb[0].mxu0
        %v5220 = vadd.f32 %v5027, %v5219
        %v5221 = vpop.f32.mrb[0].mxu0
        %v5222 = vadd.f32 %v5029, %v5221
        %v5223 = vpop.f32.mrb[0].mxu0
        %v5224 = vadd.f32 %v5031, %v5223
        %5225 = vmatprep.mubr.bf16.mxu0 %v1750
        %5226 = vmatmul.mubr.bf16.gmra.mrb[0].mxu0 %v1749
        %v5227 = vpop.f32.mrb[0].mxu0
        %v5228 = vadd.f32 %v5035, %v5227
        %v5229 = vpop.f32.mrb[0].mxu0
        %v5230 = vadd.f32 %v5037, %v5229
        %v5231 = vpop.f32.mrb[0].mxu0
        %v5232 = vadd.f32 %v5039, %v5231
        %v5233 = vpop.f32.mrb[0].mxu0
        %v5234 = vadd.f32 %v5041, %v5233
        %5235 = vmatprep.mubr.bf16.mxu0 %v1764
        %5236 = vmatmul.mubr.bf16.gmra.mrb[0].mxu0 %v1763
        %v5237 = vpop.f32.mrb[0].mxu0
        %v5238 = vadd.f32 %v5045, %v5237
        %v5239 = vpop.f32.mrb[0].mxu0
        %v5240 = vadd.f32 %v5047, %v5239
        %v5241 = vpop.f32.mrb[0].mxu0
        %v5242 = vadd.f32 %v5049, %v5241
        %v5243 = vpop.f32.mrb[0].mxu0
        %v5244 = vadd.f32 %v5051, %v5243
        %5245 = vmatprep.mubr.bf16.mxu0 %v1778
        %5246 = vmatmul.mubr.bf16.gmra.mrb[0].mxu0 %v1777
        %v5247 = vpop.f32.mrb[0].mxu0
        %v5248 = vadd.f32 %v5055, %v5247
        %v5249 = vpop.f32.mrb[0].mxu0
        %v5250 = vadd.f32 %v5057, %v5249
        %v5251 = vpop.f32.mrb[0].mxu0
        %v5252 = vadd.f32 %v5059, %v5251
        %v5253 = vpop.f32.mrb[0].mxu0
        %v5254 = vadd.f32 %v5061, %v5253
        %5255 = vmatprep.mubr.bf16.mxu0 %v1792
        %5256 = vmatmul.mubr.bf16.gmra.mrb[0].mxu0 %v1791
        %v5257 = vpop.f32.mrb[0].mxu0
        %v5258 = vadd.f32 %v5065, %v5257
        %v5259 = vpop.f32.mrb[0].mxu0
        %v5260 = vadd.f32 %v5067, %v5259
        %v5261 = vpop.f32.mrb[0].mxu0
        %v5262 = vadd.f32 %v5069, %v5261
        %v5263 = vpop.f32.mrb[0].mxu0
        %v5264 = vadd.f32 %v5071, %v5263
        %5265 = vmatprep.mubr.bf16.mxu0 %v1806
        %5266 = vmatmul.mubr.bf16.gmra.mrb[0].mxu0 %v1805
        %v5267 = vpop.f32.mrb[0].mxu0
        %v5268 = vadd.f32 %v5075, %v5267
        %v5269 = vpop.f32.mrb[0].mxu0
        %v5270 = vadd.f32 %v5077, %v5269
        %v5271 = vpop.f32.mrb[0].mxu0
        %v5272 = vadd.f32 %v5079, %v5271
        %v5273 = vpop.f32.mrb[0].mxu0
        %v5274 = vadd.f32 %v5081, %v5273
        %5275 = vmatprep.mubr.bf16.mxu0 %v1820
        %5276 = vmatmul.mubr.bf16.gmra.mrb[0].mxu0 %v1819
        %v5277 = vpop.f32.mrb[0].mxu0
        %v5278 = vadd.f32 %v5085, %v5277
        %v5279 = vpop.f32.mrb[0].mxu0
        %v5280 = vadd.f32 %v5087, %v5279
        %v5281 = vpop.f32.mrb[0].mxu0
        %v5282 = vadd.f32 %v5089, %v5281
        %v5283 = vpop.f32.mrb[0].mxu0
        %v5284 = vadd.f32 %v5091, %v5283
        %5285 = vmatprep.mubr.bf16.mxu0 %v1834
        %5286 = vmatmul.mubr.bf16.gmra.mrb[0].mxu0 %v1833
        %v5287 = vpop.f32.mrb[0].mxu0
        %v5288 = vadd.f32 %v5095, %v5287
        %v5289 = vpop.f32.mrb[0].mxu0
        %v5290 = vadd.f32 %v5097, %v5289
        %v5291 = vpop.f32.mrb[0].mxu0
        %v5292 = vadd.f32 %v5099, %v5291
        %v5293 = vpop.f32.mrb[0].mxu0
        %v5294 = vadd.f32 %v5101, %v5293
        %5295 = vmatprep.mubr.bf16.mxu0 %v1848
        %5296 = vmatmul.mubr.bf16.gmra.mrb[0].mxu0 %v1847
        %v5297 = vpop.f32.mrb[0].mxu0
        %v5298 = vadd.f32 %v5105, %v5297
        %v5299 = vpop.f32.mrb[0].mxu0
        %v5300 = vadd.f32 %v5107, %v5299
        %v5301 = vpop.f32.mrb[0].mxu0
        %v5302 = vadd.f32 %v5109, %v5301
        %v5303 = vpop.f32.mrb[0].mxu0
        %v5304 = vadd.f32 %v5111, %v5303
        %5305 = vmatprep.mubr.bf16.mxu0 %v1862
        %5306 = vmatmul.mubr.bf16.gmra.mrb[0].mxu0 %v1861
        %v5307 = vpop.f32.mrb[0].mxu0
        %v5308 = vadd.f32 %v5115, %v5307
        %v5309 = vpop.f32.mrb[0].mxu0
        %v5310 = vadd.f32 %v5117, %v5309
        %v5311 = vpop.f32.mrb[0].mxu0
        %v5312 = vadd.f32 %v5119, %v5311
        %v5313 = vpop.f32.mrb[0].mxu0
        %v5314 = vadd.f32 %v5121, %v5313
        %5315 = vmatprep.mubr.bf16.mxu0 %v1876
        %5316 = vmatmul.mubr.bf16.gmra.mrb[0].mxu0 %v1875
        %v5317 = vpop.f32.mrb[0].mxu0
        %v5318 = vadd.f32 %v5125, %v5317
        %v5319 = vpop.f32.mrb[0].mxu0
        %v5320 = vadd.f32 %v5127, %v5319
        %v5321 = vpop.f32.mrb[0].mxu0
        %v5322 = vadd.f32 %v5129, %v5321
        %v5323 = vpop.f32.mrb[0].mxu0
        %v5324 = vadd.f32 %v5131, %v5323
        %5325 = vmatprep.mubr.bf16.mxu0 %v1890
        %5326 = vmatmul.mubr.bf16.gmra.mrb[0].mxu0 %v1889
        %v5327 = vpop.f32.mrb[0].mxu0
        %v5328 = vadd.f32 %v5135, %v5327
        %v5329 = vpop.f32.mrb[0].mxu0
        %v5330 = vadd.f32 %v5137, %v5329
        %v5331 = vpop.f32.mrb[0].mxu0
        %v5332 = vadd.f32 %v5139, %v5331
        %v5333 = vpop.f32.mrb[0].mxu0
        %v5334 = vadd.f32 %v5141, %v5333
        %5335 = vmatprep.mubr.bf16.mxu0 %v1904
        %5336 = vmatmul.mubr.bf16.gmra.mrb[0].mxu0 %v1903
        %v5337 = vpop.f32.mrb[0].mxu0
        %v5338 = vadd.f32 %v5145, %v5337
        %v5339 = vpop.f32.mrb[0].mxu0
        %v5340 = vadd.f32 %v5147, %v5339
        %v5341 = vpop.f32.mrb[0].mxu0
        %v5342 = vadd.f32 %v5149, %v5341
        %v5343 = vpop.f32.mrb[0].mxu0
        %v5344 = vadd.f32 %v5151, %v5343
        %5345 = vmatprep.mubr.bf16.mxu0 %v1918
        %5346 = vmatmul.mubr.bf16.gmra.mrb[0].mxu0 %v1917
        %v5347 = vpop.f32.mrb[0].mxu0
        %v5348 = vadd.f32 %v5155, %v5347
        %v5349 = vpop.f32.mrb[0].mxu0
        %v5350 = vadd.f32 %v5157, %v5349
        %v5351 = vpop.f32.mrb[0].mxu0
        %v5352 = vadd.f32 %v5159, %v5351
        %v5353 = vpop.f32.mrb[0].mxu0
        %v5354 = vadd.f32 %v5161, %v5353
        %5355 = vmatprep.mubr.bf16.mxu0 %v1932
        %5356 = vmatmul.mubr.bf16.gmra.mrb[0].mxu0 %v1931
        %v5357 = vpop.f32.mrb[0].mxu0
        %v5358 = vadd.f32 %v5165, %v5357
        %v5359 = vpop.f32.mrb[0].mxu0
        %v5360 = vadd.f32 %v5167, %v5359
        %v5361 = vpop.f32.mrb[0].mxu0
        %v5362 = vadd.f32 %v5169, %v5361
        %v5363 = vpop.f32.mrb[0].mxu0
        %v5364 = vadd.f32 %v5171, %v5363
        %5365 = vdwg.mxu0
        %5366 = vmatprep.subr.bf16.mxu0 %v3826
        %5367 = vmatpush1.bf16.msra.mxu0 %v3825
        %5368 = vmatprep.subr.bf16.mxu0 %v3830
        %5369 = vmatpush1.bf16.msra.mxu0 %v3829
        %5370 = vmatprep.subr.bf16.mxu0 %v3834
        %5371 = vmatpush1.bf16.msra.mxu0 %v3833
        %5372 = vmatprep.subr.bf16.mxu0 %v3838
        %5373 = vmatpush1.bf16.msra.mxu0 %v3837
        %5374 = vmatprep.subr.bf16.mxu0 %v3842
        %5375 = vmatpush1.bf16.msra.mxu0 %v3841
        %5376 = vmatprep.subr.bf16.mxu0 %v3846
        %5377 = vmatpush1.bf16.msra.mxu0 %v3845
        %5378 = vmatprep.subr.bf16.mxu0 %v3850
        %5379 = vmatpush1.bf16.msra.mxu0 %v3849
        %5380 = vmatprep.subr.bf16.mxu0 %v3854
        %5381 = vmatpush1.bf16.msra.mxu0 %v3853
        %5382 = vmatprep.subr.bf16.mxu0 %v3858
        %5383 = vmatpush1.bf16.msra.mxu0 %v3857
        %5384 = vmatprep.subr.bf16.mxu0 %v3862
        %5385 = vmatpush1.bf16.msra.mxu0 %v3861
        %5386 = vmatprep.subr.bf16.mxu0 %v3866
        %5387 = vmatpush1.bf16.msra.mxu0 %v3865
        %5388 = vmatprep.subr.bf16.mxu0 %v3870
        %5389 = vmatpush1.bf16.msra.mxu0 %v3869
        %5390 = vmatprep.subr.bf16.mxu0 %v3874
        %5391 = vmatpush1.bf16.msra.mxu0 %v3873
        %5392 = vmatprep.subr.bf16.mxu0 %v3878
        %5393 = vmatpush1.bf16.msra.mxu0 %v3877
        %5394 = vmatprep.subr.bf16.mxu0 %v3882
        %5395 = vmatpush1.bf16.msra.mxu0 %v3881
        %5396 = vmatprep.subr.bf16.mxu0 %v3886
        %5397 = vmatpush1.bf16.msra.mxu0 %v3885
        %5398 = vmatprep.mubr.bf16.mxu0 %v1724
        %5399 = vmatmul.mubr.bf16.gmra.mrb[0].mxu0 %v1723
        %v5400 = vpop.f32.mrb[0].mxu0
        %v5401 = vadd.f32 %v5208, %v5400
        %v5402 = vpop.f32.mrb[0].mxu0
        %v5403 = vadd.f32 %v5210, %v5402
        %v5404 = vpop.f32.mrb[0].mxu0
        %v5405 = vadd.f32 %v5212, %v5404
        %v5406 = vpop.f32.mrb[0].mxu0
        %v5407 = vadd.f32 %v5214, %v5406
        %5408 = vmatprep.mubr.bf16.mxu0 %v1738
        %5409 = vmatmul.mubr.bf16.gmra.mrb[0].mxu0 %v1737
        %v5410 = vpop.f32.mrb[0].mxu0
        %v5411 = vadd.f32 %v5218, %v5410
        %v5412 = vpop.f32.mrb[0].mxu0
        %v5413 = vadd.f32 %v5220, %v5412
        %v5414 = vpop.f32.mrb[0].mxu0
        %v5415 = vadd.f32 %v5222, %v5414
        %v5416 = vpop.f32.mrb[0].mxu0
        %v5417 = vadd.f32 %v5224, %v5416
        %5418 = vmatprep.mubr.bf16.mxu0 %v1752
        %5419 = vmatmul.mubr.bf16.gmra.mrb[0].mxu0 %v1751
        %v5420 = vpop.f32.mrb[0].mxu0
        %v5421 = vadd.f32 %v5228, %v5420
        %v5422 = vpop.f32.mrb[0].mxu0
        %v5423 = vadd.f32 %v5230, %v5422
        %v5424 = vpop.f32.mrb[0].mxu0
        %v5425 = vadd.f32 %v5232, %v5424
        %v5426 = vpop.f32.mrb[0].mxu0
        %v5427 = vadd.f32 %v5234, %v5426
        %5428 = vmatprep.mubr.bf16.mxu0 %v1766
        %5429 = vmatmul.mubr.bf16.gmra.mrb[0].mxu0 %v1765
        %v5430 = vpop.f32.mrb[0].mxu0
        %v5431 = vadd.f32 %v5238, %v5430
        %v5432 = vpop.f32.mrb[0].mxu0
        %v5433 = vadd.f32 %v5240, %v5432
        %v5434 = vpop.f32.mrb[0].mxu0
        %v5435 = vadd.f32 %v5242, %v5434
        %v5436 = vpop.f32.mrb[0].mxu0
        %v5437 = vadd.f32 %v5244, %v5436
        %5438 = vmatprep.mubr.bf16.mxu0 %v1780
        %5439 = vmatmul.mubr.bf16.gmra.mrb[0].mxu0 %v1779
        %v5440 = vpop.f32.mrb[0].mxu0
        %v5441 = vadd.f32 %v5248, %v5440
        %v5442 = vpop.f32.mrb[0].mxu0
        %v5443 = vadd.f32 %v5250, %v5442
        %v5444 = vpop.f32.mrb[0].mxu0
        %v5445 = vadd.f32 %v5252, %v5444
        %v5446 = vpop.f32.mrb[0].mxu0
        %v5447 = vadd.f32 %v5254, %v5446
        %5448 = vmatprep.mubr.bf16.mxu0 %v1794
        %5449 = vmatmul.mubr.bf16.gmra.mrb[0].mxu0 %v1793
        %v5450 = vpop.f32.mrb[0].mxu0
        %v5451 = vadd.f32 %v5258, %v5450
        %v5452 = vpop.f32.mrb[0].mxu0
        %v5453 = vadd.f32 %v5260, %v5452
        %v5454 = vpop.f32.mrb[0].mxu0
        %v5455 = vadd.f32 %v5262, %v5454
        %v5456 = vpop.f32.mrb[0].mxu0
        %v5457 = vadd.f32 %v5264, %v5456
        %5458 = vmatprep.mubr.bf16.mxu0 %v1808
        %5459 = vmatmul.mubr.bf16.gmra.mrb[0].mxu0 %v1807
        %v5460 = vpop.f32.mrb[0].mxu0
        %v5461 = vadd.f32 %v5268, %v5460
        %v5462 = vpop.f32.mrb[0].mxu0
        %v5463 = vadd.f32 %v5270, %v5462
        %v5464 = vpop.f32.mrb[0].mxu0
        %v5465 = vadd.f32 %v5272, %v5464
        %v5466 = vpop.f32.mrb[0].mxu0
        %v5467 = vadd.f32 %v5274, %v5466
        %5468 = vmatprep.mubr.bf16.mxu0 %v1822
        %5469 = vmatmul.mubr.bf16.gmra.mrb[0].mxu0 %v1821
        %v5470 = vpop.f32.mrb[0].mxu0
        %v5471 = vadd.f32 %v5278, %v5470
        %v5472 = vpop.f32.mrb[0].mxu0
        %v5473 = vadd.f32 %v5280, %v5472
        %v5474 = vpop.f32.mrb[0].mxu0
        %v5475 = vadd.f32 %v5282, %v5474
        %v5476 = vpop.f32.mrb[0].mxu0
        %v5477 = vadd.f32 %v5284, %v5476
        %5478 = vmatprep.mubr.bf16.mxu0 %v1836
        %5479 = vmatmul.mubr.bf16.gmra.mrb[0].mxu0 %v1835
        %v5480 = vpop.f32.mrb[0].mxu0
        %v5481 = vadd.f32 %v5288, %v5480
        %v5482 = vpop.f32.mrb[0].mxu0
        %v5483 = vadd.f32 %v5290, %v5482
        %v5484 = vpop.f32.mrb[0].mxu0
        %v5485 = vadd.f32 %v5292, %v5484
        %v5486 = vpop.f32.mrb[0].mxu0
        %v5487 = vadd.f32 %v5294, %v5486
        %5488 = vmatprep.mubr.bf16.mxu0 %v1850
        %5489 = vmatmul.mubr.bf16.gmra.mrb[0].mxu0 %v1849
        %v5490 = vpop.f32.mrb[0].mxu0
        %v5491 = vadd.f32 %v5298, %v5490
        %v5492 = vpop.f32.mrb[0].mxu0
        %v5493 = vadd.f32 %v5300, %v5492
        %v5494 = vpop.f32.mrb[0].mxu0
        %v5495 = vadd.f32 %v5302, %v5494
        %v5496 = vpop.f32.mrb[0].mxu0
        %v5497 = vadd.f32 %v5304, %v5496
        %5498 = vmatprep.mubr.bf16.mxu0 %v1864
        %5499 = vmatmul.mubr.bf16.gmra.mrb[0].mxu0 %v1863
        %v5500 = vpop.f32.mrb[0].mxu0
        %v5501 = vadd.f32 %v5308, %v5500
        %v5502 = vpop.f32.mrb[0].mxu0
        %v5503 = vadd.f32 %v5310, %v5502
        %v5504 = vpop.f32.mrb[0].mxu0
        %v5505 = vadd.f32 %v5312, %v5504
        %v5506 = vpop.f32.mrb[0].mxu0
        %v5507 = vadd.f32 %v5314, %v5506
        %5508 = vmatprep.mubr.bf16.mxu0 %v1878
        %5509 = vmatmul.mubr.bf16.gmra.mrb[0].mxu0 %v1877
        %v5510 = vpop.f32.mrb[0].mxu0
        %v5511 = vadd.f32 %v5318, %v5510
        %v5512 = vpop.f32.mrb[0].mxu0
        %v5513 = vadd.f32 %v5320, %v5512
        %v5514 = vpop.f32.mrb[0].mxu0
        %v5515 = vadd.f32 %v5322, %v5514
        %v5516 = vpop.f32.mrb[0].mxu0
        %v5517 = vadd.f32 %v5324, %v5516
        %5518 = vmatprep.mubr.bf16.mxu0 %v1892
        %5519 = vmatmul.mubr.bf16.gmra.mrb[0].mxu0 %v1891
        %v5520 = vpop.f32.mrb[0].mxu0
        %v5521 = vadd.f32 %v5328, %v5520
        %v5522 = vpop.f32.mrb[0].mxu0
        %v5523 = vadd.f32 %v5330, %v5522
        %v5524 = vpop.f32.mrb[0].mxu0
        %v5525 = vadd.f32 %v5332, %v5524
        %v5526 = vpop.f32.mrb[0].mxu0
        %v5527 = vadd.f32 %v5334, %v5526
        %5528 = vmatprep.mubr.bf16.mxu0 %v1906
        %5529 = vmatmul.mubr.bf16.gmra.mrb[0].mxu0 %v1905
        %v5530 = vpop.f32.mrb[0].mxu0
        %v5531 = vadd.f32 %v5338, %v5530
        %v5532 = vpop.f32.mrb[0].mxu0
        %v5533 = vadd.f32 %v5340, %v5532
        %v5534 = vpop.f32.mrb[0].mxu0
        %v5535 = vadd.f32 %v5342, %v5534
        %v5536 = vpop.f32.mrb[0].mxu0
        %v5537 = vadd.f32 %v5344, %v5536
        %5538 = vmatprep.mubr.bf16.mxu0 %v1920
        %5539 = vmatmul.mubr.bf16.gmra.mrb[0].mxu0 %v1919
        %v5540 = vpop.f32.mrb[0].mxu0
        %v5541 = vadd.f32 %v5348, %v5540
        %v5542 = vpop.f32.mrb[0].mxu0
        %v5543 = vadd.f32 %v5350, %v5542
        %v5544 = vpop.f32.mrb[0].mxu0
        %v5545 = vadd.f32 %v5352, %v5544
        %v5546 = vpop.f32.mrb[0].mxu0
        %v5547 = vadd.f32 %v5354, %v5546
        %5548 = vmatprep.mubr.bf16.mxu0 %v1934
        %5549 = vmatmul.mubr.bf16.gmra.mrb[0].mxu0 %v1933
        %v5550 = vpop.f32.mrb[0].mxu0
        %v5551 = vadd.f32 %v5358, %v5550
        %v5552 = vpop.f32.mrb[0].mxu0
        %v5553 = vadd.f32 %v5360, %v5552
        %v5554 = vpop.f32.mrb[0].mxu0
        %v5555 = vadd.f32 %v5362, %v5554
        %v5556 = vpop.f32.mrb[0].mxu0
        %v5557 = vadd.f32 %v5364, %v5556
        %5558 = vdwg.mxu0
        %5559 = vmatprep.subr.bf16.mxu0 %v3890
        %5560 = vmatpush1.bf16.msra.mxu0 %v3889
        %5561 = vmatprep.subr.bf16.mxu0 %v3894
        %5562 = vmatpush1.bf16.msra.mxu0 %v3893
        %5563 = vmatprep.subr.bf16.mxu0 %v3898
        %5564 = vmatpush1.bf16.msra.mxu0 %v3897
        %5565 = vmatprep.subr.bf16.mxu0 %v3902
        %5566 = vmatpush1.bf16.msra.mxu0 %v3901
        %5567 = vmatprep.subr.bf16.mxu0 %v3906
        %5568 = vmatpush1.bf16.msra.mxu0 %v3905
        %5569 = vmatprep.subr.bf16.mxu0 %v3910
        %5570 = vmatpush1.bf16.msra.mxu0 %v3909
        %5571 = vmatprep.subr.bf16.mxu0 %v3914
        %5572 = vmatpush1.bf16.msra.mxu0 %v3913
        %5573 = vmatprep.subr.bf16.mxu0 %v3918
        %5574 = vmatpush1.bf16.msra.mxu0 %v3917
        %5575 = vmatprep.subr.bf16.mxu0 %v3922
        %5576 = vmatpush1.bf16.msra.mxu0 %v3921
        %5577 = vmatprep.subr.bf16.mxu0 %v3926
        %5578 = vmatpush1.bf16.msra.mxu0 %v3925
        %5579 = vmatprep.subr.bf16.mxu0 %v3930
        %5580 = vmatpush1.bf16.msra.mxu0 %v3929
        %5581 = vmatprep.subr.bf16.mxu0 %v3934
        %5582 = vmatpush1.bf16.msra.mxu0 %v3933
        %5583 = vmatprep.subr.bf16.mxu0 %v3938
        %5584 = vmatpush1.bf16.msra.mxu0 %v3937
        %5585 = vmatprep.subr.bf16.mxu0 %v3942
        %5586 = vmatpush1.bf16.msra.mxu0 %v3941
        %5587 = vmatprep.subr.bf16.mxu0 %v3946
        %5588 = vmatpush1.bf16.msra.mxu0 %v3945
        %5589 = vmatprep.subr.bf16.mxu0 %v3950
        %5590 = vmatpush1.bf16.msra.mxu0 %v3949
        %5591 = vmatprep.mubr.bf16.mxu0 %v1726
        %5592 = vmatmul.mubr.bf16.gmra.mrb[0].mxu0 %v1725
        %v5593 = vpop.f32.mrb[0].mxu0
        %v5594 = vadd.f32 %v5401, %v5593
        %v5595 = vpop.f32.mrb[0].mxu0
        %v5596 = vadd.f32 %v5403, %v5595
        %v5597 = vpop.f32.mrb[0].mxu0
        %v5598 = vadd.f32 %v5405, %v5597
        %v5599 = vpop.f32.mrb[0].mxu0
        %v5600 = vadd.f32 %v5407, %v5599
        %5601 = vmatprep.mubr.bf16.mxu0 %v1740
        %5602 = vmatmul.mubr.bf16.gmra.mrb[0].mxu0 %v1739
        %v5603 = vpop.f32.mrb[0].mxu0
        %v5604 = vadd.f32 %v5411, %v5603
        %v5605 = vpop.f32.mrb[0].mxu0
        %v5606 = vadd.f32 %v5413, %v5605
        %v5607 = vpop.f32.mrb[0].mxu0
        %v5608 = vadd.f32 %v5415, %v5607
        %v5609 = vpop.f32.mrb[0].mxu0
        %v5610 = vadd.f32 %v5417, %v5609
        %5611 = vmatprep.mubr.bf16.mxu0 %v1754
        %5612 = vmatmul.mubr.bf16.gmra.mrb[0].mxu0 %v1753
        %v5613 = vpop.f32.mrb[0].mxu0
        %v5614 = vadd.f32 %v5421, %v5613
        %v5615 = vpop.f32.mrb[0].mxu0
        %v5616 = vadd.f32 %v5423, %v5615
        %v5617 = vpop.f32.mrb[0].mxu0
        %v5618 = vadd.f32 %v5425, %v5617
        %v5619 = vpop.f32.mrb[0].mxu0
        %v5620 = vadd.f32 %v5427, %v5619
        %5621 = vmatprep.mubr.bf16.mxu0 %v1768
        %5622 = vmatmul.mubr.bf16.gmra.mrb[0].mxu0 %v1767
        %v5623 = vpop.f32.mrb[0].mxu0
        %v5624 = vadd.f32 %v5431, %v5623
        %v5625 = vpop.f32.mrb[0].mxu0
        %v5626 = vadd.f32 %v5433, %v5625
        %v5627 = vpop.f32.mrb[0].mxu0
        %v5628 = vadd.f32 %v5435, %v5627
        %v5629 = vpop.f32.mrb[0].mxu0
        %v5630 = vadd.f32 %v5437, %v5629
        %5631 = vmatprep.mubr.bf16.mxu0 %v1782
        %5632 = vmatmul.mubr.bf16.gmra.mrb[0].mxu0 %v1781
        %v5633 = vpop.f32.mrb[0].mxu0
        %v5634 = vadd.f32 %v5441, %v5633
        %v5635 = vpop.f32.mrb[0].mxu0
        %v5636 = vadd.f32 %v5443, %v5635
        %v5637 = vpop.f32.mrb[0].mxu0
        %v5638 = vadd.f32 %v5445, %v5637
        %v5639 = vpop.f32.mrb[0].mxu0
        %v5640 = vadd.f32 %v5447, %v5639
        %5641 = vmatprep.mubr.bf16.mxu0 %v1796
        %5642 = vmatmul.mubr.bf16.gmra.mrb[0].mxu0 %v1795
        %v5643 = vpop.f32.mrb[0].mxu0
        %v5644 = vadd.f32 %v5451, %v5643
        %v5645 = vpop.f32.mrb[0].mxu0
        %v5646 = vadd.f32 %v5453, %v5645
        %v5647 = vpop.f32.mrb[0].mxu0
        %v5648 = vadd.f32 %v5455, %v5647
        %v5649 = vpop.f32.mrb[0].mxu0
        %v5650 = vadd.f32 %v5457, %v5649
        %5651 = vmatprep.mubr.bf16.mxu0 %v1810
        %5652 = vmatmul.mubr.bf16.gmra.mrb[0].mxu0 %v1809
        %v5653 = vpop.f32.mrb[0].mxu0
        %v5654 = vadd.f32 %v5461, %v5653
        %v5655 = vpop.f32.mrb[0].mxu0
        %v5656 = vadd.f32 %v5463, %v5655
        %v5657 = vpop.f32.mrb[0].mxu0
        %v5658 = vadd.f32 %v5465, %v5657
        %v5659 = vpop.f32.mrb[0].mxu0
        %v5660 = vadd.f32 %v5467, %v5659
        %5661 = vmatprep.mubr.bf16.mxu0 %v1824
        %5662 = vmatmul.mubr.bf16.gmra.mrb[0].mxu0 %v1823
        %v5663 = vpop.f32.mrb[0].mxu0
        %v5664 = vadd.f32 %v5471, %v5663
        %v5665 = vpop.f32.mrb[0].mxu0
        %v5666 = vadd.f32 %v5473, %v5665
        %v5667 = vpop.f32.mrb[0].mxu0
        %v5668 = vadd.f32 %v5475, %v5667
        %v5669 = vpop.f32.mrb[0].mxu0
        %v5670 = vadd.f32 %v5477, %v5669
        %5671 = vmatprep.mubr.bf16.mxu0 %v1838
        %5672 = vmatmul.mubr.bf16.gmra.mrb[0].mxu0 %v1837
        %v5673 = vpop.f32.mrb[0].mxu0
        %v5674 = vadd.f32 %v5481, %v5673
        %v5675 = vpop.f32.mrb[0].mxu0
        %v5676 = vadd.f32 %v5483, %v5675
        %v5677 = vpop.f32.mrb[0].mxu0
        %v5678 = vadd.f32 %v5485, %v5677
        %v5679 = vpop.f32.mrb[0].mxu0
        %v5680 = vadd.f32 %v5487, %v5679
        %5681 = vmatprep.mubr.bf16.mxu0 %v1852
        %5682 = vmatmul.mubr.bf16.gmra.mrb[0].mxu0 %v1851
        %v5683 = vpop.f32.mrb[0].mxu0
        %v5684 = vadd.f32 %v5491, %v5683
        %v5685 = vpop.f32.mrb[0].mxu0
        %v5686 = vadd.f32 %v5493, %v5685
        %v5687 = vpop.f32.mrb[0].mxu0
        %v5688 = vadd.f32 %v5495, %v5687
        %v5689 = vpop.f32.mrb[0].mxu0
        %v5690 = vadd.f32 %v5497, %v5689
        %5691 = vmatprep.mubr.bf16.mxu0 %v1866
        %5692 = vmatmul.mubr.bf16.gmra.mrb[0].mxu0 %v1865
        %v5693 = vpop.f32.mrb[0].mxu0
        %v5694 = vadd.f32 %v5501, %v5693
        %v5695 = vpop.f32.mrb[0].mxu0
        %v5696 = vadd.f32 %v5503, %v5695
        %v5697 = vpop.f32.mrb[0].mxu0
        %v5698 = vadd.f32 %v5505, %v5697
        %v5699 = vpop.f32.mrb[0].mxu0
        %v5700 = vadd.f32 %v5507, %v5699
        %5701 = vmatprep.mubr.bf16.mxu0 %v1880
        %5702 = vmatmul.mubr.bf16.gmra.mrb[0].mxu0 %v1879
        %v5703 = vpop.f32.mrb[0].mxu0
        %v5704 = vadd.f32 %v5511, %v5703
        %v5705 = vpop.f32.mrb[0].mxu0
        %v5706 = vadd.f32 %v5513, %v5705
        %v5707 = vpop.f32.mrb[0].mxu0
        %v5708 = vadd.f32 %v5515, %v5707
        %v5709 = vpop.f32.mrb[0].mxu0
        %v5710 = vadd.f32 %v5517, %v5709
        %5711 = vmatprep.mubr.bf16.mxu0 %v1894
        %5712 = vmatmul.mubr.bf16.gmra.mrb[0].mxu0 %v1893
        %v5713 = vpop.f32.mrb[0].mxu0
        %v5714 = vadd.f32 %v5521, %v5713
        %v5715 = vpop.f32.mrb[0].mxu0
        %v5716 = vadd.f32 %v5523, %v5715
        %v5717 = vpop.f32.mrb[0].mxu0
        %v5718 = vadd.f32 %v5525, %v5717
        %v5719 = vpop.f32.mrb[0].mxu0
        %v5720 = vadd.f32 %v5527, %v5719
        %5721 = vmatprep.mubr.bf16.mxu0 %v1908
        %5722 = vmatmul.mubr.bf16.gmra.mrb[0].mxu0 %v1907
        %v5723 = vpop.f32.mrb[0].mxu0
        %v5724 = vadd.f32 %v5531, %v5723
        %v5725 = vpop.f32.mrb[0].mxu0
        %v5726 = vadd.f32 %v5533, %v5725
        %v5727 = vpop.f32.mrb[0].mxu0
        %v5728 = vadd.f32 %v5535, %v5727
        %v5729 = vpop.f32.mrb[0].mxu0
        %v5730 = vadd.f32 %v5537, %v5729
        %5731 = vmatprep.mubr.bf16.mxu0 %v1922
        %5732 = vmatmul.mubr.bf16.gmra.mrb[0].mxu0 %v1921
        %v5733 = vpop.f32.mrb[0].mxu0
        %v5734 = vadd.f32 %v5541, %v5733
        %v5735 = vpop.f32.mrb[0].mxu0
        %v5736 = vadd.f32 %v5543, %v5735
        %v5737 = vpop.f32.mrb[0].mxu0
        %v5738 = vadd.f32 %v5545, %v5737
        %v5739 = vpop.f32.mrb[0].mxu0
        %v5740 = vadd.f32 %v5547, %v5739
        %5741 = vmatprep.mubr.bf16.mxu0 %v1936
        %5742 = vmatmul.mubr.bf16.gmra.mrb[0].mxu0 %v1935
        %v5743 = vpop.f32.mrb[0].mxu0
        %v5744 = vadd.f32 %v5551, %v5743
        %v5745 = vpop.f32.mrb[0].mxu0
        %v5746 = vadd.f32 %v5553, %v5745
        %v5747 = vpop.f32.mrb[0].mxu0
        %v5748 = vadd.f32 %v5555, %v5747
        %v5749 = vpop.f32.mrb[0].mxu0
        %v5750 = vadd.f32 %v5557, %v5749
        %5751 = vdwg.mxu0
        %5752 = vmatprep.subr.bf16.mxu0 %v3508
        %5753 = vmatpush1.bf16.msra.mxu0 %v3507
        %5754 = vmatprep.subr.bf16.mxu0 %v3512
        %5755 = vmatpush1.bf16.msra.mxu0 %v3511
        %5756 = vmatprep.subr.bf16.mxu0 %v3516
        %5757 = vmatpush1.bf16.msra.mxu0 %v3515
        %5758 = vmatprep.subr.bf16.mxu0 %v3520
        %5759 = vmatpush1.bf16.msra.mxu0 %v3519
        %5760 = vmatprep.subr.bf16.mxu0 %v3524
        %5761 = vmatpush1.bf16.msra.mxu0 %v3523
        %5762 = vmatprep.subr.bf16.mxu0 %v3528
        %5763 = vmatpush1.bf16.msra.mxu0 %v3527
        %5764 = vmatprep.subr.bf16.mxu0 %v3532
        %5765 = vmatpush1.bf16.msra.mxu0 %v3531
        %5766 = vmatprep.subr.bf16.mxu0 %v3536
        %5767 = vmatpush1.bf16.msra.mxu0 %v3535
        %5768 = vmatprep.subr.bf16.mxu0 %v3540
        %5769 = vmatpush1.bf16.msra.mxu0 %v3539
        %5770 = vmatprep.subr.bf16.mxu0 %v3544
        %5771 = vmatpush1.bf16.msra.mxu0 %v3543
        %5772 = vmatprep.subr.bf16.mxu0 %v3548
        %5773 = vmatpush1.bf16.msra.mxu0 %v3547
        %5774 = vmatprep.subr.bf16.mxu0 %v3552
        %5775 = vmatpush1.bf16.msra.mxu0 %v3551
        %5776 = vmatprep.subr.bf16.mxu0 %v3556
        %5777 = vmatpush1.bf16.msra.mxu0 %v3555
        %5778 = vmatprep.subr.bf16.mxu0 %v3560
        %5779 = vmatpush1.bf16.msra.mxu0 %v3559
        %5780 = vmatprep.subr.bf16.mxu0 %v3564
        %5781 = vmatpush1.bf16.msra.mxu0 %v3563
        %5782 = vmatprep.subr.bf16.mxu0 %v3568
        %5783 = vmatpush1.bf16.msra.mxu0 %v3567
        %5784 = vmatprep.mubr.bf16.mxu0 %v1714
        %5785 = vmatmul.mubr.bf16.gmra.mrb[0].mxu0 %v1713
        %v5786 = vpop.f32.mrb[0].mxu0
        %v5787 = vadd.f32 0.0, %v5786
        %v5788 = vpop.f32.mrb[0].mxu0
        %v5789 = vadd.f32 0.0, %v5788
        %v5790 = vpop.f32.mrb[0].mxu0
        %v5791 = vadd.f32 0.0, %v5790
        %v5792 = vpop.f32.mrb[0].mxu0
        %v5793 = vadd.f32 0.0, %v5792
        %5794 = vmatprep.mubr.bf16.mxu0 %v1728
        %5795 = vmatmul.mubr.bf16.gmra.mrb[0].mxu0 %v1727
        %v5796 = vpop.f32.mrb[0].mxu0
        %v5797 = vadd.f32 0.0, %v5796
        %v5798 = vpop.f32.mrb[0].mxu0
        %v5799 = vadd.f32 0.0, %v5798
        %v5800 = vpop.f32.mrb[0].mxu0
        %v5801 = vadd.f32 0.0, %v5800
        %v5802 = vpop.f32.mrb[0].mxu0
        %v5803 = vadd.f32 0.0, %v5802
        %5804 = vmatprep.mubr.bf16.mxu0 %v1742
        %5805 = vmatmul.mubr.bf16.gmra.mrb[0].mxu0 %v1741
        %v5806 = vpop.f32.mrb[0].mxu0
        %v5807 = vadd.f32 0.0, %v5806
        %v5808 = vpop.f32.mrb[0].mxu0
        %v5809 = vadd.f32 0.0, %v5808
        %v5810 = vpop.f32.mrb[0].mxu0
        %v5811 = vadd.f32 0.0, %v5810
        %v5812 = vpop.f32.mrb[0].mxu0
        %v5813 = vadd.f32 0.0, %v5812
        %5814 = vmatprep.mubr.bf16.mxu0 %v1756
        %5815 = vmatmul.mubr.bf16.gmra.mrb[0].mxu0 %v1755
        %v5816 = vpop.f32.mrb[0].mxu0
        %v5817 = vadd.f32 0.0, %v5816
        %v5818 = vpop.f32.mrb[0].mxu0
        %v5819 = vadd.f32 0.0, %v5818
        %v5820 = vpop.f32.mrb[0].mxu0
        %v5821 = vadd.f32 0.0, %v5820
        %v5822 = vpop.f32.mrb[0].mxu0
        %v5823 = vadd.f32 0.0, %v5822
        %5824 = vmatprep.mubr.bf16.mxu0 %v1770
        %5825 = vmatmul.mubr.bf16.gmra.mrb[0].mxu0 %v1769
        %v5826 = vpop.f32.mrb[0].mxu0
        %v5827 = vadd.f32 0.0, %v5826
        %v5828 = vpop.f32.mrb[0].mxu0
        %v5829 = vadd.f32 0.0, %v5828
        %v5830 = vpop.f32.mrb[0].mxu0
        %v5831 = vadd.f32 0.0, %v5830
        %v5832 = vpop.f32.mrb[0].mxu0
        %v5833 = vadd.f32 0.0, %v5832
        %5834 = vmatprep.mubr.bf16.mxu0 %v1784
        %5835 = vmatmul.mubr.bf16.gmra.mrb[0].mxu0 %v1783
        %v5836 = vpop.f32.mrb[0].mxu0
        %v5837 = vadd.f32 0.0, %v5836
        %v5838 = vpop.f32.mrb[0].mxu0
        %v5839 = vadd.f32 0.0, %v5838
        %v5840 = vpop.f32.mrb[0].mxu0
        %v5841 = vadd.f32 0.0, %v5840
        %v5842 = vpop.f32.mrb[0].mxu0
        %v5843 = vadd.f32 0.0, %v5842
        %5844 = vmatprep.mubr.bf16.mxu0 %v1798
        %5845 = vmatmul.mubr.bf16.gmra.mrb[0].mxu0 %v1797
        %v5846 = vpop.f32.mrb[0].mxu0
        %v5847 = vadd.f32 0.0, %v5846
        %v5848 = vpop.f32.mrb[0].mxu0
        %v5849 = vadd.f32 0.0, %v5848
        %v5850 = vpop.f32.mrb[0].mxu0
        %v5851 = vadd.f32 0.0, %v5850
        %v5852 = vpop.f32.mrb[0].mxu0
        %v5853 = vadd.f32 0.0, %v5852
        %5854 = vmatprep.mubr.bf16.mxu0 %v1812
        %5855 = vmatmul.mubr.bf16.gmra.mrb[0].mxu0 %v1811
        %v5856 = vpop.f32.mrb[0].mxu0
        %v5857 = vadd.f32 0.0, %v5856
        %v5858 = vpop.f32.mrb[0].mxu0
        %v5859 = vadd.f32 0.0, %v5858
        %v5860 = vpop.f32.mrb[0].mxu0
        %v5861 = vadd.f32 0.0, %v5860
        %v5862 = vpop.f32.mrb[0].mxu0
        %v5863 = vadd.f32 0.0, %v5862
        %5864 = vmatprep.mubr.bf16.mxu0 %v1826
        %5865 = vmatmul.mubr.bf16.gmra.mrb[0].mxu0 %v1825
        %v5866 = vpop.f32.mrb[0].mxu0
        %v5867 = vadd.f32 0.0, %v5866
        %v5868 = vpop.f32.mrb[0].mxu0
        %v5869 = vadd.f32 0.0, %v5868
        %v5870 = vpop.f32.mrb[0].mxu0
        %v5871 = vadd.f32 0.0, %v5870
        %v5872 = vpop.f32.mrb[0].mxu0
        %v5873 = vadd.f32 0.0, %v5872
        %5874 = vmatprep.mubr.bf16.mxu0 %v1840
        %5875 = vmatmul.mubr.bf16.gmra.mrb[0].mxu0 %v1839
        %v5876 = vpop.f32.mrb[0].mxu0
        %v5877 = vadd.f32 0.0, %v5876
        %v5878 = vpop.f32.mrb[0].mxu0
        %v5879 = vadd.f32 0.0, %v5878
        %v5880 = vpop.f32.mrb[0].mxu0
        %v5881 = vadd.f32 0.0, %v5880
        %v5882 = vpop.f32.mrb[0].mxu0
        %v5883 = vadd.f32 0.0, %v5882
        %5884 = vmatprep.mubr.bf16.mxu0 %v1854
        %5885 = vmatmul.mubr.bf16.gmra.mrb[0].mxu0 %v1853
        %v5886 = vpop.f32.mrb[0].mxu0
        %v5887 = vadd.f32 0.0, %v5886
        %v5888 = vpop.f32.mrb[0].mxu0
        %v5889 = vadd.f32 0.0, %v5888
        %v5890 = vpop.f32.mrb[0].mxu0
        %v5891 = vadd.f32 0.0, %v5890
        %v5892 = vpop.f32.mrb[0].mxu0
        %v5893 = vadd.f32 0.0, %v5892
        %5894 = vmatprep.mubr.bf16.mxu0 %v1868
        %5895 = vmatmul.mubr.bf16.gmra.mrb[0].mxu0 %v1867
        %v5896 = vpop.f32.mrb[0].mxu0
        %v5897 = vadd.f32 0.0, %v5896
        %v5898 = vpop.f32.mrb[0].mxu0
        %v5899 = vadd.f32 0.0, %v5898
        %v5900 = vpop.f32.mrb[0].mxu0
        %v5901 = vadd.f32 0.0, %v5900
        %v5902 = vpop.f32.mrb[0].mxu0
        %v5903 = vadd.f32 0.0, %v5902
        %5904 = vmatprep.mubr.bf16.mxu0 %v1882
        %5905 = vmatmul.mubr.bf16.gmra.mrb[0].mxu0 %v1881
        %v5906 = vpop.f32.mrb[0].mxu0
        %v5907 = vadd.f32 0.0, %v5906
        %v5908 = vpop.f32.mrb[0].mxu0
        %v5909 = vadd.f32 0.0, %v5908
        %v5910 = vpop.f32.mrb[0].mxu0
        %v5911 = vadd.f32 0.0, %v5910
        %v5912 = vpop.f32.mrb[0].mxu0
        %v5913 = vadd.f32 0.0, %v5912
        %5914 = vmatprep.mubr.bf16.mxu0 %v1896
        %5915 = vmatmul.mubr.bf16.gmra.mrb[0].mxu0 %v1895
        %v5916 = vpop.f32.mrb[0].mxu0
        %v5917 = vadd.f32 0.0, %v5916
        %v5918 = vpop.f32.mrb[0].mxu0
        %v5919 = vadd.f32 0.0, %v5918
        %v5920 = vpop.f32.mrb[0].mxu0
        %v5921 = vadd.f32 0.0, %v5920
        %v5922 = vpop.f32.mrb[0].mxu0
        %v5923 = vadd.f32 0.0, %v5922
        %5924 = vmatprep.mubr.bf16.mxu0 %v1910
        %5925 = vmatmul.mubr.bf16.gmra.mrb[0].mxu0 %v1909
        %v5926 = vpop.f32.mrb[0].mxu0
        %v5927 = vadd.f32 0.0, %v5926
        %v5928 = vpop.f32.mrb[0].mxu0
        %v5929 = vadd.f32 0.0, %v5928
        %v5930 = vpop.f32.mrb[0].mxu0
        %v5931 = vadd.f32 0.0, %v5930
        %v5932 = vpop.f32.mrb[0].mxu0
        %v5933 = vadd.f32 0.0, %v5932
        %5934 = vmatprep.mubr.bf16.mxu0 %v1924
        %5935 = vmatmul.mubr.bf16.gmra.mrb[0].mxu0 %v1923
        %v5936 = vpop.f32.mrb[0].mxu0
        %v5937 = vadd.f32 0.0, %v5936
        %v5938 = vpop.f32.mrb[0].mxu0
        %v5939 = vadd.f32 0.0, %v5938
        %v5940 = vpop.f32.mrb[0].mxu0
        %v5941 = vadd.f32 0.0, %v5940
        %v5942 = vpop.f32.mrb[0].mxu0
        %v5943 = vadd.f32 0.0, %v5942
        %5944 = vdwg.mxu0
        %5945 = vmatprep.subr.bf16.mxu0 %v3572
        %5946 = vmatpush1.bf16.msra.mxu0 %v3571
        %5947 = vmatprep.subr.bf16.mxu0 %v3576
        %5948 = vmatpush1.bf16.msra.mxu0 %v3575
        %5949 = vmatprep.subr.bf16.mxu0 %v3580
        %5950 = vmatpush1.bf16.msra.mxu0 %v3579
        %5951 = vmatprep.subr.bf16.mxu0 %v3584
        %5952 = vmatpush1.bf16.msra.mxu0 %v3583
        %5953 = vmatprep.subr.bf16.mxu0 %v3588
        %5954 = vmatpush1.bf16.msra.mxu0 %v3587
        %5955 = vmatprep.subr.bf16.mxu0 %v3592
        %5956 = vmatpush1.bf16.msra.mxu0 %v3591
        %5957 = vmatprep.subr.bf16.mxu0 %v3596
        %5958 = vmatpush1.bf16.msra.mxu0 %v3595
        %5959 = vmatprep.subr.bf16.mxu0 %v3600
        %5960 = vmatpush1.bf16.msra.mxu0 %v3599
        %5961 = vmatprep.subr.bf16.mxu0 %v3604
        %5962 = vmatpush1.bf16.msra.mxu0 %v3603
        %5963 = vmatprep.subr.bf16.mxu0 %v3608
        %5964 = vmatpush1.bf16.msra.mxu0 %v3607
        %5965 = vmatprep.subr.bf16.mxu0 %v3612
        %5966 = vmatpush1.bf16.msra.mxu0 %v3611
        %5967 = vmatprep.subr.bf16.mxu0 %v3616
        %5968 = vmatpush1.bf16.msra.mxu0 %v3615
        %5969 = vmatprep.subr.bf16.mxu0 %v3620
        %5970 = vmatpush1.bf16.msra.mxu0 %v3619
        %5971 = vmatprep.subr.bf16.mxu0 %v3624
        %5972 = vmatpush1.bf16.msra.mxu0 %v3623
        %5973 = vmatprep.subr.bf16.mxu0 %v3628
        %5974 = vmatpush1.bf16.msra.mxu0 %v3627
        %5975 = vmatprep.subr.bf16.mxu0 %v3632
        %5976 = vmatpush1.bf16.msra.mxu0 %v3631
        %5977 = vmatprep.mubr.bf16.mxu0 %v1716
        %5978 = vmatmul.mubr.bf16.gmra.mrb[0].mxu0 %v1715
        %v5979 = vpop.f32.mrb[0].mxu0
        %v5980 = vadd.f32 %v5787, %v5979
        %v5981 = vpop.f32.mrb[0].mxu0
        %v5982 = vadd.f32 %v5789, %v5981
        %v5983 = vpop.f32.mrb[0].mxu0
        %v5984 = vadd.f32 %v5791, %v5983
        %v5985 = vpop.f32.mrb[0].mxu0
        %v5986 = vadd.f32 %v5793, %v5985
        %5987 = vmatprep.mubr.bf16.mxu0 %v1730
        %5988 = vmatmul.mubr.bf16.gmra.mrb[0].mxu0 %v1729
        %v5989 = vpop.f32.mrb[0].mxu0
        %v5990 = vadd.f32 %v5797, %v5989
        %v5991 = vpop.f32.mrb[0].mxu0
        %v5992 = vadd.f32 %v5799, %v5991
        %v5993 = vpop.f32.mrb[0].mxu0
        %v5994 = vadd.f32 %v5801, %v5993
        %v5995 = vpop.f32.mrb[0].mxu0
        %v5996 = vadd.f32 %v5803, %v5995
        %5997 = vmatprep.mubr.bf16.mxu0 %v1744
        %5998 = vmatmul.mubr.bf16.gmra.mrb[0].mxu0 %v1743
        %v5999 = vpop.f32.mrb[0].mxu0
        %v6000 = vadd.f32 %v5807, %v5999
        %v6001 = vpop.f32.mrb[0].mxu0
        %v6002 = vadd.f32 %v5809, %v6001
        %v6003 = vpop.f32.mrb[0].mxu0
        %v6004 = vadd.f32 %v5811, %v6003
        %v6005 = vpop.f32.mrb[0].mxu0
        %v6006 = vadd.f32 %v5813, %v6005
        %6007 = vmatprep.mubr.bf16.mxu0 %v1758
        %6008 = vmatmul.mubr.bf16.gmra.mrb[0].mxu0 %v1757
        %v6009 = vpop.f32.mrb[0].mxu0
        %v6010 = vadd.f32 %v5817, %v6009
        %v6011 = vpop.f32.mrb[0].mxu0
        %v6012 = vadd.f32 %v5819, %v6011
        %v6013 = vpop.f32.mrb[0].mxu0
        %v6014 = vadd.f32 %v5821, %v6013
        %v6015 = vpop.f32.mrb[0].mxu0
        %v6016 = vadd.f32 %v5823, %v6015
        %6017 = vmatprep.mubr.bf16.mxu0 %v1772
        %6018 = vmatmul.mubr.bf16.gmra.mrb[0].mxu0 %v1771
        %v6019 = vpop.f32.mrb[0].mxu0
        %v6020 = vadd.f32 %v5827, %v6019
        %v6021 = vpop.f32.mrb[0].mxu0
        %v6022 = vadd.f32 %v5829, %v6021
        %v6023 = vpop.f32.mrb[0].mxu0
        %v6024 = vadd.f32 %v5831, %v6023
        %v6025 = vpop.f32.mrb[0].mxu0
        %v6026 = vadd.f32 %v5833, %v6025
        %6027 = vmatprep.mubr.bf16.mxu0 %v1786
        %6028 = vmatmul.mubr.bf16.gmra.mrb[0].mxu0 %v1785
        %v6029 = vpop.f32.mrb[0].mxu0
        %v6030 = vadd.f32 %v5837, %v6029
        %v6031 = vpop.f32.mrb[0].mxu0
        %v6032 = vadd.f32 %v5839, %v6031
        %v6033 = vpop.f32.mrb[0].mxu0
        %v6034 = vadd.f32 %v5841, %v6033
        %v6035 = vpop.f32.mrb[0].mxu0
        %v6036 = vadd.f32 %v5843, %v6035
        %6037 = vmatprep.mubr.bf16.mxu0 %v1800
        %6038 = vmatmul.mubr.bf16.gmra.mrb[0].mxu0 %v1799
        %v6039 = vpop.f32.mrb[0].mxu0
        %v6040 = vadd.f32 %v5847, %v6039
        %v6041 = vpop.f32.mrb[0].mxu0
        %v6042 = vadd.f32 %v5849, %v6041
        %v6043 = vpop.f32.mrb[0].mxu0
        %v6044 = vadd.f32 %v5851, %v6043
        %v6045 = vpop.f32.mrb[0].mxu0
        %v6046 = vadd.f32 %v5853, %v6045
        %6047 = vmatprep.mubr.bf16.mxu0 %v1814
        %6048 = vmatmul.mubr.bf16.gmra.mrb[0].mxu0 %v1813
        %v6049 = vpop.f32.mrb[0].mxu0
        %v6050 = vadd.f32 %v5857, %v6049
        %v6051 = vpop.f32.mrb[0].mxu0
        %v6052 = vadd.f32 %v5859, %v6051
        %v6053 = vpop.f32.mrb[0].mxu0
        %v6054 = vadd.f32 %v5861, %v6053
        %v6055 = vpop.f32.mrb[0].mxu0
        %v6056 = vadd.f32 %v5863, %v6055
        %6057 = vmatprep.mubr.bf16.mxu0 %v1828
        %6058 = vmatmul.mubr.bf16.gmra.mrb[0].mxu0 %v1827
        %v6059 = vpop.f32.mrb[0].mxu0
        %v6060 = vadd.f32 %v5867, %v6059
        %v6061 = vpop.f32.mrb[0].mxu0
        %v6062 = vadd.f32 %v5869, %v6061
        %v6063 = vpop.f32.mrb[0].mxu0
        %v6064 = vadd.f32 %v5871, %v6063
        %v6065 = vpop.f32.mrb[0].mxu0
        %v6066 = vadd.f32 %v5873, %v6065
        %6067 = vmatprep.mubr.bf16.mxu0 %v1842
        %6068 = vmatmul.mubr.bf16.gmra.mrb[0].mxu0 %v1841
        %v6069 = vpop.f32.mrb[0].mxu0
        %v6070 = vadd.f32 %v5877, %v6069
        %v6071 = vpop.f32.mrb[0].mxu0
        %v6072 = vadd.f32 %v5879, %v6071
        %v6073 = vpop.f32.mrb[0].mxu0
        %v6074 = vadd.f32 %v5881, %v6073
        %v6075 = vpop.f32.mrb[0].mxu0
        %v6076 = vadd.f32 %v5883, %v6075
        %6077 = vmatprep.mubr.bf16.mxu0 %v1856
        %6078 = vmatmul.mubr.bf16.gmra.mrb[0].mxu0 %v1855
        %v6079 = vpop.f32.mrb[0].mxu0
        %v6080 = vadd.f32 %v5887, %v6079
        %v6081 = vpop.f32.mrb[0].mxu0
        %v6082 = vadd.f32 %v5889, %v6081
        %v6083 = vpop.f32.mrb[0].mxu0
        %v6084 = vadd.f32 %v5891, %v6083
        %v6085 = vpop.f32.mrb[0].mxu0
        %v6086 = vadd.f32 %v5893, %v6085
        %6087 = vmatprep.mubr.bf16.mxu0 %v1870
        %6088 = vmatmul.mubr.bf16.gmra.mrb[0].mxu0 %v1869
        %v6089 = vpop.f32.mrb[0].mxu0
        %v6090 = vadd.f32 %v5897, %v6089
        %v6091 = vpop.f32.mrb[0].mxu0
        %v6092 = vadd.f32 %v5899, %v6091
        %v6093 = vpop.f32.mrb[0].mxu0
        %v6094 = vadd.f32 %v5901, %v6093
        %v6095 = vpop.f32.mrb[0].mxu0
        %v6096 = vadd.f32 %v5903, %v6095
        %6097 = vmatprep.mubr.bf16.mxu0 %v1884
        %6098 = vmatmul.mubr.bf16.gmra.mrb[0].mxu0 %v1883
        %v6099 = vpop.f32.mrb[0].mxu0
        %v6100 = vadd.f32 %v5907, %v6099
        %v6101 = vpop.f32.mrb[0].mxu0
        %v6102 = vadd.f32 %v5909, %v6101
        %v6103 = vpop.f32.mrb[0].mxu0
        %v6104 = vadd.f32 %v5911, %v6103
        %v6105 = vpop.f32.mrb[0].mxu0
        %v6106 = vadd.f32 %v5913, %v6105
        %6107 = vmatprep.mubr.bf16.mxu0 %v1898
        %6108 = vmatmul.mubr.bf16.gmra.mrb[0].mxu0 %v1897
        %v6109 = vpop.f32.mrb[0].mxu0
        %v6110 = vadd.f32 %v5917, %v6109
        %v6111 = vpop.f32.mrb[0].mxu0
        %v6112 = vadd.f32 %v5919, %v6111
        %v6113 = vpop.f32.mrb[0].mxu0
        %v6114 = vadd.f32 %v5921, %v6113
        %v6115 = vpop.f32.mrb[0].mxu0
        %v6116 = vadd.f32 %v5923, %v6115
        %6117 = vmatprep.mubr.bf16.mxu0 %v1912
        %6118 = vmatmul.mubr.bf16.gmra.mrb[0].mxu0 %v1911
        %v6119 = vpop.f32.mrb[0].mxu0
        %v6120 = vadd.f32 %v5927, %v6119
        %v6121 = vpop.f32.mrb[0].mxu0
        %v6122 = vadd.f32 %v5929, %v6121
        %v6123 = vpop.f32.mrb[0].mxu0
        %v6124 = vadd.f32 %v5931, %v6123
        %v6125 = vpop.f32.mrb[0].mxu0
        %v6126 = vadd.f32 %v5933, %v6125
        %6127 = vmatprep.mubr.bf16.mxu0 %v1926
        %6128 = vmatmul.mubr.bf16.gmra.mrb[0].mxu0 %v1925
        %v6129 = vpop.f32.mrb[0].mxu0
        %v6130 = vadd.f32 %v5937, %v6129
        %v6131 = vpop.f32.mrb[0].mxu0
        %v6132 = vadd.f32 %v5939, %v6131
        %v6133 = vpop.f32.mrb[0].mxu0
        %v6134 = vadd.f32 %v5941, %v6133
        %v6135 = vpop.f32.mrb[0].mxu0
        %v6136 = vadd.f32 %v5943, %v6135
        %6137 = vdwg.mxu0
        %6138 = vmatprep.subr.bf16.mxu0 %v3636
        %6139 = vmatpush1.bf16.msra.mxu0 %v3635
        %6140 = vmatprep.subr.bf16.mxu0 %v3640
        %6141 = vmatpush1.bf16.msra.mxu0 %v3639
        %6142 = vmatprep.subr.bf16.mxu0 %v3644
        %6143 = vmatpush1.bf16.msra.mxu0 %v3643
        %6144 = vmatprep.subr.bf16.mxu0 %v3648
        %6145 = vmatpush1.bf16.msra.mxu0 %v3647
        %6146 = vmatprep.subr.bf16.mxu0 %v3652
        %6147 = vmatpush1.bf16.msra.mxu0 %v3651
        %6148 = vmatprep.subr.bf16.mxu0 %v3656
        %6149 = vmatpush1.bf16.msra.mxu0 %v3655
        %6150 = vmatprep.subr.bf16.mxu0 %v3660
        %6151 = vmatpush1.bf16.msra.mxu0 %v3659
        %6152 = vmatprep.subr.bf16.mxu0 %v3664
        %6153 = vmatpush1.bf16.msra.mxu0 %v3663
        %6154 = vmatprep.subr.bf16.mxu0 %v3668
        %6155 = vmatpush1.bf16.msra.mxu0 %v3667
        %6156 = vmatprep.subr.bf16.mxu0 %v3672
        %6157 = vmatpush1.bf16.msra.mxu0 %v3671
        %6158 = vmatprep.subr.bf16.mxu0 %v3676
        %6159 = vmatpush1.bf16.msra.mxu0 %v3675
        %6160 = vmatprep.subr.bf16.mxu0 %v3680
        %6161 = vmatpush1.bf16.msra.mxu0 %v3679
        %6162 = vmatprep.subr.bf16.mxu0 %v3684
        %6163 = vmatpush1.bf16.msra.mxu0 %v3683
        %6164 = vmatprep.subr.bf16.mxu0 %v3688
        %6165 = vmatpush1.bf16.msra.mxu0 %v3687
        %6166 = vmatprep.subr.bf16.mxu0 %v3692
        %6167 = vmatpush1.bf16.msra.mxu0 %v3691
        %6168 = vmatprep.subr.bf16.mxu0 %v3696
        %6169 = vmatpush1.bf16.msra.mxu0 %v3695
        %6170 = vmatprep.mubr.bf16.mxu0 %v1718
        %6171 = vmatmul.mubr.bf16.gmra.mrb[0].mxu0 %v1717
        %v6172 = vpop.f32.mrb[0].mxu0
        %v6173 = vadd.f32 %v5980, %v6172
        %v6174 = vpop.f32.mrb[0].mxu0
        %v6175 = vadd.f32 %v5982, %v6174
        %v6176 = vpop.f32.mrb[0].mxu0
        %v6177 = vadd.f32 %v5984, %v6176
        %v6178 = vpop.f32.mrb[0].mxu0
        %v6179 = vadd.f32 %v5986, %v6178
        %6180 = vmatprep.mubr.bf16.mxu0 %v1732
        %6181 = vmatmul.mubr.bf16.gmra.mrb[0].mxu0 %v1731
        %v6182 = vpop.f32.mrb[0].mxu0
        %v6183 = vadd.f32 %v5990, %v6182
        %v6184 = vpop.f32.mrb[0].mxu0
        %v6185 = vadd.f32 %v5992, %v6184
        %v6186 = vpop.f32.mrb[0].mxu0
        %v6187 = vadd.f32 %v5994, %v6186
        %v6188 = vpop.f32.mrb[0].mxu0
        %v6189 = vadd.f32 %v5996, %v6188
        %6190 = vmatprep.mubr.bf16.mxu0 %v1746
        %6191 = vmatmul.mubr.bf16.gmra.mrb[0].mxu0 %v1745
        %v6192 = vpop.f32.mrb[0].mxu0
        %v6193 = vadd.f32 %v6000, %v6192
        %v6194 = vpop.f32.mrb[0].mxu0
        %v6195 = vadd.f32 %v6002, %v6194
        %v6196 = vpop.f32.mrb[0].mxu0
        %v6197 = vadd.f32 %v6004, %v6196
        %v6198 = vpop.f32.mrb[0].mxu0
        %v6199 = vadd.f32 %v6006, %v6198
        %6200 = vmatprep.mubr.bf16.mxu0 %v1760
        %6201 = vmatmul.mubr.bf16.gmra.mrb[0].mxu0 %v1759
        %v6202 = vpop.f32.mrb[0].mxu0
        %v6203 = vadd.f32 %v6010, %v6202
        %v6204 = vpop.f32.mrb[0].mxu0
        %v6205 = vadd.f32 %v6012, %v6204
        %v6206 = vpop.f32.mrb[0].mxu0
        %v6207 = vadd.f32 %v6014, %v6206
        %v6208 = vpop.f32.mrb[0].mxu0
        %v6209 = vadd.f32 %v6016, %v6208
        %6210 = vmatprep.mubr.bf16.mxu0 %v1774
        %6211 = vmatmul.mubr.bf16.gmra.mrb[0].mxu0 %v1773
        %v6212 = vpop.f32.mrb[0].mxu0
        %v6213 = vadd.f32 %v6020, %v6212
        %v6214 = vpop.f32.mrb[0].mxu0
        %v6215 = vadd.f32 %v6022, %v6214
        %v6216 = vpop.f32.mrb[0].mxu0
        %v6217 = vadd.f32 %v6024, %v6216
        %v6218 = vpop.f32.mrb[0].mxu0
        %v6219 = vadd.f32 %v6026, %v6218
        %6220 = vmatprep.mubr.bf16.mxu0 %v1788
        %6221 = vmatmul.mubr.bf16.gmra.mrb[0].mxu0 %v1787
        %v6222 = vpop.f32.mrb[0].mxu0
        %v6223 = vadd.f32 %v6030, %v6222
        %v6224 = vpop.f32.mrb[0].mxu0
        %v6225 = vadd.f32 %v6032, %v6224
        %v6226 = vpop.f32.mrb[0].mxu0
        %v6227 = vadd.f32 %v6034, %v6226
        %v6228 = vpop.f32.mrb[0].mxu0
        %v6229 = vadd.f32 %v6036, %v6228
        %6230 = vmatprep.mubr.bf16.mxu0 %v1802
        %6231 = vmatmul.mubr.bf16.gmra.mrb[0].mxu0 %v1801
        %v6232 = vpop.f32.mrb[0].mxu0
        %v6233 = vadd.f32 %v6040, %v6232
        %v6234 = vpop.f32.mrb[0].mxu0
        %v6235 = vadd.f32 %v6042, %v6234
        %v6236 = vpop.f32.mrb[0].mxu0
        %v6237 = vadd.f32 %v6044, %v6236
        %v6238 = vpop.f32.mrb[0].mxu0
        %v6239 = vadd.f32 %v6046, %v6238
        %6240 = vmatprep.mubr.bf16.mxu0 %v1816
        %6241 = vmatmul.mubr.bf16.gmra.mrb[0].mxu0 %v1815
        %v6242 = vpop.f32.mrb[0].mxu0
        %v6243 = vadd.f32 %v6050, %v6242
        %v6244 = vpop.f32.mrb[0].mxu0
        %v6245 = vadd.f32 %v6052, %v6244
        %v6246 = vpop.f32.mrb[0].mxu0
        %v6247 = vadd.f32 %v6054, %v6246
        %v6248 = vpop.f32.mrb[0].mxu0
        %v6249 = vadd.f32 %v6056, %v6248
        %6250 = vmatprep.mubr.bf16.mxu0 %v1830
        %6251 = vmatmul.mubr.bf16.gmra.mrb[0].mxu0 %v1829
        %v6252 = vpop.f32.mrb[0].mxu0
        %v6253 = vadd.f32 %v6060, %v6252
        %v6254 = vpop.f32.mrb[0].mxu0
        %v6255 = vadd.f32 %v6062, %v6254
        %v6256 = vpop.f32.mrb[0].mxu0
        %v6257 = vadd.f32 %v6064, %v6256
        %v6258 = vpop.f32.mrb[0].mxu0
        %v6259 = vadd.f32 %v6066, %v6258
        %6260 = vmatprep.mubr.bf16.mxu0 %v1844
        %6261 = vmatmul.mubr.bf16.gmra.mrb[0].mxu0 %v1843
        %v6262 = vpop.f32.mrb[0].mxu0
        %v6263 = vadd.f32 %v6070, %v6262
        %v6264 = vpop.f32.mrb[0].mxu0
        %v6265 = vadd.f32 %v6072, %v6264
        %v6266 = vpop.f32.mrb[0].mxu0
        %v6267 = vadd.f32 %v6074, %v6266
        %v6268 = vpop.f32.mrb[0].mxu0
        %v6269 = vadd.f32 %v6076, %v6268
        %6270 = vmatprep.mubr.bf16.mxu0 %v1858
        %6271 = vmatmul.mubr.bf16.gmra.mrb[0].mxu0 %v1857
        %v6272 = vpop.f32.mrb[0].mxu0
        %v6273 = vadd.f32 %v6080, %v6272
        %v6274 = vpop.f32.mrb[0].mxu0
        %v6275 = vadd.f32 %v6082, %v6274
        %v6276 = vpop.f32.mrb[0].mxu0
        %v6277 = vadd.f32 %v6084, %v6276
        %v6278 = vpop.f32.mrb[0].mxu0
        %v6279 = vadd.f32 %v6086, %v6278
        %6280 = vmatprep.mubr.bf16.mxu0 %v1872
        %6281 = vmatmul.mubr.bf16.gmra.mrb[0].mxu0 %v1871
        %v6282 = vpop.f32.mrb[0].mxu0
        %v6283 = vadd.f32 %v6090, %v6282
        %v6284 = vpop.f32.mrb[0].mxu0
        %v6285 = vadd.f32 %v6092, %v6284
        %v6286 = vpop.f32.mrb[0].mxu0
        %v6287 = vadd.f32 %v6094, %v6286
        %v6288 = vpop.f32.mrb[0].mxu0
        %v6289 = vadd.f32 %v6096, %v6288
        %6290 = vmatprep.mubr.bf16.mxu0 %v1886
        %6291 = vmatmul.mubr.bf16.gmra.mrb[0].mxu0 %v1885
        %v6292 = vpop.f32.mrb[0].mxu0
        %v6293 = vadd.f32 %v6100, %v6292
        %v6294 = vpop.f32.mrb[0].mxu0
        %v6295 = vadd.f32 %v6102, %v6294
        %v6296 = vpop.f32.mrb[0].mxu0
        %v6297 = vadd.f32 %v6104, %v6296
        %v6298 = vpop.f32.mrb[0].mxu0
        %v6299 = vadd.f32 %v6106, %v6298
        %6300 = vmatprep.mubr.bf16.mxu0 %v1900
        %6301 = vmatmul.mubr.bf16.gmra.mrb[0].mxu0 %v1899
        %v6302 = vpop.f32.mrb[0].mxu0
        %v6303 = vadd.f32 %v6110, %v6302
        %v6304 = vpop.f32.mrb[0].mxu0
        %v6305 = vadd.f32 %v6112, %v6304
        %v6306 = vpop.f32.mrb[0].mxu0
        %v6307 = vadd.f32 %v6114, %v6306
        %v6308 = vpop.f32.mrb[0].mxu0
        %v6309 = vadd.f32 %v6116, %v6308
        %6310 = vmatprep.mubr.bf16.mxu0 %v1914
        %6311 = vmatmul.mubr.bf16.gmra.mrb[0].mxu0 %v1913
        %v6312 = vpop.f32.mrb[0].mxu0
        %v6313 = vadd.f32 %v6120, %v6312
        %v6314 = vpop.f32.mrb[0].mxu0
        %v6315 = vadd.f32 %v6122, %v6314
        %v6316 = vpop.f32.mrb[0].mxu0
        %v6317 = vadd.f32 %v6124, %v6316
        %v6318 = vpop.f32.mrb[0].mxu0
        %v6319 = vadd.f32 %v6126, %v6318
        %6320 = vmatprep.mubr.bf16.mxu0 %v1928
        %6321 = vmatmul.mubr.bf16.gmra.mrb[0].mxu0 %v1927
        %v6322 = vpop.f32.mrb[0].mxu0
        %v6323 = vadd.f32 %v6130, %v6322
        %v6324 = vpop.f32.mrb[0].mxu0
        %v6325 = vadd.f32 %v6132, %v6324
        %v6326 = vpop.f32.mrb[0].mxu0
        %v6327 = vadd.f32 %v6134, %v6326
        %v6328 = vpop.f32.mrb[0].mxu0
        %v6329 = vadd.f32 %v6136, %v6328
        %6330 = vdwg.mxu0
        %6331 = vmatprep.subr.bf16.mxu0 %v3700
        %6332 = vmatpush1.bf16.msra.mxu0 %v3699
        %6333 = vmatprep.subr.bf16.mxu0 %v3704
        %6334 = vmatpush1.bf16.msra.mxu0 %v3703
        %6335 = vmatprep.subr.bf16.mxu0 %v3708
        %6336 = vmatpush1.bf16.msra.mxu0 %v3707
        %6337 = vmatprep.subr.bf16.mxu0 %v3712
        %6338 = vmatpush1.bf16.msra.mxu0 %v3711
        %6339 = vmatprep.subr.bf16.mxu0 %v3716
        %6340 = vmatpush1.bf16.msra.mxu0 %v3715
        %6341 = vmatprep.subr.bf16.mxu0 %v3720
        %6342 = vmatpush1.bf16.msra.mxu0 %v3719
        %6343 = vmatprep.subr.bf16.mxu0 %v3724
        %6344 = vmatpush1.bf16.msra.mxu0 %v3723
        %6345 = vmatprep.subr.bf16.mxu0 %v3728
        %6346 = vmatpush1.bf16.msra.mxu0 %v3727
        %6347 = vmatprep.subr.bf16.mxu0 %v3732
        %6348 = vmatpush1.bf16.msra.mxu0 %v3731
        %6349 = vmatprep.subr.bf16.mxu0 %v3736
        %6350 = vmatpush1.bf16.msra.mxu0 %v3735
        %6351 = vmatprep.subr.bf16.mxu0 %v3740
        %6352 = vmatpush1.bf16.msra.mxu0 %v3739
        %6353 = vmatprep.subr.bf16.mxu0 %v3744
        %6354 = vmatpush1.bf16.msra.mxu0 %v3743
        %6355 = vmatprep.subr.bf16.mxu0 %v3748
        %6356 = vmatpush1.bf16.msra.mxu0 %v3747
        %6357 = vmatprep.subr.bf16.mxu0 %v3752
        %6358 = vmatpush1.bf16.msra.mxu0 %v3751
        %6359 = vmatprep.subr.bf16.mxu0 %v3756
        %6360 = vmatpush1.bf16.msra.mxu0 %v3755
        %6361 = vmatprep.subr.bf16.mxu0 %v3760
        %6362 = vmatpush1.bf16.msra.mxu0 %v3759
        %6363 = vmatprep.mubr.bf16.mxu0 %v1720
        %6364 = vmatmul.mubr.bf16.gmra.mrb[0].mxu0 %v1719
        %v6365 = vpop.f32.mrb[0].mxu0
        %v6366 = vadd.f32 %v6173, %v6365
        %v6367 = vpop.f32.mrb[0].mxu0
        %v6368 = vadd.f32 %v6175, %v6367
        %v6369 = vpop.f32.mrb[0].mxu0
        %v6370 = vadd.f32 %v6177, %v6369
        %v6371 = vpop.f32.mrb[0].mxu0
        %v6372 = vadd.f32 %v6179, %v6371
        %6373 = vmatprep.mubr.bf16.mxu0 %v1734
        %6374 = vmatmul.mubr.bf16.gmra.mrb[0].mxu0 %v1733
        %v6375 = vpop.f32.mrb[0].mxu0
        %v6376 = vadd.f32 %v6183, %v6375
        %v6377 = vpop.f32.mrb[0].mxu0
        %v6378 = vadd.f32 %v6185, %v6377
        %v6379 = vpop.f32.mrb[0].mxu0
        %v6380 = vadd.f32 %v6187, %v6379
        %v6381 = vpop.f32.mrb[0].mxu0
        %v6382 = vadd.f32 %v6189, %v6381
        %6383 = vmatprep.mubr.bf16.mxu0 %v1748
        %6384 = vmatmul.mubr.bf16.gmra.mrb[0].mxu0 %v1747
        %v6385 = vpop.f32.mrb[0].mxu0
        %v6386 = vadd.f32 %v6193, %v6385
        %v6387 = vpop.f32.mrb[0].mxu0
        %v6388 = vadd.f32 %v6195, %v6387
        %v6389 = vpop.f32.mrb[0].mxu0
        %v6390 = vadd.f32 %v6197, %v6389
        %v6391 = vpop.f32.mrb[0].mxu0
        %v6392 = vadd.f32 %v6199, %v6391
        %6393 = vmatprep.mubr.bf16.mxu0 %v1762
        %6394 = vmatmul.mubr.bf16.gmra.mrb[0].mxu0 %v1761
        %v6395 = vpop.f32.mrb[0].mxu0
        %v6396 = vadd.f32 %v6203, %v6395
        %v6397 = vpop.f32.mrb[0].mxu0
        %v6398 = vadd.f32 %v6205, %v6397
        %v6399 = vpop.f32.mrb[0].mxu0
        %v6400 = vadd.f32 %v6207, %v6399
        %v6401 = vpop.f32.mrb[0].mxu0
        %v6402 = vadd.f32 %v6209, %v6401
        %6403 = vmatprep.mubr.bf16.mxu0 %v1776
        %6404 = vmatmul.mubr.bf16.gmra.mrb[0].mxu0 %v1775
        %v6405 = vpop.f32.mrb[0].mxu0
        %v6406 = vadd.f32 %v6213, %v6405
        %v6407 = vpop.f32.mrb[0].mxu0
        %v6408 = vadd.f32 %v6215, %v6407
        %v6409 = vpop.f32.mrb[0].mxu0
        %v6410 = vadd.f32 %v6217, %v6409
        %v6411 = vpop.f32.mrb[0].mxu0
        %v6412 = vadd.f32 %v6219, %v6411
        %6413 = vmatprep.mubr.bf16.mxu0 %v1790
        %6414 = vmatmul.mubr.bf16.gmra.mrb[0].mxu0 %v1789
        %v6415 = vpop.f32.mrb[0].mxu0
        %v6416 = vadd.f32 %v6223, %v6415
        %v6417 = vpop.f32.mrb[0].mxu0
        %v6418 = vadd.f32 %v6225, %v6417
        %v6419 = vpop.f32.mrb[0].mxu0
        %v6420 = vadd.f32 %v6227, %v6419
        %v6421 = vpop.f32.mrb[0].mxu0
        %v6422 = vadd.f32 %v6229, %v6421
        %6423 = vmatprep.mubr.bf16.mxu0 %v1804
        %6424 = vmatmul.mubr.bf16.gmra.mrb[0].mxu0 %v1803
        %v6425 = vpop.f32.mrb[0].mxu0
        %v6426 = vadd.f32 %v6233, %v6425
        %v6427 = vpop.f32.mrb[0].mxu0
        %v6428 = vadd.f32 %v6235, %v6427
        %v6429 = vpop.f32.mrb[0].mxu0
        %v6430 = vadd.f32 %v6237, %v6429
        %v6431 = vpop.f32.mrb[0].mxu0
        %v6432 = vadd.f32 %v6239, %v6431
        %6433 = vmatprep.mubr.bf16.mxu0 %v1818
        %6434 = vmatmul.mubr.bf16.gmra.mrb[0].mxu0 %v1817
        %v6435 = vpop.f32.mrb[0].mxu0
        %v6436 = vadd.f32 %v6243, %v6435
        %v6437 = vpop.f32.mrb[0].mxu0
        %v6438 = vadd.f32 %v6245, %v6437
        %v6439 = vpop.f32.mrb[0].mxu0
        %v6440 = vadd.f32 %v6247, %v6439
        %v6441 = vpop.f32.mrb[0].mxu0
        %v6442 = vadd.f32 %v6249, %v6441
        %6443 = vmatprep.mubr.bf16.mxu0 %v1832
        %6444 = vmatmul.mubr.bf16.gmra.mrb[0].mxu0 %v1831
        %v6445 = vpop.f32.mrb[0].mxu0
        %v6446 = vadd.f32 %v6253, %v6445
        %v6447 = vpop.f32.mrb[0].mxu0
        %v6448 = vadd.f32 %v6255, %v6447
        %v6449 = vpop.f32.mrb[0].mxu0
        %v6450 = vadd.f32 %v6257, %v6449
        %v6451 = vpop.f32.mrb[0].mxu0
        %v6452 = vadd.f32 %v6259, %v6451
        %6453 = vmatprep.mubr.bf16.mxu0 %v1846
        %6454 = vmatmul.mubr.bf16.gmra.mrb[0].mxu0 %v1845
        %v6455 = vpop.f32.mrb[0].mxu0
        %v6456 = vadd.f32 %v6263, %v6455
        %v6457 = vpop.f32.mrb[0].mxu0
        %v6458 = vadd.f32 %v6265, %v6457
        %v6459 = vpop.f32.mrb[0].mxu0
        %v6460 = vadd.f32 %v6267, %v6459
        %v6461 = vpop.f32.mrb[0].mxu0
        %v6462 = vadd.f32 %v6269, %v6461
        %6463 = vmatprep.mubr.bf16.mxu0 %v1860
        %6464 = vmatmul.mubr.bf16.gmra.mrb[0].mxu0 %v1859
        %v6465 = vpop.f32.mrb[0].mxu0
        %v6466 = vadd.f32 %v6273, %v6465
        %v6467 = vpop.f32.mrb[0].mxu0
        %v6468 = vadd.f32 %v6275, %v6467
        %v6469 = vpop.f32.mrb[0].mxu0
        %v6470 = vadd.f32 %v6277, %v6469
        %v6471 = vpop.f32.mrb[0].mxu0
        %v6472 = vadd.f32 %v6279, %v6471
        %6473 = vmatprep.mubr.bf16.mxu0 %v1874
        %6474 = vmatmul.mubr.bf16.gmra.mrb[0].mxu0 %v1873
        %v6475 = vpop.f32.mrb[0].mxu0
        %v6476 = vadd.f32 %v6283, %v6475
        %v6477 = vpop.f32.mrb[0].mxu0
        %v6478 = vadd.f32 %v6285, %v6477
        %v6479 = vpop.f32.mrb[0].mxu0
        %v6480 = vadd.f32 %v6287, %v6479
        %v6481 = vpop.f32.mrb[0].mxu0
        %v6482 = vadd.f32 %v6289, %v6481
        %6483 = vmatprep.mubr.bf16.mxu0 %v1888
        %6484 = vmatmul.mubr.bf16.gmra.mrb[0].mxu0 %v1887
        %v6485 = vpop.f32.mrb[0].mxu0
        %v6486 = vadd.f32 %v6293, %v6485
        %v6487 = vpop.f32.mrb[0].mxu0
        %v6488 = vadd.f32 %v6295, %v6487
        %v6489 = vpop.f32.mrb[0].mxu0
        %v6490 = vadd.f32 %v6297, %v6489
        %v6491 = vpop.f32.mrb[0].mxu0
        %v6492 = vadd.f32 %v6299, %v6491
        %6493 = vmatprep.mubr.bf16.mxu0 %v1902
        %6494 = vmatmul.mubr.bf16.gmra.mrb[0].mxu0 %v1901
        %v6495 = vpop.f32.mrb[0].mxu0
        %v6496 = vadd.f32 %v6303, %v6495
        %v6497 = vpop.f32.mrb[0].mxu0
        %v6498 = vadd.f32 %v6305, %v6497
        %v6499 = vpop.f32.mrb[0].mxu0
        %v6500 = vadd.f32 %v6307, %v6499
        %v6501 = vpop.f32.mrb[0].mxu0
        %v6502 = vadd.f32 %v6309, %v6501
        %6503 = vmatprep.mubr.bf16.mxu0 %v1916
        %6504 = vmatmul.mubr.bf16.gmra.mrb[0].mxu0 %v1915
        %v6505 = vpop.f32.mrb[0].mxu0
        %v6506 = vadd.f32 %v6313, %v6505
        %v6507 = vpop.f32.mrb[0].mxu0
        %v6508 = vadd.f32 %v6315, %v6507
        %v6509 = vpop.f32.mrb[0].mxu0
        %v6510 = vadd.f32 %v6317, %v6509
        %v6511 = vpop.f32.mrb[0].mxu0
        %v6512 = vadd.f32 %v6319, %v6511
        %6513 = vmatprep.mubr.bf16.mxu0 %v1930
        %6514 = vmatmul.mubr.bf16.gmra.mrb[0].mxu0 %v1929
        %v6515 = vpop.f32.mrb[0].mxu0
        %v6516 = vadd.f32 %v6323, %v6515
        %v6517 = vpop.f32.mrb[0].mxu0
        %v6518 = vadd.f32 %v6325, %v6517
        %v6519 = vpop.f32.mrb[0].mxu0
        %v6520 = vadd.f32 %v6327, %v6519
        %v6521 = vpop.f32.mrb[0].mxu0
        %v6522 = vadd.f32 %v6329, %v6521
        %6523 = vdwg.mxu0
        %6524 = vmatprep.subr.bf16.mxu0 %v3764
        %6525 = vmatpush1.bf16.msra.mxu0 %v3763
        %6526 = vmatprep.subr.bf16.mxu0 %v3768
        %6527 = vmatpush1.bf16.msra.mxu0 %v3767
        %6528 = vmatprep.subr.bf16.mxu0 %v3772
        %6529 = vmatpush1.bf16.msra.mxu0 %v3771
        %6530 = vmatprep.subr.bf16.mxu0 %v3776
        %6531 = vmatpush1.bf16.msra.mxu0 %v3775
        %6532 = vmatprep.subr.bf16.mxu0 %v3780
        %6533 = vmatpush1.bf16.msra.mxu0 %v3779
        %6534 = vmatprep.subr.bf16.mxu0 %v3784
        %6535 = vmatpush1.bf16.msra.mxu0 %v3783
        %6536 = vmatprep.subr.bf16.mxu0 %v3788
        %6537 = vmatpush1.bf16.msra.mxu0 %v3787
        %6538 = vmatprep.subr.bf16.mxu0 %v3792
        %6539 = vmatpush1.bf16.msra.mxu0 %v3791
        %6540 = vmatprep.subr.bf16.mxu0 %v3796
        %6541 = vmatpush1.bf16.msra.mxu0 %v3795
        %6542 = vmatprep.subr.bf16.mxu0 %v3800
        %6543 = vmatpush1.bf16.msra.mxu0 %v3799
        %6544 = vmatprep.subr.bf16.mxu0 %v3804
        %6545 = vmatpush1.bf16.msra.mxu0 %v3803
        %6546 = vmatprep.subr.bf16.mxu0 %v3808
        %6547 = vmatpush1.bf16.msra.mxu0 %v3807
        %6548 = vmatprep.subr.bf16.mxu0 %v3812
        %6549 = vmatpush1.bf16.msra.mxu0 %v3811
        %6550 = vmatprep.subr.bf16.mxu0 %v3816
        %6551 = vmatpush1.bf16.msra.mxu0 %v3815
        %6552 = vmatprep.subr.bf16.mxu0 %v3820
        %6553 = vmatpush1.bf16.msra.mxu0 %v3819
        %6554 = vmatprep.subr.bf16.mxu0 %v3824
        %6555 = vmatpush1.bf16.msra.mxu0 %v3823
        %6556 = vmatprep.mubr.bf16.mxu0 %v1722
        %6557 = vmatmul.mubr.bf16.gmra.mrb[0].mxu0 %v1721
        %v6558 = vpop.f32.mrb[0].mxu0
        %v6559 = vadd.f32 %v6366, %v6558
        %v6560 = vpop.f32.mrb[0].mxu0
        %v6561 = vadd.f32 %v6368, %v6560
        %v6562 = vpop.f32.mrb[0].mxu0
        %v6563 = vadd.f32 %v6370, %v6562
        %v6564 = vpop.f32.mrb[0].mxu0
        %v6565 = vadd.f32 %v6372, %v6564
        %6566 = vmatprep.mubr.bf16.mxu0 %v1736
        %6567 = vmatmul.mubr.bf16.gmra.mrb[0].mxu0 %v1735
        %v6568 = vpop.f32.mrb[0].mxu0
        %v6569 = vadd.f32 %v6376, %v6568
        %v6570 = vpop.f32.mrb[0].mxu0
        %v6571 = vadd.f32 %v6378, %v6570
        %v6572 = vpop.f32.mrb[0].mxu0
        %v6573 = vadd.f32 %v6380, %v6572
        %v6574 = vpop.f32.mrb[0].mxu0
        %v6575 = vadd.f32 %v6382, %v6574
        %6576 = vmatprep.mubr.bf16.mxu0 %v1750
        %6577 = vmatmul.mubr.bf16.gmra.mrb[0].mxu0 %v1749
        %v6578 = vpop.f32.mrb[0].mxu0
        %v6579 = vadd.f32 %v6386, %v6578
        %v6580 = vpop.f32.mrb[0].mxu0
        %v6581 = vadd.f32 %v6388, %v6580
        %v6582 = vpop.f32.mrb[0].mxu0
        %v6583 = vadd.f32 %v6390, %v6582
        %v6584 = vpop.f32.mrb[0].mxu0
        %v6585 = vadd.f32 %v6392, %v6584
        %6586 = vmatprep.mubr.bf16.mxu0 %v1764
        %6587 = vmatmul.mubr.bf16.gmra.mrb[0].mxu0 %v1763
        %v6588 = vpop.f32.mrb[0].mxu0
        %v6589 = vadd.f32 %v6396, %v6588
        %v6590 = vpop.f32.mrb[0].mxu0
        %v6591 = vadd.f32 %v6398, %v6590
        %v6592 = vpop.f32.mrb[0].mxu0
        %v6593 = vadd.f32 %v6400, %v6592
        %v6594 = vpop.f32.mrb[0].mxu0
        %v6595 = vadd.f32 %v6402, %v6594
        %6596 = vmatprep.mubr.bf16.mxu0 %v1778
        %6597 = vmatmul.mubr.bf16.gmra.mrb[0].mxu0 %v1777
        %v6598 = vpop.f32.mrb[0].mxu0
        %v6599 = vadd.f32 %v6406, %v6598
        %v6600 = vpop.f32.mrb[0].mxu0
        %v6601 = vadd.f32 %v6408, %v6600
        %v6602 = vpop.f32.mrb[0].mxu0
        %v6603 = vadd.f32 %v6410, %v6602
        %v6604 = vpop.f32.mrb[0].mxu0
        %v6605 = vadd.f32 %v6412, %v6604
        %6606 = vmatprep.mubr.bf16.mxu0 %v1792
        %6607 = vmatmul.mubr.bf16.gmra.mrb[0].mxu0 %v1791
        %v6608 = vpop.f32.mrb[0].mxu0
        %v6609 = vadd.f32 %v6416, %v6608
        %v6610 = vpop.f32.mrb[0].mxu0
        %v6611 = vadd.f32 %v6418, %v6610
        %v6612 = vpop.f32.mrb[0].mxu0
        %v6613 = vadd.f32 %v6420, %v6612
        %v6614 = vpop.f32.mrb[0].mxu0
        %v6615 = vadd.f32 %v6422, %v6614
        %6616 = vmatprep.mubr.bf16.mxu0 %v1806
        %6617 = vmatmul.mubr.bf16.gmra.mrb[0].mxu0 %v1805
        %v6618 = vpop.f32.mrb[0].mxu0
        %v6619 = vadd.f32 %v6426, %v6618
        %v6620 = vpop.f32.mrb[0].mxu0
        %v6621 = vadd.f32 %v6428, %v6620
        %v6622 = vpop.f32.mrb[0].mxu0
        %v6623 = vadd.f32 %v6430, %v6622
        %v6624 = vpop.f32.mrb[0].mxu0
        %v6625 = vadd.f32 %v6432, %v6624
        %6626 = vmatprep.mubr.bf16.mxu0 %v1820
        %6627 = vmatmul.mubr.bf16.gmra.mrb[0].mxu0 %v1819
        %v6628 = vpop.f32.mrb[0].mxu0
        %v6629 = vadd.f32 %v6436, %v6628
        %v6630 = vpop.f32.mrb[0].mxu0
        %v6631 = vadd.f32 %v6438, %v6630
        %v6632 = vpop.f32.mrb[0].mxu0
        %v6633 = vadd.f32 %v6440, %v6632
        %v6634 = vpop.f32.mrb[0].mxu0
        %v6635 = vadd.f32 %v6442, %v6634
        %6636 = vmatprep.mubr.bf16.mxu0 %v1834
        %6637 = vmatmul.mubr.bf16.gmra.mrb[0].mxu0 %v1833
        %v6638 = vpop.f32.mrb[0].mxu0
        %v6639 = vadd.f32 %v6446, %v6638
        %v6640 = vpop.f32.mrb[0].mxu0
        %v6641 = vadd.f32 %v6448, %v6640
        %v6642 = vpop.f32.mrb[0].mxu0
        %v6643 = vadd.f32 %v6450, %v6642
        %v6644 = vpop.f32.mrb[0].mxu0
        %v6645 = vadd.f32 %v6452, %v6644
        %6646 = vmatprep.mubr.bf16.mxu0 %v1848
        %6647 = vmatmul.mubr.bf16.gmra.mrb[0].mxu0 %v1847
        %v6648 = vpop.f32.mrb[0].mxu0
        %v6649 = vadd.f32 %v6456, %v6648
        %v6650 = vpop.f32.mrb[0].mxu0
        %v6651 = vadd.f32 %v6458, %v6650
        %v6652 = vpop.f32.mrb[0].mxu0
        %v6653 = vadd.f32 %v6460, %v6652
        %v6654 = vpop.f32.mrb[0].mxu0
        %v6655 = vadd.f32 %v6462, %v6654
        %6656 = vmatprep.mubr.bf16.mxu0 %v1862
        %6657 = vmatmul.mubr.bf16.gmra.mrb[0].mxu0 %v1861
        %v6658 = vpop.f32.mrb[0].mxu0
        %v6659 = vadd.f32 %v6466, %v6658
        %v6660 = vpop.f32.mrb[0].mxu0
        %v6661 = vadd.f32 %v6468, %v6660
        %v6662 = vpop.f32.mrb[0].mxu0
        %v6663 = vadd.f32 %v6470, %v6662
        %v6664 = vpop.f32.mrb[0].mxu0
        %v6665 = vadd.f32 %v6472, %v6664
        %6666 = vmatprep.mubr.bf16.mxu0 %v1876
        %6667 = vmatmul.mubr.bf16.gmra.mrb[0].mxu0 %v1875
        %v6668 = vpop.f32.mrb[0].mxu0
        %v6669 = vadd.f32 %v6476, %v6668
        %v6670 = vpop.f32.mrb[0].mxu0
        %v6671 = vadd.f32 %v6478, %v6670
        %v6672 = vpop.f32.mrb[0].mxu0
        %v6673 = vadd.f32 %v6480, %v6672
        %v6674 = vpop.f32.mrb[0].mxu0
        %v6675 = vadd.f32 %v6482, %v6674
        %6676 = vmatprep.mubr.bf16.mxu0 %v1890
        %6677 = vmatmul.mubr.bf16.gmra.mrb[0].mxu0 %v1889
        %v6678 = vpop.f32.mrb[0].mxu0
        %v6679 = vadd.f32 %v6486, %v6678
        %v6680 = vpop.f32.mrb[0].mxu0
        %v6681 = vadd.f32 %v6488, %v6680
        %v6682 = vpop.f32.mrb[0].mxu0
        %v6683 = vadd.f32 %v6490, %v6682
        %v6684 = vpop.f32.mrb[0].mxu0
        %v6685 = vadd.f32 %v6492, %v6684
        %6686 = vmatprep.mubr.bf16.mxu0 %v1904
        %6687 = vmatmul.mubr.bf16.gmra.mrb[0].mxu0 %v1903
        %v6688 = vpop.f32.mrb[0].mxu0
        %v6689 = vadd.f32 %v6496, %v6688
        %v6690 = vpop.f32.mrb[0].mxu0
        %v6691 = vadd.f32 %v6498, %v6690
        %v6692 = vpop.f32.mrb[0].mxu0
        %v6693 = vadd.f32 %v6500, %v6692
        %v6694 = vpop.f32.mrb[0].mxu0
        %v6695 = vadd.f32 %v6502, %v6694
        %6696 = vmatprep.mubr.bf16.mxu0 %v1918
        %6697 = vmatmul.mubr.bf16.gmra.mrb[0].mxu0 %v1917
        %v6698 = vpop.f32.mrb[0].mxu0
        %v6699 = vadd.f32 %v6506, %v6698
        %v6700 = vpop.f32.mrb[0].mxu0
        %v6701 = vadd.f32 %v6508, %v6700
        %v6702 = vpop.f32.mrb[0].mxu0
        %v6703 = vadd.f32 %v6510, %v6702
        %v6704 = vpop.f32.mrb[0].mxu0
        %v6705 = vadd.f32 %v6512, %v6704
        %6706 = vmatprep.mubr.bf16.mxu0 %v1932
        %6707 = vmatmul.mubr.bf16.gmra.mrb[0].mxu0 %v1931
        %v6708 = vpop.f32.mrb[0].mxu0
        %v6709 = vadd.f32 %v6516, %v6708
        %v6710 = vpop.f32.mrb[0].mxu0
        %v6711 = vadd.f32 %v6518, %v6710
        %v6712 = vpop.f32.mrb[0].mxu0
        %v6713 = vadd.f32 %v6520, %v6712
        %v6714 = vpop.f32.mrb[0].mxu0
        %v6715 = vadd.f32 %v6522, %v6714
        %6716 = vdwg.mxu0
        %6717 = vmatprep.subr.bf16.mxu0 %v3828
        %6718 = vmatpush1.bf16.msra.mxu0 %v3827
        %6719 = vmatprep.subr.bf16.mxu0 %v3832
        %6720 = vmatpush1.bf16.msra.mxu0 %v3831
        %6721 = vmatprep.subr.bf16.mxu0 %v3836
        %6722 = vmatpush1.bf16.msra.mxu0 %v3835
        %6723 = vmatprep.subr.bf16.mxu0 %v3840
        %6724 = vmatpush1.bf16.msra.mxu0 %v3839
        %6725 = vmatprep.subr.bf16.mxu0 %v3844
        %6726 = vmatpush1.bf16.msra.mxu0 %v3843
        %6727 = vmatprep.subr.bf16.mxu0 %v3848
        %6728 = vmatpush1.bf16.msra.mxu0 %v3847
        %6729 = vmatprep.subr.bf16.mxu0 %v3852
        %6730 = vmatpush1.bf16.msra.mxu0 %v3851
        %6731 = vmatprep.subr.bf16.mxu0 %v3856
        %6732 = vmatpush1.bf16.msra.mxu0 %v3855
        %6733 = vmatprep.subr.bf16.mxu0 %v3860
        %6734 = vmatpush1.bf16.msra.mxu0 %v3859
        %6735 = vmatprep.subr.bf16.mxu0 %v3864
        %6736 = vmatpush1.bf16.msra.mxu0 %v3863
        %6737 = vmatprep.subr.bf16.mxu0 %v3868
        %6738 = vmatpush1.bf16.msra.mxu0 %v3867
        %6739 = vmatprep.subr.bf16.mxu0 %v3872
        %6740 = vmatpush1.bf16.msra.mxu0 %v3871
        %6741 = vmatprep.subr.bf16.mxu0 %v3876
        %6742 = vmatpush1.bf16.msra.mxu0 %v3875
        %6743 = vmatprep.subr.bf16.mxu0 %v3880
        %6744 = vmatpush1.bf16.msra.mxu0 %v3879
        %6745 = vmatprep.subr.bf16.mxu0 %v3884
        %6746 = vmatpush1.bf16.msra.mxu0 %v3883
        %6747 = vmatprep.subr.bf16.mxu0 %v3888
        %6748 = vmatpush1.bf16.msra.mxu0 %v3887
        %6749 = vmatprep.mubr.bf16.mxu0 %v1724
        %6750 = vmatmul.mubr.bf16.gmra.mrb[0].mxu0 %v1723
        %v6751 = vpop.f32.mrb[0].mxu0
        %v6752 = vadd.f32 %v6559, %v6751
        %v6753 = vpop.f32.mrb[0].mxu0
        %v6754 = vadd.f32 %v6561, %v6753
        %v6755 = vpop.f32.mrb[0].mxu0
        %v6756 = vadd.f32 %v6563, %v6755
        %v6757 = vpop.f32.mrb[0].mxu0
        %v6758 = vadd.f32 %v6565, %v6757
        %6759 = vmatprep.mubr.bf16.mxu0 %v1738
        %6760 = vmatmul.mubr.bf16.gmra.mrb[0].mxu0 %v1737
        %v6761 = vpop.f32.mrb[0].mxu0
        %v6762 = vadd.f32 %v6569, %v6761
        %v6763 = vpop.f32.mrb[0].mxu0
        %v6764 = vadd.f32 %v6571, %v6763
        %v6765 = vpop.f32.mrb[0].mxu0
        %v6766 = vadd.f32 %v6573, %v6765
        %v6767 = vpop.f32.mrb[0].mxu0
        %v6768 = vadd.f32 %v6575, %v6767
        %6769 = vmatprep.mubr.bf16.mxu0 %v1752
        %6770 = vmatmul.mubr.bf16.gmra.mrb[0].mxu0 %v1751
        %v6771 = vpop.f32.mrb[0].mxu0
        %v6772 = vadd.f32 %v6579, %v6771
        %v6773 = vpop.f32.mrb[0].mxu0
        %v6774 = vadd.f32 %v6581, %v6773
        %v6775 = vpop.f32.mrb[0].mxu0
        %v6776 = vadd.f32 %v6583, %v6775
        %v6777 = vpop.f32.mrb[0].mxu0
        %v6778 = vadd.f32 %v6585, %v6777
        %6779 = vmatprep.mubr.bf16.mxu0 %v1766
        %6780 = vmatmul.mubr.bf16.gmra.mrb[0].mxu0 %v1765
        %v6781 = vpop.f32.mrb[0].mxu0
        %v6782 = vadd.f32 %v6589, %v6781
        %v6783 = vpop.f32.mrb[0].mxu0
        %v6784 = vadd.f32 %v6591, %v6783
        %v6785 = vpop.f32.mrb[0].mxu0
        %v6786 = vadd.f32 %v6593, %v6785
        %v6787 = vpop.f32.mrb[0].mxu0
        %v6788 = vadd.f32 %v6595, %v6787
        %6789 = vmatprep.mubr.bf16.mxu0 %v1780
        %6790 = vmatmul.mubr.bf16.gmra.mrb[0].mxu0 %v1779
        %v6791 = vpop.f32.mrb[0].mxu0
        %v6792 = vadd.f32 %v6599, %v6791
        %v6793 = vpop.f32.mrb[0].mxu0
        %v6794 = vadd.f32 %v6601, %v6793
        %v6795 = vpop.f32.mrb[0].mxu0
        %v6796 = vadd.f32 %v6603, %v6795
        %v6797 = vpop.f32.mrb[0].mxu0
        %v6798 = vadd.f32 %v6605, %v6797
        %6799 = vmatprep.mubr.bf16.mxu0 %v1794
        %6800 = vmatmul.mubr.bf16.gmra.mrb[0].mxu0 %v1793
        %v6801 = vpop.f32.mrb[0].mxu0
        %v6802 = vadd.f32 %v6609, %v6801
        %v6803 = vpop.f32.mrb[0].mxu0
        %v6804 = vadd.f32 %v6611, %v6803
        %v6805 = vpop.f32.mrb[0].mxu0
        %v6806 = vadd.f32 %v6613, %v6805
        %v6807 = vpop.f32.mrb[0].mxu0
        %v6808 = vadd.f32 %v6615, %v6807
        %6809 = vmatprep.mubr.bf16.mxu0 %v1808
        %6810 = vmatmul.mubr.bf16.gmra.mrb[0].mxu0 %v1807
        %v6811 = vpop.f32.mrb[0].mxu0
        %v6812 = vadd.f32 %v6619, %v6811
        %v6813 = vpop.f32.mrb[0].mxu0
        %v6814 = vadd.f32 %v6621, %v6813
        %v6815 = vpop.f32.mrb[0].mxu0
        %v6816 = vadd.f32 %v6623, %v6815
        %v6817 = vpop.f32.mrb[0].mxu0
        %v6818 = vadd.f32 %v6625, %v6817
        %6819 = vmatprep.mubr.bf16.mxu0 %v1822
        %6820 = vmatmul.mubr.bf16.gmra.mrb[0].mxu0 %v1821
        %v6821 = vpop.f32.mrb[0].mxu0
        %v6822 = vadd.f32 %v6629, %v6821
        %v6823 = vpop.f32.mrb[0].mxu0
        %v6824 = vadd.f32 %v6631, %v6823
        %v6825 = vpop.f32.mrb[0].mxu0
        %v6826 = vadd.f32 %v6633, %v6825
        %v6827 = vpop.f32.mrb[0].mxu0
        %v6828 = vadd.f32 %v6635, %v6827
        %6829 = vmatprep.mubr.bf16.mxu0 %v1836
        %6830 = vmatmul.mubr.bf16.gmra.mrb[0].mxu0 %v1835
        %v6831 = vpop.f32.mrb[0].mxu0
        %v6832 = vadd.f32 %v6639, %v6831
        %v6833 = vpop.f32.mrb[0].mxu0
        %v6834 = vadd.f32 %v6641, %v6833
        %v6835 = vpop.f32.mrb[0].mxu0
        %v6836 = vadd.f32 %v6643, %v6835
        %v6837 = vpop.f32.mrb[0].mxu0
        %v6838 = vadd.f32 %v6645, %v6837
        %6839 = vmatprep.mubr.bf16.mxu0 %v1850
        %6840 = vmatmul.mubr.bf16.gmra.mrb[0].mxu0 %v1849
        %v6841 = vpop.f32.mrb[0].mxu0
        %v6842 = vadd.f32 %v6649, %v6841
        %v6843 = vpop.f32.mrb[0].mxu0
        %v6844 = vadd.f32 %v6651, %v6843
        %v6845 = vpop.f32.mrb[0].mxu0
        %v6846 = vadd.f32 %v6653, %v6845
        %v6847 = vpop.f32.mrb[0].mxu0
        %v6848 = vadd.f32 %v6655, %v6847
        %6849 = vmatprep.mubr.bf16.mxu0 %v1864
        %6850 = vmatmul.mubr.bf16.gmra.mrb[0].mxu0 %v1863
        %v6851 = vpop.f32.mrb[0].mxu0
        %v6852 = vadd.f32 %v6659, %v6851
        %v6853 = vpop.f32.mrb[0].mxu0
        %v6854 = vadd.f32 %v6661, %v6853
        %v6855 = vpop.f32.mrb[0].mxu0
        %v6856 = vadd.f32 %v6663, %v6855
        %v6857 = vpop.f32.mrb[0].mxu0
        %v6858 = vadd.f32 %v6665, %v6857
        %6859 = vmatprep.mubr.bf16.mxu0 %v1878
        %6860 = vmatmul.mubr.bf16.gmra.mrb[0].mxu0 %v1877
        %v6861 = vpop.f32.mrb[0].mxu0
        %v6862 = vadd.f32 %v6669, %v6861
        %v6863 = vpop.f32.mrb[0].mxu0
        %v6864 = vadd.f32 %v6671, %v6863
        %v6865 = vpop.f32.mrb[0].mxu0
        %v6866 = vadd.f32 %v6673, %v6865
        %v6867 = vpop.f32.mrb[0].mxu0
        %v6868 = vadd.f32 %v6675, %v6867
        %6869 = vmatprep.mubr.bf16.mxu0 %v1892
        %6870 = vmatmul.mubr.bf16.gmra.mrb[0].mxu0 %v1891
        %v6871 = vpop.f32.mrb[0].mxu0
        %v6872 = vadd.f32 %v6679, %v6871
        %v6873 = vpop.f32.mrb[0].mxu0
        %v6874 = vadd.f32 %v6681, %v6873
        %v6875 = vpop.f32.mrb[0].mxu0
        %v6876 = vadd.f32 %v6683, %v6875
        %v6877 = vpop.f32.mrb[0].mxu0
        %v6878 = vadd.f32 %v6685, %v6877
        %6879 = vmatprep.mubr.bf16.mxu0 %v1906
        %6880 = vmatmul.mubr.bf16.gmra.mrb[0].mxu0 %v1905
        %v6881 = vpop.f32.mrb[0].mxu0
        %v6882 = vadd.f32 %v6689, %v6881
        %v6883 = vpop.f32.mrb[0].mxu0
        %v6884 = vadd.f32 %v6691, %v6883
        %v6885 = vpop.f32.mrb[0].mxu0
        %v6886 = vadd.f32 %v6693, %v6885
        %v6887 = vpop.f32.mrb[0].mxu0
        %v6888 = vadd.f32 %v6695, %v6887
        %6889 = vmatprep.mubr.bf16.mxu0 %v1920
        %6890 = vmatmul.mubr.bf16.gmra.mrb[0].mxu0 %v1919
        %v6891 = vpop.f32.mrb[0].mxu0
        %v6892 = vadd.f32 %v6699, %v6891
        %v6893 = vpop.f32.mrb[0].mxu0
        %v6894 = vadd.f32 %v6701, %v6893
        %v6895 = vpop.f32.mrb[0].mxu0
        %v6896 = vadd.f32 %v6703, %v6895
        %v6897 = vpop.f32.mrb[0].mxu0
        %v6898 = vadd.f32 %v6705, %v6897
        %6899 = vmatprep.mubr.bf16.mxu0 %v1934
        %6900 = vmatmul.mubr.bf16.gmra.mrb[0].mxu0 %v1933
        %v6901 = vpop.f32.mrb[0].mxu0
        %v6902 = vadd.f32 %v6709, %v6901
        %v6903 = vpop.f32.mrb[0].mxu0
        %v6904 = vadd.f32 %v6711, %v6903
        %v6905 = vpop.f32.mrb[0].mxu0
        %v6906 = vadd.f32 %v6713, %v6905
        %v6907 = vpop.f32.mrb[0].mxu0
        %v6908 = vadd.f32 %v6715, %v6907
        %6909 = vdwg.mxu0
        %6910 = vmatprep.subr.bf16.mxu0 %v3892
        %6911 = vmatpush1.bf16.msra.mxu0 %v3891
        %6912 = vmatprep.subr.bf16.mxu0 %v3896
        %6913 = vmatpush1.bf16.msra.mxu0 %v3895
        %6914 = vmatprep.subr.bf16.mxu0 %v3900
        %6915 = vmatpush1.bf16.msra.mxu0 %v3899
        %6916 = vmatprep.subr.bf16.mxu0 %v3904
        %6917 = vmatpush1.bf16.msra.mxu0 %v3903
        %6918 = vmatprep.subr.bf16.mxu0 %v3908
        %6919 = vmatpush1.bf16.msra.mxu0 %v3907
        %6920 = vmatprep.subr.bf16.mxu0 %v3912
        %6921 = vmatpush1.bf16.msra.mxu0 %v3911
        %6922 = vmatprep.subr.bf16.mxu0 %v3916
        %6923 = vmatpush1.bf16.msra.mxu0 %v3915
        %6924 = vmatprep.subr.bf16.mxu0 %v3920
        %6925 = vmatpush1.bf16.msra.mxu0 %v3919
        %6926 = vmatprep.subr.bf16.mxu0 %v3924
        %6927 = vmatpush1.bf16.msra.mxu0 %v3923
        %6928 = vmatprep.subr.bf16.mxu0 %v3928
        %6929 = vmatpush1.bf16.msra.mxu0 %v3927
        %6930 = vmatprep.subr.bf16.mxu0 %v3932
        %6931 = vmatpush1.bf16.msra.mxu0 %v3931
        %6932 = vmatprep.subr.bf16.mxu0 %v3936
        %6933 = vmatpush1.bf16.msra.mxu0 %v3935
        %6934 = vmatprep.subr.bf16.mxu0 %v3940
        %6935 = vmatpush1.bf16.msra.mxu0 %v3939
        %6936 = vmatprep.subr.bf16.mxu0 %v3944
        %6937 = vmatpush1.bf16.msra.mxu0 %v3943
        %6938 = vmatprep.subr.bf16.mxu0 %v3948
        %6939 = vmatpush1.bf16.msra.mxu0 %v3947
        %6940 = vmatprep.subr.bf16.mxu0 %v3952
        %6941 = vmatpush1.bf16.msra.mxu0 %v3951
        %6942 = vmatprep.mubr.bf16.mxu0 %v1726
        %6943 = vmatmul.mubr.bf16.gmra.mrb[0].mxu0 %v1725
        %v6944 = vpop.f32.mrb[0].mxu0
        %v6945 = vadd.f32 %v6752, %v6944
        %v6946 = vpop.f32.mrb[0].mxu0
        %v6947 = vadd.f32 %v6754, %v6946
        %v6948 = vpop.f32.mrb[0].mxu0
        %v6949 = vadd.f32 %v6756, %v6948
        %v6950 = vpop.f32.mrb[0].mxu0
        %v6951 = vadd.f32 %v6758, %v6950
        %6952 = vmatprep.mubr.bf16.mxu0 %v1740
        %6953 = vmatmul.mubr.bf16.gmra.mrb[0].mxu0 %v1739
        %v6954 = vpop.f32.mrb[0].mxu0
        %v6955 = vadd.f32 %v6762, %v6954
        %v6956 = vpop.f32.mrb[0].mxu0
        %v6957 = vadd.f32 %v6764, %v6956
        %v6958 = vpop.f32.mrb[0].mxu0
        %v6959 = vadd.f32 %v6766, %v6958
        %v6960 = vpop.f32.mrb[0].mxu0
        %v6961 = vadd.f32 %v6768, %v6960
        %6962 = vmatprep.mubr.bf16.mxu0 %v1754
        %6963 = vmatmul.mubr.bf16.gmra.mrb[0].mxu0 %v1753
        %v6964 = vpop.f32.mrb[0].mxu0
        %v6965 = vadd.f32 %v6772, %v6964
        %v6966 = vpop.f32.mrb[0].mxu0
        %v6967 = vadd.f32 %v6774, %v6966
        %v6968 = vpop.f32.mrb[0].mxu0
        %v6969 = vadd.f32 %v6776, %v6968
        %v6970 = vpop.f32.mrb[0].mxu0
        %v6971 = vadd.f32 %v6778, %v6970
        %6972 = vmatprep.mubr.bf16.mxu0 %v1768
        %6973 = vmatmul.mubr.bf16.gmra.mrb[0].mxu0 %v1767
        %v6974 = vpop.f32.mrb[0].mxu0
        %v6975 = vadd.f32 %v6782, %v6974
        %v6976 = vpop.f32.mrb[0].mxu0
        %v6977 = vadd.f32 %v6784, %v6976
        %v6978 = vpop.f32.mrb[0].mxu0
        %v6979 = vadd.f32 %v6786, %v6978
        %v6980 = vpop.f32.mrb[0].mxu0
        %v6981 = vadd.f32 %v6788, %v6980
        %6982 = vmatprep.mubr.bf16.mxu0 %v1782
        %6983 = vmatmul.mubr.bf16.gmra.mrb[0].mxu0 %v1781
        %v6984 = vpop.f32.mrb[0].mxu0
        %v6985 = vadd.f32 %v6792, %v6984
        %v6986 = vpop.f32.mrb[0].mxu0
        %v6987 = vadd.f32 %v6794, %v6986
        %v6988 = vpop.f32.mrb[0].mxu0
        %v6989 = vadd.f32 %v6796, %v6988
        %v6990 = vpop.f32.mrb[0].mxu0
        %v6991 = vadd.f32 %v6798, %v6990
        %6992 = vmatprep.mubr.bf16.mxu0 %v1796
        %6993 = vmatmul.mubr.bf16.gmra.mrb[0].mxu0 %v1795
        %v6994 = vpop.f32.mrb[0].mxu0
        %v6995 = vadd.f32 %v6802, %v6994
        %v6996 = vpop.f32.mrb[0].mxu0
        %v6997 = vadd.f32 %v6804, %v6996
        %v6998 = vpop.f32.mrb[0].mxu0
        %v6999 = vadd.f32 %v6806, %v6998
        %v7000 = vpop.f32.mrb[0].mxu0
        %v7001 = vadd.f32 %v6808, %v7000
        %7002 = vmatprep.mubr.bf16.mxu0 %v1810
        %7003 = vmatmul.mubr.bf16.gmra.mrb[0].mxu0 %v1809
        %v7004 = vpop.f32.mrb[0].mxu0
        %v7005 = vadd.f32 %v6812, %v7004
        %v7006 = vpop.f32.mrb[0].mxu0
        %v7007 = vadd.f32 %v6814, %v7006
        %v7008 = vpop.f32.mrb[0].mxu0
        %v7009 = vadd.f32 %v6816, %v7008
        %v7010 = vpop.f32.mrb[0].mxu0
        %v7011 = vadd.f32 %v6818, %v7010
        %7012 = vmatprep.mubr.bf16.mxu0 %v1824
        %7013 = vmatmul.mubr.bf16.gmra.mrb[0].mxu0 %v1823
        %v7014 = vpop.f32.mrb[0].mxu0
        %v7015 = vadd.f32 %v6822, %v7014
        %v7016 = vpop.f32.mrb[0].mxu0
        %v7017 = vadd.f32 %v6824, %v7016
        %v7018 = vpop.f32.mrb[0].mxu0
        %v7019 = vadd.f32 %v6826, %v7018
        %v7020 = vpop.f32.mrb[0].mxu0
        %v7021 = vadd.f32 %v6828, %v7020
        %7022 = vmatprep.mubr.bf16.mxu0 %v1838
        %7023 = vmatmul.mubr.bf16.gmra.mrb[0].mxu0 %v1837
        %v7024 = vpop.f32.mrb[0].mxu0
        %v7025 = vadd.f32 %v6832, %v7024
        %v7026 = vpop.f32.mrb[0].mxu0
        %v7027 = vadd.f32 %v6834, %v7026
        %v7028 = vpop.f32.mrb[0].mxu0
        %v7029 = vadd.f32 %v6836, %v7028
        %v7030 = vpop.f32.mrb[0].mxu0
        %v7031 = vadd.f32 %v6838, %v7030
        %7032 = vmatprep.mubr.bf16.mxu0 %v1852
        %7033 = vmatmul.mubr.bf16.gmra.mrb[0].mxu0 %v1851
        %v7034 = vpop.f32.mrb[0].mxu0
        %v7035 = vadd.f32 %v6842, %v7034
        %v7036 = vpop.f32.mrb[0].mxu0
        %v7037 = vadd.f32 %v6844, %v7036
        %v7038 = vpop.f32.mrb[0].mxu0
        %v7039 = vadd.f32 %v6846, %v7038
        %v7040 = vpop.f32.mrb[0].mxu0
        %v7041 = vadd.f32 %v6848, %v7040
        %7042 = vmatprep.mubr.bf16.mxu0 %v1866
        %7043 = vmatmul.mubr.bf16.gmra.mrb[0].mxu0 %v1865
        %v7044 = vpop.f32.mrb[0].mxu0
        %v7045 = vadd.f32 %v6852, %v7044
        %v7046 = vpop.f32.mrb[0].mxu0
        %v7047 = vadd.f32 %v6854, %v7046
        %v7048 = vpop.f32.mrb[0].mxu0
        %v7049 = vadd.f32 %v6856, %v7048
        %v7050 = vpop.f32.mrb[0].mxu0
        %v7051 = vadd.f32 %v6858, %v7050
        %7052 = vmatprep.mubr.bf16.mxu0 %v1880
        %7053 = vmatmul.mubr.bf16.gmra.mrb[0].mxu0 %v1879
        %v7054 = vpop.f32.mrb[0].mxu0
        %v7055 = vadd.f32 %v6862, %v7054
        %v7056 = vpop.f32.mrb[0].mxu0
        %v7057 = vadd.f32 %v6864, %v7056
        %v7058 = vpop.f32.mrb[0].mxu0
        %v7059 = vadd.f32 %v6866, %v7058
        %v7060 = vpop.f32.mrb[0].mxu0
        %v7061 = vadd.f32 %v6868, %v7060
        %7062 = vmatprep.mubr.bf16.mxu0 %v1894
        %7063 = vmatmul.mubr.bf16.gmra.mrb[0].mxu0 %v1893
        %v7064 = vpop.f32.mrb[0].mxu0
        %v7065 = vadd.f32 %v6872, %v7064
        %v7066 = vpop.f32.mrb[0].mxu0
        %v7067 = vadd.f32 %v6874, %v7066
        %v7068 = vpop.f32.mrb[0].mxu0
        %v7069 = vadd.f32 %v6876, %v7068
        %v7070 = vpop.f32.mrb[0].mxu0
        %v7071 = vadd.f32 %v6878, %v7070
        %7072 = vmatprep.mubr.bf16.mxu0 %v1908
        %7073 = vmatmul.mubr.bf16.gmra.mrb[0].mxu0 %v1907
        %v7074 = vpop.f32.mrb[0].mxu0
        %v7075 = vadd.f32 %v6882, %v7074
        %v7076 = vpop.f32.mrb[0].mxu0
        %v7077 = vadd.f32 %v6884, %v7076
        %v7078 = vpop.f32.mrb[0].mxu0
        %v7079 = vadd.f32 %v6886, %v7078
        %v7080 = vpop.f32.mrb[0].mxu0
        %v7081 = vadd.f32 %v6888, %v7080
        %7082 = vmatprep.mubr.bf16.mxu0 %v1922
        %7083 = vmatmul.mubr.bf16.gmra.mrb[0].mxu0 %v1921
        %v7084 = vpop.f32.mrb[0].mxu0
        %v7085 = vadd.f32 %v6892, %v7084
        %v7086 = vpop.f32.mrb[0].mxu0
        %v7087 = vadd.f32 %v6894, %v7086
        %v7088 = vpop.f32.mrb[0].mxu0
        %v7089 = vadd.f32 %v6896, %v7088
        %v7090 = vpop.f32.mrb[0].mxu0
        %v7091 = vadd.f32 %v6898, %v7090
        %7092 = vmatprep.mubr.bf16.mxu0 %v1936
        %7093 = vmatmul.mubr.bf16.gmra.mrb[0].mxu0 %v1935
        %v7094 = vpop.f32.mrb[0].mxu0
        %v7095 = vadd.f32 %v6902, %v7094
        %v7096 = vpop.f32.mrb[0].mxu0
        %v7097 = vadd.f32 %v6904, %v7096
        %v7098 = vpop.f32.mrb[0].mxu0
        %v7099 = vadd.f32 %v6906, %v7098
        %v7100 = vpop.f32.mrb[0].mxu0
        %v7101 = vadd.f32 %v6908, %v7100
        %7102 = vdwg.mxu0
        %p7103 = scmp.eq.s32.totalorder %s30, 0
        // Predicated region
        $region37: #{conv_lstm_cell.1} parent=35 // pred_check
          %p7104 = pneg %p7103
        $region38: #{conv_lstm_cell.1} parent=35 // pred_check_branch
          %7106 = sbr.rel (%p7104) target = $region40
        $region39: #{conv_lstm_cell.1} parent=35 // pred_region
          %v7107 = vld [vmem:[%s357] sm:$0xf]
          %v7109 = vlaneseq
          %v7110 = vshrl.u32 %v7109, 7
          %v7111 = vsub.s32 0, %v7110
          %v7112 = vrot.slane %v7107, %v7111
          %v7113 = vlaneseq
          %v7114 = vshrl.u32 %v7113, 7
          %v7115 = vsub.s32 1, %v7114
          %v7116 = vrot.slane %v7107, %v7115
          %v7117 = vlaneseq
          %v7118 = vshrl.u32 %v7117, 7
          %v7119 = vsub.s32 2, %v7118
          %v7120 = vrot.slane %v7107, %v7119
          %v7121 = vlaneseq
          %v7122 = vshrl.u32 %v7121, 7
          %v7123 = vsub.s32 3, %v7122
          %v7124 = vrot.slane %v7107, %v7123
          %v7129 = vadd.f32 %v5594, %v7112
          %v7130 = vadd.f32 %v5596, %v7116
          %v7131 = vadd.f32 %v6945, %v7120
          %v7132 = vadd.f32 %v6947, %v7124
          %v7133 = vadd.f32 %v5598, %v7112
          %v7134 = vadd.f32 %v5600, %v7116
          %v7135 = vadd.f32 %v6949, %v7120
          %v7136 = vadd.f32 %v6951, %v7124
          %v7137 = vadd.f32 %v5604, %v7112
          %v7138 = vadd.f32 %v5606, %v7116
          %v7139 = vadd.f32 %v6955, %v7120
          %v7140 = vadd.f32 %v6957, %v7124
          %v7141 = vadd.f32 %v5608, %v7112
          %v7142 = vadd.f32 %v5610, %v7116
          %v7143 = vadd.f32 %v6959, %v7120
          %v7144 = vadd.f32 %v6961, %v7124
          %v7145 = vadd.f32 %v5614, %v7112
          %v7146 = vadd.f32 %v5616, %v7116
          %v7147 = vadd.f32 %v6965, %v7120
          %v7148 = vadd.f32 %v6967, %v7124
          %v7149 = vadd.f32 %v5618, %v7112
          %v7150 = vadd.f32 %v5620, %v7116
          %v7151 = vadd.f32 %v6969, %v7120
          %v7152 = vadd.f32 %v6971, %v7124
          %v7153 = vadd.f32 %v5624, %v7112
          %v7154 = vadd.f32 %v5626, %v7116
          %v7155 = vadd.f32 %v6975, %v7120
          %v7156 = vadd.f32 %v6977, %v7124
          %v7157 = vadd.f32 %v5628, %v7112
          %v7158 = vadd.f32 %v5630, %v7116
          %v7159 = vadd.f32 %v6979, %v7120
          %v7160 = vadd.f32 %v6981, %v7124
          %v7161 = vadd.f32 %v5634, %v7112
          %v7162 = vadd.f32 %v5636, %v7116
          %v7163 = vadd.f32 %v6985, %v7120
          %v7164 = vadd.f32 %v6987, %v7124
          %v7165 = vadd.f32 %v5638, %v7112
          %v7166 = vadd.f32 %v5640, %v7116
          %v7167 = vadd.f32 %v6989, %v7120
          %v7168 = vadd.f32 %v6991, %v7124
          %v7169 = vadd.f32 %v5644, %v7112
          %v7170 = vadd.f32 %v5646, %v7116
          %v7171 = vadd.f32 %v6995, %v7120
          %v7172 = vadd.f32 %v6997, %v7124
          %v7173 = vadd.f32 %v5648, %v7112
          %v7174 = vadd.f32 %v5650, %v7116
          %v7175 = vadd.f32 %v6999, %v7120
          %v7176 = vadd.f32 %v7001, %v7124
          %v7177 = vadd.f32 %v5654, %v7112
          %v7178 = vadd.f32 %v5656, %v7116
          %v7179 = vadd.f32 %v7005, %v7120
          %v7180 = vadd.f32 %v7007, %v7124
          %v7181 = vadd.f32 %v5658, %v7112
          %v7182 = vadd.f32 %v5660, %v7116
          %v7183 = vadd.f32 %v7009, %v7120
          %v7184 = vadd.f32 %v7011, %v7124
          %v7185 = vadd.f32 %v5664, %v7112
          %v7186 = vadd.f32 %v5666, %v7116
          %v7187 = vadd.f32 %v7015, %v7120
          %v7188 = vadd.f32 %v7017, %v7124
          %v7189 = vadd.f32 %v5668, %v7112
          %v7190 = vadd.f32 %v5670, %v7116
          %v7191 = vadd.f32 %v7019, %v7120
          %v7192 = vadd.f32 %v7021, %v7124
          %v7193 = vadd.f32 %v5674, %v7112
          %v7194 = vadd.f32 %v5676, %v7116
          %v7195 = vadd.f32 %v7025, %v7120
          %v7196 = vadd.f32 %v7027, %v7124
          %v7197 = vadd.f32 %v5678, %v7112
          %v7198 = vadd.f32 %v5680, %v7116
          %v7199 = vadd.f32 %v7029, %v7120
          %v7200 = vadd.f32 %v7031, %v7124
          %v7201 = vadd.f32 %v5684, %v7112
          %v7202 = vadd.f32 %v5686, %v7116
          %v7203 = vadd.f32 %v7035, %v7120
          %v7204 = vadd.f32 %v7037, %v7124
          %v7205 = vadd.f32 %v5688, %v7112
          %v7206 = vadd.f32 %v5690, %v7116
          %v7207 = vadd.f32 %v7039, %v7120
          %v7208 = vadd.f32 %v7041, %v7124
          %v7209 = vadd.f32 %v5694, %v7112
          %v7210 = vadd.f32 %v5696, %v7116
          %v7211 = vadd.f32 %v7045, %v7120
          %v7212 = vadd.f32 %v7047, %v7124
          %v7213 = vadd.f32 %v5698, %v7112
          %v7214 = vadd.f32 %v5700, %v7116
          %v7215 = vadd.f32 %v7049, %v7120
          %v7216 = vadd.f32 %v7051, %v7124
          %v7217 = vadd.f32 %v5704, %v7112
          %v7218 = vadd.f32 %v5706, %v7116
          %v7219 = vadd.f32 %v7055, %v7120
          %v7220 = vadd.f32 %v7057, %v7124
          %v7221 = vadd.f32 %v5708, %v7112
          %v7222 = vadd.f32 %v5710, %v7116
          %v7223 = vadd.f32 %v7059, %v7120
          %v7224 = vadd.f32 %v7061, %v7124
          %v7225 = vadd.f32 %v5714, %v7112
          %v7226 = vadd.f32 %v5716, %v7116
          %v7227 = vadd.f32 %v7065, %v7120
          %v7228 = vadd.f32 %v7067, %v7124
          %v7229 = vadd.f32 %v5718, %v7112
          %v7230 = vadd.f32 %v5720, %v7116
          %v7231 = vadd.f32 %v7069, %v7120
          %v7232 = vadd.f32 %v7071, %v7124
          %v7233 = vadd.f32 %v5724, %v7112
          %v7234 = vadd.f32 %v5726, %v7116
          %v7235 = vadd.f32 %v7075, %v7120
          %v7236 = vadd.f32 %v7077, %v7124
          %v7237 = vadd.f32 %v5728, %v7112
          %v7238 = vadd.f32 %v5730, %v7116
          %v7239 = vadd.f32 %v7079, %v7120
          %v7240 = vadd.f32 %v7081, %v7124
          %v7241 = vadd.f32 %v5734, %v7112
          %v7242 = vadd.f32 %v5736, %v7116
          %v7243 = vadd.f32 %v7085, %v7120
          %v7244 = vadd.f32 %v7087, %v7124
          %v7245 = vadd.f32 %v5738, %v7112
          %v7246 = vadd.f32 %v5740, %v7116
          %v7247 = vadd.f32 %v7089, %v7120
          %v7248 = vadd.f32 %v7091, %v7124
          %v7249 = vadd.f32 %v5744, %v7112
          %v7250 = vadd.f32 %v5746, %v7116
          %v7251 = vadd.f32 %v7095, %v7120
          %v7252 = vadd.f32 %v7097, %v7124
          %v7253 = vadd.f32 %v5748, %v7112
          %v7254 = vadd.f32 %v5750, %v7116
          %v7255 = vadd.f32 %v7099, %v7120
          %v7256 = vadd.f32 %v7101, %v7124
          %7257 = vst [vmem:[#allocation2] sm:$0xff] %v7129
          %7258 = vst [vmem:[#allocation2 + $0x8] sm:$0xff] %v7130
          %7259 = vst [vmem:[#allocation2 + $0x10] sm:$0xff] %v7131
          %7260 = vst [vmem:[#allocation2 + $0x18] sm:$0xff] %v7132
          %7261 = vst [vmem:[#allocation2 + $0x20] sm:$0xff] %v7133
          %7262 = vst [vmem:[#allocation2 + $0x28] sm:$0xff] %v7134
          %7263 = vst [vmem:[#allocation2 + $0x30] sm:$0xff] %v7135
          %7264 = vst [vmem:[#allocation2 + $0x38] sm:$0xff] %v7136
          %7265 = vst [vmem:[#allocation2 + $0x40] sm:$0xff] %v7137
          %7266 = vst [vmem:[#allocation2 + $0x48] sm:$0xff] %v7138
          %7267 = vst [vmem:[#allocation2 + $0x50] sm:$0xff] %v7139
          %7268 = vst [vmem:[#allocation2 + $0x58] sm:$0xff] %v7140
          %7269 = vst [vmem:[#allocation2 + $0x60] sm:$0xff] %v7141
          %7270 = vst [vmem:[#allocation2 + $0x68] sm:$0xff] %v7142
          %7271 = vst [vmem:[#allocation2 + $0x70] sm:$0xff] %v7143
          %7272 = vst [vmem:[#allocation2 + $0x78] sm:$0xff] %v7144
          %7273 = vst [vmem:[#allocation2 + $0x80] sm:$0xff] %v7145
          %7274 = vst [vmem:[#allocation2 + $0x88] sm:$0xff] %v7146
          %7275 = vst [vmem:[#allocation2 + $0x90] sm:$0xff] %v7147
          %7276 = vst [vmem:[#allocation2 + $0x98] sm:$0xff] %v7148
          %7277 = vst [vmem:[#allocation2 + $0xa0] sm:$0xff] %v7149
          %7278 = vst [vmem:[#allocation2 + $0xa8] sm:$0xff] %v7150
          %7279 = vst [vmem:[#allocation2 + $0xb0] sm:$0xff] %v7151
          %7280 = vst [vmem:[#allocation2 + $0xb8] sm:$0xff] %v7152
          %7281 = vst [vmem:[#allocation2 + $0xc0] sm:$0xff] %v7153
          %7282 = vst [vmem:[#allocation2 + $0xc8] sm:$0xff] %v7154
          %7283 = vst [vmem:[#allocation2 + $0xd0] sm:$0xff] %v7155
          %7284 = vst [vmem:[#allocation2 + $0xd8] sm:$0xff] %v7156
          %7285 = vst [vmem:[#allocation2 + $0xe0] sm:$0xff] %v7157
          %7286 = vst [vmem:[#allocation2 + $0xe8] sm:$0xff] %v7158
          %7287 = vst [vmem:[#allocation2 + $0xf0] sm:$0xff] %v7159
          %7288 = vst [vmem:[#allocation2 + $0xf8] sm:$0xff] %v7160
          %7289 = vst [vmem:[#allocation2 + $0x100] sm:$0xff] %v7161
          %7290 = vst [vmem:[#allocation2 + $0x108] sm:$0xff] %v7162
          %7291 = vst [vmem:[#allocation2 + $0x110] sm:$0xff] %v7163
          %7292 = vst [vmem:[#allocation2 + $0x118] sm:$0xff] %v7164
          %7293 = vst [vmem:[#allocation2 + $0x120] sm:$0xff] %v7165
          %7294 = vst [vmem:[#allocation2 + $0x128] sm:$0xff] %v7166
          %7295 = vst [vmem:[#allocation2 + $0x130] sm:$0xff] %v7167
          %7296 = vst [vmem:[#allocation2 + $0x138] sm:$0xff] %v7168
          %7297 = vst [vmem:[#allocation2 + $0x140] sm:$0xff] %v7169
          %7298 = vst [vmem:[#allocation2 + $0x148] sm:$0xff] %v7170
          %7299 = vst [vmem:[#allocation2 + $0x150] sm:$0xff] %v7171
          %7300 = vst [vmem:[#allocation2 + $0x158] sm:$0xff] %v7172
          %7301 = vst [vmem:[#allocation2 + $0x160] sm:$0xff] %v7173
          %7302 = vst [vmem:[#allocation2 + $0x168] sm:$0xff] %v7174
          %7303 = vst [vmem:[#allocation2 + $0x170] sm:$0xff] %v7175
          %7304 = vst [vmem:[#allocation2 + $0x178] sm:$0xff] %v7176
          %7305 = vst [vmem:[#allocation2 + $0x180] sm:$0xff] %v7177
          %7306 = vst [vmem:[#allocation2 + $0x188] sm:$0xff] %v7178
          %7307 = vst [vmem:[#allocation2 + $0x190] sm:$0xff] %v7179
          %7308 = vst [vmem:[#allocation2 + $0x198] sm:$0xff] %v7180
          %7309 = vst [vmem:[#allocation2 + $0x1a0] sm:$0xff] %v7181
          %7310 = vst [vmem:[#allocation2 + $0x1a8] sm:$0xff] %v7182
          %7311 = vst [vmem:[#allocation2 + $0x1b0] sm:$0xff] %v7183
          %7312 = vst [vmem:[#allocation2 + $0x1b8] sm:$0xff] %v7184
          %7313 = vst [vmem:[#allocation2 + $0x1c0] sm:$0xff] %v7185
          %7314 = vst [vmem:[#allocation2 + $0x1c8] sm:$0xff] %v7186
          %7315 = vst [vmem:[#allocation2 + $0x1d0] sm:$0xff] %v7187
          %7316 = vst [vmem:[#allocation2 + $0x1d8] sm:$0xff] %v7188
          %7317 = vst [vmem:[#allocation2 + $0x1e0] sm:$0xff] %v7189
          %7318 = vst [vmem:[#allocation2 + $0x1e8] sm:$0xff] %v7190
          %7319 = vst [vmem:[#allocation2 + $0x1f0] sm:$0xff] %v7191
          %7320 = vst [vmem:[#allocation2 + $0x1f8] sm:$0xff] %v7192
          %7321 = vst [vmem:[#allocation2 + $0x200] sm:$0xff] %v7193
          %7322 = vst [vmem:[#allocation2 + $0x208] sm:$0xff] %v7194
          %7323 = vst [vmem:[#allocation2 + $0x210] sm:$0xff] %v7195
          %7324 = vst [vmem:[#allocation2 + $0x218] sm:$0xff] %v7196
          %7325 = vst [vmem:[#allocation2 + $0x220] sm:$0xff] %v7197
          %7326 = vst [vmem:[#allocation2 + $0x228] sm:$0xff] %v7198
          %7327 = vst [vmem:[#allocation2 + $0x230] sm:$0xff] %v7199
          %7328 = vst [vmem:[#allocation2 + $0x238] sm:$0xff] %v7200
          %7329 = vst [vmem:[#allocation2 + $0x240] sm:$0xff] %v7201
          %7330 = vst [vmem:[#allocation2 + $0x248] sm:$0xff] %v7202
          %7331 = vst [vmem:[#allocation2 + $0x250] sm:$0xff] %v7203
          %7332 = vst [vmem:[#allocation2 + $0x258] sm:$0xff] %v7204
          %7333 = vst [vmem:[#allocation2 + $0x260] sm:$0xff] %v7205
          %7334 = vst [vmem:[#allocation2 + $0x268] sm:$0xff] %v7206
          %7335 = vst [vmem:[#allocation2 + $0x270] sm:$0xff] %v7207
          %7336 = vst [vmem:[#allocation2 + $0x278] sm:$0xff] %v7208
          %7337 = vst [vmem:[#allocation2 + $0x280] sm:$0xff] %v7209
          %7338 = vst [vmem:[#allocation2 + $0x288] sm:$0xff] %v7210
          %7339 = vst [vmem:[#allocation2 + $0x290] sm:$0xff] %v7211
          %7340 = vst [vmem:[#allocation2 + $0x298] sm:$0xff] %v7212
          %7341 = vst [vmem:[#allocation2 + $0x2a0] sm:$0xff] %v7213
          %7342 = vst [vmem:[#allocation2 + $0x2a8] sm:$0xff] %v7214
          %7343 = vst [vmem:[#allocation2 + $0x2b0] sm:$0xff] %v7215
          %7344 = vst [vmem:[#allocation2 + $0x2b8] sm:$0xff] %v7216
          %7345 = vst [vmem:[#allocation2 + $0x2c0] sm:$0xff] %v7217
          %7346 = vst [vmem:[#allocation2 + $0x2c8] sm:$0xff] %v7218
          %7347 = vst [vmem:[#allocation2 + $0x2d0] sm:$0xff] %v7219
          %7348 = vst [vmem:[#allocation2 + $0x2d8] sm:$0xff] %v7220
          %7349 = vst [vmem:[#allocation2 + $0x2e0] sm:$0xff] %v7221
          %7350 = vst [vmem:[#allocation2 + $0x2e8] sm:$0xff] %v7222
          %7351 = vst [vmem:[#allocation2 + $0x2f0] sm:$0xff] %v7223
          %7352 = vst [vmem:[#allocation2 + $0x2f8] sm:$0xff] %v7224
          %7353 = vst [vmem:[#allocation2 + $0x300] sm:$0xff] %v7225
          %7354 = vst [vmem:[#allocation2 + $0x308] sm:$0xff] %v7226
          %7355 = vst [vmem:[#allocation2 + $0x310] sm:$0xff] %v7227
          %7356 = vst [vmem:[#allocation2 + $0x318] sm:$0xff] %v7228
          %7357 = vst [vmem:[#allocation2 + $0x320] sm:$0xff] %v7229
          %7358 = vst [vmem:[#allocation2 + $0x328] sm:$0xff] %v7230
          %7359 = vst [vmem:[#allocation2 + $0x330] sm:$0xff] %v7231
          %7360 = vst [vmem:[#allocation2 + $0x338] sm:$0xff] %v7232
          %7361 = vst [vmem:[#allocation2 + $0x340] sm:$0xff] %v7233
          %7362 = vst [vmem:[#allocation2 + $0x348] sm:$0xff] %v7234
          %7363 = vst [vmem:[#allocation2 + $0x350] sm:$0xff] %v7235
          %7364 = vst [vmem:[#allocation2 + $0x358] sm:$0xff] %v7236
          %7365 = vst [vmem:[#allocation2 + $0x360] sm:$0xff] %v7237
          %7366 = vst [vmem:[#allocation2 + $0x368] sm:$0xff] %v7238
          %7367 = vst [vmem:[#allocation2 + $0x370] sm:$0xff] %v7239
          %7368 = vst [vmem:[#allocation2 + $0x378] sm:$0xff] %v7240
          %7369 = vst [vmem:[#allocation2 + $0x380] sm:$0xff] %v7241
          %7370 = vst [vmem:[#allocation2 + $0x388] sm:$0xff] %v7242
          %7371 = vst [vmem:[#allocation2 + $0x390] sm:$0xff] %v7243
          %7372 = vst [vmem:[#allocation2 + $0x398] sm:$0xff] %v7244
          %7373 = vst [vmem:[#allocation2 + $0x3a0] sm:$0xff] %v7245
          %7374 = vst [vmem:[#allocation2 + $0x3a8] sm:$0xff] %v7246
          %7375 = vst [vmem:[#allocation2 + $0x3b0] sm:$0xff] %v7247
          %7376 = vst [vmem:[#allocation2 + $0x3b8] sm:$0xff] %v7248
          %7377 = vst [vmem:[#allocation2 + $0x3c0] sm:$0xff] %v7249
          %7378 = vst [vmem:[#allocation2 + $0x3c8] sm:$0xff] %v7250
          %7379 = vst [vmem:[#allocation2 + $0x3d0] sm:$0xff] %v7251
          %7380 = vst [vmem:[#allocation2 + $0x3d8] sm:$0xff] %v7252
          %7381 = vst [vmem:[#allocation2 + $0x3e0] sm:$0xff] %v7253
          %7382 = vst [vmem:[#allocation2 + $0x3e8] sm:$0xff] %v7254
          %7383 = vst [vmem:[#allocation2 + $0x3f0] sm:$0xff] %v7255
          %7384 = vst [vmem:[#allocation2 + $0x3f8] sm:$0xff] %v7256
        $region40: #{conv_lstm_cell.1} parent=35 // pred_fallthru
          _
        %p7385 = scmp.gt.s32.totalorder %s30, 0
        // Predicated region
        $region41: #{conv_lstm_cell.1} parent=35 // pred_check
          %p7386 = pneg %p7385
        $region42: #{conv_lstm_cell.1} parent=35 // pred_check_branch
          %7388 = sbr.rel (%p7386) target = $region44
        $region43: #{conv_lstm_cell.1} parent=35 // pred_region
          %v7389 = vld [vmem:[#allocation2] sm:$0xff]
          %v7390 = vld [vmem:[#allocation2 + $0x8] sm:$0xff]
          %v7391 = vld [vmem:[#allocation2 + $0x10] sm:$0xff]
          %v7392 = vld [vmem:[#allocation2 + $0x18] sm:$0xff]
          %v7393 = vld [vmem:[#allocation2 + $0x20] sm:$0xff]
          %v7394 = vld [vmem:[#allocation2 + $0x28] sm:$0xff]
          %v7395 = vld [vmem:[#allocation2 + $0x30] sm:$0xff]
          %v7396 = vld [vmem:[#allocation2 + $0x38] sm:$0xff]
          %v7397 = vld [vmem:[#allocation2 + $0x40] sm:$0xff]
          %v7398 = vld [vmem:[#allocation2 + $0x48] sm:$0xff]
          %v7399 = vld [vmem:[#allocation2 + $0x50] sm:$0xff]
          %v7400 = vld [vmem:[#allocation2 + $0x58] sm:$0xff]
          %v7401 = vld [vmem:[#allocation2 + $0x60] sm:$0xff]
          %v7402 = vld [vmem:[#allocation2 + $0x68] sm:$0xff]
          %v7403 = vld [vmem:[#allocation2 + $0x70] sm:$0xff]
          %v7404 = vld [vmem:[#allocation2 + $0x78] sm:$0xff]
          %v7405 = vld [vmem:[#allocation2 + $0x80] sm:$0xff]
          %v7406 = vld [vmem:[#allocation2 + $0x88] sm:$0xff]
          %v7407 = vld [vmem:[#allocation2 + $0x90] sm:$0xff]
          %v7408 = vld [vmem:[#allocation2 + $0x98] sm:$0xff]
          %v7409 = vld [vmem:[#allocation2 + $0xa0] sm:$0xff]
          %v7410 = vld [vmem:[#allocation2 + $0xa8] sm:$0xff]
          %v7411 = vld [vmem:[#allocation2 + $0xb0] sm:$0xff]
          %v7412 = vld [vmem:[#allocation2 + $0xb8] sm:$0xff]
          %v7413 = vld [vmem:[#allocation2 + $0xc0] sm:$0xff]
          %v7414 = vld [vmem:[#allocation2 + $0xc8] sm:$0xff]
          %v7415 = vld [vmem:[#allocation2 + $0xd0] sm:$0xff]
          %v7416 = vld [vmem:[#allocation2 + $0xd8] sm:$0xff]
          %v7417 = vld [vmem:[#allocation2 + $0xe0] sm:$0xff]
          %v7418 = vld [vmem:[#allocation2 + $0xe8] sm:$0xff]
          %v7419 = vld [vmem:[#allocation2 + $0xf0] sm:$0xff]
          %v7420 = vld [vmem:[#allocation2 + $0xf8] sm:$0xff]
          %v7421 = vld [vmem:[#allocation2 + $0x100] sm:$0xff]
          %v7422 = vld [vmem:[#allocation2 + $0x108] sm:$0xff]
          %v7423 = vld [vmem:[#allocation2 + $0x110] sm:$0xff]
          %v7424 = vld [vmem:[#allocation2 + $0x118] sm:$0xff]
          %v7425 = vld [vmem:[#allocation2 + $0x120] sm:$0xff]
          %v7426 = vld [vmem:[#allocation2 + $0x128] sm:$0xff]
          %v7427 = vld [vmem:[#allocation2 + $0x130] sm:$0xff]
          %v7428 = vld [vmem:[#allocation2 + $0x138] sm:$0xff]
          %v7429 = vld [vmem:[#allocation2 + $0x140] sm:$0xff]
          %v7430 = vld [vmem:[#allocation2 + $0x148] sm:$0xff]
          %v7431 = vld [vmem:[#allocation2 + $0x150] sm:$0xff]
          %v7432 = vld [vmem:[#allocation2 + $0x158] sm:$0xff]
          %v7433 = vld [vmem:[#allocation2 + $0x160] sm:$0xff]
          %v7434 = vld [vmem:[#allocation2 + $0x168] sm:$0xff]
          %v7435 = vld [vmem:[#allocation2 + $0x170] sm:$0xff]
          %v7436 = vld [vmem:[#allocation2 + $0x178] sm:$0xff]
          %v7437 = vld [vmem:[#allocation2 + $0x180] sm:$0xff]
          %v7438 = vld [vmem:[#allocation2 + $0x188] sm:$0xff]
          %v7439 = vld [vmem:[#allocation2 + $0x190] sm:$0xff]
          %v7440 = vld [vmem:[#allocation2 + $0x198] sm:$0xff]
          %v7441 = vld [vmem:[#allocation2 + $0x1a0] sm:$0xff]
          %v7442 = vld [vmem:[#allocation2 + $0x1a8] sm:$0xff]
          %v7443 = vld [vmem:[#allocation2 + $0x1b0] sm:$0xff]
          %v7444 = vld [vmem:[#allocation2 + $0x1b8] sm:$0xff]
          %v7445 = vld [vmem:[#allocation2 + $0x1c0] sm:$0xff]
          %v7446 = vld [vmem:[#allocation2 + $0x1c8] sm:$0xff]
          %v7447 = vld [vmem:[#allocation2 + $0x1d0] sm:$0xff]
          %v7448 = vld [vmem:[#allocation2 + $0x1d8] sm:$0xff]
          %v7449 = vld [vmem:[#allocation2 + $0x1e0] sm:$0xff]
          %v7450 = vld [vmem:[#allocation2 + $0x1e8] sm:$0xff]
          %v7451 = vld [vmem:[#allocation2 + $0x1f0] sm:$0xff]
          %v7452 = vld [vmem:[#allocation2 + $0x1f8] sm:$0xff]
          %v7453 = vld [vmem:[#allocation2 + $0x200] sm:$0xff]
          %v7454 = vld [vmem:[#allocation2 + $0x208] sm:$0xff]
          %v7455 = vld [vmem:[#allocation2 + $0x210] sm:$0xff]
          %v7456 = vld [vmem:[#allocation2 + $0x218] sm:$0xff]
          %v7457 = vld [vmem:[#allocation2 + $0x220] sm:$0xff]
          %v7458 = vld [vmem:[#allocation2 + $0x228] sm:$0xff]
          %v7459 = vld [vmem:[#allocation2 + $0x230] sm:$0xff]
          %v7460 = vld [vmem:[#allocation2 + $0x238] sm:$0xff]
          %v7461 = vld [vmem:[#allocation2 + $0x240] sm:$0xff]
          %v7462 = vld [vmem:[#allocation2 + $0x248] sm:$0xff]
          %v7463 = vld [vmem:[#allocation2 + $0x250] sm:$0xff]
          %v7464 = vld [vmem:[#allocation2 + $0x258] sm:$0xff]
          %v7465 = vld [vmem:[#allocation2 + $0x260] sm:$0xff]
          %v7466 = vld [vmem:[#allocation2 + $0x268] sm:$0xff]
          %v7467 = vld [vmem:[#allocation2 + $0x270] sm:$0xff]
          %v7468 = vld [vmem:[#allocation2 + $0x278] sm:$0xff]
          %v7469 = vld [vmem:[#allocation2 + $0x280] sm:$0xff]
          %v7470 = vld [vmem:[#allocation2 + $0x288] sm:$0xff]
          %v7471 = vld [vmem:[#allocation2 + $0x290] sm:$0xff]
          %v7472 = vld [vmem:[#allocation2 + $0x298] sm:$0xff]
          %v7473 = vld [vmem:[#allocation2 + $0x2a0] sm:$0xff]
          %v7474 = vld [vmem:[#allocation2 + $0x2a8] sm:$0xff]
          %v7475 = vld [vmem:[#allocation2 + $0x2b0] sm:$0xff]
          %v7476 = vld [vmem:[#allocation2 + $0x2b8] sm:$0xff]
          %v7477 = vld [vmem:[#allocation2 + $0x2c0] sm:$0xff]
          %v7478 = vld [vmem:[#allocation2 + $0x2c8] sm:$0xff]
          %v7479 = vld [vmem:[#allocation2 + $0x2d0] sm:$0xff]
          %v7480 = vld [vmem:[#allocation2 + $0x2d8] sm:$0xff]
          %v7481 = vld [vmem:[#allocation2 + $0x2e0] sm:$0xff]
          %v7482 = vld [vmem:[#allocation2 + $0x2e8] sm:$0xff]
          %v7483 = vld [vmem:[#allocation2 + $0x2f0] sm:$0xff]
          %v7484 = vld [vmem:[#allocation2 + $0x2f8] sm:$0xff]
          %v7485 = vld [vmem:[#allocation2 + $0x300] sm:$0xff]
          %v7486 = vld [vmem:[#allocation2 + $0x308] sm:$0xff]
          %v7487 = vld [vmem:[#allocation2 + $0x310] sm:$0xff]
          %v7488 = vld [vmem:[#allocation2 + $0x318] sm:$0xff]
          %v7489 = vld [vmem:[#allocation2 + $0x320] sm:$0xff]
          %v7490 = vld [vmem:[#allocation2 + $0x328] sm:$0xff]
          %v7491 = vld [vmem:[#allocation2 + $0x330] sm:$0xff]
          %v7492 = vld [vmem:[#allocation2 + $0x338] sm:$0xff]
          %v7493 = vld [vmem:[#allocation2 + $0x340] sm:$0xff]
          %v7494 = vld [vmem:[#allocation2 + $0x348] sm:$0xff]
          %v7495 = vld [vmem:[#allocation2 + $0x350] sm:$0xff]
          %v7496 = vld [vmem:[#allocation2 + $0x358] sm:$0xff]
          %v7497 = vld [vmem:[#allocation2 + $0x360] sm:$0xff]
          %v7498 = vld [vmem:[#allocation2 + $0x368] sm:$0xff]
          %v7499 = vld [vmem:[#allocation2 + $0x370] sm:$0xff]
          %v7500 = vld [vmem:[#allocation2 + $0x378] sm:$0xff]
          %v7501 = vld [vmem:[#allocation2 + $0x380] sm:$0xff]
          %v7502 = vld [vmem:[#allocation2 + $0x388] sm:$0xff]
          %v7503 = vld [vmem:[#allocation2 + $0x390] sm:$0xff]
          %v7504 = vld [vmem:[#allocation2 + $0x398] sm:$0xff]
          %v7505 = vld [vmem:[#allocation2 + $0x3a0] sm:$0xff]
          %v7506 = vld [vmem:[#allocation2 + $0x3a8] sm:$0xff]
          %v7507 = vld [vmem:[#allocation2 + $0x3b0] sm:$0xff]
          %v7508 = vld [vmem:[#allocation2 + $0x3b8] sm:$0xff]
          %v7509 = vld [vmem:[#allocation2 + $0x3c0] sm:$0xff]
          %v7510 = vld [vmem:[#allocation2 + $0x3c8] sm:$0xff]
          %v7511 = vld [vmem:[#allocation2 + $0x3d0] sm:$0xff]
          %v7512 = vld [vmem:[#allocation2 + $0x3d8] sm:$0xff]
          %v7513 = vld [vmem:[#allocation2 + $0x3e0] sm:$0xff]
          %v7514 = vld [vmem:[#allocation2 + $0x3e8] sm:$0xff]
          %v7515 = vld [vmem:[#allocation2 + $0x3f0] sm:$0xff]
          %v7516 = vld [vmem:[#allocation2 + $0x3f8] sm:$0xff]
          %v7517 = vadd.f32 %v7389, %v5594
          %v7518 = vadd.f32 %v7390, %v5596
          %v7519 = vadd.f32 %v7391, %v6945
          %v7520 = vadd.f32 %v7392, %v6947
          %v7521 = vadd.f32 %v7393, %v5598
          %v7522 = vadd.f32 %v7394, %v5600
          %v7523 = vadd.f32 %v7395, %v6949
          %v7524 = vadd.f32 %v7396, %v6951
          %v7525 = vadd.f32 %v7397, %v5604
          %v7526 = vadd.f32 %v7398, %v5606
          %v7527 = vadd.f32 %v7399, %v6955
          %v7528 = vadd.f32 %v7400, %v6957
          %v7529 = vadd.f32 %v7401, %v5608
          %v7530 = vadd.f32 %v7402, %v5610
          %v7531 = vadd.f32 %v7403, %v6959
          %v7532 = vadd.f32 %v7404, %v6961
          %v7533 = vadd.f32 %v7405, %v5614
          %v7534 = vadd.f32 %v7406, %v5616
          %v7535 = vadd.f32 %v7407, %v6965
          %v7536 = vadd.f32 %v7408, %v6967
          %v7537 = vadd.f32 %v7409, %v5618
          %v7538 = vadd.f32 %v7410, %v5620
          %v7539 = vadd.f32 %v7411, %v6969
          %v7540 = vadd.f32 %v7412, %v6971
          %v7541 = vadd.f32 %v7413, %v5624
          %v7542 = vadd.f32 %v7414, %v5626
          %v7543 = vadd.f32 %v7415, %v6975
          %v7544 = vadd.f32 %v7416, %v6977
          %v7545 = vadd.f32 %v7417, %v5628
          %v7546 = vadd.f32 %v7418, %v5630
          %v7547 = vadd.f32 %v7419, %v6979
          %v7548 = vadd.f32 %v7420, %v6981
          %v7549 = vadd.f32 %v7421, %v5634
          %v7550 = vadd.f32 %v7422, %v5636
          %v7551 = vadd.f32 %v7423, %v6985
          %v7552 = vadd.f32 %v7424, %v6987
          %v7553 = vadd.f32 %v7425, %v5638
          %v7554 = vadd.f32 %v7426, %v5640
          %v7555 = vadd.f32 %v7427, %v6989
          %v7556 = vadd.f32 %v7428, %v6991
          %v7557 = vadd.f32 %v7429, %v5644
          %v7558 = vadd.f32 %v7430, %v5646
          %v7559 = vadd.f32 %v7431, %v6995
          %v7560 = vadd.f32 %v7432, %v6997
          %v7561 = vadd.f32 %v7433, %v5648
          %v7562 = vadd.f32 %v7434, %v5650
          %v7563 = vadd.f32 %v7435, %v6999
          %v7564 = vadd.f32 %v7436, %v7001
          %v7565 = vadd.f32 %v7437, %v5654
          %v7566 = vadd.f32 %v7438, %v5656
          %v7567 = vadd.f32 %v7439, %v7005
          %v7568 = vadd.f32 %v7440, %v7007
          %v7569 = vadd.f32 %v7441, %v5658
          %v7570 = vadd.f32 %v7442, %v5660
          %v7571 = vadd.f32 %v7443, %v7009
          %v7572 = vadd.f32 %v7444, %v7011
          %v7573 = vadd.f32 %v7445, %v5664
          %v7574 = vadd.f32 %v7446, %v5666
          %v7575 = vadd.f32 %v7447, %v7015
          %v7576 = vadd.f32 %v7448, %v7017
          %v7577 = vadd.f32 %v7449, %v5668
          %v7578 = vadd.f32 %v7450, %v5670
          %v7579 = vadd.f32 %v7451, %v7019
          %v7580 = vadd.f32 %v7452, %v7021
          %v7581 = vadd.f32 %v7453, %v5674
          %v7582 = vadd.f32 %v7454, %v5676
          %v7583 = vadd.f32 %v7455, %v7025
          %v7584 = vadd.f32 %v7456, %v7027
          %v7585 = vadd.f32 %v7457, %v5678
          %v7586 = vadd.f32 %v7458, %v5680
          %v7587 = vadd.f32 %v7459, %v7029
          %v7588 = vadd.f32 %v7460, %v7031
          %v7589 = vadd.f32 %v7461, %v5684
          %v7590 = vadd.f32 %v7462, %v5686
          %v7591 = vadd.f32 %v7463, %v7035
          %v7592 = vadd.f32 %v7464, %v7037
          %v7593 = vadd.f32 %v7465, %v5688
          %v7594 = vadd.f32 %v7466, %v5690
          %v7595 = vadd.f32 %v7467, %v7039
          %v7596 = vadd.f32 %v7468, %v7041
          %v7597 = vadd.f32 %v7469, %v5694
          %v7598 = vadd.f32 %v7470, %v5696
          %v7599 = vadd.f32 %v7471, %v7045
          %v7600 = vadd.f32 %v7472, %v7047
          %v7601 = vadd.f32 %v7473, %v5698
          %v7602 = vadd.f32 %v7474, %v5700
          %v7603 = vadd.f32 %v7475, %v7049
          %v7604 = vadd.f32 %v7476, %v7051
          %v7605 = vadd.f32 %v7477, %v5704
          %v7606 = vadd.f32 %v7478, %v5706
          %v7607 = vadd.f32 %v7479, %v7055
          %v7608 = vadd.f32 %v7480, %v7057
          %v7609 = vadd.f32 %v7481, %v5708
          %v7610 = vadd.f32 %v7482, %v5710
          %v7611 = vadd.f32 %v7483, %v7059
          %v7612 = vadd.f32 %v7484, %v7061
          %v7613 = vadd.f32 %v7485, %v5714
          %v7614 = vadd.f32 %v7486, %v5716
          %v7615 = vadd.f32 %v7487, %v7065
          %v7616 = vadd.f32 %v7488, %v7067
          %v7617 = vadd.f32 %v7489, %v5718
          %v7618 = vadd.f32 %v7490, %v5720
          %v7619 = vadd.f32 %v7491, %v7069
          %v7620 = vadd.f32 %v7492, %v7071
          %v7621 = vadd.f32 %v7493, %v5724
          %v7622 = vadd.f32 %v7494, %v5726
          %v7623 = vadd.f32 %v7495, %v7075
          %v7624 = vadd.f32 %v7496, %v7077
          %v7625 = vadd.f32 %v7497, %v5728
          %v7626 = vadd.f32 %v7498, %v5730
          %v7627 = vadd.f32 %v7499, %v7079
          %v7628 = vadd.f32 %v7500, %v7081
          %v7629 = vadd.f32 %v7501, %v5734
          %v7630 = vadd.f32 %v7502, %v5736
          %v7631 = vadd.f32 %v7503, %v7085
          %v7632 = vadd.f32 %v7504, %v7087
          %v7633 = vadd.f32 %v7505, %v5738
          %v7634 = vadd.f32 %v7506, %v5740
          %v7635 = vadd.f32 %v7507, %v7089
          %v7636 = vadd.f32 %v7508, %v7091
          %v7637 = vadd.f32 %v7509, %v5744
          %v7638 = vadd.f32 %v7510, %v5746
          %v7639 = vadd.f32 %v7511, %v7095
          %v7640 = vadd.f32 %v7512, %v7097
          %v7641 = vadd.f32 %v7513, %v5748
          %v7642 = vadd.f32 %v7514, %v5750
          %v7643 = vadd.f32 %v7515, %v7099
          %v7644 = vadd.f32 %v7516, %v7101
          %7645 = vst [vmem:[#allocation2] sm:$0xff] %v7517
          %7646 = vst [vmem:[#allocation2 + $0x8] sm:$0xff] %v7518
          %7647 = vst [vmem:[#allocation2 + $0x10] sm:$0xff] %v7519
          %7648 = vst [vmem:[#allocation2 + $0x18] sm:$0xff] %v7520
          %7649 = vst [vmem:[#allocation2 + $0x20] sm:$0xff] %v7521
          %7650 = vst [vmem:[#allocation2 + $0x28] sm:$0xff] %v7522
          %7651 = vst [vmem:[#allocation2 + $0x30] sm:$0xff] %v7523
          %7652 = vst [vmem:[#allocation2 + $0x38] sm:$0xff] %v7524
          %7653 = vst [vmem:[#allocation2 + $0x40] sm:$0xff] %v7525
          %7654 = vst [vmem:[#allocation2 + $0x48] sm:$0xff] %v7526
          %7655 = vst [vmem:[#allocation2 + $0x50] sm:$0xff] %v7527
          %7656 = vst [vmem:[#allocation2 + $0x58] sm:$0xff] %v7528
          %7657 = vst [vmem:[#allocation2 + $0x60] sm:$0xff] %v7529
          %7658 = vst [vmem:[#allocation2 + $0x68] sm:$0xff] %v7530
          %7659 = vst [vmem:[#allocation2 + $0x70] sm:$0xff] %v7531
          %7660 = vst [vmem:[#allocation2 + $0x78] sm:$0xff] %v7532
          %7661 = vst [vmem:[#allocation2 + $0x80] sm:$0xff] %v7533
          %7662 = vst [vmem:[#allocation2 + $0x88] sm:$0xff] %v7534
          %7663 = vst [vmem:[#allocation2 + $0x90] sm:$0xff] %v7535
          %7664 = vst [vmem:[#allocation2 + $0x98] sm:$0xff] %v7536
          %7665 = vst [vmem:[#allocation2 + $0xa0] sm:$0xff] %v7537
          %7666 = vst [vmem:[#allocation2 + $0xa8] sm:$0xff] %v7538
          %7667 = vst [vmem:[#allocation2 + $0xb0] sm:$0xff] %v7539
          %7668 = vst [vmem:[#allocation2 + $0xb8] sm:$0xff] %v7540
          %7669 = vst [vmem:[#allocation2 + $0xc0] sm:$0xff] %v7541
          %7670 = vst [vmem:[#allocation2 + $0xc8] sm:$0xff] %v7542
          %7671 = vst [vmem:[#allocation2 + $0xd0] sm:$0xff] %v7543
          %7672 = vst [vmem:[#allocation2 + $0xd8] sm:$0xff] %v7544
          %7673 = vst [vmem:[#allocation2 + $0xe0] sm:$0xff] %v7545
          %7674 = vst [vmem:[#allocation2 + $0xe8] sm:$0xff] %v7546
          %7675 = vst [vmem:[#allocation2 + $0xf0] sm:$0xff] %v7547
          %7676 = vst [vmem:[#allocation2 + $0xf8] sm:$0xff] %v7548
          %7677 = vst [vmem:[#allocation2 + $0x100] sm:$0xff] %v7549
          %7678 = vst [vmem:[#allocation2 + $0x108] sm:$0xff] %v7550
          %7679 = vst [vmem:[#allocation2 + $0x110] sm:$0xff] %v7551
          %7680 = vst [vmem:[#allocation2 + $0x118] sm:$0xff] %v7552
          %7681 = vst [vmem:[#allocation2 + $0x120] sm:$0xff] %v7553
          %7682 = vst [vmem:[#allocation2 + $0x128] sm:$0xff] %v7554
          %7683 = vst [vmem:[#allocation2 + $0x130] sm:$0xff] %v7555
          %7684 = vst [vmem:[#allocation2 + $0x138] sm:$0xff] %v7556
          %7685 = vst [vmem:[#allocation2 + $0x140] sm:$0xff] %v7557
          %7686 = vst [vmem:[#allocation2 + $0x148] sm:$0xff] %v7558
          %7687 = vst [vmem:[#allocation2 + $0x150] sm:$0xff] %v7559
          %7688 = vst [vmem:[#allocation2 + $0x158] sm:$0xff] %v7560
          %7689 = vst [vmem:[#allocation2 + $0x160] sm:$0xff] %v7561
          %7690 = vst [vmem:[#allocation2 + $0x168] sm:$0xff] %v7562
          %7691 = vst [vmem:[#allocation2 + $0x170] sm:$0xff] %v7563
          %7692 = vst [vmem:[#allocation2 + $0x178] sm:$0xff] %v7564
          %7693 = vst [vmem:[#allocation2 + $0x180] sm:$0xff] %v7565
          %7694 = vst [vmem:[#allocation2 + $0x188] sm:$0xff] %v7566
          %7695 = vst [vmem:[#allocation2 + $0x190] sm:$0xff] %v7567
          %7696 = vst [vmem:[#allocation2 + $0x198] sm:$0xff] %v7568
          %7697 = vst [vmem:[#allocation2 + $0x1a0] sm:$0xff] %v7569
          %7698 = vst [vmem:[#allocation2 + $0x1a8] sm:$0xff] %v7570
          %7699 = vst [vmem:[#allocation2 + $0x1b0] sm:$0xff] %v7571
          %7700 = vst [vmem:[#allocation2 + $0x1b8] sm:$0xff] %v7572
          %7701 = vst [vmem:[#allocation2 + $0x1c0] sm:$0xff] %v7573
          %7702 = vst [vmem:[#allocation2 + $0x1c8] sm:$0xff] %v7574
          %7703 = vst [vmem:[#allocation2 + $0x1d0] sm:$0xff] %v7575
          %7704 = vst [vmem:[#allocation2 + $0x1d8] sm:$0xff] %v7576
          %7705 = vst [vmem:[#allocation2 + $0x1e0] sm:$0xff] %v7577
          %7706 = vst [vmem:[#allocation2 + $0x1e8] sm:$0xff] %v7578
          %7707 = vst [vmem:[#allocation2 + $0x1f0] sm:$0xff] %v7579
          %7708 = vst [vmem:[#allocation2 + $0x1f8] sm:$0xff] %v7580
          %7709 = vst [vmem:[#allocation2 + $0x200] sm:$0xff] %v7581
          %7710 = vst [vmem:[#allocation2 + $0x208] sm:$0xff] %v7582
          %7711 = vst [vmem:[#allocation2 + $0x210] sm:$0xff] %v7583
          %7712 = vst [vmem:[#allocation2 + $0x218] sm:$0xff] %v7584
          %7713 = vst [vmem:[#allocation2 + $0x220] sm:$0xff] %v7585
          %7714 = vst [vmem:[#allocation2 + $0x228] sm:$0xff] %v7586
          %7715 = vst [vmem:[#allocation2 + $0x230] sm:$0xff] %v7587
          %7716 = vst [vmem:[#allocation2 + $0x238] sm:$0xff] %v7588
          %7717 = vst [vmem:[#allocation2 + $0x240] sm:$0xff] %v7589
          %7718 = vst [vmem:[#allocation2 + $0x248] sm:$0xff] %v7590
          %7719 = vst [vmem:[#allocation2 + $0x250] sm:$0xff] %v7591
          %7720 = vst [vmem:[#allocation2 + $0x258] sm:$0xff] %v7592
          %7721 = vst [vmem:[#allocation2 + $0x260] sm:$0xff] %v7593
          %7722 = vst [vmem:[#allocation2 + $0x268] sm:$0xff] %v7594
          %7723 = vst [vmem:[#allocation2 + $0x270] sm:$0xff] %v7595
          %7724 = vst [vmem:[#allocation2 + $0x278] sm:$0xff] %v7596
          %7725 = vst [vmem:[#allocation2 + $0x280] sm:$0xff] %v7597
          %7726 = vst [vmem:[#allocation2 + $0x288] sm:$0xff] %v7598
          %7727 = vst [vmem:[#allocation2 + $0x290] sm:$0xff] %v7599
          %7728 = vst [vmem:[#allocation2 + $0x298] sm:$0xff] %v7600
          %7729 = vst [vmem:[#allocation2 + $0x2a0] sm:$0xff] %v7601
          %7730 = vst [vmem:[#allocation2 + $0x2a8] sm:$0xff] %v7602
          %7731 = vst [vmem:[#allocation2 + $0x2b0] sm:$0xff] %v7603
          %7732 = vst [vmem:[#allocation2 + $0x2b8] sm:$0xff] %v7604
          %7733 = vst [vmem:[#allocation2 + $0x2c0] sm:$0xff] %v7605
          %7734 = vst [vmem:[#allocation2 + $0x2c8] sm:$0xff] %v7606
          %7735 = vst [vmem:[#allocation2 + $0x2d0] sm:$0xff] %v7607
          %7736 = vst [vmem:[#allocation2 + $0x2d8] sm:$0xff] %v7608
          %7737 = vst [vmem:[#allocation2 + $0x2e0] sm:$0xff] %v7609
          %7738 = vst [vmem:[#allocation2 + $0x2e8] sm:$0xff] %v7610
          %7739 = vst [vmem:[#allocation2 + $0x2f0] sm:$0xff] %v7611
          %7740 = vst [vmem:[#allocation2 + $0x2f8] sm:$0xff] %v7612
          %7741 = vst [vmem:[#allocation2 + $0x300] sm:$0xff] %v7613
          %7742 = vst [vmem:[#allocation2 + $0x308] sm:$0xff] %v7614
          %7743 = vst [vmem:[#allocation2 + $0x310] sm:$0xff] %v7615
          %7744 = vst [vmem:[#allocation2 + $0x318] sm:$0xff] %v7616
          %7745 = vst [vmem:[#allocation2 + $0x320] sm:$0xff] %v7617
          %7746 = vst [vmem:[#allocation2 + $0x328] sm:$0xff] %v7618
          %7747 = vst [vmem:[#allocation2 + $0x330] sm:$0xff] %v7619
          %7748 = vst [vmem:[#allocation2 + $0x338] sm:$0xff] %v7620
          %7749 = vst [vmem:[#allocation2 + $0x340] sm:$0xff] %v7621
          %7750 = vst [vmem:[#allocation2 + $0x348] sm:$0xff] %v7622
          %7751 = vst [vmem:[#allocation2 + $0x350] sm:$0xff] %v7623
          %7752 = vst [vmem:[#allocation2 + $0x358] sm:$0xff] %v7624
          %7753 = vst [vmem:[#allocation2 + $0x360] sm:$0xff] %v7625
          %7754 = vst [vmem:[#allocation2 + $0x368] sm:$0xff] %v7626
          %7755 = vst [vmem:[#allocation2 + $0x370] sm:$0xff] %v7627
          %7756 = vst [vmem:[#allocation2 + $0x378] sm:$0xff] %v7628
          %7757 = vst [vmem:[#allocation2 + $0x380] sm:$0xff] %v7629
          %7758 = vst [vmem:[#allocation2 + $0x388] sm:$0xff] %v7630
          %7759 = vst [vmem:[#allocation2 + $0x390] sm:$0xff] %v7631
          %7760 = vst [vmem:[#allocation2 + $0x398] sm:$0xff] %v7632
          %7761 = vst [vmem:[#allocation2 + $0x3a0] sm:$0xff] %v7633
          %7762 = vst [vmem:[#allocation2 + $0x3a8] sm:$0xff] %v7634
          %7763 = vst [vmem:[#allocation2 + $0x3b0] sm:$0xff] %v7635
          %7764 = vst [vmem:[#allocation2 + $0x3b8] sm:$0xff] %v7636
          %7765 = vst [vmem:[#allocation2 + $0x3c0] sm:$0xff] %v7637
          %7766 = vst [vmem:[#allocation2 + $0x3c8] sm:$0xff] %v7638
          %7767 = vst [vmem:[#allocation2 + $0x3d0] sm:$0xff] %v7639
          %7768 = vst [vmem:[#allocation2 + $0x3d8] sm:$0xff] %v7640
          %7769 = vst [vmem:[#allocation2 + $0x3e0] sm:$0xff] %v7641
          %7770 = vst [vmem:[#allocation2 + $0x3e8] sm:$0xff] %v7642
          %7771 = vst [vmem:[#allocation2 + $0x3f0] sm:$0xff] %v7643
          %7772 = vst [vmem:[#allocation2 + $0x3f8] sm:$0xff] %v7644
        $region44: #{conv_lstm_cell.1} parent=35 // pred_fallthru
          _
        // Predicated region
        $region45: #{conv_lstm_cell.1} parent=35 // pred_check
          %p7773 = pneg %p7103
        $region46: #{conv_lstm_cell.1} parent=35 // pred_check_branch
          %7775 = sbr.rel (%p7773) target = $region48
        $region47: #{conv_lstm_cell.1} parent=35 // pred_region
          %v7776 = vld [vmem:[#allocation2] sm:$0xff]
          %v7777 = vld [vmem:[#allocation2 + $0x8] sm:$0xff]
          %v7778 = vld [vmem:[#allocation2 + $0x10] sm:$0xff]
          %v7779 = vld [vmem:[#allocation2 + $0x18] sm:$0xff]
          %v7780 = vld [vmem:[#allocation2 + $0x20] sm:$0xff]
          %v7781 = vld [vmem:[#allocation2 + $0x28] sm:$0xff]
          %v7782 = vld [vmem:[#allocation2 + $0x30] sm:$0xff]
          %v7783 = vld [vmem:[#allocation2 + $0x38] sm:$0xff]
          %v7784 = vld [vmem:[#allocation2 + $0x40] sm:$0xff]
          %v7785 = vld [vmem:[#allocation2 + $0x48] sm:$0xff]
          %v7786 = vld [vmem:[#allocation2 + $0x50] sm:$0xff]
          %v7787 = vld [vmem:[#allocation2 + $0x58] sm:$0xff]
          %v7788 = vld [vmem:[#allocation2 + $0x60] sm:$0xff]
          %v7789 = vld [vmem:[#allocation2 + $0x68] sm:$0xff]
          %v7790 = vld [vmem:[#allocation2 + $0x70] sm:$0xff]
          %v7791 = vld [vmem:[#allocation2 + $0x78] sm:$0xff]
          %v7792 = vld [vmem:[#allocation2 + $0x80] sm:$0xff]
          %v7793 = vld [vmem:[#allocation2 + $0x88] sm:$0xff]
          %v7794 = vld [vmem:[#allocation2 + $0x90] sm:$0xff]
          %v7795 = vld [vmem:[#allocation2 + $0x98] sm:$0xff]
          %v7796 = vld [vmem:[#allocation2 + $0xa0] sm:$0xff]
          %v7797 = vld [vmem:[#allocation2 + $0xa8] sm:$0xff]
          %v7798 = vld [vmem:[#allocation2 + $0xb0] sm:$0xff]
          %v7799 = vld [vmem:[#allocation2 + $0xb8] sm:$0xff]
          %v7800 = vld [vmem:[#allocation2 + $0xc0] sm:$0xff]
          %v7801 = vld [vmem:[#allocation2 + $0xc8] sm:$0xff]
          %v7802 = vld [vmem:[#allocation2 + $0xd0] sm:$0xff]
          %v7803 = vld [vmem:[#allocation2 + $0xd8] sm:$0xff]
          %v7804 = vld [vmem:[#allocation2 + $0xe0] sm:$0xff]
          %v7805 = vld [vmem:[#allocation2 + $0xe8] sm:$0xff]
          %v7806 = vld [vmem:[#allocation2 + $0xf0] sm:$0xff]
          %v7807 = vld [vmem:[#allocation2 + $0xf8] sm:$0xff]
          %v7808 = vld [vmem:[#allocation2 + $0x100] sm:$0xff]
          %v7809 = vld [vmem:[#allocation2 + $0x108] sm:$0xff]
          %v7810 = vld [vmem:[#allocation2 + $0x110] sm:$0xff]
          %v7811 = vld [vmem:[#allocation2 + $0x118] sm:$0xff]
          %v7812 = vld [vmem:[#allocation2 + $0x120] sm:$0xff]
          %v7813 = vld [vmem:[#allocation2 + $0x128] sm:$0xff]
          %v7814 = vld [vmem:[#allocation2 + $0x130] sm:$0xff]
          %v7815 = vld [vmem:[#allocation2 + $0x138] sm:$0xff]
          %v7816 = vld [vmem:[#allocation2 + $0x140] sm:$0xff]
          %v7817 = vld [vmem:[#allocation2 + $0x148] sm:$0xff]
          %v7818 = vld [vmem:[#allocation2 + $0x150] sm:$0xff]
          %v7819 = vld [vmem:[#allocation2 + $0x158] sm:$0xff]
          %v7820 = vld [vmem:[#allocation2 + $0x160] sm:$0xff]
          %v7821 = vld [vmem:[#allocation2 + $0x168] sm:$0xff]
          %v7822 = vld [vmem:[#allocation2 + $0x170] sm:$0xff]
          %v7823 = vld [vmem:[#allocation2 + $0x178] sm:$0xff]
          %v7824 = vld [vmem:[#allocation2 + $0x180] sm:$0xff]
          %v7825 = vld [vmem:[#allocation2 + $0x188] sm:$0xff]
          %v7826 = vld [vmem:[#allocation2 + $0x190] sm:$0xff]
          %v7827 = vld [vmem:[#allocation2 + $0x198] sm:$0xff]
          %v7828 = vld [vmem:[#allocation2 + $0x1a0] sm:$0xff]
          %v7829 = vld [vmem:[#allocation2 + $0x1a8] sm:$0xff]
          %v7830 = vld [vmem:[#allocation2 + $0x1b0] sm:$0xff]
          %v7831 = vld [vmem:[#allocation2 + $0x1b8] sm:$0xff]
          %v7832 = vld [vmem:[#allocation2 + $0x1c0] sm:$0xff]
          %v7833 = vld [vmem:[#allocation2 + $0x1c8] sm:$0xff]
          %v7834 = vld [vmem:[#allocation2 + $0x1d0] sm:$0xff]
          %v7835 = vld [vmem:[#allocation2 + $0x1d8] sm:$0xff]
          %v7836 = vld [vmem:[#allocation2 + $0x1e0] sm:$0xff]
          %v7837 = vld [vmem:[#allocation2 + $0x1e8] sm:$0xff]
          %v7838 = vld [vmem:[#allocation2 + $0x1f0] sm:$0xff]
          %v7839 = vld [vmem:[#allocation2 + $0x1f8] sm:$0xff]
          %v7840 = vld [vmem:[#allocation2 + $0x200] sm:$0xff]
          %v7841 = vld [vmem:[#allocation2 + $0x208] sm:$0xff]
          %v7842 = vld [vmem:[#allocation2 + $0x210] sm:$0xff]
          %v7843 = vld [vmem:[#allocation2 + $0x218] sm:$0xff]
          %v7844 = vld [vmem:[#allocation2 + $0x220] sm:$0xff]
          %v7845 = vld [vmem:[#allocation2 + $0x228] sm:$0xff]
          %v7846 = vld [vmem:[#allocation2 + $0x230] sm:$0xff]
          %v7847 = vld [vmem:[#allocation2 + $0x238] sm:$0xff]
          %v7848 = vld [vmem:[#allocation2 + $0x240] sm:$0xff]
          %v7849 = vld [vmem:[#allocation2 + $0x248] sm:$0xff]
          %v7850 = vld [vmem:[#allocation2 + $0x250] sm:$0xff]
          %v7851 = vld [vmem:[#allocation2 + $0x258] sm:$0xff]
          %v7852 = vld [vmem:[#allocation2 + $0x260] sm:$0xff]
          %v7853 = vld [vmem:[#allocation2 + $0x268] sm:$0xff]
          %v7854 = vld [vmem:[#allocation2 + $0x270] sm:$0xff]
          %v7855 = vld [vmem:[#allocation2 + $0x278] sm:$0xff]
          %v7856 = vld [vmem:[#allocation2 + $0x280] sm:$0xff]
          %v7857 = vld [vmem:[#allocation2 + $0x288] sm:$0xff]
          %v7858 = vld [vmem:[#allocation2 + $0x290] sm:$0xff]
          %v7859 = vld [vmem:[#allocation2 + $0x298] sm:$0xff]
          %v7860 = vld [vmem:[#allocation2 + $0x2a0] sm:$0xff]
          %v7861 = vld [vmem:[#allocation2 + $0x2a8] sm:$0xff]
          %v7862 = vld [vmem:[#allocation2 + $0x2b0] sm:$0xff]
          %v7863 = vld [vmem:[#allocation2 + $0x2b8] sm:$0xff]
          %v7864 = vld [vmem:[#allocation2 + $0x2c0] sm:$0xff]
          %v7865 = vld [vmem:[#allocation2 + $0x2c8] sm:$0xff]
          %v7866 = vld [vmem:[#allocation2 + $0x2d0] sm:$0xff]
          %v7867 = vld [vmem:[#allocation2 + $0x2d8] sm:$0xff]
          %v7868 = vld [vmem:[#allocation2 + $0x2e0] sm:$0xff]
          %v7869 = vld [vmem:[#allocation2 + $0x2e8] sm:$0xff]
          %v7870 = vld [vmem:[#allocation2 + $0x2f0] sm:$0xff]
          %v7871 = vld [vmem:[#allocation2 + $0x2f8] sm:$0xff]
          %v7872 = vld [vmem:[#allocation2 + $0x300] sm:$0xff]
          %v7873 = vld [vmem:[#allocation2 + $0x308] sm:$0xff]
          %v7874 = vld [vmem:[#allocation2 + $0x310] sm:$0xff]
          %v7875 = vld [vmem:[#allocation2 + $0x318] sm:$0xff]
          %v7876 = vld [vmem:[#allocation2 + $0x320] sm:$0xff]
          %v7877 = vld [vmem:[#allocation2 + $0x328] sm:$0xff]
          %v7878 = vld [vmem:[#allocation2 + $0x330] sm:$0xff]
          %v7879 = vld [vmem:[#allocation2 + $0x338] sm:$0xff]
          %v7880 = vld [vmem:[#allocation2 + $0x340] sm:$0xff]
          %v7881 = vld [vmem:[#allocation2 + $0x348] sm:$0xff]
          %v7882 = vld [vmem:[#allocation2 + $0x350] sm:$0xff]
          %v7883 = vld [vmem:[#allocation2 + $0x358] sm:$0xff]
          %v7884 = vld [vmem:[#allocation2 + $0x360] sm:$0xff]
          %v7885 = vld [vmem:[#allocation2 + $0x368] sm:$0xff]
          %v7886 = vld [vmem:[#allocation2 + $0x370] sm:$0xff]
          %v7887 = vld [vmem:[#allocation2 + $0x378] sm:$0xff]
          %v7888 = vld [vmem:[#allocation2 + $0x380] sm:$0xff]
          %v7889 = vld [vmem:[#allocation2 + $0x388] sm:$0xff]
          %v7890 = vld [vmem:[#allocation2 + $0x390] sm:$0xff]
          %v7891 = vld [vmem:[#allocation2 + $0x398] sm:$0xff]
          %v7892 = vld [vmem:[#allocation2 + $0x3a0] sm:$0xff]
          %v7893 = vld [vmem:[#allocation2 + $0x3a8] sm:$0xff]
          %v7894 = vld [vmem:[#allocation2 + $0x3b0] sm:$0xff]
          %v7895 = vld [vmem:[#allocation2 + $0x3b8] sm:$0xff]
          %v7896 = vld [vmem:[#allocation2 + $0x3c0] sm:$0xff]
          %v7897 = vld [vmem:[#allocation2 + $0x3c8] sm:$0xff]
          %v7898 = vld [vmem:[#allocation2 + $0x3d0] sm:$0xff]
          %v7899 = vld [vmem:[#allocation2 + $0x3d8] sm:$0xff]
          %v7900 = vld [vmem:[#allocation2 + $0x3e0] sm:$0xff]
          %v7901 = vld [vmem:[#allocation2 + $0x3e8] sm:$0xff]
          %v7902 = vld [vmem:[#allocation2 + $0x3f0] sm:$0xff]
          %v7903 = vld [vmem:[#allocation2 + $0x3f8] sm:$0xff]
          %v7904 = vxor.u32 %v7776, 2147483648
          %v7905 = vxor.u32 %v7780, 2147483648
          %v7906 = vxor.u32 %v7784, 2147483648
          %v7907 = vxor.u32 %v7788, 2147483648
          %v7908 = vxor.u32 %v7792, 2147483648
          %v7909 = vxor.u32 %v7796, 2147483648
          %v7910 = vxor.u32 %v7800, 2147483648
          %v7911 = vxor.u32 %v7804, 2147483648
          %v7912 = vxor.u32 %v7808, 2147483648
          %v7913 = vxor.u32 %v7812, 2147483648
          %v7914 = vxor.u32 %v7816, 2147483648
          %v7915 = vxor.u32 %v7820, 2147483648
          %v7916 = vxor.u32 %v7824, 2147483648
          %v7917 = vxor.u32 %v7828, 2147483648
          %v7918 = vxor.u32 %v7832, 2147483648
          %v7919 = vxor.u32 %v7836, 2147483648
          %v7920 = vxor.u32 %v7840, 2147483648
          %v7921 = vxor.u32 %v7844, 2147483648
          %v7922 = vxor.u32 %v7848, 2147483648
          %v7923 = vxor.u32 %v7852, 2147483648
          %v7924 = vxor.u32 %v7856, 2147483648
          %v7925 = vxor.u32 %v7860, 2147483648
          %v7926 = vxor.u32 %v7864, 2147483648
          %v7927 = vxor.u32 %v7868, 2147483648
          %v7928 = vxor.u32 %v7872, 2147483648
          %v7929 = vxor.u32 %v7876, 2147483648
          %v7930 = vxor.u32 %v7880, 2147483648
          %v7931 = vxor.u32 %v7884, 2147483648
          %v7932 = vxor.u32 %v7888, 2147483648
          %v7933 = vxor.u32 %v7892, 2147483648
          %v7934 = vxor.u32 %v7896, 2147483648
          %v7935 = vxor.u32 %v7900, 2147483648
          %v7936 = vmul.f32 %v7904, 1.442695
          %v7937 = vpow.pop %v7936
          %v7938 = vmul.f32 %v7905, 1.442695
          %v7939 = vpow.pop %v7938
          %v7940 = vmul.f32 %v7906, 1.442695
          %v7941 = vpow.pop %v7940
          %v7942 = vmul.f32 %v7907, 1.442695
          %v7943 = vpow.pop %v7942
          %v7944 = vmul.f32 %v7908, 1.442695
          %v7945 = vpow.pop %v7944
          %v7946 = vmul.f32 %v7909, 1.442695
          %v7947 = vpow.pop %v7946
          %v7948 = vmul.f32 %v7910, 1.442695
          %v7949 = vpow.pop %v7948
          %v7950 = vmul.f32 %v7911, 1.442695
          %v7951 = vpow.pop %v7950
          %v7952 = vmul.f32 %v7912, 1.442695
          %v7953 = vpow.pop %v7952
          %v7954 = vmul.f32 %v7913, 1.442695
          %v7955 = vpow.pop %v7954
          %v7956 = vmul.f32 %v7914, 1.442695
          %v7957 = vpow.pop %v7956
          %v7958 = vmul.f32 %v7915, 1.442695
          %v7959 = vpow.pop %v7958
          %v7960 = vmul.f32 %v7916, 1.442695
          %v7961 = vpow.pop %v7960
          %v7962 = vmul.f32 %v7917, 1.442695
          %v7963 = vpow.pop %v7962
          %v7964 = vmul.f32 %v7918, 1.442695
          %v7965 = vpow.pop %v7964
          %v7966 = vmul.f32 %v7919, 1.442695
          %v7967 = vpow.pop %v7966
          %v7968 = vmul.f32 %v7920, 1.442695
          %v7969 = vpow.pop %v7968
          %v7970 = vmul.f32 %v7921, 1.442695
          %v7971 = vpow.pop %v7970
          %v7972 = vmul.f32 %v7922, 1.442695
          %v7973 = vpow.pop %v7972
          %v7974 = vmul.f32 %v7923, 1.442695
          %v7975 = vpow.pop %v7974
          %v7976 = vmul.f32 %v7924, 1.442695
          %v7977 = vpow.pop %v7976
          %v7978 = vmul.f32 %v7925, 1.442695
          %v7979 = vpow.pop %v7978
          %v7980 = vmul.f32 %v7926, 1.442695
          %v7981 = vpow.pop %v7980
          %v7982 = vmul.f32 %v7927, 1.442695
          %v7983 = vpow.pop %v7982
          %v7984 = vmul.f32 %v7928, 1.442695
          %v7985 = vpow.pop %v7984
          %v7986 = vmul.f32 %v7929, 1.442695
          %v7987 = vpow.pop %v7986
          %v7988 = vmul.f32 %v7930, 1.442695
          %v7989 = vpow.pop %v7988
          %v7990 = vmul.f32 %v7931, 1.442695
          %v7991 = vpow.pop %v7990
          %v7992 = vmul.f32 %v7932, 1.442695
          %v7993 = vpow.pop %v7992
          %v7994 = vmul.f32 %v7933, 1.442695
          %v7995 = vpow.pop %v7994
          %v7996 = vmul.f32 %v7934, 1.442695
          %v7997 = vpow.pop %v7996
          %v7998 = vmul.f32 %v7935, 1.442695
          %v7999 = vpow.pop %v7998
          %v8000 = vadd.f32 %v7937, 1.0
          %v8001 = vadd.f32 %v7939, 1.0
          %v8002 = vadd.f32 %v7941, 1.0
          %v8003 = vadd.f32 %v7943, 1.0
          %v8004 = vadd.f32 %v7945, 1.0
          %v8005 = vadd.f32 %v7947, 1.0
          %v8006 = vadd.f32 %v7949, 1.0
          %v8007 = vadd.f32 %v7951, 1.0
          %v8008 = vadd.f32 %v7953, 1.0
          %v8009 = vadd.f32 %v7955, 1.0
          %v8010 = vadd.f32 %v7957, 1.0
          %v8011 = vadd.f32 %v7959, 1.0
          %v8012 = vadd.f32 %v7961, 1.0
          %v8013 = vadd.f32 %v7963, 1.0
          %v8014 = vadd.f32 %v7965, 1.0
          %v8015 = vadd.f32 %v7967, 1.0
          %v8016 = vadd.f32 %v7969, 1.0
          %v8017 = vadd.f32 %v7971, 1.0
          %v8018 = vadd.f32 %v7973, 1.0
          %v8019 = vadd.f32 %v7975, 1.0
          %v8020 = vadd.f32 %v7977, 1.0
          %v8021 = vadd.f32 %v7979, 1.0
          %v8022 = vadd.f32 %v7981, 1.0
          %v8023 = vadd.f32 %v7983, 1.0
          %v8024 = vadd.f32 %v7985, 1.0
          %v8025 = vadd.f32 %v7987, 1.0
          %v8026 = vadd.f32 %v7989, 1.0
          %v8027 = vadd.f32 %v7991, 1.0
          %v8028 = vadd.f32 %v7993, 1.0
          %v8029 = vadd.f32 %v7995, 1.0
          %v8030 = vadd.f32 %v7997, 1.0
          %v8031 = vadd.f32 %v7999, 1.0
          %v8032 = vrcp.pop %v8000
          %v8033 = vmul.f32 1.0, %v8032
          %v8034 = vrcp.pop %v8001
          %v8035 = vmul.f32 1.0, %v8034
          %v8036 = vrcp.pop %v8002
          %v8037 = vmul.f32 1.0, %v8036
          %v8038 = vrcp.pop %v8003
          %v8039 = vmul.f32 1.0, %v8038
          %v8040 = vrcp.pop %v8004
          %v8041 = vmul.f32 1.0, %v8040
          %v8042 = vrcp.pop %v8005
          %v8043 = vmul.f32 1.0, %v8042
          %v8044 = vrcp.pop %v8006
          %v8045 = vmul.f32 1.0, %v8044
          %v8046 = vrcp.pop %v8007
          %v8047 = vmul.f32 1.0, %v8046
          %v8048 = vrcp.pop %v8008
          %v8049 = vmul.f32 1.0, %v8048
          %v8050 = vrcp.pop %v8009
          %v8051 = vmul.f32 1.0, %v8050
          %v8052 = vrcp.pop %v8010
          %v8053 = vmul.f32 1.0, %v8052
          %v8054 = vrcp.pop %v8011
          %v8055 = vmul.f32 1.0, %v8054
          %v8056 = vrcp.pop %v8012
          %v8057 = vmul.f32 1.0, %v8056
          %v8058 = vrcp.pop %v8013
          %v8059 = vmul.f32 1.0, %v8058
          %v8060 = vrcp.pop %v8014
          %v8061 = vmul.f32 1.0, %v8060
          %v8062 = vrcp.pop %v8015
          %v8063 = vmul.f32 1.0, %v8062
          %v8064 = vrcp.pop %v8016
          %v8065 = vmul.f32 1.0, %v8064
          %v8066 = vrcp.pop %v8017
          %v8067 = vmul.f32 1.0, %v8066
          %v8068 = vrcp.pop %v8018
          %v8069 = vmul.f32 1.0, %v8068
          %v8070 = vrcp.pop %v8019
          %v8071 = vmul.f32 1.0, %v8070
          %v8072 = vrcp.pop %v8020
          %v8073 = vmul.f32 1.0, %v8072
          %v8074 = vrcp.pop %v8021
          %v8075 = vmul.f32 1.0, %v8074
          %v8076 = vrcp.pop %v8022
          %v8077 = vmul.f32 1.0, %v8076
          %v8078 = vrcp.pop %v8023
          %v8079 = vmul.f32 1.0, %v8078
          %v8080 = vrcp.pop %v8024
          %v8081 = vmul.f32 1.0, %v8080
          %v8082 = vrcp.pop %v8025
          %v8083 = vmul.f32 1.0, %v8082
          %v8084 = vrcp.pop %v8026
          %v8085 = vmul.f32 1.0, %v8084
          %v8086 = vrcp.pop %v8027
          %v8087 = vmul.f32 1.0, %v8086
          %v8088 = vrcp.pop %v8028
          %v8089 = vmul.f32 1.0, %v8088
          %v8090 = vrcp.pop %v8029
          %v8091 = vmul.f32 1.0, %v8090
          %v8092 = vrcp.pop %v8030
          %v8093 = vmul.f32 1.0, %v8092
          %v8094 = vrcp.pop %v8031
          %v8095 = vmul.f32 1.0, %v8094
          %v8096 = vxor.u32 %v7777, 2147483648
          %v8097 = vxor.u32 %v7781, 2147483648
          %v8098 = vxor.u32 %v7785, 2147483648
          %v8099 = vxor.u32 %v7789, 2147483648
          %v8100 = vxor.u32 %v7793, 2147483648
          %v8101 = vxor.u32 %v7797, 2147483648
          %v8102 = vxor.u32 %v7801, 2147483648
          %v8103 = vxor.u32 %v7805, 2147483648
          %v8104 = vxor.u32 %v7809, 2147483648
          %v8105 = vxor.u32 %v7813, 2147483648
          %v8106 = vxor.u32 %v7817, 2147483648
          %v8107 = vxor.u32 %v7821, 2147483648
          %v8108 = vxor.u32 %v7825, 2147483648
          %v8109 = vxor.u32 %v7829, 2147483648
          %v8110 = vxor.u32 %v7833, 2147483648
          %v8111 = vxor.u32 %v7837, 2147483648
          %v8112 = vxor.u32 %v7841, 2147483648
          %v8113 = vxor.u32 %v7845, 2147483648
          %v8114 = vxor.u32 %v7849, 2147483648
          %v8115 = vxor.u32 %v7853, 2147483648
          %v8116 = vxor.u32 %v7857, 2147483648
          %v8117 = vxor.u32 %v7861, 2147483648
          %v8118 = vxor.u32 %v7865, 2147483648
          %v8119 = vxor.u32 %v7869, 2147483648
          %v8120 = vxor.u32 %v7873, 2147483648
          %v8121 = vxor.u32 %v7877, 2147483648
          %v8122 = vxor.u32 %v7881, 2147483648
          %v8123 = vxor.u32 %v7885, 2147483648
          %v8124 = vxor.u32 %v7889, 2147483648
          %v8125 = vxor.u32 %v7893, 2147483648
          %v8126 = vxor.u32 %v7897, 2147483648
          %v8127 = vxor.u32 %v7901, 2147483648
          %v8128 = vmul.f32 %v8096, 1.442695
          %v8129 = vpow.pop %v8128
          %v8130 = vmul.f32 %v8097, 1.442695
          %v8131 = vpow.pop %v8130
          %v8132 = vmul.f32 %v8098, 1.442695
          %v8133 = vpow.pop %v8132
          %v8134 = vmul.f32 %v8099, 1.442695
          %v8135 = vpow.pop %v8134
          %v8136 = vmul.f32 %v8100, 1.442695
          %v8137 = vpow.pop %v8136
          %v8138 = vmul.f32 %v8101, 1.442695
          %v8139 = vpow.pop %v8138
          %v8140 = vmul.f32 %v8102, 1.442695
          %v8141 = vpow.pop %v8140
          %v8142 = vmul.f32 %v8103, 1.442695
          %v8143 = vpow.pop %v8142
          %v8144 = vmul.f32 %v8104, 1.442695
          %v8145 = vpow.pop %v8144
          %v8146 = vmul.f32 %v8105, 1.442695
          %v8147 = vpow.pop %v8146
          %v8148 = vmul.f32 %v8106, 1.442695
          %v8149 = vpow.pop %v8148
          %v8150 = vmul.f32 %v8107, 1.442695
          %v8151 = vpow.pop %v8150
          %v8152 = vmul.f32 %v8108, 1.442695
          %v8153 = vpow.pop %v8152
          %v8154 = vmul.f32 %v8109, 1.442695
          %v8155 = vpow.pop %v8154
          %v8156 = vmul.f32 %v8110, 1.442695
          %v8157 = vpow.pop %v8156
          %v8158 = vmul.f32 %v8111, 1.442695
          %v8159 = vpow.pop %v8158
          %v8160 = vmul.f32 %v8112, 1.442695
          %v8161 = vpow.pop %v8160
          %v8162 = vmul.f32 %v8113, 1.442695
          %v8163 = vpow.pop %v8162
          %v8164 = vmul.f32 %v8114, 1.442695
          %v8165 = vpow.pop %v8164
          %v8166 = vmul.f32 %v8115, 1.442695
          %v8167 = vpow.pop %v8166
          %v8168 = vmul.f32 %v8116, 1.442695
          %v8169 = vpow.pop %v8168
          %v8170 = vmul.f32 %v8117, 1.442695
          %v8171 = vpow.pop %v8170
          %v8172 = vmul.f32 %v8118, 1.442695
          %v8173 = vpow.pop %v8172
          %v8174 = vmul.f32 %v8119, 1.442695
          %v8175 = vpow.pop %v8174
          %v8176 = vmul.f32 %v8120, 1.442695
          %v8177 = vpow.pop %v8176
          %v8178 = vmul.f32 %v8121, 1.442695
          %v8179 = vpow.pop %v8178
          %v8180 = vmul.f32 %v8122, 1.442695
          %v8181 = vpow.pop %v8180
          %v8182 = vmul.f32 %v8123, 1.442695
          %v8183 = vpow.pop %v8182
          %v8184 = vmul.f32 %v8124, 1.442695
          %v8185 = vpow.pop %v8184
          %v8186 = vmul.f32 %v8125, 1.442695
          %v8187 = vpow.pop %v8186
          %v8188 = vmul.f32 %v8126, 1.442695
          %v8189 = vpow.pop %v8188
          %v8190 = vmul.f32 %v8127, 1.442695
          %v8191 = vpow.pop %v8190
          %v8192 = vadd.f32 %v8129, 1.0
          %v8193 = vadd.f32 %v8131, 1.0
          %v8194 = vadd.f32 %v8133, 1.0
          %v8195 = vadd.f32 %v8135, 1.0
          %v8196 = vadd.f32 %v8137, 1.0
          %v8197 = vadd.f32 %v8139, 1.0
          %v8198 = vadd.f32 %v8141, 1.0
          %v8199 = vadd.f32 %v8143, 1.0
          %v8200 = vadd.f32 %v8145, 1.0
          %v8201 = vadd.f32 %v8147, 1.0
          %v8202 = vadd.f32 %v8149, 1.0
          %v8203 = vadd.f32 %v8151, 1.0
          %v8204 = vadd.f32 %v8153, 1.0
          %v8205 = vadd.f32 %v8155, 1.0
          %v8206 = vadd.f32 %v8157, 1.0
          %v8207 = vadd.f32 %v8159, 1.0
          %v8208 = vadd.f32 %v8161, 1.0
          %v8209 = vadd.f32 %v8163, 1.0
          %v8210 = vadd.f32 %v8165, 1.0
          %v8211 = vadd.f32 %v8167, 1.0
          %v8212 = vadd.f32 %v8169, 1.0
          %v8213 = vadd.f32 %v8171, 1.0
          %v8214 = vadd.f32 %v8173, 1.0
          %v8215 = vadd.f32 %v8175, 1.0
          %v8216 = vadd.f32 %v8177, 1.0
          %v8217 = vadd.f32 %v8179, 1.0
          %v8218 = vadd.f32 %v8181, 1.0
          %v8219 = vadd.f32 %v8183, 1.0
          %v8220 = vadd.f32 %v8185, 1.0
          %v8221 = vadd.f32 %v8187, 1.0
          %v8222 = vadd.f32 %v8189, 1.0
          %v8223 = vadd.f32 %v8191, 1.0
          %v8224 = vrcp.pop %v8192
          %v8225 = vmul.f32 1.0, %v8224
          %v8226 = vrcp.pop %v8193
          %v8227 = vmul.f32 1.0, %v8226
          %v8228 = vrcp.pop %v8194
          %v8229 = vmul.f32 1.0, %v8228
          %v8230 = vrcp.pop %v8195
          %v8231 = vmul.f32 1.0, %v8230
          %v8232 = vrcp.pop %v8196
          %v8233 = vmul.f32 1.0, %v8232
          %v8234 = vrcp.pop %v8197
          %v8235 = vmul.f32 1.0, %v8234
          %v8236 = vrcp.pop %v8198
          %v8237 = vmul.f32 1.0, %v8236
          %v8238 = vrcp.pop %v8199
          %v8239 = vmul.f32 1.0, %v8238
          %v8240 = vrcp.pop %v8200
          %v8241 = vmul.f32 1.0, %v8240
          %v8242 = vrcp.pop %v8201
          %v8243 = vmul.f32 1.0, %v8242
          %v8244 = vrcp.pop %v8202
          %v8245 = vmul.f32 1.0, %v8244
          %v8246 = vrcp.pop %v8203
          %v8247 = vmul.f32 1.0, %v8246
          %v8248 = vrcp.pop %v8204
          %v8249 = vmul.f32 1.0, %v8248
          %v8250 = vrcp.pop %v8205
          %v8251 = vmul.f32 1.0, %v8250
          %v8252 = vrcp.pop %v8206
          %v8253 = vmul.f32 1.0, %v8252
          %v8254 = vrcp.pop %v8207
          %v8255 = vmul.f32 1.0, %v8254
          %v8256 = vrcp.pop %v8208
          %v8257 = vmul.f32 1.0, %v8256
          %v8258 = vrcp.pop %v8209
          %v8259 = vmul.f32 1.0, %v8258
          %v8260 = vrcp.pop %v8210
          %v8261 = vmul.f32 1.0, %v8260
          %v8262 = vrcp.pop %v8211
          %v8263 = vmul.f32 1.0, %v8262
          %v8264 = vrcp.pop %v8212
          %v8265 = vmul.f32 1.0, %v8264
          %v8266 = vrcp.pop %v8213
          %v8267 = vmul.f32 1.0, %v8266
          %v8268 = vrcp.pop %v8214
          %v8269 = vmul.f32 1.0, %v8268
          %v8270 = vrcp.pop %v8215
          %v8271 = vmul.f32 1.0, %v8270
          %v8272 = vrcp.pop %v8216
          %v8273 = vmul.f32 1.0, %v8272
          %v8274 = vrcp.pop %v8217
          %v8275 = vmul.f32 1.0, %v8274
          %v8276 = vrcp.pop %v8218
          %v8277 = vmul.f32 1.0, %v8276
          %v8278 = vrcp.pop %v8219
          %v8279 = vmul.f32 1.0, %v8278
          %v8280 = vrcp.pop %v8220
          %v8281 = vmul.f32 1.0, %v8280
          %v8282 = vrcp.pop %v8221
          %v8283 = vmul.f32 1.0, %v8282
          %v8284 = vrcp.pop %v8222
          %v8285 = vmul.f32 1.0, %v8284
          %v8286 = vrcp.pop %v8223
          %v8287 = vmul.f32 1.0, %v8286
          %v8288 = vxor.u32 %v7778, 2147483648
          %v8289 = vxor.u32 %v7782, 2147483648
          %v8290 = vxor.u32 %v7786, 2147483648
          %v8291 = vxor.u32 %v7790, 2147483648
          %v8292 = vxor.u32 %v7794, 2147483648
          %v8293 = vxor.u32 %v7798, 2147483648
          %v8294 = vxor.u32 %v7802, 2147483648
          %v8295 = vxor.u32 %v7806, 2147483648
          %v8296 = vxor.u32 %v7810, 2147483648
          %v8297 = vxor.u32 %v7814, 2147483648
          %v8298 = vxor.u32 %v7818, 2147483648
          %v8299 = vxor.u32 %v7822, 2147483648
          %v8300 = vxor.u32 %v7826, 2147483648
          %v8301 = vxor.u32 %v7830, 2147483648
          %v8302 = vxor.u32 %v7834, 2147483648
          %v8303 = vxor.u32 %v7838, 2147483648
          %v8304 = vxor.u32 %v7842, 2147483648
          %v8305 = vxor.u32 %v7846, 2147483648
          %v8306 = vxor.u32 %v7850, 2147483648
          %v8307 = vxor.u32 %v7854, 2147483648
          %v8308 = vxor.u32 %v7858, 2147483648
          %v8309 = vxor.u32 %v7862, 2147483648
          %v8310 = vxor.u32 %v7866, 2147483648
          %v8311 = vxor.u32 %v7870, 2147483648
          %v8312 = vxor.u32 %v7874, 2147483648
          %v8313 = vxor.u32 %v7878, 2147483648
          %v8314 = vxor.u32 %v7882, 2147483648
          %v8315 = vxor.u32 %v7886, 2147483648
          %v8316 = vxor.u32 %v7890, 2147483648
          %v8317 = vxor.u32 %v7894, 2147483648
          %v8318 = vxor.u32 %v7898, 2147483648
          %v8319 = vxor.u32 %v7902, 2147483648
          %v8320 = vmul.f32 %v8288, 1.442695
          %v8321 = vpow.pop %v8320
          %v8322 = vmul.f32 %v8289, 1.442695
          %v8323 = vpow.pop %v8322
          %v8324 = vmul.f32 %v8290, 1.442695
          %v8325 = vpow.pop %v8324
          %v8326 = vmul.f32 %v8291, 1.442695
          %v8327 = vpow.pop %v8326
          %v8328 = vmul.f32 %v8292, 1.442695
          %v8329 = vpow.pop %v8328
          %v8330 = vmul.f32 %v8293, 1.442695
          %v8331 = vpow.pop %v8330
          %v8332 = vmul.f32 %v8294, 1.442695
          %v8333 = vpow.pop %v8332
          %v8334 = vmul.f32 %v8295, 1.442695
          %v8335 = vpow.pop %v8334
          %v8336 = vmul.f32 %v8296, 1.442695
          %v8337 = vpow.pop %v8336
          %v8338 = vmul.f32 %v8297, 1.442695
          %v8339 = vpow.pop %v8338
          %v8340 = vmul.f32 %v8298, 1.442695
          %v8341 = vpow.pop %v8340
          %v8342 = vmul.f32 %v8299, 1.442695
          %v8343 = vpow.pop %v8342
          %v8344 = vmul.f32 %v8300, 1.442695
          %v8345 = vpow.pop %v8344
          %v8346 = vmul.f32 %v8301, 1.442695
          %v8347 = vpow.pop %v8346
          %v8348 = vmul.f32 %v8302, 1.442695
          %v8349 = vpow.pop %v8348
          %v8350 = vmul.f32 %v8303, 1.442695
          %v8351 = vpow.pop %v8350
          %v8352 = vmul.f32 %v8304, 1.442695
          %v8353 = vpow.pop %v8352
          %v8354 = vmul.f32 %v8305, 1.442695
          %v8355 = vpow.pop %v8354
          %v8356 = vmul.f32 %v8306, 1.442695
          %v8357 = vpow.pop %v8356
          %v8358 = vmul.f32 %v8307, 1.442695
          %v8359 = vpow.pop %v8358
          %v8360 = vmul.f32 %v8308, 1.442695
          %v8361 = vpow.pop %v8360
          %v8362 = vmul.f32 %v8309, 1.442695
          %v8363 = vpow.pop %v8362
          %v8364 = vmul.f32 %v8310, 1.442695
          %v8365 = vpow.pop %v8364
          %v8366 = vmul.f32 %v8311, 1.442695
          %v8367 = vpow.pop %v8366
          %v8368 = vmul.f32 %v8312, 1.442695
          %v8369 = vpow.pop %v8368
          %v8370 = vmul.f32 %v8313, 1.442695
          %v8371 = vpow.pop %v8370
          %v8372 = vmul.f32 %v8314, 1.442695
          %v8373 = vpow.pop %v8372
          %v8374 = vmul.f32 %v8315, 1.442695
          %v8375 = vpow.pop %v8374
          %v8376 = vmul.f32 %v8316, 1.442695
          %v8377 = vpow.pop %v8376
          %v8378 = vmul.f32 %v8317, 1.442695
          %v8379 = vpow.pop %v8378
          %v8380 = vmul.f32 %v8318, 1.442695
          %v8381 = vpow.pop %v8380
          %v8382 = vmul.f32 %v8319, 1.442695
          %v8383 = vpow.pop %v8382
          %v8384 = vadd.f32 %v8321, 1.0
          %v8385 = vadd.f32 %v8323, 1.0
          %v8386 = vadd.f32 %v8325, 1.0
          %v8387 = vadd.f32 %v8327, 1.0
          %v8388 = vadd.f32 %v8329, 1.0
          %v8389 = vadd.f32 %v8331, 1.0
          %v8390 = vadd.f32 %v8333, 1.0
          %v8391 = vadd.f32 %v8335, 1.0
          %v8392 = vadd.f32 %v8337, 1.0
          %v8393 = vadd.f32 %v8339, 1.0
          %v8394 = vadd.f32 %v8341, 1.0
          %v8395 = vadd.f32 %v8343, 1.0
          %v8396 = vadd.f32 %v8345, 1.0
          %v8397 = vadd.f32 %v8347, 1.0
          %v8398 = vadd.f32 %v8349, 1.0
          %v8399 = vadd.f32 %v8351, 1.0
          %v8400 = vadd.f32 %v8353, 1.0
          %v8401 = vadd.f32 %v8355, 1.0
          %v8402 = vadd.f32 %v8357, 1.0
          %v8403 = vadd.f32 %v8359, 1.0
          %v8404 = vadd.f32 %v8361, 1.0
          %v8405 = vadd.f32 %v8363, 1.0
          %v8406 = vadd.f32 %v8365, 1.0
          %v8407 = vadd.f32 %v8367, 1.0
          %v8408 = vadd.f32 %v8369, 1.0
          %v8409 = vadd.f32 %v8371, 1.0
          %v8410 = vadd.f32 %v8373, 1.0
          %v8411 = vadd.f32 %v8375, 1.0
          %v8412 = vadd.f32 %v8377, 1.0
          %v8413 = vadd.f32 %v8379, 1.0
          %v8414 = vadd.f32 %v8381, 1.0
          %v8415 = vadd.f32 %v8383, 1.0
          %v8416 = vrcp.pop %v8384
          %v8417 = vmul.f32 1.0, %v8416
          %v8418 = vrcp.pop %v8385
          %v8419 = vmul.f32 1.0, %v8418
          %v8420 = vrcp.pop %v8386
          %v8421 = vmul.f32 1.0, %v8420
          %v8422 = vrcp.pop %v8387
          %v8423 = vmul.f32 1.0, %v8422
          %v8424 = vrcp.pop %v8388
          %v8425 = vmul.f32 1.0, %v8424
          %v8426 = vrcp.pop %v8389
          %v8427 = vmul.f32 1.0, %v8426
          %v8428 = vrcp.pop %v8390
          %v8429 = vmul.f32 1.0, %v8428
          %v8430 = vrcp.pop %v8391
          %v8431 = vmul.f32 1.0, %v8430
          %v8432 = vrcp.pop %v8392
          %v8433 = vmul.f32 1.0, %v8432
          %v8434 = vrcp.pop %v8393
          %v8435 = vmul.f32 1.0, %v8434
          %v8436 = vrcp.pop %v8394
          %v8437 = vmul.f32 1.0, %v8436
          %v8438 = vrcp.pop %v8395
          %v8439 = vmul.f32 1.0, %v8438
          %v8440 = vrcp.pop %v8396
          %v8441 = vmul.f32 1.0, %v8440
          %v8442 = vrcp.pop %v8397
          %v8443 = vmul.f32 1.0, %v8442
          %v8444 = vrcp.pop %v8398
          %v8445 = vmul.f32 1.0, %v8444
          %v8446 = vrcp.pop %v8399
          %v8447 = vmul.f32 1.0, %v8446
          %v8448 = vrcp.pop %v8400
          %v8449 = vmul.f32 1.0, %v8448
          %v8450 = vrcp.pop %v8401
          %v8451 = vmul.f32 1.0, %v8450
          %v8452 = vrcp.pop %v8402
          %v8453 = vmul.f32 1.0, %v8452
          %v8454 = vrcp.pop %v8403
          %v8455 = vmul.f32 1.0, %v8454
          %v8456 = vrcp.pop %v8404
          %v8457 = vmul.f32 1.0, %v8456
          %v8458 = vrcp.pop %v8405
          %v8459 = vmul.f32 1.0, %v8458
          %v8460 = vrcp.pop %v8406
          %v8461 = vmul.f32 1.0, %v8460
          %v8462 = vrcp.pop %v8407
          %v8463 = vmul.f32 1.0, %v8462
          %v8464 = vrcp.pop %v8408
          %v8465 = vmul.f32 1.0, %v8464
          %v8466 = vrcp.pop %v8409
          %v8467 = vmul.f32 1.0, %v8466
          %v8468 = vrcp.pop %v8410
          %v8469 = vmul.f32 1.0, %v8468
          %v8470 = vrcp.pop %v8411
          %v8471 = vmul.f32 1.0, %v8470
          %v8472 = vrcp.pop %v8412
          %v8473 = vmul.f32 1.0, %v8472
          %v8474 = vrcp.pop %v8413
          %v8475 = vmul.f32 1.0, %v8474
          %v8476 = vrcp.pop %v8414
          %v8477 = vmul.f32 1.0, %v8476
          %v8478 = vrcp.pop %v8415
          %v8479 = vmul.f32 1.0, %v8478
          %v8480 = vtanh.pop %v7779
          %v8481 = vtanh.pop %v7783
          %v8482 = vtanh.pop %v7787
          %v8483 = vtanh.pop %v7791
          %v8484 = vtanh.pop %v7795
          %v8485 = vtanh.pop %v7799
          %v8486 = vtanh.pop %v7803
          %v8487 = vtanh.pop %v7807
          %v8488 = vtanh.pop %v7811
          %v8489 = vtanh.pop %v7815
          %v8490 = vtanh.pop %v7819
          %v8491 = vtanh.pop %v7823
          %v8492 = vtanh.pop %v7827
          %v8493 = vtanh.pop %v7831
          %v8494 = vtanh.pop %v7835
          %v8495 = vtanh.pop %v7839
          %v8496 = vtanh.pop %v7843
          %v8497 = vtanh.pop %v7847
          %v8498 = vtanh.pop %v7851
          %v8499 = vtanh.pop %v7855
          %v8500 = vtanh.pop %v7859
          %v8501 = vtanh.pop %v7863
          %v8502 = vtanh.pop %v7867
          %v8503 = vtanh.pop %v7871
          %v8504 = vtanh.pop %v7875
          %v8505 = vtanh.pop %v7879
          %v8506 = vtanh.pop %v7883
          %v8507 = vtanh.pop %v7887
          %v8508 = vtanh.pop %v7891
          %v8509 = vtanh.pop %v7895
          %v8510 = vtanh.pop %v7899
          %v8511 = vtanh.pop %v7903
          %v8512 = vld [vmem:[%s365] sm:$0xff]
          %v8513 = vld [vmem:[%s365 + $0x8] sm:$0xff]
          %v8514 = vld [vmem:[%s365 + $0x10] sm:$0xff]
          %v8515 = vld [vmem:[%s365 + $0x18] sm:$0xff]
          %v8516 = vld [vmem:[%s365 + $0x20] sm:$0xff]
          %v8517 = vld [vmem:[%s365 + $0x28] sm:$0xff]
          %v8518 = vld [vmem:[%s365 + $0x30] sm:$0xff]
          %v8519 = vld [vmem:[%s365 + $0x38] sm:$0xff]
          %v8520 = vld [vmem:[%s365 + $0x40] sm:$0xff]
          %v8521 = vld [vmem:[%s365 + $0x48] sm:$0xff]
          %v8522 = vld [vmem:[%s365 + $0x50] sm:$0xff]
          %v8523 = vld [vmem:[%s365 + $0x58] sm:$0xff]
          %v8524 = vld [vmem:[%s365 + $0x60] sm:$0xff]
          %v8525 = vld [vmem:[%s365 + $0x68] sm:$0xff]
          %v8526 = vld [vmem:[%s365 + $0x70] sm:$0xff]
          %v8527 = vld [vmem:[%s365 + $0x78] sm:$0xff]
          %v8528 = vld [vmem:[%s365 + $0x80] sm:$0xff]
          %v8529 = vld [vmem:[%s365 + $0x88] sm:$0xff]
          %v8530 = vld [vmem:[%s365 + $0x90] sm:$0xff]
          %v8531 = vld [vmem:[%s365 + $0x98] sm:$0xff]
          %v8532 = vld [vmem:[%s365 + $0xa0] sm:$0xff]
          %v8533 = vld [vmem:[%s365 + $0xa8] sm:$0xff]
          %v8534 = vld [vmem:[%s365 + $0xb0] sm:$0xff]
          %v8535 = vld [vmem:[%s365 + $0xb8] sm:$0xff]
          %v8536 = vld [vmem:[%s365 + $0xc0] sm:$0xff]
          %v8537 = vld [vmem:[%s365 + $0xc8] sm:$0xff]
          %v8538 = vld [vmem:[%s365 + $0xd0] sm:$0xff]
          %v8539 = vld [vmem:[%s365 + $0xd8] sm:$0xff]
          %v8540 = vld [vmem:[%s365 + $0xe0] sm:$0xff]
          %v8541 = vld [vmem:[%s365 + $0xe8] sm:$0xff]
          %v8542 = vld [vmem:[%s365 + $0xf0] sm:$0xff]
          %v8543 = vld [vmem:[%s365 + $0xf8] sm:$0xff]
          %v8544 = vmul.f32 %v8225, %v8512
          %v8545 = vmul.f32 %v8227, %v8513
          %v8546 = vmul.f32 %v8229, %v8514
          %v8547 = vmul.f32 %v8231, %v8515
          %v8548 = vmul.f32 %v8233, %v8516
          %v8549 = vmul.f32 %v8235, %v8517
          %v8550 = vmul.f32 %v8237, %v8518
          %v8551 = vmul.f32 %v8239, %v8519
          %v8552 = vmul.f32 %v8241, %v8520
          %v8553 = vmul.f32 %v8243, %v8521
          %v8554 = vmul.f32 %v8245, %v8522
          %v8555 = vmul.f32 %v8247, %v8523
          %v8556 = vmul.f32 %v8249, %v8524
          %v8557 = vmul.f32 %v8251, %v8525
          %v8558 = vmul.f32 %v8253, %v8526
          %v8559 = vmul.f32 %v8255, %v8527
          %v8560 = vmul.f32 %v8257, %v8528
          %v8561 = vmul.f32 %v8259, %v8529
          %v8562 = vmul.f32 %v8261, %v8530
          %v8563 = vmul.f32 %v8263, %v8531
          %v8564 = vmul.f32 %v8265, %v8532
          %v8565 = vmul.f32 %v8267, %v8533
          %v8566 = vmul.f32 %v8269, %v8534
          %v8567 = vmul.f32 %v8271, %v8535
          %v8568 = vmul.f32 %v8273, %v8536
          %v8569 = vmul.f32 %v8275, %v8537
          %v8570 = vmul.f32 %v8277, %v8538
          %v8571 = vmul.f32 %v8279, %v8539
          %v8572 = vmul.f32 %v8281, %v8540
          %v8573 = vmul.f32 %v8283, %v8541
          %v8574 = vmul.f32 %v8285, %v8542
          %v8575 = vmul.f32 %v8287, %v8543
          %v8576 = vmul.f32 %v8033, %v8480
          %v8577 = vmul.f32 %v8035, %v8481
          %v8578 = vmul.f32 %v8037, %v8482
          %v8579 = vmul.f32 %v8039, %v8483
          %v8580 = vmul.f32 %v8041, %v8484
          %v8581 = vmul.f32 %v8043, %v8485
          %v8582 = vmul.f32 %v8045, %v8486
          %v8583 = vmul.f32 %v8047, %v8487
          %v8584 = vmul.f32 %v8049, %v8488
          %v8585 = vmul.f32 %v8051, %v8489
          %v8586 = vmul.f32 %v8053, %v8490
          %v8587 = vmul.f32 %v8055, %v8491
          %v8588 = vmul.f32 %v8057, %v8492
          %v8589 = vmul.f32 %v8059, %v8493
          %v8590 = vmul.f32 %v8061, %v8494
          %v8591 = vmul.f32 %v8063, %v8495
          %v8592 = vmul.f32 %v8065, %v8496
          %v8593 = vmul.f32 %v8067, %v8497
          %v8594 = vmul.f32 %v8069, %v8498
          %v8595 = vmul.f32 %v8071, %v8499
          %v8596 = vmul.f32 %v8073, %v8500
          %v8597 = vmul.f32 %v8075, %v8501
          %v8598 = vmul.f32 %v8077, %v8502
          %v8599 = vmul.f32 %v8079, %v8503
          %v8600 = vmul.f32 %v8081, %v8504
          %v8601 = vmul.f32 %v8083, %v8505
          %v8602 = vmul.f32 %v8085, %v8506
          %v8603 = vmul.f32 %v8087, %v8507
          %v8604 = vmul.f32 %v8089, %v8508
          %v8605 = vmul.f32 %v8091, %v8509
          %v8606 = vmul.f32 %v8093, %v8510
          %v8607 = vmul.f32 %v8095, %v8511
          %v8608 = vadd.f32 %v8544, %v8576
          %v8609 = vadd.f32 %v8545, %v8577
          %v8610 = vadd.f32 %v8546, %v8578
          %v8611 = vadd.f32 %v8547, %v8579
          %v8612 = vadd.f32 %v8548, %v8580
          %v8613 = vadd.f32 %v8549, %v8581
          %v8614 = vadd.f32 %v8550, %v8582
          %v8615 = vadd.f32 %v8551, %v8583
          %v8616 = vadd.f32 %v8552, %v8584
          %v8617 = vadd.f32 %v8553, %v8585
          %v8618 = vadd.f32 %v8554, %v8586
          %v8619 = vadd.f32 %v8555, %v8587
          %v8620 = vadd.f32 %v8556, %v8588
          %v8621 = vadd.f32 %v8557, %v8589
          %v8622 = vadd.f32 %v8558, %v8590
          %v8623 = vadd.f32 %v8559, %v8591
          %v8624 = vadd.f32 %v8560, %v8592
          %v8625 = vadd.f32 %v8561, %v8593
          %v8626 = vadd.f32 %v8562, %v8594
          %v8627 = vadd.f32 %v8563, %v8595
          %v8628 = vadd.f32 %v8564, %v8596
          %v8629 = vadd.f32 %v8565, %v8597
          %v8630 = vadd.f32 %v8566, %v8598
          %v8631 = vadd.f32 %v8567, %v8599
          %v8632 = vadd.f32 %v8568, %v8600
          %v8633 = vadd.f32 %v8569, %v8601
          %v8634 = vadd.f32 %v8570, %v8602
          %v8635 = vadd.f32 %v8571, %v8603
          %v8636 = vadd.f32 %v8572, %v8604
          %v8637 = vadd.f32 %v8573, %v8605
          %v8638 = vadd.f32 %v8574, %v8606
          %v8639 = vadd.f32 %v8575, %v8607
          %v8640 = vtanh.pop %v8608
          %v8641 = vtanh.pop %v8609
          %v8642 = vtanh.pop %v8610
          %v8643 = vtanh.pop %v8611
          %v8644 = vtanh.pop %v8612
          %v8645 = vtanh.pop %v8613
          %v8646 = vtanh.pop %v8614
          %v8647 = vtanh.pop %v8615
          %v8648 = vtanh.pop %v8616
          %v8649 = vtanh.pop %v8617
          %v8650 = vtanh.pop %v8618
          %v8651 = vtanh.pop %v8619
          %v8652 = vtanh.pop %v8620
          %v8653 = vtanh.pop %v8621
          %v8654 = vtanh.pop %v8622
          %v8655 = vtanh.pop %v8623
          %v8656 = vtanh.pop %v8624
          %v8657 = vtanh.pop %v8625
          %v8658 = vtanh.pop %v8626
          %v8659 = vtanh.pop %v8627
          %v8660 = vtanh.pop %v8628
          %v8661 = vtanh.pop %v8629
          %v8662 = vtanh.pop %v8630
          %v8663 = vtanh.pop %v8631
          %v8664 = vtanh.pop %v8632
          %v8665 = vtanh.pop %v8633
          %v8666 = vtanh.pop %v8634
          %v8667 = vtanh.pop %v8635
          %v8668 = vtanh.pop %v8636
          %v8669 = vtanh.pop %v8637
          %v8670 = vtanh.pop %v8638
          %v8671 = vtanh.pop %v8639
          %v8672 = vmul.f32 %v8417, %v8640
          %v8673 = vmul.f32 %v8419, %v8641
          %v8674 = vmul.f32 %v8421, %v8642
          %v8675 = vmul.f32 %v8423, %v8643
          %v8676 = vmul.f32 %v8425, %v8644
          %v8677 = vmul.f32 %v8427, %v8645
          %v8678 = vmul.f32 %v8429, %v8646
          %v8679 = vmul.f32 %v8431, %v8647
          %v8680 = vmul.f32 %v8433, %v8648
          %v8681 = vmul.f32 %v8435, %v8649
          %v8682 = vmul.f32 %v8437, %v8650
          %v8683 = vmul.f32 %v8439, %v8651
          %v8684 = vmul.f32 %v8441, %v8652
          %v8685 = vmul.f32 %v8443, %v8653
          %v8686 = vmul.f32 %v8445, %v8654
          %v8687 = vmul.f32 %v8447, %v8655
          %v8688 = vmul.f32 %v8449, %v8656
          %v8689 = vmul.f32 %v8451, %v8657
          %v8690 = vmul.f32 %v8453, %v8658
          %v8691 = vmul.f32 %v8455, %v8659
          %v8692 = vmul.f32 %v8457, %v8660
          %v8693 = vmul.f32 %v8459, %v8661
          %v8694 = vmul.f32 %v8461, %v8662
          %v8695 = vmul.f32 %v8463, %v8663
          %v8696 = vmul.f32 %v8465, %v8664
          %v8697 = vmul.f32 %v8467, %v8665
          %v8698 = vmul.f32 %v8469, %v8666
          %v8699 = vmul.f32 %v8471, %v8667
          %v8700 = vmul.f32 %v8473, %v8668
          %v8701 = vmul.f32 %v8475, %v8669
          %v8702 = vmul.f32 %v8477, %v8670
          %v8703 = vmul.f32 %v8479, %v8671
          %8704 = vst [vmem:[%s323] sm:$0xff] %v8672
          %8705 = vst [vmem:[%s323 + $0x8] sm:$0xff] %v8673
          %8706 = vst [vmem:[%s323 + $0x10] sm:$0xff] %v8674
          %8707 = vst [vmem:[%s323 + $0x18] sm:$0xff] %v8675
          %8708 = vst [vmem:[%s323 + $0x20] sm:$0xff] %v8676
          %8709 = vst [vmem:[%s323 + $0x28] sm:$0xff] %v8677
          %8710 = vst [vmem:[%s323 + $0x30] sm:$0xff] %v8678
          %8711 = vst [vmem:[%s323 + $0x38] sm:$0xff] %v8679
          %8712 = vst [vmem:[%s323 + $0x40] sm:$0xff] %v8680
          %8713 = vst [vmem:[%s323 + $0x48] sm:$0xff] %v8681
          %8714 = vst [vmem:[%s323 + $0x50] sm:$0xff] %v8682
          %8715 = vst [vmem:[%s323 + $0x58] sm:$0xff] %v8683
          %8716 = vst [vmem:[%s323 + $0x60] sm:$0xff] %v8684
          %8717 = vst [vmem:[%s323 + $0x68] sm:$0xff] %v8685
          %8718 = vst [vmem:[%s323 + $0x70] sm:$0xff] %v8686
          %8719 = vst [vmem:[%s323 + $0x78] sm:$0xff] %v8687
          %8720 = vst [vmem:[%s323 + $0x80] sm:$0xff] %v8688
          %8721 = vst [vmem:[%s323 + $0x88] sm:$0xff] %v8689
          %8722 = vst [vmem:[%s323 + $0x90] sm:$0xff] %v8690
          %8723 = vst [vmem:[%s323 + $0x98] sm:$0xff] %v8691
          %8724 = vst [vmem:[%s323 + $0xa0] sm:$0xff] %v8692
          %8725 = vst [vmem:[%s323 + $0xa8] sm:$0xff] %v8693
          %8726 = vst [vmem:[%s323 + $0xb0] sm:$0xff] %v8694
          %8727 = vst [vmem:[%s323 + $0xb8] sm:$0xff] %v8695
          %8728 = vst [vmem:[%s323 + $0xc0] sm:$0xff] %v8696
          %8729 = vst [vmem:[%s323 + $0xc8] sm:$0xff] %v8697
          %8730 = vst [vmem:[%s323 + $0xd0] sm:$0xff] %v8698
          %8731 = vst [vmem:[%s323 + $0xd8] sm:$0xff] %v8699
          %8732 = vst [vmem:[%s323 + $0xe0] sm:$0xff] %v8700
          %8733 = vst [vmem:[%s323 + $0xe8] sm:$0xff] %v8701
          %8734 = vst [vmem:[%s323 + $0xf0] sm:$0xff] %v8702
          %8735 = vst [vmem:[%s323 + $0xf8] sm:$0xff] %v8703
          %8736 = vst [vmem:[%s330] sm:$0xff] %v8608
          %8737 = vst [vmem:[%s330 + $0x8] sm:$0xff] %v8609
          %8738 = vst [vmem:[%s330 + $0x10] sm:$0xff] %v8610
          %8739 = vst [vmem:[%s330 + $0x18] sm:$0xff] %v8611
          %8740 = vst [vmem:[%s330 + $0x20] sm:$0xff] %v8612
          %8741 = vst [vmem:[%s330 + $0x28] sm:$0xff] %v8613
          %8742 = vst [vmem:[%s330 + $0x30] sm:$0xff] %v8614
          %8743 = vst [vmem:[%s330 + $0x38] sm:$0xff] %v8615
          %8744 = vst [vmem:[%s330 + $0x40] sm:$0xff] %v8616
          %8745 = vst [vmem:[%s330 + $0x48] sm:$0xff] %v8617
          %8746 = vst [vmem:[%s330 + $0x50] sm:$0xff] %v8618
          %8747 = vst [vmem:[%s330 + $0x58] sm:$0xff] %v8619
          %8748 = vst [vmem:[%s330 + $0x60] sm:$0xff] %v8620
          %8749 = vst [vmem:[%s330 + $0x68] sm:$0xff] %v8621
          %8750 = vst [vmem:[%s330 + $0x70] sm:$0xff] %v8622
          %8751 = vst [vmem:[%s330 + $0x78] sm:$0xff] %v8623
          %8752 = vst [vmem:[%s330 + $0x80] sm:$0xff] %v8624
          %8753 = vst [vmem:[%s330 + $0x88] sm:$0xff] %v8625
          %8754 = vst [vmem:[%s330 + $0x90] sm:$0xff] %v8626
          %8755 = vst [vmem:[%s330 + $0x98] sm:$0xff] %v8627
          %8756 = vst [vmem:[%s330 + $0xa0] sm:$0xff] %v8628
          %8757 = vst [vmem:[%s330 + $0xa8] sm:$0xff] %v8629
          %8758 = vst [vmem:[%s330 + $0xb0] sm:$0xff] %v8630
          %8759 = vst [vmem:[%s330 + $0xb8] sm:$0xff] %v8631
          %8760 = vst [vmem:[%s330 + $0xc0] sm:$0xff] %v8632
          %8761 = vst [vmem:[%s330 + $0xc8] sm:$0xff] %v8633
          %8762 = vst [vmem:[%s330 + $0xd0] sm:$0xff] %v8634
          %8763 = vst [vmem:[%s330 + $0xd8] sm:$0xff] %v8635
          %8764 = vst [vmem:[%s330 + $0xe0] sm:$0xff] %v8636
          %8765 = vst [vmem:[%s330 + $0xe8] sm:$0xff] %v8637
          %8766 = vst [vmem:[%s330 + $0xf0] sm:$0xff] %v8638
          %8767 = vst [vmem:[%s330 + $0xf8] sm:$0xff] %v8639
        $region48: #{conv_lstm_cell.1} parent=35 // pred_fallthru
          _
        %s8768 = sand.u32 %s162, 1
        %s8769 = scalar_lea.sflag [#allocation4], %s8768
        %s8770 = sand.u32 %s162, 1
        %s8771 = smul.addr %s8770, 256
        %s8772 = scalar_lea.vmem [#allocation3], %s8771
        %s8773 = sand.u32 %s190, 1
        %s8774 = scalar_lea.sflag [#allocation6], %s8773
        %s8775 = sand.u32 %s190, 1
        %s8776 = smul.addr %s8775, 256
        %s8777 = scalar_lea.vmem [#allocation5], %s8776
        // Predicated region
        $region49: #{conv_lstm_cell.1} parent=35 // pred_check
          %p8778 = pneg %p172
        $region50: #{conv_lstm_cell.1} parent=35 // pred_check_branch
          %8780 = sbr.rel (%p8778) target = $region52
        $region51: #{conv_lstm_cell.1} parent=35 // pred_region
          %s8781 = smul.u32 32, %s29
          %s8783 = ssub.s32 4096, 4096
          %8784 = vsyncadd %s8769, %s8783
          %s8785 = sadd.s32 %s28, %s8781
          %s8786 = smul.addr %s8785, 128
          %s8787 = scalar_lea.hbm %s4, %s8786
          %s8788 = sshll.u32 %s8772, 4
          %s8789 = int_to_ptr.vmem [resolvable:$true] %s8788
          %8794 = dma.vmem_to_hbm [thread:$0]  %s8789, 4096, %s8787, %s8769, 128, 128, 8
        $region52: #{conv_lstm_cell.1} parent=35 // pred_fallthru
          _
        // Predicated region
        $region53: #{conv_lstm_cell.1} parent=35 // pred_check
          %p8795 = pneg %p200
        $region54: #{conv_lstm_cell.1} parent=35 // pred_check_branch
          %8797 = sbr.rel (%p8795) target = $region56
        $region55: #{conv_lstm_cell.1} parent=35 // pred_region
          %s8798 = smul.u32 32, %s29
          %s8800 = ssub.s32 4096, 4096
          %8801 = vsyncadd %s8774, %s8800
          %s8802 = sadd.s32 %s28, %s8798
          %s8803 = smul.addr %s8802, 128
          %s8804 = scalar_lea.hbm %s5, %s8803
          %s8805 = sshll.u32 %s8777, 4
          %s8806 = int_to_ptr.vmem [resolvable:$true] %s8805
          %8811 = dma.vmem_to_hbm [thread:$0]  %s8806, 4096, %s8804, %s8774, 128, 128, 8
        $region56: #{conv_lstm_cell.1} parent=35 // pred_fallthru
          _
      $region36: #{conv_lstm_cell.1} parent=5 // pred_fallthru
        _
      %p8812 = scmp.le.s32.totalorder 2, %s18
      // Predicated region
      $region57: #{conv_lstm_cell.1} parent=5 // pred_check
        %p8813 = pneg %p8812
      $region58: #{conv_lstm_cell.1} parent=5 // pred_check_branch
        %8815 = sbr.rel (%p8813) target = $region60
      $region59: #{conv_lstm_cell.1} parent=5 // pred_region
        %s8816 = ssub.s32 %s18, 2
        // Predicated region
        $region61: #{conv_lstm_cell.1} parent=59 // pred_check
          %p8817 = pneg %p178
        $region62: #{conv_lstm_cell.1} parent=59 // pred_check_branch
          %8819 = sbr.rel (%p8817) target = $region64
        $region63: #{conv_lstm_cell.1} parent=59 // pred_region
          %s8820 = sand.u32 %s163, 1
          %s8821 = scalar_lea.sflag [#allocation4], %s8820
          %s8822 = sand.u32 %s163, 1
          %s8823 = smul.addr %s8822, 256
          %s8824 = scalar_lea.vmem [#allocation3], %s8823
          %8825 = dma.done %s8821, 4096
        $region64: #{conv_lstm_cell.1} parent=59 // pred_fallthru
          _
        // Predicated region
        $region65: #{conv_lstm_cell.1} parent=59 // pred_check
          %p8826 = pneg %p206
        $region66: #{conv_lstm_cell.1} parent=59 // pred_check_branch
          %8828 = sbr.rel (%p8826) target = $region68
        $region67: #{conv_lstm_cell.1} parent=59 // pred_region
          %s8829 = sand.u32 %s191, 1
          %s8830 = scalar_lea.sflag [#allocation6], %s8829
          %s8831 = sand.u32 %s191, 1
          %s8832 = smul.addr %s8831, 256
          %s8833 = scalar_lea.vmem [#allocation5], %s8832
          %8834 = dma.done %s8830, 4096
        $region68: #{conv_lstm_cell.1} parent=59 // pred_fallthru
          _
      $region60: #{conv_lstm_cell.1} parent=5 // pred_fallthru
        _
    $region6: #{conv_lstm_cell.1} parent=1 // loop_footer
      %s22 = sadd.s32 1, %s18
    $region7: #{conv_lstm_cell.1} parent=1 // loop_footer_branch
      %17 = sbr.rel target = $region3
    $region8: #{conv_lstm_cell.1} parent=1 // loop_exit
      _
    %8835 = vsyncpa [#allocation4], 1
    %s8836 = scalar_lea.sflag [#allocation4], 1
    %8837 = vsyncpa %s8836, 1
    %8838 = vsyncpa [#allocation6], 1
    %s8839 = scalar_lea.sflag [#allocation6], 1
    %8840 = vsyncpa %s8839, 1

</llo_original>
